<compile_context>
chip_gen: v6e
topology: v6e:2x2x1
jax: 0.10.0
libtpu: 0.0.40
codegen_flags: <defaults>
</compile_context>

<pallas_src>
import functools

import numpy as np
import jax
import jax.numpy as jnp
from jax import lax
from jax.experimental import pallas as pl
from jax.experimental.pallas import tpu as pltpu

EPS = 1e-5
TM = 256  # lanes (flattened spatial positions) per output tile


# ----------------------------------------------------------------------------
# Flat layout helpers: (C, Mg) with M = B * (H+2) * (W+2), zero spatial pads.
# flat index of logical (b, y, x) = b*Hp*Wp + (y+1)*Wp + (x+1)
# ----------------------------------------------------------------------------
def make_layout(B, H, W):
    Hp, Wp = H + 2, W + 2
    Ms = B * Hp * Wp
    Mg = pl.cdiv(Ms, TM) * TM
    m = np.zeros((B, Hp, Wp), np.float32)
    m[:, 1:H + 1, 1:W + 1] = 1.0
    mask = np.zeros((1, Mg), np.float32)
    mask[0, :Ms] = m.reshape(-1)
    return dict(B=B, H=H, W=W, Hp=Hp, Wp=Wp, Ms=Ms, Mg=Mg, nM=Mg // TM,
                mask=jnp.asarray(mask))


def to_flat(x_cbhw, ly):
    """(C, B, H, W) float -> (C, Mg) bf16 in flat padded layout."""
    C = x_cbhw.shape[0]
    xp = jnp.pad(x_cbhw.astype(jnp.float32), ((0, 0), (0, 0), (1, 1), (1, 1)))
    flat = xp.reshape(C, ly['Ms'])
    flat = jnp.pad(flat, ((0, 0), (0, ly['Mg'] - ly['Ms'])))
    return flat.astype(jnp.bfloat16)


def from_flat(a, ly):
    """(C, Mg) -> (C, B, H, W) float32 (interior positions only)."""
    C = a.shape[0]
    x = a[:, :ly['Ms']].astype(jnp.float32).reshape(C, ly['B'], ly['Hp'], ly['Wp'])
    return x[:, :, 1:ly['H'] + 1, 1:ly['W'] + 1]


# ----------------------------------------------------------------------------
# Pallas kernels
# ----------------------------------------------------------------------------
def _conv_kernel(*refs, shifts, relu, n_add, halo):
    """Fused conv (tap-accumulated matmuls) + bias + addends + ReLU + pad mask.

    Operands: [xl, xc, xr | xc], w (T,O,Cin), bias (O,1), mask (1,TM),
              addends* (O,TM), out (O,TM).
    """
    if halo:
        xl_ref, xc_ref, xr_ref = refs[0], refs[1], refs[2]
        idx = 3
    else:
        xc_ref = refs[0]
        idx = 1
    w_ref, b_ref, m_ref = refs[idx], refs[idx + 1], refs[idx + 2]
    add_refs = refs[idx + 3: idx + 3 + n_add]
    o_ref = refs[-1]

    xc = xc_ref[...]
    if halo:
        xl = xl_ref[...]
        xr = xr_ref[...]

    def window(s):
        # flat window [i*TM + s, i*TM + s + TM) built from current + halo blocks
        if s == 0:
            return xc
        if s > 0:
            return jnp.concatenate([xc[:, s:], xr[:, :s]], axis=1)
        return jnp.concatenate([xl[:, s:], xc[:, :s]], axis=1)

    acc = None
    for t, s in enumerate(shifts):
        c = jnp.dot(w_ref[t], window(s), preferred_element_type=jnp.float32)
        acc = c if acc is None else acc + c

    y = acc + b_ref[...]
    for a_ref in add_refs:
        y = y + a_ref[...].astype(jnp.float32)
    if relu:
        y = jnp.maximum(y, 0.0)
    y = y * m_ref[...]          # zero the spatial-pad / tail positions
    o_ref[...] = y.astype(o_ref.dtype)


def _add_relu_kernel(a_ref, b_ref, o_ref):
    s = a_ref[...].astype(jnp.float32) + b_ref[...].astype(jnp.float32)
    o_ref[...] = jnp.maximum(s, 0.0).astype(o_ref.dtype)


def add_relu_flat(a, b, ly):
    """relu(a + b) on flat-layout (C, Mg) bf16 tensors (lane-dense, tiled)."""
    C, Mg = a.shape
    return pl.pallas_call(
        _add_relu_kernel,
        out_shape=jax.ShapeDtypeStruct((C, Mg), jnp.bfloat16),
        grid=(ly['nM'],),
        in_specs=[pl.BlockSpec((C, TM), lambda i: (0, i)),
                  pl.BlockSpec((C, TM), lambda i: (0, i))],
        out_specs=pl.BlockSpec((C, TM), lambda i: (0, i)),
        compiler_params=pltpu.CompilerParams(dimension_semantics=("parallel",)),
    )(a, b)


def conv_flat(xf, ly, p, kh, kw, ph, pw, *, relu, addends=()):
    """Fused Conv(kh,kw)+folded-BN(+addends)(+ReLU) on flat layout.

    xf: (Cin, Mg) bf16; p: {'w': (O,Cin,kh,kw), 'scale': (O,), 'bias': (O,)}
    addends: extra (O, Mg) bf16 tensors added in the epilogue (before ReLU).
    returns (O, Mg) bf16.
    """
    Cin = xf.shape[0]
    O = p['w'].shape[0]
    Wp, nM, Mg = ly['Wp'], ly['nM'], ly['Mg']

    # Fold BN scale into the weights; keep only bias in the epilogue.
    wf = p['w'] * p['scale'][:, None, None, None]
    wt = jnp.transpose(wf, (2, 3, 0, 1)).reshape(kh * kw, O, Cin).astype(jnp.bfloat16)
    bias = p['bias'].reshape(O, 1).astype(jnp.float32)
    shifts = [(dy - ph) * Wp + (dx - pw) for dy in range(kh) for dx in range(kw)]
    halo = any(s != 0 for s in shifts)

    args, specs = [], []
    if halo:
        args += [xf, xf, xf]
        specs += [pl.BlockSpec((Cin, TM), lambda i: (0, jnp.maximum(i - 1, 0))),
                  pl.BlockSpec((Cin, TM), lambda i: (0, i)),
                  pl.BlockSpec((Cin, TM), lambda i: (0, jnp.minimum(i + 1, nM - 1)))]
    else:
        args += [xf]
        specs += [pl.BlockSpec((Cin, TM), lambda i: (0, i))]
    args += [wt, bias, ly['mask']]
    specs += [pl.BlockSpec((kh * kw, O, Cin), lambda i: (0, 0, 0)),
              pl.BlockSpec((O, 1), lambda i: (0, 0)),
              pl.BlockSpec((1, TM), lambda i: (0, i))]
    for a in addends:
        args.append(a)
        specs.append(pl.BlockSpec((O, TM), lambda i: (0, i)))

    kern = functools.partial(_conv_kernel, shifts=tuple(shifts), relu=relu,
                             n_add=len(addends), halo=halo)
    return pl.pallas_call(
        kern,
        out_shape=jax.ShapeDtypeStruct((O, Mg), jnp.bfloat16),
        grid=(nM,),
        in_specs=specs,
        out_specs=pl.BlockSpec((O, TM), lambda i: (0, i)),
        compiler_params=pltpu.CompilerParams(dimension_semantics=("parallel",)),
    )(*args)


# ----------------------------------------------------------------------------
# Adaptive average pool / bilinear(align_corners=True) as exact matrices (glue)
# ----------------------------------------------------------------------------
def adaptive_pool_matrix(in_size, out_size):
    P = np.zeros((out_size, in_size), np.float32)
    for i in range(out_size):
        s = (i * in_size) // out_size
        e = -((-(i + 1) * in_size) // out_size)  # ceil
        P[i, s:e] = 1.0 / (e - s)
    return jnp.asarray(P)


def bilinear_matrix(in_size, out_size):
    U = np.zeros((out_size, in_size), np.float32)
    if in_size == 1:
        U[:, 0] = 1.0
    elif out_size == 1:
        U[0, 0] = 1.0
    else:
        scale = (in_size - 1) / (out_size - 1)
        for i in range(out_size):
            src = i * scale
            lo = min(int(np.floor(src)), in_size - 1)
            hi = min(lo + 1, in_size - 1)
            frac = src - lo
            U[i, lo] += 1.0 - frac
            U[i, hi] += frac
    return jnp.asarray(U)


def _sep_resize_cb(x, Mh, Mw):      # x: (C, B, H, W)
    return jnp.einsum('oh,pw,cbhw->cbop', Mh, Mw, x)


def adaptive_avg_pool_cb(x, oh, ow):
    return _sep_resize_cb(x, adaptive_pool_matrix(x.shape[2], oh),
                          adaptive_pool_matrix(x.shape[3], ow))


def bilinear_resize_cb(x, oh, ow):
    return _sep_resize_cb(x, bilinear_matrix(x.shape[2], oh),
                          bilinear_matrix(x.shape[3], ow))


# ----------------------------------------------------------------------------
# Parameter init (deterministic, synthetic; BN in folded inference form)
# ----------------------------------------------------------------------------
def init_conv_bn(key, cin, cout, kh, kw):
    ks = jax.random.split(key, 5)
    fan_in = cin * kh * kw
    w = jax.random.normal(ks[0], (cout, cin, kh, kw), jnp.float32) / np.sqrt(fan_in)
    gamma = 1.0 + 0.1 * jax.random.normal(ks[1], (cout,), jnp.float32)
    beta = 0.1 * jax.random.normal(ks[2], (cout,), jnp.float32)
    mean = 0.1 * jax.random.normal(ks[3], (cout,), jnp.float32)
    var = 0.5 + jnp.abs(jax.random.normal(ks[4], (cout,), jnp.float32))
    scale = gamma / jnp.sqrt(var + EPS)
    bias = beta - mean * scale
    return {'w': w, 'scale': scale, 'bias': bias}


def init_conv_bias(key, cin, cout, kh, kw):
    ks = jax.random.split(key, 2)
    fan_in = cin * kh * kw
    w = jax.random.normal(ks[0], (cout, cin, kh, kw), jnp.float32) / np.sqrt(fan_in)
    b = 0.1 * jax.random.normal(ks[1], (cout,), jnp.float32)
    return {'w': w, 'scale': jnp.ones((cout,), jnp.float32), 'bias': b}


def init_strip_pooling(key, ic):
    ic4 = ic // 4
    layers = [
        ('conv1_1', ic, ic4, 1, 1), ('conv1_2', ic, ic4, 1, 1),
        ('conv2_0', ic4, ic4, 3, 3), ('conv2_1', ic4, ic4, 3, 3),
        ('conv2_2', ic4, ic4, 3, 3), ('conv2_3', ic4, ic4, 1, 3),
        ('conv2_4', ic4, ic4, 3, 1), ('conv2_5', ic4, ic4, 3, 3),
        ('conv2_6', ic4, ic4, 3, 3), ('conv3', 2 * ic4, ic, 1, 1),
    ]
    keys = jax.random.split(key, len(layers))
    return {name: init_conv_bn(k, ci, co, kh, kw)
            for k, (name, ci, co, kh, kw) in zip(keys, layers)}


def init_sp_head(key, in_channels, out_channels):
    inter = in_channels // 2
    k = jax.random.split(key, 5)
    return {
        'trans': init_conv_bn(k[0], in_channels, inter, 1, 1),
        'sp1': init_strip_pooling(k[1], inter),
        'sp2': init_strip_pooling(k[2], inter),
        'score1': init_conv_bn(k[3], inter, inter // 2, 3, 3),
        'score2': init_conv_bias(k[4], inter // 2, out_channels, 1, 1),
    }


# ----------------------------------------------------------------------------
# Forward passes (Pallas path, flat layout)
# ----------------------------------------------------------------------------
def strip_pooling_forward(xf, ly, p):
    C = xf.shape[0]
    ic4 = C // 4
    B, H, W = ly['B'], ly['H'], ly['W']

    # Fused conv1_1 + conv1_2 (shared 1x1 input): one matmul, concat output chans.
    p12 = {'w': jnp.concatenate([p['conv1_1']['w'], p['conv1_2']['w']], axis=0),
           'scale': jnp.concatenate([p['conv1_1']['scale'], p['conv1_2']['scale']]),
           'bias': jnp.concatenate([p['conv1_1']['bias'], p['conv1_2']['bias']])}
    x12 = conv_flat(xf, ly, p12, 1, 1, 0, 0, relu=True)      # (2*ic4, Mg)
    x1f, x2f = x12[:ic4], x12[ic4:]
    x1s, x2s = from_flat(x1f, ly), from_flat(x2f, ly)         # (ic4, B, H, W) f32

    # Pooled branches (pool / upsample are exact small matrix products, glue).
    ly20 = make_layout(B, 20, 20)
    c21 = conv_flat(to_flat(adaptive_avg_pool_cb(x1s, 20, 20), ly20), ly20,
                    p['conv2_1'], 3, 3, 1, 1, relu=False)
    x2_2 = bilinear_resize_cb(from_flat(c21, ly20), H, W)

    ly12 = make_layout(B, 12, 12)
    c22 = conv_flat(to_flat(adaptive_avg_pool_cb(x1s, 12, 12), ly12), ly12,
                    p['conv2_2'], 3, 3, 1, 1, relu=False)
    x2_3 = bilinear_resize_cb(from_flat(c22, ly12), H, W)

    lyrow = make_layout(B, 1, W)    # pool3 = AdaptiveAvgPool2d((1, None))
    c23 = conv_flat(to_flat(adaptive_avg_pool_cb(x2s, 1, W), lyrow), lyrow,
                    p['conv2_3'], 1, 3, 0, 1, relu=False)
    x2_4 = bilinear_resize_cb(from_flat(c23, lyrow), H, W)

    lycol = make_layout(B, H, 1)    # pool4 = AdaptiveAvgPool2d((None, 1))
    c24 = conv_flat(to_flat(adaptive_avg_pool_cb(x2s, H, 1), lycol), lycol,
                    p['conv2_4'], 3, 1, 1, 0, relu=False)
    x2_5 = bilinear_resize_cb(from_flat(c24, lycol), H, W)

    # y1 = relu(conv2_0(x1) + x2_2 + x2_3) -- merges fused into conv2_0 epilogue.
    y1 = conv_flat(x1f, ly, p['conv2_0'], 3, 3, 1, 1, relu=True,
                   addends=(to_flat(x2_2, ly), to_flat(x2_3, ly)))
    # y2 = relu(x2_5 + x2_4) -- lane-dense fused add kernel.
    y2 = add_relu_flat(to_flat(x2_5, ly), to_flat(x2_4, ly), ly)

    x1b = conv_flat(y1, ly, p['conv2_5'], 3, 3, 1, 1, relu=True)
    x2b = conv_flat(y2, ly, p['conv2_6'], 3, 3, 1, 1, relu=True)

    # out = relu(x + conv3(cat[x1b, x2b])) -- residual + ReLU fused into conv3.
    cat = jnp.concatenate([x1b, x2b], axis=0)
    return conv_flat(cat, ly, p['conv3'], 1, 1, 0, 0, relu=True, addends=(xf,))


def sp_head_forward(x_nchw, params):
    B, _, H, W = x_nchw.shape
    ly = make_layout(B, H, W)
    x = to_flat(jnp.transpose(x_nchw, (1, 0, 2, 3)), ly)      # NCHW -> (C, Mg)
    x = conv_flat(x, ly, params['trans'], 1, 1, 0, 0, relu=True)
    x = strip_pooling_forward(x, ly, params['sp1'])
    x = strip_pooling_forward(x, ly, params['sp2'])
    y = conv_flat(x, ly, params['score1'], 3, 3, 1, 1, relu=True)
    # Dropout2d(0.1) is identity at inference time.
    y = conv_flat(y, ly, params['score2'], 1, 1, 0, 0, relu=False)
    out = from_flat(y, ly)                                    # (Cout, B, H, W)
    return jnp.transpose(out, (1, 0, 2, 3))                   # -> NCHW f32


# ----------------------------------------------------------------------------
# Pure-JAX f32 reference (for correctness check of the Pallas path)
# ----------------------------------------------------------------------------
def _ref_conv(x, p, pad, relu):
    y = lax.conv_general_dilated(x, p['w'], (1, 1),
                                 ((pad[0], pad[0]), (pad[1], pad[1])),
                                 dimension_numbers=('NCHW', 'OIHW', 'NCHW'))
    y = y * p['scale'][None, :, None, None] + p['bias'][None, :, None, None]
    return jnp.maximum(y, 0.0) if relu else y


def _ref_resize(x, Mh, Mw):     # x: (B, C, H, W)
    return jnp.einsum('oh,pw,bchw->bcop', Mh, Mw, x)


def _ref_pool(x, oh, ow):
    return _ref_resize(x, adaptive_pool_matrix(x.shape[2], oh),
                       adaptive_pool_matrix(x.shape[3], ow))


def _ref_up(x, oh, ow):
    return _ref_resize(x, bilinear_matrix(x.shape[2], oh),
                       bilinear_matrix(x.shape[3], ow))


def _ref_strip_pooling(x, p):
    _, _, H, W = x.shape
    x1 = _ref_conv(x, p['conv1_1'], (0, 0), True)
    x2 = _ref_conv(x, p['conv1_2'], (0, 0), True)
    x2_1 = _ref_conv(x1, p['conv2_0'], (1, 1), False)
    x2_2 = _ref_up(_ref_conv(_ref_pool(x1, 20, 20), p['conv2_1'], (1, 1), False), H, W)
    x2_3 = _ref_up(_ref_conv(_ref_pool(x1, 12, 12), p['conv2_2'], (1, 1), False), H, W)
    x2_4 = _ref_up(_ref_conv(_ref_pool(x2, 1, W), p['conv2_3'], (0, 1), False), H, W)
    x2_5 = _ref_up(_ref_conv(_ref_pool(x2, H, 1), p['conv2_4'], (1, 0), False), H, W)
    y1 = _ref_conv(jnp.maximum(x2_1 + x2_2 + x2_3, 0.0), p['conv2_5'], (1, 1), True)
    y2 = _ref_conv(jnp.maximum(x2_5 + x2_4, 0.0), p['conv2_6'], (1, 1), True)
    out = _ref_conv(jnp.concatenate([y1, y2], axis=1), p['conv3'], (0, 0), False)
    return jnp.maximum(x + out, 0.0)


def ref_sp_head(x, params):
    x = _ref_conv(x, params['trans'], (0, 0), True)
    x = _ref_strip_pooling(x, params['sp1'])
    x = _ref_strip_pooling(x, params['sp2'])
    y = _ref_conv(x, params['score1'], (1, 1), True)
    return _ref_conv(y, params['score2'], (0, 0), False)


if __name__ == "__main__":
    key = jax.random.PRNGKey(0)
    kx, kp = jax.random.split(key)
    B, Cin, H, W = 2, 32, 16, 16
    Cout = 8
    x = jax.random.normal(kx, (B, Cin, H, W), jnp.float32)
    params = init_sp_head(kp, Cin, Cout)

    out = jax.block_until_ready(jax.jit(sp_head_forward)(x, params))
    assert out.shape == (B, Cout, H, W), out.shape
    assert bool(jnp.all(jnp.isfinite(out)))

    # Correctness check vs. pure-JAX f32 reference (loose tolerance: the Pallas
    # path stores activations / MXU inputs in bf16 with f32 accumulation).
    ref = jax.block_until_ready(jax.jit(ref_sp_head)(x, params))
    err = float(jnp.max(jnp.abs(out - ref)))
    scale = float(jnp.max(jnp.abs(ref)))
    assert err <= 0.12 * scale + 0.05, f"mismatch: err={err}, scale={scale}"

    print("KERNEL_OK")
</pallas_src>

<mosaic_0001>
module attributes {stable_mosaic.version = 11 : i64} {
  func.func @_conv_kernel(%arg0: i32, %arg1: memref<32x256xbf16, #tpu.memory_space<vmem>>, %arg2: memref<1x16x32xbf16, #tpu.memory_space<vmem>>, %arg3: memref<16x1xf32, #tpu.memory_space<vmem>>, %arg4: memref<1x256xf32, #tpu.memory_space<vmem>>, %arg5: memref<16x256xbf16, #tpu.memory_space<vmem>>) attributes {dimension_semantics = [#tpu.dimension_semantics<parallel>], iteration_bounds = array<i64: 3>, scalar_prefetch = 0 : i64, scratch_operands = 0 : i64, tpu.core_type = #tpu.core_type<tc>, window_params = [{transform_indices = @transform_0, window_bounds = array<i64: 32, 256>}, {pipeline_mode = #tpu.pipeline_mode<synchronous>, transform_indices = @transform_1, window_bounds = array<i64: 1, 16, 32>}, {pipeline_mode = #tpu.pipeline_mode<synchronous>, transform_indices = @transform_2, window_bounds = array<i64: 16, 1>}, {transform_indices = @transform_3, window_bounds = array<i64: 1, 256>}, {transform_indices = @transform_4, window_bounds = array<i64: 16, 256>}]} {
    %c0 = arith.constant 0 : index
    %c0_0 = arith.constant 0 : index
    %0 = vector.load %arg1[%c0, %c0_0] : memref<32x256xbf16, #tpu.memory_space<vmem>>, vector<32x256xbf16>
    %c0_1 = arith.constant 0 : index
    %c0_2 = arith.constant 0 : index
    %c0_3 = arith.constant 0 : index
    %1 = vector.load %arg2[%c0_1, %c0_2, %c0_3] : memref<1x16x32xbf16, #tpu.memory_space<vmem>>, vector<1x16x32xbf16>
    %2 = vector.shape_cast %1 : vector<1x16x32xbf16> to vector<16x32xbf16>
    %cst = arith.constant dense<0.000000e+00> : vector<16x256xf32>
    %3 = tpu.matmul %2, %0, %cst {dimension_numbers = #tpu.dot_dimension_numbers<[1], [0], [0], [1], [0, 0, 1, 1], [], []>} : vector<16x32xbf16>, vector<32x256xbf16>, vector<16x256xf32> -> vector<16x256xf32>
    %c0_4 = arith.constant 0 : index
    %c0_5 = arith.constant 0 : index
    %4 = vector.load %arg3[%c0_4, %c0_5] : memref<16x1xf32, #tpu.memory_space<vmem>>, vector<16x1xf32>
    %5 = vector.broadcast %4 : vector<16x1xf32> to vector<16x256xf32>
    %6 = arith.addf %3, %5 : vector<16x256xf32>
    %cst_6 = arith.constant 0.000000e+00 : f32
    %7 = vector.broadcast %cst_6 : f32 to vector<16x256xf32>
    %8 = arith.maximumf %6, %7 : vector<16x256xf32>
    %c0_7 = arith.constant 0 : index
    %c0_8 = arith.constant 0 : index
    %9 = vector.load %arg4[%c0_7, %c0_8] : memref<1x256xf32, #tpu.memory_space<vmem>>, vector<1x256xf32>
    %10 = vector.broadcast %9 : vector<1x256xf32> to vector<16x256xf32>
    %11 = arith.mulf %8, %10 : vector<16x256xf32>
    %12 = arith.truncf %11 : vector<16x256xf32> to vector<16x256xbf16>
    %c0_9 = arith.constant 0 : index
    %c0_10 = arith.constant 0 : index
    %13 = vector.load %arg5[%c0_9, %c0_10] : memref<16x256xbf16, #tpu.memory_space<vmem>>, vector<16x256xbf16>
    tpu.vector_store %arg5[%c0_9, %c0_10], %12 {strides = array<i32>} : memref<16x256xbf16, #tpu.memory_space<vmem>>, vector<16x256xbf16>,
    return
  }
  func.func @transform_0(%arg0: i32) -> (i32, i32) {
    %c0_i32 = arith.constant 0 : i32
    %c0_i32_0 = arith.constant 0 : i32
    return %c0_i32, %arg0 : i32, i32
  }
  func.func @transform_1(%arg0: i32) -> (i32, i32, i32) {
    %c0_i32 = arith.constant 0 : i32
    %c0_i32_0 = arith.constant 0 : i32
    %c0_i32_1 = arith.constant 0 : i32
    %c0_i32_2 = arith.constant 0 : i32
    return %c0_i32, %c0_i32_0, %c0_i32_1 : i32, i32, i32
  }
  func.func @transform_2(%arg0: i32) -> (i32, i32) {
    %c0_i32 = arith.constant 0 : i32
    %c0_i32_0 = arith.constant 0 : i32
    %c0_i32_1 = arith.constant 0 : i32
    return %c0_i32, %c0_i32_0 : i32, i32
  }
  func.func @transform_3(%arg0: i32) -> (i32, i32) {
    %c0_i32 = arith.constant 0 : i32
    %c0_i32_0 = arith.constant 0 : i32
    return %c0_i32, %arg0 : i32, i32
  }
  func.func @transform_4(%arg0: i32) -> (i32, i32) {
    %c0_i32 = arith.constant 0 : i32
    %c0_i32_0 = arith.constant 0 : i32
    return %c0_i32, %arg0 : i32, i32
  }
}

module attributes {stable_mosaic.version = 11 : i64} {
  func.func @_conv_kernel(%arg0: i32, %arg1: memref<16x256xbf16, #tpu.memory_space<vmem>>, %arg2: memref<1x8x16xbf16, #tpu.memory_space<vmem>>, %arg3: memref<8x1xf32, #tpu.memory_space<vmem>>, %arg4: memref<1x256xf32, #tpu.memory_space<vmem>>, %arg5: memref<8x256xbf16, #tpu.memory_space<vmem>>) attributes {dimension_semantics = [#tpu.dimension_semantics<parallel>], iteration_bounds = array<i64: 3>, scalar_prefetch = 0 : i64, scratch_operands = 0 : i64, tpu.core_type = #tpu.core_type<tc>, window_params = [{transform_indices = @transform_0, window_bounds = array<i64: 16, 256>}, {pipeline_mode = #tpu.pipeline_mode<synchronous>, transform_indices = @transform_1, window_bounds = array<i64: 1, 8, 16>}, {pipeline_mode = #tpu.pipeline_mode<synchronous>, transform_indices = @transform_2, window_bounds = array<i64: 8, 1>}, {transform_indices = @transform_3, window_bounds = array<i64: 1, 256>}, {transform_indices = @transform_4, window_bounds = array<i64: 8, 256>}]} {
    %c0 = arith.constant 0 : index
    %c0_0 = arith.constant 0 : index
    %0 = vector.load %arg1[%c0, %c0_0] : memref<16x256xbf16, #tpu.memory_space<vmem>>, vector<16x256xbf16>
    %c0_1 = arith.constant 0 : index
    %c0_2 = arith.constant 0 : index
    %c0_3 = arith.constant 0 : index
    %1 = vector.load %arg2[%c0_1, %c0_2, %c0_3] : memref<1x8x16xbf16, #tpu.memory_space<vmem>>, vector<1x8x16xbf16>
    %2 = vector.shape_cast %1 : vector<1x8x16xbf16> to vector<8x16xbf16>
    %cst = arith.constant dense<0.000000e+00> : vector<8x256xf32>
    %3 = tpu.matmul %2, %0, %cst {dimension_numbers = #tpu.dot_dimension_numbers<[1], [0], [0], [1], [0, 0, 1, 1], [], []>} : vector<8x16xbf16>, vector<16x256xbf16>, vector<8x256xf32> -> vector<8x256xf32>
    %c0_4 = arith.constant 0 : index
    %c0_5 = arith.constant 0 : index
    %4 = vector.load %arg3[%c0_4, %c0_5] : memref<8x1xf32, #tpu.memory_space<vmem>>, vector<8x1xf32>
    %5 = vector.broadcast %4 : vector<8x1xf32> to vector<8x256xf32>
    %6 = arith.addf %3, %5 : vector<8x256xf32>
    %cst_6 = arith.constant 0.000000e+00 : f32
    %7 = vector.broadcast %cst_6 : f32 to vector<8x256xf32>
    %8 = arith.maximumf %6, %7 : vector<8x256xf32>
    %c0_7 = arith.constant 0 : index
    %c0_8 = arith.constant 0 : index
    %9 = vector.load %arg4[%c0_7, %c0_8] : memref<1x256xf32, #tpu.memory_space<vmem>>, vector<1x256xf32>
    %10 = vector.broadcast %9 : vector<1x256xf32> to vector<8x256xf32>
    %11 = arith.mulf %8, %10 : vector<8x256xf32>
    %12 = arith.truncf %11 : vector<8x256xf32> to vector<8x256xbf16>
    %c0_9 = arith.constant 0 : index
    %c0_10 = arith.constant 0 : index
    %13 = vector.load %arg5[%c0_9, %c0_10] : memref<8x256xbf16, #tpu.memory_space<vmem>>, vector<8x256xbf16>
    tpu.vector_store %arg5[%c0_9, %c0_10], %12 {strides = array<i32>} : memref<8x256xbf16, #tpu.memory_space<vmem>>, vector<8x256xbf16>,
    return
  }
  func.func @transform_0(%arg0: i32) -> (i32, i32) {
    %c0_i32 = arith.constant 0 : i32
    %c0_i32_0 = arith.constant 0 : i32
    return %c0_i32, %arg0 : i32, i32
  }
  func.func @transform_1(%arg0: i32) -> (i32, i32, i32) {
    %c0_i32 = arith.constant 0 : i32
    %c0_i32_0 = arith.constant 0 : i32
    %c0_i32_1 = arith.constant 0 : i32
    %c0_i32_2 = arith.constant 0 : i32
    return %c0_i32, %c0_i32_0, %c0_i32_1 : i32, i32, i32
  }
  func.func @transform_2(%arg0: i32) -> (i32, i32) {
    %c0_i32 = arith.constant 0 : i32
    %c0_i32_0 = arith.constant 0 : i32
    %c0_i32_1 = arith.constant 0 : i32
    return %c0_i32, %c0_i32_0 : i32, i32
  }
  func.func @transform_3(%arg0: i32) -> (i32, i32) {
    %c0_i32 = arith.constant 0 : i32
    %c0_i32_0 = arith.constant 0 : i32
    return %c0_i32, %arg0 : i32, i32
  }
  func.func @transform_4(%arg0: i32) -> (i32, i32) {
    %c0_i32 = arith.constant 0 : i32
    %c0_i32_0 = arith.constant 0 : i32
    return %c0_i32, %arg0 : i32, i32
  }
}

module attributes {stable_mosaic.version = 11 : i64} {
  func.func @_conv_kernel(%arg0: i32, %arg1: memref<4x256xbf16, #tpu.memory_space<vmem>>, %arg2: memref<4x256xbf16, #tpu.memory_space<vmem>>, %arg3: memref<4x256xbf16, #tpu.memory_space<vmem>>, %arg4: memref<9x4x4xbf16, #tpu.memory_space<vmem>>, %arg5: memref<4x1xf32, #tpu.memory_space<vmem>>, %arg6: memref<1x256xf32, #tpu.memory_space<vmem>>, %arg7: memref<4x256xbf16, #tpu.memory_space<vmem>>) attributes {dimension_semantics = [#tpu.dimension_semantics<parallel>], iteration_bounds = array<i64: 4>, scalar_prefetch = 0 : i64, scratch_operands = 0 : i64, tpu.core_type = #tpu.core_type<tc>, window_params = [{transform_indices = @transform_0, window_bounds = array<i64: 4, 256>}, {transform_indices = @transform_1, window_bounds = array<i64: 4, 256>}, {transform_indices = @transform_2, window_bounds = array<i64: 4, 256>}, {pipeline_mode = #tpu.pipeline_mode<synchronous>, transform_indices = @transform_3, window_bounds = array<i64: 9, 4, 4>}, {pipeline_mode = #tpu.pipeline_mode<synchronous>, transform_indices = @transform_4, window_bounds = array<i64: 4, 1>}, {transform_indices = @transform_5, window_bounds = array<i64: 1, 256>}, {transform_indices = @transform_6, window_bounds = array<i64: 4, 256>}]} {
    %c0 = arith.constant 0 : index
    %c0_0 = arith.constant 0 : index
    %0 = vector.load %arg2[%c0, %c0_0] : memref<4x256xbf16, #tpu.memory_space<vmem>>, vector<4x256xbf16>
    %c0_1 = arith.constant 0 : index
    %c0_2 = arith.constant 0 : index
    %1 = vector.load %arg1[%c0_1, %c0_2] : memref<4x256xbf16, #tpu.memory_space<vmem>>, vector<4x256xbf16>
    %c0_3 = arith.constant 0 : index
    %c0_4 = arith.constant 0 : index
    %2 = vector.load %arg3[%c0_3, %c0_4] : memref<4x256xbf16, #tpu.memory_space<vmem>>, vector<4x256xbf16>
    %c0_5 = arith.constant 0 : index
    %c0_6 = arith.constant 0 : index
    %c0_7 = arith.constant 0 : index
    %3 = vector.load %arg4[%c0_5, %c0_6, %c0_7] : memref<9x4x4xbf16, #tpu.memory_space<vmem>>, vector<1x4x4xbf16>
    %4 = vector.shape_cast %3 : vector<1x4x4xbf16> to vector<4x4xbf16>
    %5 = vector.extract_strided_slice %1 {offsets = [0, 233], sizes = [4, 23], strides = [1, 1]} : vector<4x256xbf16> to vector<4x23xbf16>
    %6 = vector.extract_strided_slice %0 {offsets = [0, 0], sizes = [4, 233], strides = [1, 1]} : vector<4x256xbf16> to vector<4x233xbf16>
    %7 = tpu.concatenate %5, %6 in 1 : vector<4x23xbf16>, vector<4x233xbf16> -> vector<4x256xbf16>
    %cst = arith.constant dense<0.000000e+00> : vector<4x256xf32>
    %8 = tpu.matmul %4, %7, %cst {dimension_numbers = #tpu.dot_dimension_numbers<[1], [0], [0], [1], [0, 0, 1, 1], [], []>} : vector<4x4xbf16>, vector<4x256xbf16>, vector<4x256xf32> -> vector<4x256xf32>
    %c1 = arith.constant 1 : index
    %c0_8 = arith.constant 0 : index
    %c0_9 = arith.constant 0 : index
    %9 = vector.load %arg4[%c1, %c0_8, %c0_9] : memref<9x4x4xbf16, #tpu.memory_space<vmem>>, vector<1x4x4xbf16>
    %10 = vector.shape_cast %9 : vector<1x4x4xbf16> to vector<4x4xbf16>
    %11 = vector.extract_strided_slice %1 {offsets = [0, 234], sizes = [4, 22], strides = [1, 1]} : vector<4x256xbf16> to vector<4x22xbf16>
    %12 = vector.extract_strided_slice %0 {offsets = [0, 0], sizes = [4, 234], strides = [1, 1]} : vector<4x256xbf16> to vector<4x234xbf16>
    %13 = tpu.concatenate %11, %12 in 1 : vector<4x22xbf16>, vector<4x234xbf16> -> vector<4x256xbf16>
    %cst_10 = arith.constant dense<0.000000e+00> : vector<4x256xf32>
    %14 = tpu.matmul %10, %13, %cst_10 {dimension_numbers = #tpu.dot_dimension_numbers<[1], [0], [0], [1], [0, 0, 1, 1], [], []>} : vector<4x4xbf16>, vector<4x256xbf16>, vector<4x256xf32> -> vector<4x256xf32>
    %15 = arith.addf %8, %14 : vector<4x256xf32>
    %c2 = arith.constant 2 : index
    %c0_11 = arith.constant 0 : index
    %c0_12 = arith.constant 0 : index
    %16 = vector.load %arg4[%c2, %c0_11, %c0_12] : memref<9x4x4xbf16, #tpu.memory_space<vmem>>, vector<1x4x4xbf16>
    %17 = vector.shape_cast %16 : vector<1x4x4xbf16> to vector<4x4xbf16>
    %18 = vector.extract_strided_slice %1 {offsets = [0, 235], sizes = [4, 21], strides = [1, 1]} : vector<4x256xbf16> to vector<4x21xbf16>
    %19 = vector.extract_strided_slice %0 {offsets = [0, 0], sizes = [4, 235], strides = [1, 1]} : vector<4x256xbf16> to vector<4x235xbf16>
    %20 = tpu.concatenate %18, %19 in 1 : vector<4x21xbf16>, vector<4x235xbf16> -> vector<4x256xbf16>
    %cst_13 = arith.constant dense<0.000000e+00> : vector<4x256xf32>
    %21 = tpu.matmul %17, %20, %cst_13 {dimension_numbers = #tpu.dot_dimension_numbers<[1], [0], [0], [1], [0, 0, 1, 1], [], []>} : vector<4x4xbf16>, vector<4x256xbf16>, vector<4x256xf32> -> vector<4x256xf32>
    %22 = arith.addf %15, %21 : vector<4x256xf32>
    %c3 = arith.constant 3 : index
    %c0_14 = arith.constant 0 : index
    %c0_15 = arith.constant 0 : index
    %23 = vector.load %arg4[%c3, %c0_14, %c0_15] : memref<9x4x4xbf16, #tpu.memory_space<vmem>>, vector<1x4x4xbf16>
    %24 = vector.shape_cast %23 : vector<1x4x4xbf16> to vector<4x4xbf16>
    %25 = vector.extract_strided_slice %1 {offsets = [0, 255], sizes = [4, 1], strides = [1, 1]} : vector<4x256xbf16> to vector<4x1xbf16>
    %26 = vector.extract_strided_slice %0 {offsets = [0, 0], sizes = [4, 255], strides = [1, 1]} : vector<4x256xbf16> to vector<4x255xbf16>
    %27 = tpu.concatenate %25, %26 in 1 : vector<4x1xbf16>, vector<4x255xbf16> -> vector<4x256xbf16>
    %cst_16 = arith.constant dense<0.000000e+00> : vector<4x256xf32>
    %28 = tpu.matmul %24, %27, %cst_16 {dimension_numbers = #tpu.dot_dimension_numbers<[1], [0], [0], [1], [0, 0, 1, 1], [], []>} : vector<4x4xbf16>, vector<4x256xbf16>, vector<4x256xf32> -> vector<4x256xf32>
    %29 = arith.addf %22, %28 : vector<4x256xf32>
    %c4 = arith.constant 4 : index
    %c0_17 = arith.constant 0 : index
    %c0_18 = arith.constant 0 : index
    %30 = vector.load %arg4[%c4, %c0_17, %c0_18] : memref<9x4x4xbf16, #tpu.memory_space<vmem>>, vector<1x4x4xbf16>
    %31 = vector.shape_cast %30 : vector<1x4x4xbf16> to vector<4x4xbf16>
    %cst_19 = arith.constant dense<0.000000e+00> : vector<4x256xf32>
    %32 = tpu.matmul %31, %0, %cst_19 {dimension_numbers = #tpu.dot_dimension_numbers<[1], [0], [0], [1], [0, 0, 1, 1], [], []>} : vector<4x4xbf16>, vector<4x256xbf16>, vector<4x256xf32> -> vector<4x256xf32>
    %33 = arith.addf %29, %32 : vector<4x256xf32>
    %c5 = arith.constant 5 : index
    %c0_20 = arith.constant 0 : index
    %c0_21 = arith.constant 0 : index
    %34 = vector.load %arg4[%c5, %c0_20, %c0_21] : memref<9x4x4xbf16, #tpu.memory_space<vmem>>, vector<1x4x4xbf16>
    %35 = vector.shape_cast %34 : vector<1x4x4xbf16> to vector<4x4xbf16>
    %36 = vector.extract_strided_slice %0 {offsets = [0, 1], sizes = [4, 255], strides = [1, 1]} : vector<4x256xbf16> to vector<4x255xbf16>
    %37 = vector.extract_strided_slice %2 {offsets = [0, 0], sizes = [4, 1], strides = [1, 1]} : vector<4x256xbf16> to vector<4x1xbf16>
    %38 = tpu.concatenate %36, %37 in 1 : vector<4x255xbf16>, vector<4x1xbf16> -> vector<4x256xbf16>
    %cst_22 = arith.constant dense<0.000000e+00> : vector<4x256xf32>
    %39 = tpu.matmul %35, %38, %cst_22 {dimension_numbers = #tpu.dot_dimension_numbers<[1], [0], [0], [1], [0, 0, 1, 1], [], []>} : vector<4x4xbf16>, vector<4x256xbf16>, vector<4x256xf32> -> vector<4x256xf32>
    %40 = arith.addf %33, %39 : vector<4x256xf32>
    %c6 = arith.constant 6 : index
    %c0_23 = arith.constant 0 : index
    %c0_24 = arith.constant 0 : index
    %41 = vector.load %arg4[%c6, %c0_23, %c0_24] : memref<9x4x4xbf16, #tpu.memory_space<vmem>>, vector<1x4x4xbf16>
    %42 = vector.shape_cast %41 : vector<1x4x4xbf16> to vector<4x4xbf16>
    %43 = vector.extract_strided_slice %0 {offsets = [0, 21], sizes = [4, 235], strides = [1, 1]} : vector<4x256xbf16> to vector<4x235xbf16>
    %44 = vector.extract_strided_slice %2 {offsets = [0, 0], sizes = [4, 21], strides = [1, 1]} : vector<4x256xbf16> to vector<4x21xbf16>
    %45 = tpu.concatenate %43, %44 in 1 : vector<4x235xbf16>, vector<4x21xbf16> -> vector<4x256xbf16>
    %cst_25 = arith.constant dense<0.000000e+00> : vector<4x256xf32>
    %46 = tpu.matmul %42, %45, %cst_25 {dimension_numbers = #tpu.dot_dimension_numbers<[1], [0], [0], [1], [0, 0, 1, 1], [], []>} : vector<4x4xbf16>, vector<4x256xbf16>, vector<4x256xf32> -> vector<4x256xf32>
    %47 = arith.addf %40, %46 : vector<4x256xf32>
    %c7 = arith.constant 7 : index
    %c0_26 = arith.constant 0 : index
    %c0_27 = arith.constant 0 : index
    %48 = vector.load %arg4[%c7, %c0_26, %c0_27] : memref<9x4x4xbf16, #tpu.memory_space<vmem>>, vector<1x4x4xbf16>
    %49 = vector.shape_cast %48 : vector<1x4x4xbf16> to vector<4x4xbf16>
    %50 = vector.extract_strided_slice %0 {offsets = [0, 22], sizes = [4, 234], strides = [1, 1]} : vector<4x256xbf16> to vector<4x234xbf16>
    %51 = vector.extract_strided_slice %2 {offsets = [0, 0], sizes = [4, 22], strides = [1, 1]} : vector<4x256xbf16> to vector<4x22xbf16>
    %52 = tpu.concatenate %50, %51 in 1 : vector<4x234xbf16>, vector<4x22xbf16> -> vector<4x256xbf16>
    %cst_28 = arith.constant dense<0.000000e+00> : vector<4x256xf32>
    %53 = tpu.matmul %49, %52, %cst_28 {dimension_numbers = #tpu.dot_dimension_numbers<[1], [0], [0], [1], [0, 0, 1, 1], [], []>} : vector<4x4xbf16>, vector<4x256xbf16>, vector<4x256xf32> -> vector<4x256xf32>
    %54 = arith.addf %47, %53 : vector<4x256xf32>
    %c8 = arith.constant 8 : index
    %c0_29 = arith.constant 0 : index
    %c0_30 = arith.constant 0 : index
    %55 = vector.load %arg4[%c8, %c0_29, %c0_30] : memref<9x4x4xbf16, #tpu.memory_space<vmem>>, vector<1x4x4xbf16>
    %56 = vector.shape_cast %55 : vector<1x4x4xbf16> to vector<4x4xbf16>
    %57 = vector.extract_strided_slice %0 {offsets = [0, 23], sizes = [4, 233], strides = [1, 1]} : vector<4x256xbf16> to vector<4x233xbf16>
    %58 = vector.extract_strided_slice %2 {offsets = [0, 0], sizes = [4, 23], strides = [1, 1]} : vector<4x256xbf16> to vector<4x23xbf16>
    %59 = tpu.concatenate %57, %58 in 1 : vector<4x233xbf16>, vector<4x23xbf16> -> vector<4x256xbf16>
    %cst_31 = arith.constant dense<0.000000e+00> : vector<4x256xf32>
    %60 = tpu.matmul %56, %59, %cst_31 {dimension_numbers = #tpu.dot_dimension_numbers<[1], [0], [0], [1], [0, 0, 1, 1], [], []>} : vector<4x4xbf16>, vector<4x256xbf16>, vector<4x256xf32> -> vector<4x256xf32>
    %61 = arith.addf %54, %60 : vector<4x256xf32>
    %c0_32 = arith.constant 0 : index
    %c0_33 = arith.constant 0 : index
    %62 = vector.load %arg5[%c0_32, %c0_33] : memref<4x1xf32, #tpu.memory_space<vmem>>, vector<4x1xf32>
    %63 = vector.broadcast %62 : vector<4x1xf32> to vector<4x256xf32>
    %64 = arith.addf %61, %63 : vector<4x256xf32>
    %c0_34 = arith.constant 0 : index
    %c0_35 = arith.constant 0 : index
    %65 = vector.load %arg6[%c0_34, %c0_35] : memref<1x256xf32, #tpu.memory_space<vmem>>, vector<1x256xf32>
    %66 = vector.broadcast %65 : vector<1x256xf32> to vector<4x256xf32>
    %67 = arith.mulf %64, %66 : vector<4x256xf32>
    %68 = arith.truncf %67 : vector<4x256xf32> to vector<4x256xbf16>
    %c0_36 = arith.constant 0 : index
    %c0_37 = arith.constant 0 : index
    %69 = vector.load %arg7[%c0_36, %c0_37] : memref<4x256xbf16, #tpu.memory_space<vmem>>, vector<4x256xbf16>
    tpu.vector_store %arg7[%c0_36, %c0_37], %68 {strides = array<i32>} : memref<4x256xbf16, #tpu.memory_space<vmem>>, vector<4x256xbf16>,
    return
  }
  func.func @transform_0(%arg0: i32) -> (i32, i32) {
    %c1_i32 = arith.constant 1 : i32
    %0 = arith.subi %arg0, %c1_i32 : i32
    %c0_i32 = arith.constant 0 : i32
    %1 = arith.maxsi %0, %c0_i32 : i32
    %c0_i32_0 = arith.constant 0 : i32
    %c0_i32_1 = arith.constant 0 : i32
    return %c0_i32_0, %1 : i32, i32
  }
  func.func @transform_1(%arg0: i32) -> (i32, i32) {
    %c0_i32 = arith.constant 0 : i32
    %c0_i32_0 = arith.constant 0 : i32
    return %c0_i32, %arg0 : i32, i32
  }
  func.func @transform_2(%arg0: i32) -> (i32, i32) {
    %c1_i32 = arith.constant 1 : i32
    %0 = arith.addi %arg0, %c1_i32 : i32
    %c3_i32 = arith.constant 3 : i32
    %1 = arith.minsi %0, %c3_i32 : i32
    %c0_i32 = arith.constant 0 : i32
    %c0_i32_0 = arith.constant 0 : i32
    return %c0_i32, %1 : i32, i32
  }
  func.func @transform_3(%arg0: i32) -> (i32, i32, i32) {
    %c0_i32 = arith.constant 0 : i32
    %c0_i32_0 = arith.constant 0 : i32
    %c0_i32_1 = arith.constant 0 : i32
    %c0_i32_2 = arith.constant 0 : i32
    return %c0_i32, %c0_i32_0, %c0_i32_1 : i32, i32, i32
  }
  func.func @transform_4(%arg0: i32) -> (i32, i32) {
    %c0_i32 = arith.constant 0 : i32
    %c0_i32_0 = arith.constant 0 : i32
    %c0_i32_1 = arith.constant 0 : i32
    return %c0_i32, %c0_i32_0 : i32, i32
  }
  func.func @transform_5(%arg0: i32) -> (i32, i32) {
    %c0_i32 = arith.constant 0 : i32
    %c0_i32_0 = arith.constant 0 : i32
    return %c0_i32, %arg0 : i32, i32
  }
  func.func @transform_6(%arg0: i32) -> (i32, i32) {
    %c0_i32 = arith.constant 0 : i32
    %c0_i32_0 = arith.constant 0 : i32
    return %c0_i32, %arg0 : i32, i32
  }
}

module attributes {stable_mosaic.version = 11 : i64} {
  func.func @_conv_kernel(%arg0: i32, %arg1: memref<4x256xbf16, #tpu.memory_space<vmem>>, %arg2: memref<4x256xbf16, #tpu.memory_space<vmem>>, %arg3: memref<4x256xbf16, #tpu.memory_space<vmem>>, %arg4: memref<9x4x4xbf16, #tpu.memory_space<vmem>>, %arg5: memref<4x1xf32, #tpu.memory_space<vmem>>, %arg6: memref<1x256xf32, #tpu.memory_space<vmem>>, %arg7: memref<4x256xbf16, #tpu.memory_space<vmem>>) attributes {dimension_semantics = [#tpu.dimension_semantics<parallel>], iteration_bounds = array<i64: 2>, scalar_prefetch = 0 : i64, scratch_operands = 0 : i64, tpu.core_type = #tpu.core_type<tc>, window_params = [{transform_indices = @transform_0, window_bounds = array<i64: 4, 256>}, {transform_indices = @transform_1, window_bounds = array<i64: 4, 256>}, {transform_indices = @transform_2, window_bounds = array<i64: 4, 256>}, {pipeline_mode = #tpu.pipeline_mode<synchronous>, transform_indices = @transform_3, window_bounds = array<i64: 9, 4, 4>}, {pipeline_mode = #tpu.pipeline_mode<synchronous>, transform_indices = @transform_4, window_bounds = array<i64: 4, 1>}, {transform_indices = @transform_5, window_bounds = array<i64: 1, 256>}, {transform_indices = @transform_6, window_bounds = array<i64: 4, 256>}]} {
    %c0 = arith.constant 0 : index
    %c0_0 = arith.constant 0 : index
    %0 = vector.load %arg2[%c0, %c0_0] : memref<4x256xbf16, #tpu.memory_space<vmem>>, vector<4x256xbf16>
    %c0_1 = arith.constant 0 : index
    %c0_2 = arith.constant 0 : index
    %1 = vector.load %arg1[%c0_1, %c0_2] : memref<4x256xbf16, #tpu.memory_space<vmem>>, vector<4x256xbf16>
    %c0_3 = arith.constant 0 : index
    %c0_4 = arith.constant 0 : index
    %2 = vector.load %arg3[%c0_3, %c0_4] : memref<4x256xbf16, #tpu.memory_space<vmem>>, vector<4x256xbf16>
    %c0_5 = arith.constant 0 : index
    %c0_6 = arith.constant 0 : index
    %c0_7 = arith.constant 0 : index
    %3 = vector.load %arg4[%c0_5, %c0_6, %c0_7] : memref<9x4x4xbf16, #tpu.memory_space<vmem>>, vector<1x4x4xbf16>
    %4 = vector.shape_cast %3 : vector<1x4x4xbf16> to vector<4x4xbf16>
    %5 = vector.extract_strided_slice %1 {offsets = [0, 241], sizes = [4, 15], strides = [1, 1]} : vector<4x256xbf16> to vector<4x15xbf16>
    %6 = vector.extract_strided_slice %0 {offsets = [0, 0], sizes = [4, 241], strides = [1, 1]} : vector<4x256xbf16> to vector<4x241xbf16>
    %7 = tpu.concatenate %5, %6 in 1 : vector<4x15xbf16>, vector<4x241xbf16> -> vector<4x256xbf16>
    %cst = arith.constant dense<0.000000e+00> : vector<4x256xf32>
    %8 = tpu.matmul %4, %7, %cst {dimension_numbers = #tpu.dot_dimension_numbers<[1], [0], [0], [1], [0, 0, 1, 1], [], []>} : vector<4x4xbf16>, vector<4x256xbf16>, vector<4x256xf32> -> vector<4x256xf32>
    %c1 = arith.constant 1 : index
    %c0_8 = arith.constant 0 : index
    %c0_9 = arith.constant 0 : index
    %9 = vector.load %arg4[%c1, %c0_8, %c0_9] : memref<9x4x4xbf16, #tpu.memory_space<vmem>>, vector<1x4x4xbf16>
    %10 = vector.shape_cast %9 : vector<1x4x4xbf16> to vector<4x4xbf16>
    %11 = vector.extract_strided_slice %1 {offsets = [0, 242], sizes = [4, 14], strides = [1, 1]} : vector<4x256xbf16> to vector<4x14xbf16>
    %12 = vector.extract_strided_slice %0 {offsets = [0, 0], sizes = [4, 242], strides = [1, 1]} : vector<4x256xbf16> to vector<4x242xbf16>
    %13 = tpu.concatenate %11, %12 in 1 : vector<4x14xbf16>, vector<4x242xbf16> -> vector<4x256xbf16>
    %cst_10 = arith.constant dense<0.000000e+00> : vector<4x256xf32>
    %14 = tpu.matmul %10, %13, %cst_10 {dimension_numbers = #tpu.dot_dimension_numbers<[1], [0], [0], [1], [0, 0, 1, 1], [], []>} : vector<4x4xbf16>, vector<4x256xbf16>, vector<4x256xf32> -> vector<4x256xf32>
    %15 = arith.addf %8, %14 : vector<4x256xf32>
    %c2 = arith.constant 2 : index
    %c0_11 = arith.constant 0 : index
    %c0_12 = arith.constant 0 : index
    %16 = vector.load %arg4[%c2, %c0_11, %c0_12] : memref<9x4x4xbf16, #tpu.memory_space<vmem>>, vector<1x4x4xbf16>
    %17 = vector.shape_cast %16 : vector<1x4x4xbf16> to vector<4x4xbf16>
    %18 = vector.extract_strided_slice %1 {offsets = [0, 243], sizes = [4, 13], strides = [1, 1]} : vector<4x256xbf16> to vector<4x13xbf16>
    %19 = vector.extract_strided_slice %0 {offsets = [0, 0], sizes = [4, 243], strides = [1, 1]} : vector<4x256xbf16> to vector<4x243xbf16>
    %20 = tpu.concatenate %18, %19 in 1 : vector<4x13xbf16>, vector<4x243xbf16> -> vector<4x256xbf16>
    %cst_13 = arith.constant dense<0.000000e+00> : vector<4x256xf32>
    %21 = tpu.matmul %17, %20, %cst_13 {dimension_numbers = #tpu.dot_dimension_numbers<[1], [0], [0], [1], [0, 0, 1, 1], [], []>} : vector<4x4xbf16>, vector<4x256xbf16>, vector<4x256xf32> -> vector<4x256xf32>
    %22 = arith.addf %15, %21 : vector<4x256xf32>
    %c3 = arith.constant 3 : index
    %c0_14 = arith.constant 0 : index
    %c0_15 = arith.constant 0 : index
    %23 = vector.load %arg4[%c3, %c0_14, %c0_15] : memref<9x4x4xbf16, #tpu.memory_space<vmem>>, vector<1x4x4xbf16>
    %24 = vector.shape_cast %23 : vector<1x4x4xbf16> to vector<4x4xbf16>
    %25 = vector.extract_strided_slice %1 {offsets = [0, 255], sizes = [4, 1], strides = [1, 1]} : vector<4x256xbf16> to vector<4x1xbf16>
    %26 = vector.extract_strided_slice %0 {offsets = [0, 0], sizes = [4, 255], strides = [1, 1]} : vector<4x256xbf16> to vector<4x255xbf16>
    %27 = tpu.concatenate %25, %26 in 1 : vector<4x1xbf16>, vector<4x255xbf16> -> vector<4x256xbf16>
    %cst_16 = arith.constant dense<0.000000e+00> : vector<4x256xf32>
    %28 = tpu.matmul %24, %27, %cst_16 {dimension_numbers = #tpu.dot_dimension_numbers<[1], [0], [0], [1], [0, 0, 1, 1], [], []>} : vector<4x4xbf16>, vector<4x256xbf16>, vector<4x256xf32> -> vector<4x256xf32>
    %29 = arith.addf %22, %28 : vector<4x256xf32>
    %c4 = arith.constant 4 : index
    %c0_17 = arith.constant 0 : index
    %c0_18 = arith.constant 0 : index
    %30 = vector.load %arg4[%c4, %c0_17, %c0_18] : memref<9x4x4xbf16, #tpu.memory_space<vmem>>, vector<1x4x4xbf16>
    %31 = vector.shape_cast %30 : vector<1x4x4xbf16> to vector<4x4xbf16>
    %cst_19 = arith.constant dense<0.000000e+00> : vector<4x256xf32>
    %32 = tpu.matmul %31, %0, %cst_19 {dimension_numbers = #tpu.dot_dimension_numbers<[1], [0], [0], [1], [0, 0, 1, 1], [], []>} : vector<4x4xbf16>, vector<4x256xbf16>, vector<4x256xf32> -> vector<4x256xf32>
    %33 = arith.addf %29, %32 : vector<4x256xf32>
    %c5 = arith.constant 5 : index
    %c0_20 = arith.constant 0 : index
    %c0_21 = arith.constant 0 : index
    %34 = vector.load %arg4[%c5, %c0_20, %c0_21] : memref<9x4x4xbf16, #tpu.memory_space<vmem>>, vector<1x4x4xbf16>
    %35 = vector.shape_cast %34 : vector<1x4x4xbf16> to vector<4x4xbf16>
    %36 = vector.extract_strided_slice %0 {offsets = [0, 1], sizes = [4, 255], strides = [1, 1]} : vector<4x256xbf16> to vector<4x255xbf16>
    %37 = vector.extract_strided_slice %2 {offsets = [0, 0], sizes = [4, 1], strides = [1, 1]} : vector<4x256xbf16> to vector<4x1xbf16>
    %38 = tpu.concatenate %36, %37 in 1 : vector<4x255xbf16>, vector<4x1xbf16> -> vector<4x256xbf16>
    %cst_22 = arith.constant dense<0.000000e+00> : vector<4x256xf32>
    %39 = tpu.matmul %35, %38, %cst_22 {dimension_numbers = #tpu.dot_dimension_numbers<[1], [0], [0], [1], [0, 0, 1, 1], [], []>} : vector<4x4xbf16>, vector<4x256xbf16>, vector<4x256xf32> -> vector<4x256xf32>
    %40 = arith.addf %33, %39 : vector<4x256xf32>
    %c6 = arith.constant 6 : index
    %c0_23 = arith.constant 0 : index
    %c0_24 = arith.constant 0 : index
    %41 = vector.load %arg4[%c6, %c0_23, %c0_24] : memref<9x4x4xbf16, #tpu.memory_space<vmem>>, vector<1x4x4xbf16>
    %42 = vector.shape_cast %41 : vector<1x4x4xbf16> to vector<4x4xbf16>
    %43 = vector.extract_strided_slice %0 {offsets = [0, 13], sizes = [4, 243], strides = [1, 1]} : vector<4x256xbf16> to vector<4x243xbf16>
    %44 = vector.extract_strided_slice %2 {offsets = [0, 0], sizes = [4, 13], strides = [1, 1]} : vector<4x256xbf16> to vector<4x13xbf16>
    %45 = tpu.concatenate %43, %44 in 1 : vector<4x243xbf16>, vector<4x13xbf16> -> vector<4x256xbf16>
    %cst_25 = arith.constant dense<0.000000e+00> : vector<4x256xf32>
    %46 = tpu.matmul %42, %45, %cst_25 {dimension_numbers = #tpu.dot_dimension_numbers<[1], [0], [0], [1], [0, 0, 1, 1], [], []>} : vector<4x4xbf16>, vector<4x256xbf16>, vector<4x256xf32> -> vector<4x256xf32>
    %47 = arith.addf %40, %46 : vector<4x256xf32>
    %c7 = arith.constant 7 : index
    %c0_26 = arith.constant 0 : index
    %c0_27 = arith.constant 0 : index
    %48 = vector.load %arg4[%c7, %c0_26, %c0_27] : memref<9x4x4xbf16, #tpu.memory_space<vmem>>, vector<1x4x4xbf16>
    %49 = vector.shape_cast %48 : vector<1x4x4xbf16> to vector<4x4xbf16>
    %50 = vector.extract_strided_slice %0 {offsets = [0, 14], sizes = [4, 242], strides = [1, 1]} : vector<4x256xbf16> to vector<4x242xbf16>
    %51 = vector.extract_strided_slice %2 {offsets = [0, 0], sizes = [4, 14], strides = [1, 1]} : vector<4x256xbf16> to vector<4x14xbf16>
    %52 = tpu.concatenate %50, %51 in 1 : vector<4x242xbf16>, vector<4x14xbf16> -> vector<4x256xbf16>
    %cst_28 = arith.constant dense<0.000000e+00> : vector<4x256xf32>
    %53 = tpu.matmul %49, %52, %cst_28 {dimension_numbers = #tpu.dot_dimension_numbers<[1], [0], [0], [1], [0, 0, 1, 1], [], []>} : vector<4x4xbf16>, vector<4x256xbf16>, vector<4x256xf32> -> vector<4x256xf32>
    %54 = arith.addf %47, %53 : vector<4x256xf32>
    %c8 = arith.constant 8 : index
    %c0_29 = arith.constant 0 : index
    %c0_30 = arith.constant 0 : index
    %55 = vector.load %arg4[%c8, %c0_29, %c0_30] : memref<9x4x4xbf16, #tpu.memory_space<vmem>>, vector<1x4x4xbf16>
    %56 = vector.shape_cast %55 : vector<1x4x4xbf16> to vector<4x4xbf16>
    %57 = vector.extract_strided_slice %0 {offsets = [0, 15], sizes = [4, 241], strides = [1, 1]} : vector<4x256xbf16> to vector<4x241xbf16>
    %58 = vector.extract_strided_slice %2 {offsets = [0, 0], sizes = [4, 15], strides = [1, 1]} : vector<4x256xbf16> to vector<4x15xbf16>
    %59 = tpu.concatenate %57, %58 in 1 : vector<4x241xbf16>, vector<4x15xbf16> -> vector<4x256xbf16>
    %cst_31 = arith.constant dense<0.000000e+00> : vector<4x256xf32>
    %60 = tpu.matmul %56, %59, %cst_31 {dimension_numbers = #tpu.dot_dimension_numbers<[1], [0], [0], [1], [0, 0, 1, 1], [], []>} : vector<4x4xbf16>, vector<4x256xbf16>, vector<4x256xf32> -> vector<4x256xf32>
    %61 = arith.addf %54, %60 : vector<4x256xf32>
    %c0_32 = arith.constant 0 : index
    %c0_33 = arith.constant 0 : index
    %62 = vector.load %arg5[%c0_32, %c0_33] : memref<4x1xf32, #tpu.memory_space<vmem>>, vector<4x1xf32>
    %63 = vector.broadcast %62 : vector<4x1xf32> to vector<4x256xf32>
    %64 = arith.addf %61, %63 : vector<4x256xf32>
    %c0_34 = arith.constant 0 : index
    %c0_35 = arith.constant 0 : index
    %65 = vector.load %arg6[%c0_34, %c0_35] : memref<1x256xf32, #tpu.memory_space<vmem>>, vector<1x256xf32>
    %66 = vector.broadcast %65 : vector<1x256xf32> to vector<4x256xf32>
    %67 = arith.mulf %64, %66 : vector<4x256xf32>
    %68 = arith.truncf %67 : vector<4x256xf32> to vector<4x256xbf16>
    %c0_36 = arith.constant 0 : index
    %c0_37 = arith.constant 0 : index
    %69 = vector.load %arg7[%c0_36, %c0_37] : memref<4x256xbf16, #tpu.memory_space<vmem>>, vector<4x256xbf16>
    tpu.vector_store %arg7[%c0_36, %c0_37], %68 {strides = array<i32>} : memref<4x256xbf16, #tpu.memory_space<vmem>>, vector<4x256xbf16>,
    return
  }
  func.func @transform_0(%arg0: i32) -> (i32, i32) {
    %c1_i32 = arith.constant 1 : i32
    %0 = arith.subi %arg0, %c1_i32 : i32
    %c0_i32 = arith.constant 0 : i32
    %1 = arith.maxsi %0, %c0_i32 : i32
    %c0_i32_0 = arith.constant 0 : i32
    %c0_i32_1 = arith.constant 0 : i32
    return %c0_i32_0, %1 : i32, i32
  }
  func.func @transform_1(%arg0: i32) -> (i32, i32) {
    %c0_i32 = arith.constant 0 : i32
    %c0_i32_0 = arith.constant 0 : i32
    return %c0_i32, %arg0 : i32, i32
  }
  func.func @transform_2(%arg0: i32) -> (i32, i32) {
    %c1_i32 = arith.constant 1 : i32
    %0 = arith.addi %arg0, %c1_i32 : i32
    %c1_i32_0 = arith.constant 1 : i32
    %1 = arith.minsi %0, %c1_i32_0 : i32
    %c0_i32 = arith.constant 0 : i32
    %c0_i32_1 = arith.constant 0 : i32
    return %c0_i32, %1 : i32, i32
  }
  func.func @transform_3(%arg0: i32) -> (i32, i32, i32) {
    %c0_i32 = arith.constant 0 : i32
    %c0_i32_0 = arith.constant 0 : i32
    %c0_i32_1 = arith.constant 0 : i32
    %c0_i32_2 = arith.constant 0 : i32
    return %c0_i32, %c0_i32_0, %c0_i32_1 : i32, i32, i32
  }
  func.func @transform_4(%arg0: i32) -> (i32, i32) {
    %c0_i32 = arith.constant 0 : i32
    %c0_i32_0 = arith.constant 0 : i32
    %c0_i32_1 = arith.constant 0 : i32
    return %c0_i32, %c0_i32_0 : i32, i32
  }
  func.func @transform_5(%arg0: i32) -> (i32, i32) {
    %c0_i32 = arith.constant 0 : i32
    %c0_i32_0 = arith.constant 0 : i32
    return %c0_i32, %arg0 : i32, i32
  }
  func.func @transform_6(%arg0: i32) -> (i32, i32) {
    %c0_i32 = arith.constant 0 : i32
    %c0_i32_0 = arith.constant 0 : i32
    return %c0_i32, %arg0 : i32, i32
  }
}

module attributes {stable_mosaic.version = 11 : i64} {
  func.func @_conv_kernel(%arg0: i32, %arg1: memref<4x256xbf16, #tpu.memory_space<vmem>>, %arg2: memref<4x256xbf16, #tpu.memory_space<vmem>>, %arg3: memref<4x256xbf16, #tpu.memory_space<vmem>>, %arg4: memref<9x4x4xbf16, #tpu.memory_space<vmem>>, %arg5: memref<4x1xf32, #tpu.memory_space<vmem>>, %arg6: memref<1x256xf32, #tpu.memory_space<vmem>>, %arg7: memref<4x256xbf16, #tpu.memory_space<vmem>>, %arg8: memref<4x256xbf16, #tpu.memory_space<vmem>>, %arg9: memref<4x256xbf16, #tpu.memory_space<vmem>>) attributes {dimension_semantics = [#tpu.dimension_semantics<parallel>], iteration_bounds = array<i64: 3>, scalar_prefetch = 0 : i64, scratch_operands = 0 : i64, tpu.core_type = #tpu.core_type<tc>, window_params = [{transform_indices = @transform_0, window_bounds = array<i64: 4, 256>}, {transform_indices = @transform_1, window_bounds = array<i64: 4, 256>}, {transform_indices = @transform_2, window_bounds = array<i64: 4, 256>}, {pipeline_mode = #tpu.pipeline_mode<synchronous>, transform_indices = @transform_3, window_bounds = array<i64: 9, 4, 4>}, {pipeline_mode = #tpu.pipeline_mode<synchronous>, transform_indices = @transform_4, window_bounds = array<i64: 4, 1>}, {transform_indices = @transform_5, window_bounds = array<i64: 1, 256>}, {transform_indices = @transform_6, window_bounds = array<i64: 4, 256>}, {transform_indices = @transform_7, window_bounds = array<i64: 4, 256>}, {transform_indices = @transform_8, window_bounds = array<i64: 4, 256>}]} {
    %c0 = arith.constant 0 : index
    %c0_0 = arith.constant 0 : index
    %0 = vector.load %arg2[%c0, %c0_0] : memref<4x256xbf16, #tpu.memory_space<vmem>>, vector<4x256xbf16>
    %c0_1 = arith.constant 0 : index
    %c0_2 = arith.constant 0 : index
    %1 = vector.load %arg1[%c0_1, %c0_2] : memref<4x256xbf16, #tpu.memory_space<vmem>>, vector<4x256xbf16>
    %c0_3 = arith.constant 0 : index
    %c0_4 = arith.constant 0 : index
    %2 = vector.load %arg3[%c0_3, %c0_4] : memref<4x256xbf16, #tpu.memory_space<vmem>>, vector<4x256xbf16>
    %c0_5 = arith.constant 0 : index
    %c0_6 = arith.constant 0 : index
    %c0_7 = arith.constant 0 : index
    %3 = vector.load %arg4[%c0_5, %c0_6, %c0_7] : memref<9x4x4xbf16, #tpu.memory_space<vmem>>, vector<1x4x4xbf16>
    %4 = vector.shape_cast %3 : vector<1x4x4xbf16> to vector<4x4xbf16>
    %5 = vector.extract_strided_slice %1 {offsets = [0, 237], sizes = [4, 19], strides = [1, 1]} : vector<4x256xbf16> to vector<4x19xbf16>
    %6 = vector.extract_strided_slice %0 {offsets = [0, 0], sizes = [4, 237], strides = [1, 1]} : vector<4x256xbf16> to vector<4x237xbf16>
    %7 = tpu.concatenate %5, %6 in 1 : vector<4x19xbf16>, vector<4x237xbf16> -> vector<4x256xbf16>
    %cst = arith.constant dense<0.000000e+00> : vector<4x256xf32>
    %8 = tpu.matmul %4, %7, %cst {dimension_numbers = #tpu.dot_dimension_numbers<[1], [0], [0], [1], [0, 0, 1, 1], [], []>} : vector<4x4xbf16>, vector<4x256xbf16>, vector<4x256xf32> -> vector<4x256xf32>
    %c1 = arith.constant 1 : index
    %c0_8 = arith.constant 0 : index
    %c0_9 = arith.constant 0 : index
    %9 = vector.load %arg4[%c1, %c0_8, %c0_9] : memref<9x4x4xbf16, #tpu.memory_space<vmem>>, vector<1x4x4xbf16>
    %10 = vector.shape_cast %9 : vector<1x4x4xbf16> to vector<4x4xbf16>
    %11 = vector.extract_strided_slice %1 {offsets = [0, 238], sizes = [4, 18], strides = [1, 1]} : vector<4x256xbf16> to vector<4x18xbf16>
    %12 = vector.extract_strided_slice %0 {offsets = [0, 0], sizes = [4, 238], strides = [1, 1]} : vector<4x256xbf16> to vector<4x238xbf16>
    %13 = tpu.concatenate %11, %12 in 1 : vector<4x18xbf16>, vector<4x238xbf16> -> vector<4x256xbf16>
    %cst_10 = arith.constant dense<0.000000e+00> : vector<4x256xf32>
    %14 = tpu.matmul %10, %13, %cst_10 {dimension_numbers = #tpu.dot_dimension_numbers<[1], [0], [0], [1], [0, 0, 1, 1], [], []>} : vector<4x4xbf16>, vector<4x256xbf16>, vector<4x256xf32> -> vector<4x256xf32>
    %15 = arith.addf %8, %14 : vector<4x256xf32>
    %c2 = arith.constant 2 : index
    %c0_11 = arith.constant 0 : index
    %c0_12 = arith.constant 0 : index
    %16 = vector.load %arg4[%c2, %c0_11, %c0_12] : memref<9x4x4xbf16, #tpu.memory_space<vmem>>, vector<1x4x4xbf16>
    %17 = vector.shape_cast %16 : vector<1x4x4xbf16> to vector<4x4xbf16>
    %18 = vector.extract_strided_slice %1 {offsets = [0, 239], sizes = [4, 17], strides = [1, 1]} : vector<4x256xbf16> to vector<4x17xbf16>
    %19 = vector.extract_strided_slice %0 {offsets = [0, 0], sizes = [4, 239], strides = [1, 1]} : vector<4x256xbf16> to vector<4x239xbf16>
    %20 = tpu.concatenate %18, %19 in 1 : vector<4x17xbf16>, vector<4x239xbf16> -> vector<4x256xbf16>
    %cst_13 = arith.constant dense<0.000000e+00> : vector<4x256xf32>
    %21 = tpu.matmul %17, %20, %cst_13 {dimension_numbers = #tpu.dot_dimension_numbers<[1], [0], [0], [1], [0, 0, 1, 1], [], []>} : vector<4x4xbf16>, vector<4x256xbf16>, vector<4x256xf32> -> vector<4x256xf32>
    %22 = arith.addf %15, %21 : vector<4x256xf32>
    %c3 = arith.constant 3 : index
    %c0_14 = arith.constant 0 : index
    %c0_15 = arith.constant 0 : index
    %23 = vector.load %arg4[%c3, %c0_14, %c0_15] : memref<9x4x4xbf16, #tpu.memory_space<vmem>>, vector<1x4x4xbf16>
    %24 = vector.shape_cast %23 : vector<1x4x4xbf16> to vector<4x4xbf16>
    %25 = vector.extract_strided_slice %1 {offsets = [0, 255], sizes = [4, 1], strides = [1, 1]} : vector<4x256xbf16> to vector<4x1xbf16>
    %26 = vector.extract_strided_slice %0 {offsets = [0, 0], sizes = [4, 255], strides = [1, 1]} : vector<4x256xbf16> to vector<4x255xbf16>
    %27 = tpu.concatenate %25, %26 in 1 : vector<4x1xbf16>, vector<4x255xbf16> -> vector<4x256xbf16>
    %cst_16 = arith.constant dense<0.000000e+00> : vector<4x256xf32>
    %28 = tpu.matmul %24, %27, %cst_16 {dimension_numbers = #tpu.dot_dimension_numbers<[1], [0], [0], [1], [0, 0, 1, 1], [], []>} : vector<4x4xbf16>, vector<4x256xbf16>, vector<4x256xf32> -> vector<4x256xf32>
    %29 = arith.addf %22, %28 : vector<4x256xf32>
    %c4 = arith.constant 4 : index
    %c0_17 = arith.constant 0 : index
    %c0_18 = arith.constant 0 : index
    %30 = vector.load %arg4[%c4, %c0_17, %c0_18] : memref<9x4x4xbf16, #tpu.memory_space<vmem>>, vector<1x4x4xbf16>
    %31 = vector.shape_cast %30 : vector<1x4x4xbf16> to vector<4x4xbf16>
    %cst_19 = arith.constant dense<0.000000e+00> : vector<4x256xf32>
    %32 = tpu.matmul %31, %0, %cst_19 {dimension_numbers = #tpu.dot_dimension_numbers<[1], [0], [0], [1], [0, 0, 1, 1], [], []>} : vector<4x4xbf16>, vector<4x256xbf16>, vector<4x256xf32> -> vector<4x256xf32>
    %33 = arith.addf %29, %32 : vector<4x256xf32>
    %c5 = arith.constant 5 : index
    %c0_20 = arith.constant 0 : index
    %c0_21 = arith.constant 0 : index
    %34 = vector.load %arg4[%c5, %c0_20, %c0_21] : memref<9x4x4xbf16, #tpu.memory_space<vmem>>, vector<1x4x4xbf16>
    %35 = vector.shape_cast %34 : vector<1x4x4xbf16> to vector<4x4xbf16>
    %36 = vector.extract_strided_slice %0 {offsets = [0, 1], sizes = [4, 255], strides = [1, 1]} : vector<4x256xbf16> to vector<4x255xbf16>
    %37 = vector.extract_strided_slice %2 {offsets = [0, 0], sizes = [4, 1], strides = [1, 1]} : vector<4x256xbf16> to vector<4x1xbf16>
    %38 = tpu.concatenate %36, %37 in 1 : vector<4x255xbf16>, vector<4x1xbf16> -> vector<4x256xbf16>
    %cst_22 = arith.constant dense<0.000000e+00> : vector<4x256xf32>
    %39 = tpu.matmul %35, %38, %cst_22 {dimension_numbers = #tpu.dot_dimension_numbers<[1], [0], [0], [1], [0, 0, 1, 1], [], []>} : vector<4x4xbf16>, vector<4x256xbf16>, vector<4x256xf32> -> vector<4x256xf32>
    %40 = arith.addf %33, %39 : vector<4x256xf32>
    %c6 = arith.constant 6 : index
    %c0_23 = arith.constant 0 : index
    %c0_24 = arith.constant 0 : index
    %41 = vector.load %arg4[%c6, %c0_23, %c0_24] : memref<9x4x4xbf16, #tpu.memory_space<vmem>>, vector<1x4x4xbf16>
    %42 = vector.shape_cast %41 : vector<1x4x4xbf16> to vector<4x4xbf16>
    %43 = vector.extract_strided_slice %0 {offsets = [0, 17], sizes = [4, 239], strides = [1, 1]} : vector<4x256xbf16> to vector<4x239xbf16>
    %44 = vector.extract_strided_slice %2 {offsets = [0, 0], sizes = [4, 17], strides = [1, 1]} : vector<4x256xbf16> to vector<4x17xbf16>
    %45 = tpu.concatenate %43, %44 in 1 : vector<4x239xbf16>, vector<4x17xbf16> -> vector<4x256xbf16>
    %cst_25 = arith.constant dense<0.000000e+00> : vector<4x256xf32>
    %46 = tpu.matmul %42, %45, %cst_25 {dimension_numbers = #tpu.dot_dimension_numbers<[1], [0], [0], [1], [0, 0, 1, 1], [], []>} : vector<4x4xbf16>, vector<4x256xbf16>, vector<4x256xf32> -> vector<4x256xf32>
    %47 = arith.addf %40, %46 : vector<4x256xf32>
    %c7 = arith.constant 7 : index
    %c0_26 = arith.constant 0 : index
    %c0_27 = arith.constant 0 : index
    %48 = vector.load %arg4[%c7, %c0_26, %c0_27] : memref<9x4x4xbf16, #tpu.memory_space<vmem>>, vector<1x4x4xbf16>
    %49 = vector.shape_cast %48 : vector<1x4x4xbf16> to vector<4x4xbf16>
    %50 = vector.extract_strided_slice %0 {offsets = [0, 18], sizes = [4, 238], strides = [1, 1]} : vector<4x256xbf16> to vector<4x238xbf16>
    %51 = vector.extract_strided_slice %2 {offsets = [0, 0], sizes = [4, 18], strides = [1, 1]} : vector<4x256xbf16> to vector<4x18xbf16>
    %52 = tpu.concatenate %50, %51 in 1 : vector<4x238xbf16>, vector<4x18xbf16> -> vector<4x256xbf16>
    %cst_28 = arith.constant dense<0.000000e+00> : vector<4x256xf32>
    %53 = tpu.matmul %49, %52, %cst_28 {dimension_numbers = #tpu.dot_dimension_numbers<[1], [0], [0], [1], [0, 0, 1, 1], [], []>} : vector<4x4xbf16>, vector<4x256xbf16>, vector<4x256xf32> -> vector<4x256xf32>
    %54 = arith.addf %47, %53 : vector<4x256xf32>
    %c8 = arith.constant 8 : index
    %c0_29 = arith.constant 0 : index
    %c0_30 = arith.constant 0 : index
    %55 = vector.load %arg4[%c8, %c0_29, %c0_30] : memref<9x4x4xbf16, #tpu.memory_space<vmem>>, vector<1x4x4xbf16>
    %56 = vector.shape_cast %55 : vector<1x4x4xbf16> to vector<4x4xbf16>
    %57 = vector.extract_strided_slice %0 {offsets = [0, 19], sizes = [4, 237], strides = [1, 1]} : vector<4x256xbf16> to vector<4x237xbf16>
    %58 = vector.extract_strided_slice %2 {offsets = [0, 0], sizes = [4, 19], strides = [1, 1]} : vector<4x256xbf16> to vector<4x19xbf16>
    %59 = tpu.concatenate %57, %58 in 1 : vector<4x237xbf16>, vector<4x19xbf16> -> vector<4x256xbf16>
    %cst_31 = arith.constant dense<0.000000e+00> : vector<4x256xf32>
    %60 = tpu.matmul %56, %59, %cst_31 {dimension_numbers = #tpu.dot_dimension_numbers<[1], [0], [0], [1], [0, 0, 1, 1], [], []>} : vector<4x4xbf16>, vector<4x256xbf16>, vector<4x256xf32> -> vector<4x256xf32>
    %61 = arith.addf %54, %60 : vector<4x256xf32>
    %c0_32 = arith.constant 0 : index
    %c0_33 = arith.constant 0 : index
    %62 = vector.load %arg5[%c0_32, %c0_33] : memref<4x1xf32, #tpu.memory_space<vmem>>, vector<4x1xf32>
    %63 = vector.broadcast %62 : vector<4x1xf32> to vector<4x256xf32>
    %64 = arith.addf %61, %63 : vector<4x256xf32>
    %c0_34 = arith.constant 0 : index
    %c0_35 = arith.constant 0 : index
    %65 = vector.load %arg7[%c0_34, %c0_35] : memref<4x256xbf16, #tpu.memory_space<vmem>>, vector<4x256xbf16>
    %66 = arith.extf %65 : vector<4x256xbf16> to vector<4x256xf32>
    %67 = arith.addf %64, %66 : vector<4x256xf32>
    %c0_36 = arith.constant 0 : index
    %c0_37 = arith.constant 0 : index
    %68 = vector.load %arg8[%c0_36, %c0_37] : memref<4x256xbf16, #tpu.memory_space<vmem>>, vector<4x256xbf16>
    %69 = arith.extf %68 : vector<4x256xbf16> to vector<4x256xf32>
    %70 = arith.addf %67, %69 : vector<4x256xf32>
    %cst_38 = arith.constant 0.000000e+00 : f32
    %71 = vector.broadcast %cst_38 : f32 to vector<4x256xf32>
    %72 = arith.maximumf %70, %71 : vector<4x256xf32>
    %c0_39 = arith.constant 0 : index
    %c0_40 = arith.constant 0 : index
    %73 = vector.load %arg6[%c0_39, %c0_40] : memref<1x256xf32, #tpu.memory_space<vmem>>, vector<1x256xf32>
    %74 = vector.broadcast %73 : vector<1x256xf32> to vector<4x256xf32>
    %75 = arith.mulf %72, %74 : vector<4x256xf32>
    %76 = arith.truncf %75 : vector<4x256xf32> to vector<4x256xbf16>
    %c0_41 = arith.constant 0 : index
    %c0_42 = arith.constant 0 : index
    %77 = vector.load %arg9[%c0_41, %c0_42] : memref<4x256xbf16, #tpu.memory_space<vmem>>, vector<4x256xbf16>
    tpu.vector_store %arg9[%c0_41, %c0_42], %76 {strides = array<i32>} : memref<4x256xbf16, #tpu.memory_space<vmem>>, vector<4x256xbf16>,
    return
  }
  func.func @transform_0(%arg0: i32) -> (i32, i32) {
    %c1_i32 = arith.constant 1 : i32
    %0 = arith.subi %arg0, %c1_i32 : i32
    %c0_i32 = arith.constant 0 : i32
    %1 = arith.maxsi %0, %c0_i32 : i32
    %c0_i32_0 = arith.constant 0 : i32
    %c0_i32_1 = arith.constant 0 : i32
    return %c0_i32_0, %1 : i32, i32
  }
  func.func @transform_1(%arg0: i32) -> (i32, i32) {
    %c0_i32 = arith.constant 0 : i32
    %c0_i32_0 = arith.constant 0 : i32
    return %c0_i32, %arg0 : i32, i32
  }
  func.func @transform_2(%arg0: i32) -> (i32, i32) {
    %c1_i32 = arith.constant 1 : i32
    %0 = arith.addi %arg0, %c1_i32 : i32
    %c2_i32 = arith.constant 2 : i32
    %1 = arith.minsi %0, %c2_i32 : i32
    %c0_i32 = arith.constant 0 : i32
    %c0_i32_0 = arith.constant 0 : i32
    return %c0_i32, %1 : i32, i32
  }
  func.func @transform_3(%arg0: i32) -> (i32, i32, i32) {
    %c0_i32 = arith.constant 0 : i32
    %c0_i32_0 = arith.constant 0 : i32
    %c0_i32_1 = arith.constant 0 : i32
    %c0_i32_2 = arith.constant 0 : i32
    return %c0_i32, %c0_i32_0, %c0_i32_1 : i32, i32, i32
  }
  func.func @transform_4(%arg0: i32) -> (i32, i32) {
    %c0_i32 = arith.constant 0 : i32
    %c0_i32_0 = arith.constant 0 : i32
    %c0_i32_1 = arith.constant 0 : i32
    return %c0_i32, %c0_i32_0 : i32, i32
  }
  func.func @transform_5(%arg0: i32) -> (i32, i32) {
    %c0_i32 = arith.constant 0 : i32
    %c0_i32_0 = arith.constant 0 : i32
    return %c0_i32, %arg0 : i32, i32
  }
  func.func @transform_6(%arg0: i32) -> (i32, i32) {
    %c0_i32 = arith.constant 0 : i32
    %c0_i32_0 = arith.constant 0 : i32
    return %c0_i32, %arg0 : i32, i32
  }
  func.func @transform_7(%arg0: i32) -> (i32, i32) {
    %c0_i32 = arith.constant 0 : i32
    %c0_i32_0 = arith.constant 0 : i32
    return %c0_i32, %arg0 : i32, i32
  }
  func.func @transform_8(%arg0: i32) -> (i32, i32) {
    %c0_i32 = arith.constant 0 : i32
    %c0_i32_0 = arith.constant 0 : i32
    return %c0_i32, %arg0 : i32, i32
  }
}

module attributes {stable_mosaic.version = 11 : i64} {
  func.func @_conv_kernel(%arg0: i32, %arg1: memref<4x256xbf16, #tpu.memory_space<vmem>>, %arg2: memref<4x256xbf16, #tpu.memory_space<vmem>>, %arg3: memref<4x256xbf16, #tpu.memory_space<vmem>>, %arg4: memref<9x4x4xbf16, #tpu.memory_space<vmem>>, %arg5: memref<4x1xf32, #tpu.memory_space<vmem>>, %arg6: memref<1x256xf32, #tpu.memory_space<vmem>>, %arg7: memref<4x256xbf16, #tpu.memory_space<vmem>>) attributes {dimension_semantics = [#tpu.dimension_semantics<parallel>], iteration_bounds = array<i64: 3>, scalar_prefetch = 0 : i64, scratch_operands = 0 : i64, tpu.core_type = #tpu.core_type<tc>, window_params = [{transform_indices = @transform_0, window_bounds = array<i64: 4, 256>}, {transform_indices = @transform_1, window_bounds = array<i64: 4, 256>}, {transform_indices = @transform_2, window_bounds = array<i64: 4, 256>}, {pipeline_mode = #tpu.pipeline_mode<synchronous>, transform_indices = @transform_3, window_bounds = array<i64: 9, 4, 4>}, {pipeline_mode = #tpu.pipeline_mode<synchronous>, transform_indices = @transform_4, window_bounds = array<i64: 4, 1>}, {transform_indices = @transform_5, window_bounds = array<i64: 1, 256>}, {transform_indices = @transform_6, window_bounds = array<i64: 4, 256>}]} {
    %c0 = arith.constant 0 : index
    %c0_0 = arith.constant 0 : index
    %0 = vector.load %arg2[%c0, %c0_0] : memref<4x256xbf16, #tpu.memory_space<vmem>>, vector<4x256xbf16>
    %c0_1 = arith.constant 0 : index
    %c0_2 = arith.constant 0 : index
    %1 = vector.load %arg1[%c0_1, %c0_2] : memref<4x256xbf16, #tpu.memory_space<vmem>>, vector<4x256xbf16>
    %c0_3 = arith.constant 0 : index
    %c0_4 = arith.constant 0 : index
    %2 = vector.load %arg3[%c0_3, %c0_4] : memref<4x256xbf16, #tpu.memory_space<vmem>>, vector<4x256xbf16>
    %c0_5 = arith.constant 0 : index
    %c0_6 = arith.constant 0 : index
    %c0_7 = arith.constant 0 : index
    %3 = vector.load %arg4[%c0_5, %c0_6, %c0_7] : memref<9x4x4xbf16, #tpu.memory_space<vmem>>, vector<1x4x4xbf16>
    %4 = vector.shape_cast %3 : vector<1x4x4xbf16> to vector<4x4xbf16>
    %5 = vector.extract_strided_slice %1 {offsets = [0, 237], sizes = [4, 19], strides = [1, 1]} : vector<4x256xbf16> to vector<4x19xbf16>
    %6 = vector.extract_strided_slice %0 {offsets = [0, 0], sizes = [4, 237], strides = [1, 1]} : vector<4x256xbf16> to vector<4x237xbf16>
    %7 = tpu.concatenate %5, %6 in 1 : vector<4x19xbf16>, vector<4x237xbf16> -> vector<4x256xbf16>
    %cst = arith.constant dense<0.000000e+00> : vector<4x256xf32>
    %8 = tpu.matmul %4, %7, %cst {dimension_numbers = #tpu.dot_dimension_numbers<[1], [0], [0], [1], [0, 0, 1, 1], [], []>} : vector<4x4xbf16>, vector<4x256xbf16>, vector<4x256xf32> -> vector<4x256xf32>
    %c1 = arith.constant 1 : index
    %c0_8 = arith.constant 0 : index
    %c0_9 = arith.constant 0 : index
    %9 = vector.load %arg4[%c1, %c0_8, %c0_9] : memref<9x4x4xbf16, #tpu.memory_space<vmem>>, vector<1x4x4xbf16>
    %10 = vector.shape_cast %9 : vector<1x4x4xbf16> to vector<4x4xbf16>
    %11 = vector.extract_strided_slice %1 {offsets = [0, 238], sizes = [4, 18], strides = [1, 1]} : vector<4x256xbf16> to vector<4x18xbf16>
    %12 = vector.extract_strided_slice %0 {offsets = [0, 0], sizes = [4, 238], strides = [1, 1]} : vector<4x256xbf16> to vector<4x238xbf16>
    %13 = tpu.concatenate %11, %12 in 1 : vector<4x18xbf16>, vector<4x238xbf16> -> vector<4x256xbf16>
    %cst_10 = arith.constant dense<0.000000e+00> : vector<4x256xf32>
    %14 = tpu.matmul %10, %13, %cst_10 {dimension_numbers = #tpu.dot_dimension_numbers<[1], [0], [0], [1], [0, 0, 1, 1], [], []>} : vector<4x4xbf16>, vector<4x256xbf16>, vector<4x256xf32> -> vector<4x256xf32>
    %15 = arith.addf %8, %14 : vector<4x256xf32>
    %c2 = arith.constant 2 : index
    %c0_11 = arith.constant 0 : index
    %c0_12 = arith.constant 0 : index
    %16 = vector.load %arg4[%c2, %c0_11, %c0_12] : memref<9x4x4xbf16, #tpu.memory_space<vmem>>, vector<1x4x4xbf16>
    %17 = vector.shape_cast %16 : vector<1x4x4xbf16> to vector<4x4xbf16>
    %18 = vector.extract_strided_slice %1 {offsets = [0, 239], sizes = [4, 17], strides = [1, 1]} : vector<4x256xbf16> to vector<4x17xbf16>
    %19 = vector.extract_strided_slice %0 {offsets = [0, 0], sizes = [4, 239], strides = [1, 1]} : vector<4x256xbf16> to vector<4x239xbf16>
    %20 = tpu.concatenate %18, %19 in 1 : vector<4x17xbf16>, vector<4x239xbf16> -> vector<4x256xbf16>
    %cst_13 = arith.constant dense<0.000000e+00> : vector<4x256xf32>
    %21 = tpu.matmul %17, %20, %cst_13 {dimension_numbers = #tpu.dot_dimension_numbers<[1], [0], [0], [1], [0, 0, 1, 1], [], []>} : vector<4x4xbf16>, vector<4x256xbf16>, vector<4x256xf32> -> vector<4x256xf32>
    %22 = arith.addf %15, %21 : vector<4x256xf32>
    %c3 = arith.constant 3 : index
    %c0_14 = arith.constant 0 : index
    %c0_15 = arith.constant 0 : index
    %23 = vector.load %arg4[%c3, %c0_14, %c0_15] : memref<9x4x4xbf16, #tpu.memory_space<vmem>>, vector<1x4x4xbf16>
    %24 = vector.shape_cast %23 : vector<1x4x4xbf16> to vector<4x4xbf16>
    %25 = vector.extract_strided_slice %1 {offsets = [0, 255], sizes = [4, 1], strides = [1, 1]} : vector<4x256xbf16> to vector<4x1xbf16>
    %26 = vector.extract_strided_slice %0 {offsets = [0, 0], sizes = [4, 255], strides = [1, 1]} : vector<4x256xbf16> to vector<4x255xbf16>
    %27 = tpu.concatenate %25, %26 in 1 : vector<4x1xbf16>, vector<4x255xbf16> -> vector<4x256xbf16>
    %cst_16 = arith.constant dense<0.000000e+00> : vector<4x256xf32>
    %28 = tpu.matmul %24, %27, %cst_16 {dimension_numbers = #tpu.dot_dimension_numbers<[1], [0], [0], [1], [0, 0, 1, 1], [], []>} : vector<4x4xbf16>, vector<4x256xbf16>, vector<4x256xf32> -> vector<4x256xf32>
    %29 = arith.addf %22, %28 : vector<4x256xf32>
    %c4 = arith.constant 4 : index
    %c0_17 = arith.constant 0 : index
    %c0_18 = arith.constant 0 : index
    %30 = vector.load %arg4[%c4, %c0_17, %c0_18] : memref<9x4x4xbf16, #tpu.memory_space<vmem>>, vector<1x4x4xbf16>
    %31 = vector.shape_cast %30 : vector<1x4x4xbf16> to vector<4x4xbf16>
    %cst_19 = arith.constant dense<0.000000e+00> : vector<4x256xf32>
    %32 = tpu.matmul %31, %0, %cst_19 {dimension_numbers = #tpu.dot_dimension_numbers<[1], [0], [0], [1], [0, 0, 1, 1], [], []>} : vector<4x4xbf16>, vector<4x256xbf16>, vector<4x256xf32> -> vector<4x256xf32>
    %33 = arith.addf %29, %32 : vector<4x256xf32>
    %c5 = arith.constant 5 : index
    %c0_20 = arith.constant 0 : index
    %c0_21 = arith.constant 0 : index
    %34 = vector.load %arg4[%c5, %c0_20, %c0_21] : memref<9x4x4xbf16, #tpu.memory_space<vmem>>, vector<1x4x4xbf16>
    %35 = vector.shape_cast %34 : vector<1x4x4xbf16> to vector<4x4xbf16>
    %36 = vector.extract_strided_slice %0 {offsets = [0, 1], sizes = [4, 255], strides = [1, 1]} : vector<4x256xbf16> to vector<4x255xbf16>
    %37 = vector.extract_strided_slice %2 {offsets = [0, 0], sizes = [4, 1], strides = [1, 1]} : vector<4x256xbf16> to vector<4x1xbf16>
    %38 = tpu.concatenate %36, %37 in 1 : vector<4x255xbf16>, vector<4x1xbf16> -> vector<4x256xbf16>
    %cst_22 = arith.constant dense<0.000000e+00> : vector<4x256xf32>
    %39 = tpu.matmul %35, %38, %cst_22 {dimension_numbers = #tpu.dot_dimension_numbers<[1], [0], [0], [1], [0, 0, 1, 1], [], []>} : vector<4x4xbf16>, vector<4x256xbf16>, vector<4x256xf32> -> vector<4x256xf32>
    %40 = arith.addf %33, %39 : vector<4x256xf32>
    %c6 = arith.constant 6 : index
    %c0_23 = arith.constant 0 : index
    %c0_24 = arith.constant 0 : index
    %41 = vector.load %arg4[%c6, %c0_23, %c0_24] : memref<9x4x4xbf16, #tpu.memory_space<vmem>>, vector<1x4x4xbf16>
    %42 = vector.shape_cast %41 : vector<1x4x4xbf16> to vector<4x4xbf16>
    %43 = vector.extract_strided_slice %0 {offsets = [0, 17], sizes = [4, 239], strides = [1, 1]} : vector<4x256xbf16> to vector<4x239xbf16>
    %44 = vector.extract_strided_slice %2 {offsets = [0, 0], sizes = [4, 17], strides = [1, 1]} : vector<4x256xbf16> to vector<4x17xbf16>
    %45 = tpu.concatenate %43, %44 in 1 : vector<4x239xbf16>, vector<4x17xbf16> -> vector<4x256xbf16>
    %cst_25 = arith.constant dense<0.000000e+00> : vector<4x256xf32>
    %46 = tpu.matmul %42, %45, %cst_25 {dimension_numbers = #tpu.dot_dimension_numbers<[1], [0], [0], [1], [0, 0, 1, 1], [], []>} : vector<4x4xbf16>, vector<4x256xbf16>, vector<4x256xf32> -> vector<4x256xf32>
    %47 = arith.addf %40, %46 : vector<4x256xf32>
    %c7 = arith.constant 7 : index
    %c0_26 = arith.constant 0 : index
    %c0_27 = arith.constant 0 : index
    %48 = vector.load %arg4[%c7, %c0_26, %c0_27] : memref<9x4x4xbf16, #tpu.memory_space<vmem>>, vector<1x4x4xbf16>
    %49 = vector.shape_cast %48 : vector<1x4x4xbf16> to vector<4x4xbf16>
    %50 = vector.extract_strided_slice %0 {offsets = [0, 18], sizes = [4, 238], strides = [1, 1]} : vector<4x256xbf16> to vector<4x238xbf16>
    %51 = vector.extract_strided_slice %2 {offsets = [0, 0], sizes = [4, 18], strides = [1, 1]} : vector<4x256xbf16> to vector<4x18xbf16>
    %52 = tpu.concatenate %50, %51 in 1 : vector<4x238xbf16>, vector<4x18xbf16> -> vector<4x256xbf16>
    %cst_28 = arith.constant dense<0.000000e+00> : vector<4x256xf32>
    %53 = tpu.matmul %49, %52, %cst_28 {dimension_numbers = #tpu.dot_dimension_numbers<[1], [0], [0], [1], [0, 0, 1, 1], [], []>} : vector<4x4xbf16>, vector<4x256xbf16>, vector<4x256xf32> -> vector<4x256xf32>
    %54 = arith.addf %47, %53 : vector<4x256xf32>
    %c8 = arith.constant 8 : index
    %c0_29 = arith.constant 0 : index
    %c0_30 = arith.constant 0 : index
    %55 = vector.load %arg4[%c8, %c0_29, %c0_30] : memref<9x4x4xbf16, #tpu.memory_space<vmem>>, vector<1x4x4xbf16>
    %56 = vector.shape_cast %55 : vector<1x4x4xbf16> to vector<4x4xbf16>
    %57 = vector.extract_strided_slice %0 {offsets = [0, 19], sizes = [4, 237], strides = [1, 1]} : vector<4x256xbf16> to vector<4x237xbf16>
    %58 = vector.extract_strided_slice %2 {offsets = [0, 0], sizes = [4, 19], strides = [1, 1]} : vector<4x256xbf16> to vector<4x19xbf16>
    %59 = tpu.concatenate %57, %58 in 1 : vector<4x237xbf16>, vector<4x19xbf16> -> vector<4x256xbf16>
    %cst_31 = arith.constant dense<0.000000e+00> : vector<4x256xf32>
    %60 = tpu.matmul %56, %59, %cst_31 {dimension_numbers = #tpu.dot_dimension_numbers<[1], [0], [0], [1], [0, 0, 1, 1], [], []>} : vector<4x4xbf16>, vector<4x256xbf16>, vector<4x256xf32> -> vector<4x256xf32>
    %61 = arith.addf %54, %60 : vector<4x256xf32>
    %c0_32 = arith.constant 0 : index
    %c0_33 = arith.constant 0 : index
    %62 = vector.load %arg5[%c0_32, %c0_33] : memref<4x1xf32, #tpu.memory_space<vmem>>, vector<4x1xf32>
    %63 = vector.broadcast %62 : vector<4x1xf32> to vector<4x256xf32>
    %64 = arith.addf %61, %63 : vector<4x256xf32>
    %cst_34 = arith.constant 0.000000e+00 : f32
    %65 = vector.broadcast %cst_34 : f32 to vector<4x256xf32>
    %66 = arith.maximumf %64, %65 : vector<4x256xf32>
    %c0_35 = arith.constant 0 : index
    %c0_36 = arith.constant 0 : index
    %67 = vector.load %arg6[%c0_35, %c0_36] : memref<1x256xf32, #tpu.memory_space<vmem>>, vector<1x256xf32>
    %68 = vector.broadcast %67 : vector<1x256xf32> to vector<4x256xf32>
    %69 = arith.mulf %66, %68 : vector<4x256xf32>
    %70 = arith.truncf %69 : vector<4x256xf32> to vector<4x256xbf16>
    %c0_37 = arith.constant 0 : index
    %c0_38 = arith.constant 0 : index
    %71 = vector.load %arg7[%c0_37, %c0_38] : memref<4x256xbf16, #tpu.memory_space<vmem>>, vector<4x256xbf16>
    tpu.vector_store %arg7[%c0_37, %c0_38], %70 {strides = array<i32>} : memref<4x256xbf16, #tpu.memory_space<vmem>>, vector<4x256xbf16>,
    return
  }
  func.func @transform_0(%arg0: i32) -> (i32, i32) {
    %c1_i32 = arith.constant 1 : i32
    %0 = arith.subi %arg0, %c1_i32 : i32
    %c0_i32 = arith.constant 0 : i32
    %1 = arith.maxsi %0, %c0_i32 : i32
    %c0_i32_0 = arith.constant 0 : i32
    %c0_i32_1 = arith.constant 0 : i32
    return %c0_i32_0, %1 : i32, i32
  }
  func.func @transform_1(%arg0: i32) -> (i32, i32) {
    %c0_i32 = arith.constant 0 : i32
    %c0_i32_0 = arith.constant 0 : i32
    return %c0_i32, %arg0 : i32, i32
  }
  func.func @transform_2(%arg0: i32) -> (i32, i32) {
    %c1_i32 = arith.constant 1 : i32
    %0 = arith.addi %arg0, %c1_i32 : i32
    %c2_i32 = arith.constant 2 : i32
    %1 = arith.minsi %0, %c2_i32 : i32
    %c0_i32 = arith.constant 0 : i32
    %c0_i32_0 = arith.constant 0 : i32
    return %c0_i32, %1 : i32, i32
  }
  func.func @transform_3(%arg0: i32) -> (i32, i32, i32) {
    %c0_i32 = arith.constant 0 : i32
    %c0_i32_0 = arith.constant 0 : i32
    %c0_i32_1 = arith.constant 0 : i32
    %c0_i32_2 = arith.constant 0 : i32
    return %c0_i32, %c0_i32_0, %c0_i32_1 : i32, i32, i32
  }
  func.func @transform_4(%arg0: i32) -> (i32, i32) {
    %c0_i32 = arith.constant 0 : i32
    %c0_i32_0 = arith.constant 0 : i32
    %c0_i32_1 = arith.constant 0 : i32
    return %c0_i32, %c0_i32_0 : i32, i32
  }
  func.func @transform_5(%arg0: i32) -> (i32, i32) {
    %c0_i32 = arith.constant 0 : i32
    %c0_i32_0 = arith.constant 0 : i32
    return %c0_i32, %arg0 : i32, i32
  }
  func.func @transform_6(%arg0: i32) -> (i32, i32) {
    %c0_i32 = arith.constant 0 : i32
    %c0_i32_0 = arith.constant 0 : i32
    return %c0_i32, %arg0 : i32, i32
  }
}

module attributes {stable_mosaic.version = 11 : i64} {
  func.func @_conv_kernel(%arg0: i32, %arg1: memref<4x256xbf16, #tpu.memory_space<vmem>>, %arg2: memref<4x256xbf16, #tpu.memory_space<vmem>>, %arg3: memref<4x256xbf16, #tpu.memory_space<vmem>>, %arg4: memref<3x4x4xbf16, #tpu.memory_space<vmem>>, %arg5: memref<4x1xf32, #tpu.memory_space<vmem>>, %arg6: memref<1x256xf32, #tpu.memory_space<vmem>>, %arg7: memref<4x256xbf16, #tpu.memory_space<vmem>>) attributes {dimension_semantics = [#tpu.dimension_semantics<parallel>], iteration_bounds = array<i64: 1>, scalar_prefetch = 0 : i64, scratch_operands = 0 : i64, tpu.core_type = #tpu.core_type<tc>, window_params = [{transform_indices = @transform_0, window_bounds = array<i64: 4, 256>}, {transform_indices = @transform_1, window_bounds = array<i64: 4, 256>}, {transform_indices = @transform_2, window_bounds = array<i64: 4, 256>}, {pipeline_mode = #tpu.pipeline_mode<synchronous>, transform_indices = @transform_3, window_bounds = array<i64: 3, 4, 4>}, {pipeline_mode = #tpu.pipeline_mode<synchronous>, transform_indices = @transform_4, window_bounds = array<i64: 4, 1>}, {transform_indices = @transform_5, window_bounds = array<i64: 1, 256>}, {transform_indices = @transform_6, window_bounds = array<i64: 4, 256>}]} {
    %c0 = arith.constant 0 : index
    %c0_0 = arith.constant 0 : index
    %0 = vector.load %arg2[%c0, %c0_0] : memref<4x256xbf16, #tpu.memory_space<vmem>>, vector<4x256xbf16>
    %c0_1 = arith.constant 0 : index
    %c0_2 = arith.constant 0 : index
    %1 = vector.load %arg1[%c0_1, %c0_2] : memref<4x256xbf16, #tpu.memory_space<vmem>>, vector<4x256xbf16>
    %c0_3 = arith.constant 0 : index
    %c0_4 = arith.constant 0 : index
    %2 = vector.load %arg3[%c0_3, %c0_4] : memref<4x256xbf16, #tpu.memory_space<vmem>>, vector<4x256xbf16>
    %c0_5 = arith.constant 0 : index
    %c0_6 = arith.constant 0 : index
    %c0_7 = arith.constant 0 : index
    %3 = vector.load %arg4[%c0_5, %c0_6, %c0_7] : memref<3x4x4xbf16, #tpu.memory_space<vmem>>, vector<1x4x4xbf16>
    %4 = vector.shape_cast %3 : vector<1x4x4xbf16> to vector<4x4xbf16>
    %5 = vector.extract_strided_slice %1 {offsets = [0, 253], sizes = [4, 3], strides = [1, 1]} : vector<4x256xbf16> to vector<4x3xbf16>
    %6 = vector.extract_strided_slice %0 {offsets = [0, 0], sizes = [4, 253], strides = [1, 1]} : vector<4x256xbf16> to vector<4x253xbf16>
    %7 = tpu.concatenate %5, %6 in 1 : vector<4x3xbf16>, vector<4x253xbf16> -> vector<4x256xbf16>
    %cst = arith.constant dense<0.000000e+00> : vector<4x256xf32>
    %8 = tpu.matmul %4, %7, %cst {dimension_numbers = #tpu.dot_dimension_numbers<[1], [0], [0], [1], [0, 0, 1, 1], [], []>} : vector<4x4xbf16>, vector<4x256xbf16>, vector<4x256xf32> -> vector<4x256xf32>
    %c1 = arith.constant 1 : index
    %c0_8 = arith.constant 0 : index
    %c0_9 = arith.constant 0 : index
    %9 = vector.load %arg4[%c1, %c0_8, %c0_9] : memref<3x4x4xbf16, #tpu.memory_space<vmem>>, vector<1x4x4xbf16>
    %10 = vector.shape_cast %9 : vector<1x4x4xbf16> to vector<4x4xbf16>
    %cst_10 = arith.constant dense<0.000000e+00> : vector<4x256xf32>
    %11 = tpu.matmul %10, %0, %cst_10 {dimension_numbers = #tpu.dot_dimension_numbers<[1], [0], [0], [1], [0, 0, 1, 1], [], []>} : vector<4x4xbf16>, vector<4x256xbf16>, vector<4x256xf32> -> vector<4x256xf32>
    %12 = arith.addf %8, %11 : vector<4x256xf32>
    %c2 = arith.constant 2 : index
    %c0_11 = arith.constant 0 : index
    %c0_12 = arith.constant 0 : index
    %13 = vector.load %arg4[%c2, %c0_11, %c0_12] : memref<3x4x4xbf16, #tpu.memory_space<vmem>>, vector<1x4x4xbf16>
    %14 = vector.shape_cast %13 : vector<1x4x4xbf16> to vector<4x4xbf16>
    %15 = vector.extract_strided_slice %0 {offsets = [0, 3], sizes = [4, 253], strides = [1, 1]} : vector<4x256xbf16> to vector<4x253xbf16>
    %16 = vector.extract_strided_slice %2 {offsets = [0, 0], sizes = [4, 3], strides = [1, 1]} : vector<4x256xbf16> to vector<4x3xbf16>
    %17 = tpu.concatenate %15, %16 in 1 : vector<4x253xbf16>, vector<4x3xbf16> -> vector<4x256xbf16>
    %cst_13 = arith.constant dense<0.000000e+00> : vector<4x256xf32>
    %18 = tpu.matmul %14, %17, %cst_13 {dimension_numbers = #tpu.dot_dimension_numbers<[1], [0], [0], [1], [0, 0, 1, 1], [], []>} : vector<4x4xbf16>, vector<4x256xbf16>, vector<4x256xf32> -> vector<4x256xf32>
    %19 = arith.addf %12, %18 : vector<4x256xf32>
    %c0_14 = arith.constant 0 : index
    %c0_15 = arith.constant 0 : index
    %20 = vector.load %arg5[%c0_14, %c0_15] : memref<4x1xf32, #tpu.memory_space<vmem>>, vector<4x1xf32>
    %21 = vector.broadcast %20 : vector<4x1xf32> to vector<4x256xf32>
    %22 = arith.addf %19, %21 : vector<4x256xf32>
    %c0_16 = arith.constant 0 : index
    %c0_17 = arith.constant 0 : index
    %23 = vector.load %arg6[%c0_16, %c0_17] : memref<1x256xf32, #tpu.memory_space<vmem>>, vector<1x256xf32>
    %24 = vector.broadcast %23 : vector<1x256xf32> to vector<4x256xf32>
    %25 = arith.mulf %22, %24 : vector<4x256xf32>
    %26 = arith.truncf %25 : vector<4x256xf32> to vector<4x256xbf16>
    %c0_18 = arith.constant 0 : index
    %c0_19 = arith.constant 0 : index
    %27 = vector.load %arg7[%c0_18, %c0_19] : memref<4x256xbf16, #tpu.memory_space<vmem>>, vector<4x256xbf16>
    tpu.vector_store %arg7[%c0_18, %c0_19], %26 {strides = array<i32>} : memref<4x256xbf16, #tpu.memory_space<vmem>>, vector<4x256xbf16>,
    return
  }
  func.func @transform_0(%arg0: i32) -> (i32, i32) {
    %c1_i32 = arith.constant 1 : i32
    %0 = arith.subi %arg0, %c1_i32 : i32
    %c0_i32 = arith.constant 0 : i32
    %1 = arith.maxsi %0, %c0_i32 : i32
    %c0_i32_0 = arith.constant 0 : i32
    %c0_i32_1 = arith.constant 0 : i32
    return %c0_i32_0, %1 : i32, i32
  }
  func.func @transform_1(%arg0: i32) -> (i32, i32) {
    %c0_i32 = arith.constant 0 : i32
    %c0_i32_0 = arith.constant 0 : i32
    return %c0_i32, %arg0 : i32, i32
  }
  func.func @transform_2(%arg0: i32) -> (i32, i32) {
    %c1_i32 = arith.constant 1 : i32
    %0 = arith.addi %arg0, %c1_i32 : i32
    %c0_i32 = arith.constant 0 : i32
    %1 = arith.minsi %0, %c0_i32 : i32
    %c0_i32_0 = arith.constant 0 : i32
    %c0_i32_1 = arith.constant 0 : i32
    return %c0_i32_0, %1 : i32, i32
  }
  func.func @transform_3(%arg0: i32) -> (i32, i32, i32) {
    %c0_i32 = arith.constant 0 : i32
    %c0_i32_0 = arith.constant 0 : i32
    %c0_i32_1 = arith.constant 0 : i32
    %c0_i32_2 = arith.constant 0 : i32
    return %c0_i32, %c0_i32_0, %c0_i32_1 : i32, i32, i32
  }
  func.func @transform_4(%arg0: i32) -> (i32, i32) {
    %c0_i32 = arith.constant 0 : i32
    %c0_i32_0 = arith.constant 0 : i32
    %c0_i32_1 = arith.constant 0 : i32
    return %c0_i32, %c0_i32_0 : i32, i32
  }
  func.func @transform_5(%arg0: i32) -> (i32, i32) {
    %c0_i32 = arith.constant 0 : i32
    %c0_i32_0 = arith.constant 0 : i32
    return %c0_i32, %arg0 : i32, i32
  }
  func.func @transform_6(%arg0: i32) -> (i32, i32) {
    %c0_i32 = arith.constant 0 : i32
    %c0_i32_0 = arith.constant 0 : i32
    return %c0_i32, %arg0 : i32, i32
  }
}

module attributes {stable_mosaic.version = 11 : i64} {
  func.func @_conv_kernel(%arg0: i32, %arg1: memref<4x256xbf16, #tpu.memory_space<vmem>>, %arg2: memref<4x256xbf16, #tpu.memory_space<vmem>>, %arg3: memref<4x256xbf16, #tpu.memory_space<vmem>>, %arg4: memref<3x4x4xbf16, #tpu.memory_space<vmem>>, %arg5: memref<4x1xf32, #tpu.memory_space<vmem>>, %arg6: memref<1x256xf32, #tpu.memory_space<vmem>>, %arg7: memref<4x256xbf16, #tpu.memory_space<vmem>>) attributes {dimension_semantics = [#tpu.dimension_semantics<parallel>], iteration_bounds = array<i64: 1>, scalar_prefetch = 0 : i64, scratch_operands = 0 : i64, tpu.core_type = #tpu.core_type<tc>, window_params = [{transform_indices = @transform_0, window_bounds = array<i64: 4, 256>}, {transform_indices = @transform_1, window_bounds = array<i64: 4, 256>}, {transform_indices = @transform_2, window_bounds = array<i64: 4, 256>}, {pipeline_mode = #tpu.pipeline_mode<synchronous>, transform_indices = @transform_3, window_bounds = array<i64: 3, 4, 4>}, {pipeline_mode = #tpu.pipeline_mode<synchronous>, transform_indices = @transform_4, window_bounds = array<i64: 4, 1>}, {transform_indices = @transform_5, window_bounds = array<i64: 1, 256>}, {transform_indices = @transform_6, window_bounds = array<i64: 4, 256>}]} {
    %c0 = arith.constant 0 : index
    %c0_0 = arith.constant 0 : index
    %0 = vector.load %arg2[%c0, %c0_0] : memref<4x256xbf16, #tpu.memory_space<vmem>>, vector<4x256xbf16>
    %c0_1 = arith.constant 0 : index
    %c0_2 = arith.constant 0 : index
    %1 = vector.load %arg1[%c0_1, %c0_2] : memref<4x256xbf16, #tpu.memory_space<vmem>>, vector<4x256xbf16>
    %c0_3 = arith.constant 0 : index
    %c0_4 = arith.constant 0 : index
    %2 = vector.load %arg3[%c0_3, %c0_4] : memref<4x256xbf16, #tpu.memory_space<vmem>>, vector<4x256xbf16>
    %c0_5 = arith.constant 0 : index
    %c0_6 = arith.constant 0 : index
    %c0_7 = arith.constant 0 : index
    %3 = vector.load %arg4[%c0_5, %c0_6, %c0_7] : memref<3x4x4xbf16, #tpu.memory_space<vmem>>, vector<1x4x4xbf16>
    %4 = vector.shape_cast %3 : vector<1x4x4xbf16> to vector<4x4xbf16>
    %5 = vector.extract_strided_slice %1 {offsets = [0, 255], sizes = [4, 1], strides = [1, 1]} : vector<4x256xbf16> to vector<4x1xbf16>
    %6 = vector.extract_strided_slice %0 {offsets = [0, 0], sizes = [4, 255], strides = [1, 1]} : vector<4x256xbf16> to vector<4x255xbf16>
    %7 = tpu.concatenate %5, %6 in 1 : vector<4x1xbf16>, vector<4x255xbf16> -> vector<4x256xbf16>
    %cst = arith.constant dense<0.000000e+00> : vector<4x256xf32>
    %8 = tpu.matmul %4, %7, %cst {dimension_numbers = #tpu.dot_dimension_numbers<[1], [0], [0], [1], [0, 0, 1, 1], [], []>} : vector<4x4xbf16>, vector<4x256xbf16>, vector<4x256xf32> -> vector<4x256xf32>
    %c1 = arith.constant 1 : index
    %c0_8 = arith.constant 0 : index
    %c0_9 = arith.constant 0 : index
    %9 = vector.load %arg4[%c1, %c0_8, %c0_9] : memref<3x4x4xbf16, #tpu.memory_space<vmem>>, vector<1x4x4xbf16>
    %10 = vector.shape_cast %9 : vector<1x4x4xbf16> to vector<4x4xbf16>
    %cst_10 = arith.constant dense<0.000000e+00> : vector<4x256xf32>
    %11 = tpu.matmul %10, %0, %cst_10 {dimension_numbers = #tpu.dot_dimension_numbers<[1], [0], [0], [1], [0, 0, 1, 1], [], []>} : vector<4x4xbf16>, vector<4x256xbf16>, vector<4x256xf32> -> vector<4x256xf32>
    %12 = arith.addf %8, %11 : vector<4x256xf32>
    %c2 = arith.constant 2 : index
    %c0_11 = arith.constant 0 : index
    %c0_12 = arith.constant 0 : index
    %13 = vector.load %arg4[%c2, %c0_11, %c0_12] : memref<3x4x4xbf16, #tpu.memory_space<vmem>>, vector<1x4x4xbf16>
    %14 = vector.shape_cast %13 : vector<1x4x4xbf16> to vector<4x4xbf16>
    %15 = vector.extract_strided_slice %0 {offsets = [0, 1], sizes = [4, 255], strides = [1, 1]} : vector<4x256xbf16> to vector<4x255xbf16>
    %16 = vector.extract_strided_slice %2 {offsets = [0, 0], sizes = [4, 1], strides = [1, 1]} : vector<4x256xbf16> to vector<4x1xbf16>
    %17 = tpu.concatenate %15, %16 in 1 : vector<4x255xbf16>, vector<4x1xbf16> -> vector<4x256xbf16>
    %cst_13 = arith.constant dense<0.000000e+00> : vector<4x256xf32>
    %18 = tpu.matmul %14, %17, %cst_13 {dimension_numbers = #tpu.dot_dimension_numbers<[1], [0], [0], [1], [0, 0, 1, 1], [], []>} : vector<4x4xbf16>, vector<4x256xbf16>, vector<4x256xf32> -> vector<4x256xf32>
    %19 = arith.addf %12, %18 : vector<4x256xf32>
    %c0_14 = arith.constant 0 : index
    %c0_15 = arith.constant 0 : index
    %20 = vector.load %arg5[%c0_14, %c0_15] : memref<4x1xf32, #tpu.memory_space<vmem>>, vector<4x1xf32>
    %21 = vector.broadcast %20 : vector<4x1xf32> to vector<4x256xf32>
    %22 = arith.addf %19, %21 : vector<4x256xf32>
    %c0_16 = arith.constant 0 : index
    %c0_17 = arith.constant 0 : index
    %23 = vector.load %arg6[%c0_16, %c0_17] : memref<1x256xf32, #tpu.memory_space<vmem>>, vector<1x256xf32>
    %24 = vector.broadcast %23 : vector<1x256xf32> to vector<4x256xf32>
    %25 = arith.mulf %22, %24 : vector<4x256xf32>
    %26 = arith.truncf %25 : vector<4x256xf32> to vector<4x256xbf16>
    %c0_18 = arith.constant 0 : index
    %c0_19 = arith.constant 0 : index
    %27 = vector.load %arg7[%c0_18, %c0_19] : memref<4x256xbf16, #tpu.memory_space<vmem>>, vector<4x256xbf16>
    tpu.vector_store %arg7[%c0_18, %c0_19], %26 {strides = array<i32>} : memref<4x256xbf16, #tpu.memory_space<vmem>>, vector<4x256xbf16>,
    return
  }
  func.func @transform_0(%arg0: i32) -> (i32, i32) {
    %c1_i32 = arith.constant 1 : i32
    %0 = arith.subi %arg0, %c1_i32 : i32
    %c0_i32 = arith.constant 0 : i32
    %1 = arith.maxsi %0, %c0_i32 : i32
    %c0_i32_0 = arith.constant 0 : i32
    %c0_i32_1 = arith.constant 0 : i32
    return %c0_i32_0, %1 : i32, i32
  }
  func.func @transform_1(%arg0: i32) -> (i32, i32) {
    %c0_i32 = arith.constant 0 : i32
    %c0_i32_0 = arith.constant 0 : i32
    return %c0_i32, %arg0 : i32, i32
  }
  func.func @transform_2(%arg0: i32) -> (i32, i32) {
    %c1_i32 = arith.constant 1 : i32
    %0 = arith.addi %arg0, %c1_i32 : i32
    %c0_i32 = arith.constant 0 : i32
    %1 = arith.minsi %0, %c0_i32 : i32
    %c0_i32_0 = arith.constant 0 : i32
    %c0_i32_1 = arith.constant 0 : i32
    return %c0_i32_0, %1 : i32, i32
  }
  func.func @transform_3(%arg0: i32) -> (i32, i32, i32) {
    %c0_i32 = arith.constant 0 : i32
    %c0_i32_0 = arith.constant 0 : i32
    %c0_i32_1 = arith.constant 0 : i32
    %c0_i32_2 = arith.constant 0 : i32
    return %c0_i32, %c0_i32_0, %c0_i32_1 : i32, i32, i32
  }
  func.func @transform_4(%arg0: i32) -> (i32, i32) {
    %c0_i32 = arith.constant 0 : i32
    %c0_i32_0 = arith.constant 0 : i32
    %c0_i32_1 = arith.constant 0 : i32
    return %c0_i32, %c0_i32_0 : i32, i32
  }
  func.func @transform_5(%arg0: i32) -> (i32, i32) {
    %c0_i32 = arith.constant 0 : i32
    %c0_i32_0 = arith.constant 0 : i32
    return %c0_i32, %arg0 : i32, i32
  }
  func.func @transform_6(%arg0: i32) -> (i32, i32) {
    %c0_i32 = arith.constant 0 : i32
    %c0_i32_0 = arith.constant 0 : i32
    return %c0_i32, %arg0 : i32, i32
  }
}

module attributes {stable_mosaic.version = 11 : i64} {
  func.func @_conv_kernel(%arg0: i32, %arg1: memref<8x256xbf16, #tpu.memory_space<vmem>>, %arg2: memref<1x16x8xbf16, #tpu.memory_space<vmem>>, %arg3: memref<16x1xf32, #tpu.memory_space<vmem>>, %arg4: memref<1x256xf32, #tpu.memory_space<vmem>>, %arg5: memref<16x256xbf16, #tpu.memory_space<vmem>>, %arg6: memref<16x256xbf16, #tpu.memory_space<vmem>>) attributes {dimension_semantics = [#tpu.dimension_semantics<parallel>], iteration_bounds = array<i64: 3>, scalar_prefetch = 0 : i64, scratch_operands = 0 : i64, tpu.core_type = #tpu.core_type<tc>, window_params = [{transform_indices = @transform_0, window_bounds = array<i64: 8, 256>}, {pipeline_mode = #tpu.pipeline_mode<synchronous>, transform_indices = @transform_1, window_bounds = array<i64: 1, 16, 8>}, {pipeline_mode = #tpu.pipeline_mode<synchronous>, transform_indices = @transform_2, window_bounds = array<i64: 16, 1>}, {transform_indices = @transform_3, window_bounds = array<i64: 1, 256>}, {transform_indices = @transform_4, window_bounds = array<i64: 16, 256>}, {transform_indices = @transform_5, window_bounds = array<i64: 16, 256>}]} {
    %c0 = arith.constant 0 : index
    %c0_0 = arith.constant 0 : index
    %0 = vector.load %arg1[%c0, %c0_0] : memref<8x256xbf16, #tpu.memory_space<vmem>>, vector<8x256xbf16>
    %c0_1 = arith.constant 0 : index
    %c0_2 = arith.constant 0 : index
    %c0_3 = arith.constant 0 : index
    %1 = vector.load %arg2[%c0_1, %c0_2, %c0_3] : memref<1x16x8xbf16, #tpu.memory_space<vmem>>, vector<1x16x8xbf16>
    %2 = vector.shape_cast %1 : vector<1x16x8xbf16> to vector<16x8xbf16>
    %cst = arith.constant dense<0.000000e+00> : vector<16x256xf32>
    %3 = tpu.matmul %2, %0, %cst {dimension_numbers = #tpu.dot_dimension_numbers<[1], [0], [0], [1], [0, 0, 1, 1], [], []>} : vector<16x8xbf16>, vector<8x256xbf16>, vector<16x256xf32> -> vector<16x256xf32>
    %c0_4 = arith.constant 0 : index
    %c0_5 = arith.constant 0 : index
    %4 = vector.load %arg3[%c0_4, %c0_5] : memref<16x1xf32, #tpu.memory_space<vmem>>, vector<16x1xf32>
    %5 = vector.broadcast %4 : vector<16x1xf32> to vector<16x256xf32>
    %6 = arith.addf %3, %5 : vector<16x256xf32>
    %c0_6 = arith.constant 0 : index
    %c0_7 = arith.constant 0 : index
    %7 = vector.load %arg5[%c0_6, %c0_7] : memref<16x256xbf16, #tpu.memory_space<vmem>>, vector<16x256xbf16>
    %8 = arith.extf %7 : vector<16x256xbf16> to vector<16x256xf32>
    %9 = arith.addf %6, %8 : vector<16x256xf32>
    %cst_8 = arith.constant 0.000000e+00 : f32
    %10 = vector.broadcast %cst_8 : f32 to vector<16x256xf32>
    %11 = arith.maximumf %9, %10 : vector<16x256xf32>
    %c0_9 = arith.constant 0 : index
    %c0_10 = arith.constant 0 : index
    %12 = vector.load %arg4[%c0_9, %c0_10] : memref<1x256xf32, #tpu.memory_space<vmem>>, vector<1x256xf32>
    %13 = vector.broadcast %12 : vector<1x256xf32> to vector<16x256xf32>
    %14 = arith.mulf %11, %13 : vector<16x256xf32>
    %15 = arith.truncf %14 : vector<16x256xf32> to vector<16x256xbf16>
    %c0_11 = arith.constant 0 : index
    %c0_12 = arith.constant 0 : index
    %16 = vector.load %arg6[%c0_11, %c0_12] : memref<16x256xbf16, #tpu.memory_space<vmem>>, vector<16x256xbf16>
    tpu.vector_store %arg6[%c0_11, %c0_12], %15 {strides = array<i32>} : memref<16x256xbf16, #tpu.memory_space<vmem>>, vector<16x256xbf16>,
    return
  }
  func.func @transform_0(%arg0: i32) -> (i32, i32) {
    %c0_i32 = arith.constant 0 : i32
    %c0_i32_0 = arith.constant 0 : i32
    return %c0_i32, %arg0 : i32, i32
  }
  func.func @transform_1(%arg0: i32) -> (i32, i32, i32) {
    %c0_i32 = arith.constant 0 : i32
    %c0_i32_0 = arith.constant 0 : i32
    %c0_i32_1 = arith.constant 0 : i32
    %c0_i32_2 = arith.constant 0 : i32
    return %c0_i32, %c0_i32_0, %c0_i32_1 : i32, i32, i32
  }
  func.func @transform_2(%arg0: i32) -> (i32, i32) {
    %c0_i32 = arith.constant 0 : i32
    %c0_i32_0 = arith.constant 0 : i32
    %c0_i32_1 = arith.constant 0 : i32
    return %c0_i32, %c0_i32_0 : i32, i32
  }
  func.func @transform_3(%arg0: i32) -> (i32, i32) {
    %c0_i32 = arith.constant 0 : i32
    %c0_i32_0 = arith.constant 0 : i32
    return %c0_i32, %arg0 : i32, i32
  }
  func.func @transform_4(%arg0: i32) -> (i32, i32) {
    %c0_i32 = arith.constant 0 : i32
    %c0_i32_0 = arith.constant 0 : i32
    return %c0_i32, %arg0 : i32, i32
  }
  func.func @transform_5(%arg0: i32) -> (i32, i32) {
    %c0_i32 = arith.constant 0 : i32
    %c0_i32_0 = arith.constant 0 : i32
    return %c0_i32, %arg0 : i32, i32
  }
}

module attributes {stable_mosaic.version = 11 : i64} {
  func.func @_add_relu_kernel(%arg0: i32, %arg1: memref<4x256xbf16, #tpu.memory_space<vmem>>, %arg2: memref<4x256xbf16, #tpu.memory_space<vmem>>, %arg3: memref<4x256xbf16, #tpu.memory_space<vmem>>) attributes {dimension_semantics = [#tpu.dimension_semantics<parallel>], iteration_bounds = array<i64: 3>, scalar_prefetch = 0 : i64, scratch_operands = 0 : i64, tpu.core_type = #tpu.core_type<tc>, window_params = [{transform_indices = @transform_0, window_bounds = array<i64: 4, 256>}, {transform_indices = @transform_1, window_bounds = array<i64: 4, 256>}, {transform_indices = @transform_2, window_bounds = array<i64: 4, 256>}]} {
    %c0 = arith.constant 0 : index
    %c0_0 = arith.constant 0 : index
    %0 = vector.load %arg1[%c0, %c0_0] : memref<4x256xbf16, #tpu.memory_space<vmem>>, vector<4x256xbf16>
    %1 = arith.extf %0 : vector<4x256xbf16> to vector<4x256xf32>
    %c0_1 = arith.constant 0 : index
    %c0_2 = arith.constant 0 : index
    %2 = vector.load %arg2[%c0_1, %c0_2] : memref<4x256xbf16, #tpu.memory_space<vmem>>, vector<4x256xbf16>
    %3 = arith.extf %2 : vector<4x256xbf16> to vector<4x256xf32>
    %4 = arith.addf %1, %3 : vector<4x256xf32>
    %cst = arith.constant 0.000000e+00 : f32
    %5 = vector.broadcast %cst : f32 to vector<4x256xf32>
    %6 = arith.maximumf %4, %5 : vector<4x256xf32>
    %7 = arith.truncf %6 : vector<4x256xf32> to vector<4x256xbf16>
    %c0_3 = arith.constant 0 : index
    %c0_4 = arith.constant 0 : index
    %8 = vector.load %arg3[%c0_3, %c0_4] : memref<4x256xbf16, #tpu.memory_space<vmem>>, vector<4x256xbf16>
    tpu.vector_store %arg3[%c0_3, %c0_4], %7 {strides = array<i32>} : memref<4x256xbf16, #tpu.memory_space<vmem>>, vector<4x256xbf16>,
    return
  }
  func.func @transform_0(%arg0: i32) -> (i32, i32) {
    %c0_i32 = arith.constant 0 : i32
    %c0_i32_0 = arith.constant 0 : i32
    return %c0_i32, %arg0 : i32, i32
  }
  func.func @transform_1(%arg0: i32) -> (i32, i32) {
    %c0_i32 = arith.constant 0 : i32
    %c0_i32_0 = arith.constant 0 : i32
    return %c0_i32, %arg0 : i32, i32
  }
  func.func @transform_2(%arg0: i32) -> (i32, i32) {
    %c0_i32 = arith.constant 0 : i32
    %c0_i32_0 = arith.constant 0 : i32
    return %c0_i32, %arg0 : i32, i32
  }
}

module attributes {stable_mosaic.version = 11 : i64} {
  func.func @_conv_kernel(%arg0: i32, %arg1: memref<16x256xbf16, #tpu.memory_space<vmem>>, %arg2: memref<16x256xbf16, #tpu.memory_space<vmem>>, %arg3: memref<16x256xbf16, #tpu.memory_space<vmem>>, %arg4: memref<9x8x16xbf16, #tpu.memory_space<vmem>>, %arg5: memref<8x1xf32, #tpu.memory_space<vmem>>, %arg6: memref<1x256xf32, #tpu.memory_space<vmem>>, %arg7: memref<8x256xbf16, #tpu.memory_space<vmem>>) attributes {dimension_semantics = [#tpu.dimension_semantics<parallel>], iteration_bounds = array<i64: 3>, scalar_prefetch = 0 : i64, scratch_operands = 0 : i64, tpu.core_type = #tpu.core_type<tc>, window_params = [{transform_indices = @transform_0, window_bounds = array<i64: 16, 256>}, {transform_indices = @transform_1, window_bounds = array<i64: 16, 256>}, {transform_indices = @transform_2, window_bounds = array<i64: 16, 256>}, {pipeline_mode = #tpu.pipeline_mode<synchronous>, transform_indices = @transform_3, window_bounds = array<i64: 9, 8, 16>}, {pipeline_mode = #tpu.pipeline_mode<synchronous>, transform_indices = @transform_4, window_bounds = array<i64: 8, 1>}, {transform_indices = @transform_5, window_bounds = array<i64: 1, 256>}, {transform_indices = @transform_6, window_bounds = array<i64: 8, 256>}]} {
    %c0 = arith.constant 0 : index
    %c0_0 = arith.constant 0 : index
    %0 = vector.load %arg2[%c0, %c0_0] : memref<16x256xbf16, #tpu.memory_space<vmem>>, vector<16x256xbf16>
    %c0_1 = arith.constant 0 : index
    %c0_2 = arith.constant 0 : index
    %1 = vector.load %arg1[%c0_1, %c0_2] : memref<16x256xbf16, #tpu.memory_space<vmem>>, vector<16x256xbf16>
    %c0_3 = arith.constant 0 : index
    %c0_4 = arith.constant 0 : index
    %2 = vector.load %arg3[%c0_3, %c0_4] : memref<16x256xbf16, #tpu.memory_space<vmem>>, vector<16x256xbf16>
    %c0_5 = arith.constant 0 : index
    %c0_6 = arith.constant 0 : index
    %c0_7 = arith.constant 0 : index
    %3 = vector.load %arg4[%c0_5, %c0_6, %c0_7] : memref<9x8x16xbf16, #tpu.memory_space<vmem>>, vector<1x8x16xbf16>
    %4 = vector.shape_cast %3 : vector<1x8x16xbf16> to vector<8x16xbf16>
    %5 = vector.extract_strided_slice %1 {offsets = [0, 237], sizes = [16, 19], strides = [1, 1]} : vector<16x256xbf16> to vector<16x19xbf16>
    %6 = vector.extract_strided_slice %0 {offsets = [0, 0], sizes = [16, 237], strides = [1, 1]} : vector<16x256xbf16> to vector<16x237xbf16>
    %7 = tpu.concatenate %5, %6 in 1 : vector<16x19xbf16>, vector<16x237xbf16> -> vector<16x256xbf16>
    %cst = arith.constant dense<0.000000e+00> : vector<8x256xf32>
    %8 = tpu.matmul %4, %7, %cst {dimension_numbers = #tpu.dot_dimension_numbers<[1], [0], [0], [1], [0, 0, 1, 1], [], []>} : vector<8x16xbf16>, vector<16x256xbf16>, vector<8x256xf32> -> vector<8x256xf32>
    %c1 = arith.constant 1 : index
    %c0_8 = arith.constant 0 : index
    %c0_9 = arith.constant 0 : index
    %9 = vector.load %arg4[%c1, %c0_8, %c0_9] : memref<9x8x16xbf16, #tpu.memory_space<vmem>>, vector<1x8x16xbf16>
    %10 = vector.shape_cast %9 : vector<1x8x16xbf16> to vector<8x16xbf16>
    %11 = vector.extract_strided_slice %1 {offsets = [0, 238], sizes = [16, 18], strides = [1, 1]} : vector<16x256xbf16> to vector<16x18xbf16>
    %12 = vector.extract_strided_slice %0 {offsets = [0, 0], sizes = [16, 238], strides = [1, 1]} : vector<16x256xbf16> to vector<16x238xbf16>
    %13 = tpu.concatenate %11, %12 in 1 : vector<16x18xbf16>, vector<16x238xbf16> -> vector<16x256xbf16>
    %cst_10 = arith.constant dense<0.000000e+00> : vector<8x256xf32>
    %14 = tpu.matmul %10, %13, %cst_10 {dimension_numbers = #tpu.dot_dimension_numbers<[1], [0], [0], [1], [0, 0, 1, 1], [], []>} : vector<8x16xbf16>, vector<16x256xbf16>, vector<8x256xf32> -> vector<8x256xf32>
    %15 = arith.addf %8, %14 : vector<8x256xf32>
    %c2 = arith.constant 2 : index
    %c0_11 = arith.constant 0 : index
    %c0_12 = arith.constant 0 : index
    %16 = vector.load %arg4[%c2, %c0_11, %c0_12] : memref<9x8x16xbf16, #tpu.memory_space<vmem>>, vector<1x8x16xbf16>
    %17 = vector.shape_cast %16 : vector<1x8x16xbf16> to vector<8x16xbf16>
    %18 = vector.extract_strided_slice %1 {offsets = [0, 239], sizes = [16, 17], strides = [1, 1]} : vector<16x256xbf16> to vector<16x17xbf16>
    %19 = vector.extract_strided_slice %0 {offsets = [0, 0], sizes = [16, 239], strides = [1, 1]} : vector<16x256xbf16> to vector<16x239xbf16>
    %20 = tpu.concatenate %18, %19 in 1 : vector<16x17xbf16>, vector<16x239xbf16> -> vector<16x256xbf16>
    %cst_13 = arith.constant dense<0.000000e+00> : vector<8x256xf32>
    %21 = tpu.matmul %17, %20, %cst_13 {dimension_numbers = #tpu.dot_dimension_numbers<[1], [0], [0], [1], [0, 0, 1, 1], [], []>} : vector<8x16xbf16>, vector<16x256xbf16>, vector<8x256xf32> -> vector<8x256xf32>
    %22 = arith.addf %15, %21 : vector<8x256xf32>
    %c3 = arith.constant 3 : index
    %c0_14 = arith.constant 0 : index
    %c0_15 = arith.constant 0 : index
    %23 = vector.load %arg4[%c3, %c0_14, %c0_15] : memref<9x8x16xbf16, #tpu.memory_space<vmem>>, vector<1x8x16xbf16>
    %24 = vector.shape_cast %23 : vector<1x8x16xbf16> to vector<8x16xbf16>
    %25 = vector.extract_strided_slice %1 {offsets = [0, 255], sizes = [16, 1], strides = [1, 1]} : vector<16x256xbf16> to vector<16x1xbf16>
    %26 = vector.extract_strided_slice %0 {offsets = [0, 0], sizes = [16, 255], strides = [1, 1]} : vector<16x256xbf16> to vector<16x255xbf16>
    %27 = tpu.concatenate %25, %26 in 1 : vector<16x1xbf16>, vector<16x255xbf16> -> vector<16x256xbf16>
    %cst_16 = arith.constant dense<0.000000e+00> : vector<8x256xf32>
    %28 = tpu.matmul %24, %27, %cst_16 {dimension_numbers = #tpu.dot_dimension_numbers<[1], [0], [0], [1], [0, 0, 1, 1], [], []>} : vector<8x16xbf16>, vector<16x256xbf16>, vector<8x256xf32> -> vector<8x256xf32>
    %29 = arith.addf %22, %28 : vector<8x256xf32>
    %c4 = arith.constant 4 : index
    %c0_17 = arith.constant 0 : index
    %c0_18 = arith.constant 0 : index
    %30 = vector.load %arg4[%c4, %c0_17, %c0_18] : memref<9x8x16xbf16, #tpu.memory_space<vmem>>, vector<1x8x16xbf16>
    %31 = vector.shape_cast %30 : vector<1x8x16xbf16> to vector<8x16xbf16>
    %cst_19 = arith.constant dense<0.000000e+00> : vector<8x256xf32>
    %32 = tpu.matmul %31, %0, %cst_19 {dimension_numbers = #tpu.dot_dimension_numbers<[1], [0], [0], [1], [0, 0, 1, 1], [], []>} : vector<8x16xbf16>, vector<16x256xbf16>, vector<8x256xf32> -> vector<8x256xf32>
    %33 = arith.addf %29, %32 : vector<8x256xf32>
    %c5 = arith.constant 5 : index
    %c0_20 = arith.constant 0 : index
    %c0_21 = arith.constant 0 : index
    %34 = vector.load %arg4[%c5, %c0_20, %c0_21] : memref<9x8x16xbf16, #tpu.memory_space<vmem>>, vector<1x8x16xbf16>
    %35 = vector.shape_cast %34 : vector<1x8x16xbf16> to vector<8x16xbf16>
    %36 = vector.extract_strided_slice %0 {offsets = [0, 1], sizes = [16, 255], strides = [1, 1]} : vector<16x256xbf16> to vector<16x255xbf16>
    %37 = vector.extract_strided_slice %2 {offsets = [0, 0], sizes = [16, 1], strides = [1, 1]} : vector<16x256xbf16> to vector<16x1xbf16>
    %38 = tpu.concatenate %36, %37 in 1 : vector<16x255xbf16>, vector<16x1xbf16> -> vector<16x256xbf16>
    %cst_22 = arith.constant dense<0.000000e+00> : vector<8x256xf32>
    %39 = tpu.matmul %35, %38, %cst_22 {dimension_numbers = #tpu.dot_dimension_numbers<[1], [0], [0], [1], [0, 0, 1, 1], [], []>} : vector<8x16xbf16>, vector<16x256xbf16>, vector<8x256xf32> -> vector<8x256xf32>
    %40 = arith.addf %33, %39 : vector<8x256xf32>
    %c6 = arith.constant 6 : index
    %c0_23 = arith.constant 0 : index
    %c0_24 = arith.constant 0 : index
    %41 = vector.load %arg4[%c6, %c0_23, %c0_24] : memref<9x8x16xbf16, #tpu.memory_space<vmem>>, vector<1x8x16xbf16>
    %42 = vector.shape_cast %41 : vector<1x8x16xbf16> to vector<8x16xbf16>
    %43 = vector.extract_strided_slice %0 {offsets = [0, 17], sizes = [16, 239], strides = [1, 1]} : vector<16x256xbf16> to vector<16x239xbf16>
    %44 = vector.extract_strided_slice %2 {offsets = [0, 0], sizes = [16, 17], strides = [1, 1]} : vector<16x256xbf16> to vector<16x17xbf16>
    %45 = tpu.concatenate %43, %44 in 1 : vector<16x239xbf16>, vector<16x17xbf16> -> vector<16x256xbf16>
    %cst_25 = arith.constant dense<0.000000e+00> : vector<8x256xf32>
    %46 = tpu.matmul %42, %45, %cst_25 {dimension_numbers = #tpu.dot_dimension_numbers<[1], [0], [0], [1], [0, 0, 1, 1], [], []>} : vector<8x16xbf16>, vector<16x256xbf16>, vector<8x256xf32> -> vector<8x256xf32>
    %47 = arith.addf %40, %46 : vector<8x256xf32>
    %c7 = arith.constant 7 : index
    %c0_26 = arith.constant 0 : index
    %c0_27 = arith.constant 0 : index
    %48 = vector.load %arg4[%c7, %c0_26, %c0_27] : memref<9x8x16xbf16, #tpu.memory_space<vmem>>, vector<1x8x16xbf16>
    %49 = vector.shape_cast %48 : vector<1x8x16xbf16> to vector<8x16xbf16>
    %50 = vector.extract_strided_slice %0 {offsets = [0, 18], sizes = [16, 238], strides = [1, 1]} : vector<16x256xbf16> to vector<16x238xbf16>
    %51 = vector.extract_strided_slice %2 {offsets = [0, 0], sizes = [16, 18], strides = [1, 1]} : vector<16x256xbf16> to vector<16x18xbf16>
    %52 = tpu.concatenate %50, %51 in 1 : vector<16x238xbf16>, vector<16x18xbf16> -> vector<16x256xbf16>
    %cst_28 = arith.constant dense<0.000000e+00> : vector<8x256xf32>
    %53 = tpu.matmul %49, %52, %cst_28 {dimension_numbers = #tpu.dot_dimension_numbers<[1], [0], [0], [1], [0, 0, 1, 1], [], []>} : vector<8x16xbf16>, vector<16x256xbf16>, vector<8x256xf32> -> vector<8x256xf32>
    %54 = arith.addf %47, %53 : vector<8x256xf32>
    %c8 = arith.constant 8 : index
    %c0_29 = arith.constant 0 : index
    %c0_30 = arith.constant 0 : index
    %55 = vector.load %arg4[%c8, %c0_29, %c0_30] : memref<9x8x16xbf16, #tpu.memory_space<vmem>>, vector<1x8x16xbf16>
    %56 = vector.shape_cast %55 : vector<1x8x16xbf16> to vector<8x16xbf16>
    %57 = vector.extract_strided_slice %0 {offsets = [0, 19], sizes = [16, 237], strides = [1, 1]} : vector<16x256xbf16> to vector<16x237xbf16>
    %58 = vector.extract_strided_slice %2 {offsets = [0, 0], sizes = [16, 19], strides = [1, 1]} : vector<16x256xbf16> to vector<16x19xbf16>
    %59 = tpu.concatenate %57, %58 in 1 : vector<16x237xbf16>, vector<16x19xbf16> -> vector<16x256xbf16>
    %cst_31 = arith.constant dense<0.000000e+00> : vector<8x256xf32>
    %60 = tpu.matmul %56, %59, %cst_31 {dimension_numbers = #tpu.dot_dimension_numbers<[1], [0], [0], [1], [0, 0, 1, 1], [], []>} : vector<8x16xbf16>, vector<16x256xbf16>, vector<8x256xf32> -> vector<8x256xf32>
    %61 = arith.addf %54, %60 : vector<8x256xf32>
    %c0_32 = arith.constant 0 : index
    %c0_33 = arith.constant 0 : index
    %62 = vector.load %arg5[%c0_32, %c0_33] : memref<8x1xf32, #tpu.memory_space<vmem>>, vector<8x1xf32>
    %63 = vector.broadcast %62 : vector<8x1xf32> to vector<8x256xf32>
    %64 = arith.addf %61, %63 : vector<8x256xf32>
    %cst_34 = arith.constant 0.000000e+00 : f32
    %65 = vector.broadcast %cst_34 : f32 to vector<8x256xf32>
    %66 = arith.maximumf %64, %65 : vector<8x256xf32>
    %c0_35 = arith.constant 0 : index
    %c0_36 = arith.constant 0 : index
    %67 = vector.load %arg6[%c0_35, %c0_36] : memref<1x256xf32, #tpu.memory_space<vmem>>, vector<1x256xf32>
    %68 = vector.broadcast %67 : vector<1x256xf32> to vector<8x256xf32>
    %69 = arith.mulf %66, %68 : vector<8x256xf32>
    %70 = arith.truncf %69 : vector<8x256xf32> to vector<8x256xbf16>
    %c0_37 = arith.constant 0 : index
    %c0_38 = arith.constant 0 : index
    %71 = vector.load %arg7[%c0_37, %c0_38] : memref<8x256xbf16, #tpu.memory_space<vmem>>, vector<8x256xbf16>
    tpu.vector_store %arg7[%c0_37, %c0_38], %70 {strides = array<i32>} : memref<8x256xbf16, #tpu.memory_space<vmem>>, vector<8x256xbf16>,
    return
  }
  func.func @transform_0(%arg0: i32) -> (i32, i32) {
    %c1_i32 = arith.constant 1 : i32
    %0 = arith.subi %arg0, %c1_i32 : i32
    %c0_i32 = arith.constant 0 : i32
    %1 = arith.maxsi %0, %c0_i32 : i32
    %c0_i32_0 = arith.constant 0 : i32
    %c0_i32_1 = arith.constant 0 : i32
    return %c0_i32_0, %1 : i32, i32
  }
  func.func @transform_1(%arg0: i32) -> (i32, i32) {
    %c0_i32 = arith.constant 0 : i32
    %c0_i32_0 = arith.constant 0 : i32
    return %c0_i32, %arg0 : i32, i32
  }
  func.func @transform_2(%arg0: i32) -> (i32, i32) {
    %c1_i32 = arith.constant 1 : i32
    %0 = arith.addi %arg0, %c1_i32 : i32
    %c2_i32 = arith.constant 2 : i32
    %1 = arith.minsi %0, %c2_i32 : i32
    %c0_i32 = arith.constant 0 : i32
    %c0_i32_0 = arith.constant 0 : i32
    return %c0_i32, %1 : i32, i32
  }
  func.func @transform_3(%arg0: i32) -> (i32, i32, i32) {
    %c0_i32 = arith.constant 0 : i32
    %c0_i32_0 = arith.constant 0 : i32
    %c0_i32_1 = arith.constant 0 : i32
    %c0_i32_2 = arith.constant 0 : i32
    return %c0_i32, %c0_i32_0, %c0_i32_1 : i32, i32, i32
  }
  func.func @transform_4(%arg0: i32) -> (i32, i32) {
    %c0_i32 = arith.constant 0 : i32
    %c0_i32_0 = arith.constant 0 : i32
    %c0_i32_1 = arith.constant 0 : i32
    return %c0_i32, %c0_i32_0 : i32, i32
  }
  func.func @transform_5(%arg0: i32) -> (i32, i32) {
    %c0_i32 = arith.constant 0 : i32
    %c0_i32_0 = arith.constant 0 : i32
    return %c0_i32, %arg0 : i32, i32
  }
  func.func @transform_6(%arg0: i32) -> (i32, i32) {
    %c0_i32 = arith.constant 0 : i32
    %c0_i32_0 = arith.constant 0 : i32
    return %c0_i32, %arg0 : i32, i32
  }
}

module attributes {stable_mosaic.version = 11 : i64} {
  func.func @_conv_kernel(%arg0: i32, %arg1: memref<8x256xbf16, #tpu.memory_space<vmem>>, %arg2: memref<1x8x8xbf16, #tpu.memory_space<vmem>>, %arg3: memref<8x1xf32, #tpu.memory_space<vmem>>, %arg4: memref<1x256xf32, #tpu.memory_space<vmem>>, %arg5: memref<8x256xbf16, #tpu.memory_space<vmem>>) attributes {dimension_semantics = [#tpu.dimension_semantics<parallel>], iteration_bounds = array<i64: 3>, scalar_prefetch = 0 : i64, scratch_operands = 0 : i64, tpu.core_type = #tpu.core_type<tc>, window_params = [{transform_indices = @transform_0, window_bounds = array<i64: 8, 256>}, {pipeline_mode = #tpu.pipeline_mode<synchronous>, transform_indices = @transform_1, window_bounds = array<i64: 1, 8, 8>}, {pipeline_mode = #tpu.pipeline_mode<synchronous>, transform_indices = @transform_2, window_bounds = array<i64: 8, 1>}, {transform_indices = @transform_3, window_bounds = array<i64: 1, 256>}, {transform_indices = @transform_4, window_bounds = array<i64: 8, 256>}]} {
    %c0 = arith.constant 0 : index
    %c0_0 = arith.constant 0 : index
    %0 = vector.load %arg1[%c0, %c0_0] : memref<8x256xbf16, #tpu.memory_space<vmem>>, vector<8x256xbf16>
    %c0_1 = arith.constant 0 : index
    %c0_2 = arith.constant 0 : index
    %c0_3 = arith.constant 0 : index
    %1 = vector.load %arg2[%c0_1, %c0_2, %c0_3] : memref<1x8x8xbf16, #tpu.memory_space<vmem>>, vector<1x8x8xbf16>
    %2 = vector.shape_cast %1 : vector<1x8x8xbf16> to vector<8x8xbf16>
    %cst = arith.constant dense<0.000000e+00> : vector<8x256xf32>
    %3 = tpu.matmul %2, %0, %cst {dimension_numbers = #tpu.dot_dimension_numbers<[1], [0], [0], [1], [0, 0, 1, 1], [], []>} : vector<8x8xbf16>, vector<8x256xbf16>, vector<8x256xf32> -> vector<8x256xf32>
    %c0_4 = arith.constant 0 : index
    %c0_5 = arith.constant 0 : index
    %4 = vector.load %arg3[%c0_4, %c0_5] : memref<8x1xf32, #tpu.memory_space<vmem>>, vector<8x1xf32>
    %5 = vector.broadcast %4 : vector<8x1xf32> to vector<8x256xf32>
    %6 = arith.addf %3, %5 : vector<8x256xf32>
    %c0_6 = arith.constant 0 : index
    %c0_7 = arith.constant 0 : index
    %7 = vector.load %arg4[%c0_6, %c0_7] : memref<1x256xf32, #tpu.memory_space<vmem>>, vector<1x256xf32>
    %8 = vector.broadcast %7 : vector<1x256xf32> to vector<8x256xf32>
    %9 = arith.mulf %6, %8 : vector<8x256xf32>
    %10 = arith.truncf %9 : vector<8x256xf32> to vector<8x256xbf16>
    %c0_8 = arith.constant 0 : index
    %c0_9 = arith.constant 0 : index
    %11 = vector.load %arg5[%c0_8, %c0_9] : memref<8x256xbf16, #tpu.memory_space<vmem>>, vector<8x256xbf16>
    tpu.vector_store %arg5[%c0_8, %c0_9], %10 {strides = array<i32>} : memref<8x256xbf16, #tpu.memory_space<vmem>>, vector<8x256xbf16>,
    return
  }
  func.func @transform_0(%arg0: i32) -> (i32, i32) {
    %c0_i32 = arith.constant 0 : i32
    %c0_i32_0 = arith.constant 0 : i32
    return %c0_i32, %arg0 : i32, i32
  }
  func.func @transform_1(%arg0: i32) -> (i32, i32, i32) {
    %c0_i32 = arith.constant 0 : i32
    %c0_i32_0 = arith.constant 0 : i32
    %c0_i32_1 = arith.constant 0 : i32
    %c0_i32_2 = arith.constant 0 : i32
    return %c0_i32, %c0_i32_0, %c0_i32_1 : i32, i32, i32
  }
  func.func @transform_2(%arg0: i32) -> (i32, i32) {
    %c0_i32 = arith.constant 0 : i32
    %c0_i32_0 = arith.constant 0 : i32
    %c0_i32_1 = arith.constant 0 : i32
    return %c0_i32, %c0_i32_0 : i32, i32
  }
  func.func @transform_3(%arg0: i32) -> (i32, i32) {
    %c0_i32 = arith.constant 0 : i32
    %c0_i32_0 = arith.constant 0 : i32
    return %c0_i32, %arg0 : i32, i32
  }
  func.func @transform_4(%arg0: i32) -> (i32, i32) {
    %c0_i32 = arith.constant 0 : i32
    %c0_i32_0 = arith.constant 0 : i32
    return %c0_i32, %arg0 : i32, i32
  }
}

</mosaic_0001>

<llo_original>
// kernel: sp_head_forward.24
$region0: #{sp_head_forward.24}
  #allocation0 [shape = 'u32[]', space=smem, size = 0x4, offset = 0x4, fixed_abs, tag = 'smem constant byte address 0x4 - core index']
  #allocation1 [shape = 'u32[144,128]{1,0:T(1,128)}', space=vmem, size = 0x12000, scoped, tag = 'internal scratch']
  %s0 = inlined_call_operand.vmem [shape: bf16[16,768], index: 0, kind: input, shape index: {}]
  %s1 = inlined_call_operand.vmem [shape: bf16[1,8,16], index: 1, kind: input, shape index: {}]
  %s2 = inlined_call_operand.vmem [shape: f32[8,1], index: 2, kind: input, shape index: {}]
  %s3 = inlined_call_operand.vmem [shape: f32[1,768], index: 3, kind: input, shape index: {}]
  %s4 = inlined_call_operand.vmem [shape: bf16[8,768], index: 4, kind: output, shape index: {}]
  %s5 = sld [smem:[#allocation0]]
  $region87: #{sp_head_forward.24} parent=0
    _
  %s7 = ssub.s32 1, %s5
  %s8 = scalar_select 0, %s7, %s5
  $region1: #{sp_head_forward.24} parent=0
    #allocation2 [shape = 'u8[16384]{0}', space=vmem, size = 0x4000, scoped, tag = 'input window, operand 0']
    loop: start=0, step=1, limit=5
    $region2: #{sp_head_forward.24} parent=1 // loop_pre_header
      _
    $region3: #{sp_head_forward.24} parent=1 // loop_header
      %s10 = sphi 0, %s14
      %p11 = scmp.ge.s32.totalorder %s10, 5
      %s20 = sphi 0, %s22
      %s23 = sphi 0, %s20
      %s24 = sphi 0, %s23
      %s40 = sphi 0, %s24
      %s44 = sphi 0, %s44
      %s46 = sphi 0, %s44
      %s47 = sphi 0, %s46
      %s61 = sphi 0, %s47
      %s65 = sphi 0, %s65
      %s67 = sphi 0, %s65
      %s68 = sphi 0, %s67
      %s82 = sphi 0, %s68
      %s88 = sphi 0, %s90
      %s91 = sphi 0, %s88
      %s92 = sphi 0, %s91
      %s108 = sphi 0, %s92
      %s114 = sphi 0, %s116
      %s117 = sphi 0, %s114
      %s118 = sphi 0, %s117
      %s134 = sphi 0, %s118
    $region4: #{sp_head_forward.24} parent=1 // loop_header_branch
      %13 = sbr.rel (%p11) target = $region8
    $region5: #{sp_head_forward.24} parent=1 // loop_body
      %s15 = ssub.s32 %s10, 1
      %s16 = ssub.s32 %s10, 2
      %s17 = sadd.s32 %s10, 1
      %s18 = ssub.s32 %s10, %s17
      %p19 = scmp.eq.s32.totalorder %s18, 0
      %s21 = sadd.s32 %s20, 1
      %s22 = scalar_select %p19, %s20, %s21
      %p25 = pneg %p19
      %p26 = scmp.eq.s32.totalorder %s10, 2
      %p27 = por %p25, %p26
      %p28 = scmp.ne.s32.totalorder %s20, %s23
      %p29 = scmp.eq.s32.totalorder %s10, 0
      %p30 = por %p28, %p29
      %p31 = scmp.ne.s32.totalorder %s20, %s23
      %p32 = scmp.eq.s32.totalorder %s15, 2
      %p33 = por %p31, %p32
      %p34 = scmp.ne.s32.totalorder %s23, %s24
      %p35 = scmp.eq.s32.totalorder %s15, 0
      %p36 = por %p34, %p35
      %p37 = scmp.ne.s32.totalorder %s23, %s24
      %p38 = scmp.eq.s32.totalorder %s16, 2
      %p39 = por %p37, %p38
      %p41 = scmp.ne.s32.totalorder %s24, %s40
      %p42 = scmp.eq.s32.totalorder %s16, 0
      %p43 = por %p41, %p42
      %s45 = sadd.s32 %s44, 1
      %p48 = scmp.eq.s32.totalorder %s10, 2
      %p49 = scmp.ne.s32.totalorder %s44, %s46
      %p50 = scmp.eq.s32.totalorder %s10, 0
      %p51 = por %p49, %p50
      %p52 = scmp.ne.s32.totalorder %s44, %s46
      %p53 = scmp.eq.s32.totalorder %s15, 2
      %p54 = por %p52, %p53
      %p55 = scmp.ne.s32.totalorder %s46, %s47
      %p56 = scmp.eq.s32.totalorder %s15, 0
      %p57 = por %p55, %p56
      %p58 = scmp.ne.s32.totalorder %s46, %s47
      %p59 = scmp.eq.s32.totalorder %s16, 2
      %p60 = por %p58, %p59
      %p62 = scmp.ne.s32.totalorder %s47, %s61
      %p63 = scmp.eq.s32.totalorder %s16, 0
      %p64 = por %p62, %p63
      %s66 = sadd.s32 %s65, 1
      %p69 = scmp.eq.s32.totalorder %s10, 2
      %p70 = scmp.ne.s32.totalorder %s65, %s67
      %p71 = scmp.eq.s32.totalorder %s10, 0
      %p72 = por %p70, %p71
      %p73 = scmp.ne.s32.totalorder %s65, %s67
      %p74 = scmp.eq.s32.totalorder %s15, 2
      %p75 = por %p73, %p74
      %p76 = scmp.ne.s32.totalorder %s67, %s68
      %p77 = scmp.eq.s32.totalorder %s15, 0
      %p78 = por %p76, %p77
      %p79 = scmp.ne.s32.totalorder %s67, %s68
      %p80 = scmp.eq.s32.totalorder %s16, 2
      %p81 = por %p79, %p80
      %p83 = scmp.ne.s32.totalorder %s68, %s82
      %p84 = scmp.eq.s32.totalorder %s16, 0
      %p85 = por %p83, %p84
      %s86 = ssub.s32 %s10, %s17
      %p87 = scmp.eq.s32.totalorder %s86, 0
      %s89 = sadd.s32 %s88, 1
      %s90 = scalar_select %p87, %s88, %s89
      %p93 = pneg %p87
      %p94 = scmp.eq.s32.totalorder %s10, 2
      %p95 = por %p93, %p94
      %p96 = scmp.ne.s32.totalorder %s88, %s91
      %p97 = scmp.eq.s32.totalorder %s10, 0
      %p98 = por %p96, %p97
      %p99 = scmp.ne.s32.totalorder %s88, %s91
      %p100 = scmp.eq.s32.totalorder %s15, 2
      %p101 = por %p99, %p100
      %p102 = scmp.ne.s32.totalorder %s91, %s92
      %p103 = scmp.eq.s32.totalorder %s15, 0
      %p104 = por %p102, %p103
      %p105 = scmp.ne.s32.totalorder %s91, %s92
      %p106 = scmp.eq.s32.totalorder %s16, 2
      %p107 = por %p105, %p106
      %p109 = scmp.ne.s32.totalorder %s92, %s108
      %p110 = scmp.eq.s32.totalorder %s16, 0
      %p111 = por %p109, %p110
      %s112 = ssub.s32 %s10, %s17
      %p113 = scmp.eq.s32.totalorder %s112, 0
      %s115 = sadd.s32 %s114, 1
      %s116 = scalar_select %p113, %s114, %s115
      %p119 = pneg %p113
      %p120 = scmp.eq.s32.totalorder %s10, 2
      %p121 = por %p119, %p120
      %p122 = scmp.ne.s32.totalorder %s114, %s117
      %p123 = scmp.eq.s32.totalorder %s10, 0
      %p124 = por %p122, %p123
      %p125 = scmp.ne.s32.totalorder %s114, %s117
      %p126 = scmp.eq.s32.totalorder %s15, 2
      %p127 = por %p125, %p126
      %p128 = scmp.ne.s32.totalorder %s117, %s118
      %p129 = scmp.eq.s32.totalorder %s15, 0
      %p130 = por %p128, %p129
      %p131 = scmp.ne.s32.totalorder %s117, %s118
      %p132 = scmp.eq.s32.totalorder %s16, 2
      %p133 = por %p131, %p132
      %p135 = scmp.ne.s32.totalorder %s118, %s134
      %p136 = scmp.eq.s32.totalorder %s16, 0
      %p137 = por %p135, %p136
      %p138 = scmp.le.s32.totalorder 1, %s10
      %p139 = scmp.lt.s32.totalorder %s10, 4
      %p140 = pnand %p138, %p139
      %p141 = pneg %p140
      // Predicated region
      $region9: #{sp_head_forward.24} parent=5 // pred_check
        _
      $region10: #{sp_head_forward.24} parent=5 // pred_check_branch
        %143 = sbr.rel (%p140) target = $region12
      $region11: #{sp_head_forward.24} parent=5 // pred_region
        %s144 = ssub.s32 %s10, 1
        // Predicated region
        $region13: #{sp_head_forward.24} parent=11 // pred_check
          %p145 = pneg %p57
        $region14: #{sp_head_forward.24} parent=11 // pred_check_branch
          %147 = sbr.rel (%p145) target = $region16
        $region15: #{sp_head_forward.24} parent=11 // pred_region
          _
        $region16: #{sp_head_forward.24} parent=11 // pred_fallthru
          _
        // Predicated region
        $region17: #{sp_head_forward.24} parent=11 // pred_check
          %p148 = pneg %p78
        $region18: #{sp_head_forward.24} parent=11 // pred_check_branch
          %150 = sbr.rel (%p148) target = $region20
        $region19: #{sp_head_forward.24} parent=11 // pred_region
          _
        $region20: #{sp_head_forward.24} parent=11 // pred_fallthru
          _
      $region12: #{sp_head_forward.24} parent=5 // pred_fallthru
        _
      %p151 = scmp.lt.s32.totalorder %s10, 3
      // Predicated region
      $region21: #{sp_head_forward.24} parent=5 // pred_check
        %p152 = pneg %p151
      $region22: #{sp_head_forward.24} parent=5 // pred_check_branch
        %154 = sbr.rel (%p152) target = $region24
      $region23: #{sp_head_forward.24} parent=5 // pred_region
        // Predicated region
        $region25: #{sp_head_forward.24} parent=23 // pred_check
          %p155 = pneg %p30
        $region26: #{sp_head_forward.24} parent=23 // pred_check_branch
          %157 = sbr.rel (%p155) target = $region28
        $region27: #{sp_head_forward.24} parent=23 // pred_region
          %s158 = sand.u32 %s20, 1
          %s159 = sand.u32 %s20, 1
          %s160 = smul.addr %s159, 16
          %s161 = scalar_lea.vmem [#allocation2], %s160
          %s162 = smul.u32 2, %s10
          %s163 = smul.addr %s162, 4
          %s164 = scalar_lea.vmem %s0, %s163
          // Predicated region
          $region29: #{sp_head_forward.24} parent=27 // pred_check
            _
          $region30: #{sp_head_forward.24} parent=27 // pred_check_branch
            %166 = sbr.rel (0) target = $region32
          $region31: #{sp_head_forward.24} parent=27 // pred_region
            // Predicated region
            $region33: #{sp_head_forward.24} parent=31 // pred_check
              _
            $region34: #{sp_head_forward.24} parent=31 // pred_check_branch
              %168 = sbr.rel (0) target = $region36
            $region35: #{sp_head_forward.24} parent=31 // pred_region
              // Predicated region
              $region48: #{sp_head_forward.24} parent=35 // pred_check
                _
              $region49: #{sp_head_forward.24} parent=35 // pred_check_branch
                %186 = sbr.rel (0) target = $region51
              $region50: #{sp_head_forward.24} parent=35 // pred_region
                loop: start=0, step=1, limit=1
                $region52: #{sp_head_forward.24} parent=50 // loop_pre_header
                  _
                $region53: #{sp_head_forward.24} parent=50 // loop_header
                  %s188 = sphi 0, %s192
                  %p189 = scmp.ge.s32.totalorder %s188, 1
                  %s193 = sphi %s164, %s164
                  %s194 = sphi %s161, %s161
                $region54: #{sp_head_forward.24} parent=50 // loop_header_branch
                  %191 = sbr.rel (%p189) target = $region58
                $region55: #{sp_head_forward.24} parent=50 // loop_body
                  %v195 = vld [vmem:[%s193] sm:$0xff]
                  %196 = vst [vmem:[%s194] sm:$0xff] %v195
                  %v197 = vld [vmem:[%s193 + $0x18] sm:$0xff]
                  %198 = vst [vmem:[%s194 + $0x8] sm:$0xff] %v197
                $region56: #{sp_head_forward.24} parent=50 // loop_footer
                  %s192 = sadd.s32 1, %s188
                $region57: #{sp_head_forward.24} parent=50 // loop_footer_branch
                  %187 = sbr.rel target = $region53
                $region58: #{sp_head_forward.24} parent=50 // loop_exit
                  _
              $region51: #{sp_head_forward.24} parent=35 // pred_fallthru
                _
              // Predicated region
              $region59: #{sp_head_forward.24} parent=35 // pred_check
                _
              $region60: #{sp_head_forward.24} parent=35 // pred_check_branch
                %200 = sbr.rel target = $region62
              $region61: #{sp_head_forward.24} parent=35 // pred_region
                _
              $region62: #{sp_head_forward.24} parent=35 // pred_fallthru
                _
            $region36: #{sp_head_forward.24} parent=31 // pred_fallthru
              _
            // Predicated region
            $region37: #{sp_head_forward.24} parent=31 // pred_check
              _
            $region38: #{sp_head_forward.24} parent=31 // pred_check_branch
              %170 = sbr.rel target = $region40
            $region39: #{sp_head_forward.24} parent=31 // pred_region
              %s172 = ssub.s32 256, 1
              loop: start=0, step=1, limit=1
              $region41: #{sp_head_forward.24} parent=39 // loop_pre_header
                _
              $region42: #{sp_head_forward.24} parent=39 // loop_header
                %s174 = sphi 0, %s178
                %p175 = scmp.ge.s32.totalorder %s174, 1
                %s179 = sphi %s164, %s164
                %s180 = sphi %s161, %s161
              $region43: #{sp_head_forward.24} parent=39 // loop_header_branch
                %177 = sbr.rel (%p175) target = $region47
              $region44: #{sp_head_forward.24} parent=39 // loop_body
                %v181 = vld [vmem:[%s179] sm:%s172]
                %182 = vst [vmem:[%s180] sm:%s172] %v181
                %v183 = vld [vmem:[%s179 + $0x18] sm:%s172]
                %184 = vst [vmem:[%s180 + $0x8] sm:%s172] %v183
              $region45: #{sp_head_forward.24} parent=39 // loop_footer
                %s178 = sadd.s32 1, %s174
              $region46: #{sp_head_forward.24} parent=39 // loop_footer_branch
                %173 = sbr.rel target = $region42
              $region47: #{sp_head_forward.24} parent=39 // loop_exit
                _
            $region40: #{sp_head_forward.24} parent=31 // pred_fallthru
              _
          $region32: #{sp_head_forward.24} parent=27 // pred_fallthru
            _
          %201 = vnop
        $region28: #{sp_head_forward.24} parent=23 // pred_fallthru
          _
        // Predicated region
        $region63: #{sp_head_forward.24} parent=23 // pred_check
          %p202 = pneg %p98
        $region64: #{sp_head_forward.24} parent=23 // pred_check_branch
          %204 = sbr.rel (%p202) target = $region66
        $region65: #{sp_head_forward.24} parent=23 // pred_region
          %s205 = smul.u32 2, %s10
          %p206 = scmp.lt.s32.totalorder %s205, 5
          %s207 = scalar_select %p206, %s205, 5
          %s208 = scalar_lea.vmem %s3, %s207
          %s209 = smul.u32 2, %s10
        $region66: #{sp_head_forward.24} parent=23 // pred_fallthru
          _
      $region24: #{sp_head_forward.24} parent=5 // pred_fallthru
        _
      %p210 = scmp.le.s32.totalorder 1, %s10
      %p211 = scmp.lt.s32.totalorder %s10, 4
      %p212 = pnand %p210, %p211
      %p213 = pneg %p212
      // Predicated region
      $region67: #{sp_head_forward.24} parent=5 // pred_check
        _
      $region68: #{sp_head_forward.24} parent=5 // pred_check_branch
        %215 = sbr.rel (%p212) target = $region70
      $region69: #{sp_head_forward.24} parent=5 // pred_region
        %s216 = ssub.s32 %s10, 1
        %s217 = sand.u32 %s23, 1
        %s218 = sand.u32 %s23, 1
        %s219 = smul.addr %s218, 16
        %s220 = scalar_lea.vmem [#allocation2], %s219
        // Predicated region
        $region71: #{sp_head_forward.24} parent=69 // pred_check
          %p221 = pneg %p36
        $region72: #{sp_head_forward.24} parent=69 // pred_check_branch
          %223 = sbr.rel (%p221) target = $region74
        $region73: #{sp_head_forward.24} parent=69 // pred_region
          _
        $region74: #{sp_head_forward.24} parent=69 // pred_fallthru
          _
        %s224 = sand.u32 %s23, 1
        %s225 = sand.u32 %s23, 1
        %s226 = smul.addr %s225, 16
        %s227 = scalar_lea.vmem [#allocation2], %s226
        %p228 = pneg %p36
        %p229 = pneg %p33
        %p230 = pneg %p57
        %p231 = pneg %p54
        %p232 = pneg %p78
        %p233 = pneg %p75
        %s234 = smul.u32 2, %s15
        %p235 = scmp.lt.s32.totalorder %s234, 5
        %s236 = scalar_select %p235, %s234, 5
        %s237 = scalar_lea.vmem %s3, %s236
        %p238 = pneg %p104
        %p239 = pneg %p101
        %p240 = pneg %p130
        %p241 = pneg %p127
        %s242 = smul.u32 2, %s15
        %p243 = scmp.lt.s32.totalorder %s242, 5
        %s244 = scalar_select %p243, %s242, 5
        %s245 = smul.addr %s244, 4
        %s246 = scalar_lea.vmem %s4, %s245
        %s247 = smul.u32 2, %s15
        %s248 = smul.u32 2, %s15
        %p249 = scmp.lt.s32.totalorder %s248, 5
        %s250 = scalar_select %p249, %s248, 5
        %s251 = scalar_lea.vmem %s3, %s250
        %s252 = smul.u32 2, %s15
        %s253 = smul.u32 2, %s15
        %p254 = scmp.lt.s32.totalorder %s253, 5
        %s255 = scalar_select %p254, %s253, 5
        %s256 = smul.addr %s255, 4
        %s257 = scalar_lea.vmem %s4, %s256
        %s258 = smul.u32 2, %s15
        %v260 = vld [vmem:[%s220] sm:$0xff]
        %v261 = vld [vmem:[%s220 + $0x8] sm:$0xff]
        %v262 = vld [vmem:[%s1] sm:$0xf]
        %v263 = vld [vmem:[%s2] sm:$0xff]
        %265 = vset.pattern.permute.xlu0 0
        %266 = vperm.xlu0 %265, %v263
        %v267 = vpop.permute.xlu0 %266
        %v271 = vunpack.c.l.b16 %v260
        %v272 = vunpack.c.h.b16 %v260
        %v273 = vunpack.c.l.b16 %v261
        %v274 = vunpack.c.h.b16 %v261
        %v275 = vpack.c.b16 %v273, %v271
        %v276 = vpack.c.b16 %v274, %v272
        %vm279 = vcmask 130048
        %v281 = vsel %vm279, %v262, 0
        %283 = vmatprep.subr.bf16.mxu0 0
        %284 = vmatpush1.bf16.msra.mxu0 0
        %285 = vmatprep.subr.bf16.mxu0 0
        %286 = vmatpush1.bf16.msra.mxu0 0
        %287 = vmatprep.subr.bf16.mxu0 0
        %288 = vmatpush1.bf16.msra.mxu0 0
        %289 = vmatprep.subr.bf16.mxu0 0
        %290 = vmatpush1.bf16.msra.mxu0 0
        %291 = vmatprep.subr.bf16.mxu0 0
        %292 = vmatpush1.bf16.msra.mxu0 0
        %293 = vmatprep.subr.bf16.mxu0 0
        %294 = vmatpush1.bf16.msra.mxu0 0
        %295 = vmatprep.subr.bf16.mxu0 0
        %296 = vmatpush1.bf16.msra.mxu0 0
        %297 = vmatprep.subr.bf16.mxu0 %v276
        %298 = vmatpush1.bf16.msra.mxu0 %v275
        %299 = vmatprep.subr.bf16.mxu0 0
        %300 = vmatpush2.bf16.msra.mxu0 0
        %301 = vmatprep.subr.bf16.mxu0 0
        %302 = vmatpush2.bf16.msra.mxu0 0
        %303 = vmatprep.subr.bf16.mxu0 0
        %304 = vmatpush2.bf16.msra.mxu0 0
        %305 = vmatprep.subr.bf16.mxu0 0
        %306 = vmatpush2.bf16.msra.mxu0 0
        %307 = vmatprep.subr.bf16.mxu0 0
        %308 = vmatpush2.bf16.msra.mxu0 0
        %309 = vmatprep.subr.bf16.mxu0 0
        %310 = vmatpush2.bf16.msra.mxu0 0
        %311 = vmatprep.subr.bf16.mxu0 0
        %312 = vmatpush2.bf16.msra.mxu0 0
        %313 = vmatprep.subr.bf16.mxu0 0
        %314 = vmatpush2.bf16.msra.mxu0 0
        %315 = vmatprep.mubr.bf16.mxu0 0
        %316 = vmatmul.mubr.bf16.gmra.mxu0 %v281
        %v317 = vpop.f32.mrf.mxu0
        %v318 = vadd.f32 %v267, %v317
        %v319 = vpop.f32.mrf.mxu0
        %v320 = vadd.f32 %v267, %v319
        %v321 = vpop.f32.mrf.mxu0
        %v322 = vpop.f32.mrf.mxu0
        %323 = vdwg.mxu0
        %v324 = vmax.f32 %v318, 0.0
        %v325 = vmax.f32 %v320, 0.0
        %v326 = vld [vmem:[%s251] sm:$0x3]
        %v328 = vlaneseq
        %v329 = vshrl.u32 %v328, 7
        %v330 = vsub.s32 0, %v329
        %v331 = vrot.slane %v326, %v330
        %v332 = vlaneseq
        %v333 = vshrl.u32 %v332, 7
        %v334 = vsub.s32 1, %v333
        %v335 = vrot.slane %v326, %v334
        %v338 = vmul.f32 %v324, %v331
        %v339 = vmul.f32 %v325, %v335
        %v340 = vpack.c.bf16 %v338, %v338
        %v341 = vpack.c.bf16 %v339, %v339
        %v344 = vunpack.c.l.b16 %v340
        %v345 = vunpack.c.l.b16 %v341
        %v346 = vpack.c.b16 %v345, %v344
        %348 = vst [vmem:[%s257] sm:$0xff] %v346
        %s349 = smul.u32 2, %s15
        %p350 = scmp.lt.s32.totalorder %s349, 5
        %s351 = scalar_select %p350, %s349, 5
        %s352 = smul.addr %s351, 4
        %s353 = scalar_lea.vmem %s4, %s352
        // Predicated region
        $region75: #{sp_head_forward.24} parent=69 // pred_check
          %p354 = pneg %p127
        $region76: #{sp_head_forward.24} parent=69 // pred_check_branch
          %356 = sbr.rel (%p354) target = $region78
        $region77: #{sp_head_forward.24} parent=69 // pred_region
          %s357 = smul.u32 2, %s15
        $region78: #{sp_head_forward.24} parent=69 // pred_fallthru
          _
      $region70: #{sp_head_forward.24} parent=5 // pred_fallthru
        _
      %p358 = scmp.le.s32.totalorder 2, %s10
      // Predicated region
      $region79: #{sp_head_forward.24} parent=5 // pred_check
        %p359 = pneg %p358
      $region80: #{sp_head_forward.24} parent=5 // pred_check_branch
        %361 = sbr.rel (%p359) target = $region82
      $region81: #{sp_head_forward.24} parent=5 // pred_region
        %s362 = ssub.s32 %s10, 2
        // Predicated region
        $region83: #{sp_head_forward.24} parent=81 // pred_check
          %p363 = pneg %p133
        $region84: #{sp_head_forward.24} parent=81 // pred_check_branch
          %365 = sbr.rel (%p363) target = $region86
        $region85: #{sp_head_forward.24} parent=81 // pred_region
          %s366 = smul.u32 2, %s16
          %p367 = scmp.lt.s32.totalorder %s366, 5
          %s368 = scalar_select %p367, %s366, 5
          %s369 = smul.addr %s368, 4
          %s370 = scalar_lea.vmem %s4, %s369
        $region86: #{sp_head_forward.24} parent=81 // pred_fallthru
          _
      $region82: #{sp_head_forward.24} parent=5 // pred_fallthru
        _
    $region6: #{sp_head_forward.24} parent=1 // loop_footer
      %s14 = sadd.s32 1, %s10
    $region7: #{sp_head_forward.24} parent=1 // loop_footer_branch
      %9 = sbr.rel target = $region3
    $region8: #{sp_head_forward.24} parent=1 // loop_exit
      _

// kernel: sp_head_forward.23
$region0: #{sp_head_forward.23}
  #allocation0 [shape = 'u32[]', space=smem, size = 0x4, offset = 0x4, fixed_abs, tag = 'smem constant byte address 0x4 - core index']
  #allocation1 [shape = 'u32[144,128]{1,0:T(1,128)}', space=vmem, size = 0x12000, scoped, tag = 'internal scratch']
  %s0 = inlined_call_operand.vmem [shape: bf16[32,768], index: 0, kind: input, shape index: {}]
  %s1 = inlined_call_operand.vmem [shape: bf16[1,16,32], index: 1, kind: input, shape index: {}]
  %s2 = inlined_call_operand.vmem [shape: f32[16,1], index: 2, kind: input, shape index: {}]
  %s3 = inlined_call_operand.vmem [shape: f32[1,768], index: 3, kind: input, shape index: {}]
  %s4 = inlined_call_operand.vmem [shape: bf16[16,768], index: 4, kind: output, shape index: {}]
  %s5 = sld [smem:[#allocation0]]
  $region121: #{sp_head_forward.23} parent=0
    _
  %s7 = ssub.s32 1, %s5
  %s8 = scalar_select 0, %s7, %s5
  $region1: #{sp_head_forward.23} parent=0
    #allocation2 [shape = 'u8[32768]{0}', space=vmem, size = 0x8000, scoped, tag = 'input window, operand 0']
    #allocation3 [shape = 'u8[16384]{0}', space=vmem, size = 0x4000, scoped, tag = 'output window, operand 0']
    loop: start=0, step=1, limit=5
    $region2: #{sp_head_forward.23} parent=1 // loop_pre_header
      _
    $region3: #{sp_head_forward.23} parent=1 // loop_header
      %s10 = sphi 0, %s14
      %p11 = scmp.ge.s32.totalorder %s10, 5
      %s20 = sphi 0, %s22
      %s23 = sphi 0, %s20
      %s24 = sphi 0, %s23
      %s40 = sphi 0, %s24
      %s44 = sphi 0, %s44
      %s46 = sphi 0, %s44
      %s47 = sphi 0, %s46
      %s61 = sphi 0, %s47
      %s65 = sphi 0, %s65
      %s67 = sphi 0, %s65
      %s68 = sphi 0, %s67
      %s82 = sphi 0, %s68
      %s88 = sphi 0, %s90
      %s91 = sphi 0, %s88
      %s92 = sphi 0, %s91
      %s108 = sphi 0, %s92
      %s114 = sphi 0, %s116
      %s117 = sphi 0, %s114
      %s118 = sphi 0, %s117
      %s134 = sphi 0, %s118
    $region4: #{sp_head_forward.23} parent=1 // loop_header_branch
      %13 = sbr.rel (%p11) target = $region8
    $region5: #{sp_head_forward.23} parent=1 // loop_body
      %s15 = ssub.s32 %s10, 1
      %s16 = ssub.s32 %s10, 2
      %s17 = sadd.s32 %s10, 1
      %s18 = ssub.s32 %s10, %s17
      %p19 = scmp.eq.s32.totalorder %s18, 0
      %s21 = sadd.s32 %s20, 1
      %s22 = scalar_select %p19, %s20, %s21
      %p25 = pneg %p19
      %p26 = scmp.eq.s32.totalorder %s10, 2
      %p27 = por %p25, %p26
      %p28 = scmp.ne.s32.totalorder %s20, %s23
      %p29 = scmp.eq.s32.totalorder %s10, 0
      %p30 = por %p28, %p29
      %p31 = scmp.ne.s32.totalorder %s20, %s23
      %p32 = scmp.eq.s32.totalorder %s15, 2
      %p33 = por %p31, %p32
      %p34 = scmp.ne.s32.totalorder %s23, %s24
      %p35 = scmp.eq.s32.totalorder %s15, 0
      %p36 = por %p34, %p35
      %p37 = scmp.ne.s32.totalorder %s23, %s24
      %p38 = scmp.eq.s32.totalorder %s16, 2
      %p39 = por %p37, %p38
      %p41 = scmp.ne.s32.totalorder %s24, %s40
      %p42 = scmp.eq.s32.totalorder %s16, 0
      %p43 = por %p41, %p42
      %s45 = sadd.s32 %s44, 1
      %p48 = scmp.eq.s32.totalorder %s10, 2
      %p49 = scmp.ne.s32.totalorder %s44, %s46
      %p50 = scmp.eq.s32.totalorder %s10, 0
      %p51 = por %p49, %p50
      %p52 = scmp.ne.s32.totalorder %s44, %s46
      %p53 = scmp.eq.s32.totalorder %s15, 2
      %p54 = por %p52, %p53
      %p55 = scmp.ne.s32.totalorder %s46, %s47
      %p56 = scmp.eq.s32.totalorder %s15, 0
      %p57 = por %p55, %p56
      %p58 = scmp.ne.s32.totalorder %s46, %s47
      %p59 = scmp.eq.s32.totalorder %s16, 2
      %p60 = por %p58, %p59
      %p62 = scmp.ne.s32.totalorder %s47, %s61
      %p63 = scmp.eq.s32.totalorder %s16, 0
      %p64 = por %p62, %p63
      %s66 = sadd.s32 %s65, 1
      %p69 = scmp.eq.s32.totalorder %s10, 2
      %p70 = scmp.ne.s32.totalorder %s65, %s67
      %p71 = scmp.eq.s32.totalorder %s10, 0
      %p72 = por %p70, %p71
      %p73 = scmp.ne.s32.totalorder %s65, %s67
      %p74 = scmp.eq.s32.totalorder %s15, 2
      %p75 = por %p73, %p74
      %p76 = scmp.ne.s32.totalorder %s67, %s68
      %p77 = scmp.eq.s32.totalorder %s15, 0
      %p78 = por %p76, %p77
      %p79 = scmp.ne.s32.totalorder %s67, %s68
      %p80 = scmp.eq.s32.totalorder %s16, 2
      %p81 = por %p79, %p80
      %p83 = scmp.ne.s32.totalorder %s68, %s82
      %p84 = scmp.eq.s32.totalorder %s16, 0
      %p85 = por %p83, %p84
      %s86 = ssub.s32 %s10, %s17
      %p87 = scmp.eq.s32.totalorder %s86, 0
      %s89 = sadd.s32 %s88, 1
      %s90 = scalar_select %p87, %s88, %s89
      %p93 = pneg %p87
      %p94 = scmp.eq.s32.totalorder %s10, 2
      %p95 = por %p93, %p94
      %p96 = scmp.ne.s32.totalorder %s88, %s91
      %p97 = scmp.eq.s32.totalorder %s10, 0
      %p98 = por %p96, %p97
      %p99 = scmp.ne.s32.totalorder %s88, %s91
      %p100 = scmp.eq.s32.totalorder %s15, 2
      %p101 = por %p99, %p100
      %p102 = scmp.ne.s32.totalorder %s91, %s92
      %p103 = scmp.eq.s32.totalorder %s15, 0
      %p104 = por %p102, %p103
      %p105 = scmp.ne.s32.totalorder %s91, %s92
      %p106 = scmp.eq.s32.totalorder %s16, 2
      %p107 = por %p105, %p106
      %p109 = scmp.ne.s32.totalorder %s92, %s108
      %p110 = scmp.eq.s32.totalorder %s16, 0
      %p111 = por %p109, %p110
      %s112 = ssub.s32 %s10, %s17
      %p113 = scmp.eq.s32.totalorder %s112, 0
      %s115 = sadd.s32 %s114, 1
      %s116 = scalar_select %p113, %s114, %s115
      %p119 = pneg %p113
      %p120 = scmp.eq.s32.totalorder %s10, 2
      %p121 = por %p119, %p120
      %p122 = scmp.ne.s32.totalorder %s114, %s117
      %p123 = scmp.eq.s32.totalorder %s10, 0
      %p124 = por %p122, %p123
      %p125 = scmp.ne.s32.totalorder %s114, %s117
      %p126 = scmp.eq.s32.totalorder %s15, 2
      %p127 = por %p125, %p126
      %p128 = scmp.ne.s32.totalorder %s117, %s118
      %p129 = scmp.eq.s32.totalorder %s15, 0
      %p130 = por %p128, %p129
      %p131 = scmp.ne.s32.totalorder %s117, %s118
      %p132 = scmp.eq.s32.totalorder %s16, 2
      %p133 = por %p131, %p132
      %p135 = scmp.ne.s32.totalorder %s118, %s134
      %p136 = scmp.eq.s32.totalorder %s16, 0
      %p137 = por %p135, %p136
      %p138 = scmp.le.s32.totalorder 1, %s10
      %p139 = scmp.lt.s32.totalorder %s10, 4
      %p140 = pnand %p138, %p139
      %p141 = pneg %p140
      // Predicated region
      $region9: #{sp_head_forward.23} parent=5 // pred_check
        _
      $region10: #{sp_head_forward.23} parent=5 // pred_check_branch
        %143 = sbr.rel (%p140) target = $region12
      $region11: #{sp_head_forward.23} parent=5 // pred_region
        %s144 = ssub.s32 %s10, 1
        // Predicated region
        $region13: #{sp_head_forward.23} parent=11 // pred_check
          %p145 = pneg %p57
        $region14: #{sp_head_forward.23} parent=11 // pred_check_branch
          %147 = sbr.rel (%p145) target = $region16
        $region15: #{sp_head_forward.23} parent=11 // pred_region
          _
        $region16: #{sp_head_forward.23} parent=11 // pred_fallthru
          _
        // Predicated region
        $region17: #{sp_head_forward.23} parent=11 // pred_check
          %p148 = pneg %p78
        $region18: #{sp_head_forward.23} parent=11 // pred_check_branch
          %150 = sbr.rel (%p148) target = $region20
        $region19: #{sp_head_forward.23} parent=11 // pred_region
          _
        $region20: #{sp_head_forward.23} parent=11 // pred_fallthru
          _
      $region12: #{sp_head_forward.23} parent=5 // pred_fallthru
        _
      %p151 = scmp.lt.s32.totalorder %s10, 3
      // Predicated region
      $region21: #{sp_head_forward.23} parent=5 // pred_check
        %p152 = pneg %p151
      $region22: #{sp_head_forward.23} parent=5 // pred_check_branch
        %154 = sbr.rel (%p152) target = $region24
      $region23: #{sp_head_forward.23} parent=5 // pred_region
        // Predicated region
        $region25: #{sp_head_forward.23} parent=23 // pred_check
          %p155 = pneg %p30
        $region26: #{sp_head_forward.23} parent=23 // pred_check_branch
          %157 = sbr.rel (%p155) target = $region28
        $region27: #{sp_head_forward.23} parent=23 // pred_region
          %s158 = sand.u32 %s20, 1
          %s159 = sand.u32 %s20, 1
          %s160 = smul.addr %s159, 32
          %s161 = scalar_lea.vmem [#allocation2], %s160
          %s162 = smul.u32 2, %s10
          %s163 = smul.addr %s162, 4
          %s164 = scalar_lea.vmem %s0, %s163
          // Predicated region
          $region29: #{sp_head_forward.23} parent=27 // pred_check
            _
          $region30: #{sp_head_forward.23} parent=27 // pred_check_branch
            %166 = sbr.rel (0) target = $region32
          $region31: #{sp_head_forward.23} parent=27 // pred_region
            // Predicated region
            $region33: #{sp_head_forward.23} parent=31 // pred_check
              _
            $region34: #{sp_head_forward.23} parent=31 // pred_check_branch
              %168 = sbr.rel (0) target = $region36
            $region35: #{sp_head_forward.23} parent=31 // pred_region
              // Predicated region
              $region48: #{sp_head_forward.23} parent=35 // pred_check
                _
              $region49: #{sp_head_forward.23} parent=35 // pred_check_branch
                %190 = sbr.rel (0) target = $region51
              $region50: #{sp_head_forward.23} parent=35 // pred_region
                loop: start=0, step=1, limit=1
                $region52: #{sp_head_forward.23} parent=50 // loop_pre_header
                  _
                $region53: #{sp_head_forward.23} parent=50 // loop_header
                  %s192 = sphi 0, %s196
                  %p193 = scmp.ge.s32.totalorder %s192, 1
                  %s197 = sphi %s164, %s164
                  %s198 = sphi %s161, %s161
                $region54: #{sp_head_forward.23} parent=50 // loop_header_branch
                  %195 = sbr.rel (%p193) target = $region58
                $region55: #{sp_head_forward.23} parent=50 // loop_body
                  %v199 = vld [vmem:[%s197] sm:$0xff]
                  %200 = vst [vmem:[%s198] sm:$0xff] %v199
                  %v201 = vld [vmem:[%s197 + $0x18] sm:$0xff]
                  %202 = vst [vmem:[%s198 + $0x8] sm:$0xff] %v201
                  %v203 = vld [vmem:[%s197 + $0x30] sm:$0xff]
                  %204 = vst [vmem:[%s198 + $0x10] sm:$0xff] %v203
                  %v205 = vld [vmem:[%s197 + $0x48] sm:$0xff]
                  %206 = vst [vmem:[%s198 + $0x18] sm:$0xff] %v205
                $region56: #{sp_head_forward.23} parent=50 // loop_footer
                  %s196 = sadd.s32 1, %s192
                $region57: #{sp_head_forward.23} parent=50 // loop_footer_branch
                  %191 = sbr.rel target = $region53
                $region58: #{sp_head_forward.23} parent=50 // loop_exit
                  _
              $region51: #{sp_head_forward.23} parent=35 // pred_fallthru
                _
              // Predicated region
              $region59: #{sp_head_forward.23} parent=35 // pred_check
                _
              $region60: #{sp_head_forward.23} parent=35 // pred_check_branch
                %208 = sbr.rel target = $region62
              $region61: #{sp_head_forward.23} parent=35 // pred_region
                _
              $region62: #{sp_head_forward.23} parent=35 // pred_fallthru
                _
            $region36: #{sp_head_forward.23} parent=31 // pred_fallthru
              _
            // Predicated region
            $region37: #{sp_head_forward.23} parent=31 // pred_check
              _
            $region38: #{sp_head_forward.23} parent=31 // pred_check_branch
              %170 = sbr.rel target = $region40
            $region39: #{sp_head_forward.23} parent=31 // pred_region
              %s172 = ssub.s32 256, 1
              loop: start=0, step=1, limit=1
              $region41: #{sp_head_forward.23} parent=39 // loop_pre_header
                _
              $region42: #{sp_head_forward.23} parent=39 // loop_header
                %s174 = sphi 0, %s178
                %p175 = scmp.ge.s32.totalorder %s174, 1
                %s179 = sphi %s164, %s164
                %s180 = sphi %s161, %s161
              $region43: #{sp_head_forward.23} parent=39 // loop_header_branch
                %177 = sbr.rel (%p175) target = $region47
              $region44: #{sp_head_forward.23} parent=39 // loop_body
                %v181 = vld [vmem:[%s179] sm:%s172]
                %182 = vst [vmem:[%s180] sm:%s172] %v181
                %v183 = vld [vmem:[%s179 + $0x18] sm:%s172]
                %184 = vst [vmem:[%s180 + $0x8] sm:%s172] %v183
                %v185 = vld [vmem:[%s179 + $0x30] sm:%s172]
                %186 = vst [vmem:[%s180 + $0x10] sm:%s172] %v185
                %v187 = vld [vmem:[%s179 + $0x48] sm:%s172]
                %188 = vst [vmem:[%s180 + $0x18] sm:%s172] %v187
              $region45: #{sp_head_forward.23} parent=39 // loop_footer
                %s178 = sadd.s32 1, %s174
              $region46: #{sp_head_forward.23} parent=39 // loop_footer_branch
                %173 = sbr.rel target = $region42
              $region47: #{sp_head_forward.23} parent=39 // loop_exit
                _
            $region40: #{sp_head_forward.23} parent=31 // pred_fallthru
              _
          $region32: #{sp_head_forward.23} parent=27 // pred_fallthru
            _
          %209 = vnop
        $region28: #{sp_head_forward.23} parent=23 // pred_fallthru
          _
        // Predicated region
        $region63: #{sp_head_forward.23} parent=23 // pred_check
          %p210 = pneg %p98
        $region64: #{sp_head_forward.23} parent=23 // pred_check_branch
          %212 = sbr.rel (%p210) target = $region66
        $region65: #{sp_head_forward.23} parent=23 // pred_region
          %s213 = smul.u32 2, %s10
          %p214 = scmp.lt.s32.totalorder %s213, 5
          %s215 = scalar_select %p214, %s213, 5
          %s216 = scalar_lea.vmem %s3, %s215
          %s217 = smul.u32 2, %s10
        $region66: #{sp_head_forward.23} parent=23 // pred_fallthru
          _
      $region24: #{sp_head_forward.23} parent=5 // pred_fallthru
        _
      %p218 = scmp.le.s32.totalorder 1, %s10
      %p219 = scmp.lt.s32.totalorder %s10, 4
      %p220 = pnand %p218, %p219
      %p221 = pneg %p220
      // Predicated region
      $region67: #{sp_head_forward.23} parent=5 // pred_check
        _
      $region68: #{sp_head_forward.23} parent=5 // pred_check_branch
        %223 = sbr.rel (%p220) target = $region70
      $region69: #{sp_head_forward.23} parent=5 // pred_region
        %s224 = ssub.s32 %s10, 1
        %s225 = sand.u32 %s23, 1
        %s226 = sand.u32 %s23, 1
        %s227 = smul.addr %s226, 32
        %s228 = scalar_lea.vmem [#allocation2], %s227
        // Predicated region
        $region71: #{sp_head_forward.23} parent=69 // pred_check
          %p229 = pneg %p36
        $region72: #{sp_head_forward.23} parent=69 // pred_check_branch
          %231 = sbr.rel (%p229) target = $region74
        $region73: #{sp_head_forward.23} parent=69 // pred_region
          _
        $region74: #{sp_head_forward.23} parent=69 // pred_fallthru
          _
        %s232 = sand.u32 %s23, 1
        %s233 = sand.u32 %s23, 1
        %s234 = smul.addr %s233, 32
        %s235 = scalar_lea.vmem [#allocation2], %s234
        %p236 = pneg %p36
        %p237 = pneg %p33
        %p238 = pneg %p57
        %p239 = pneg %p54
        %p240 = pneg %p78
        %p241 = pneg %p75
        %s242 = smul.u32 2, %s15
        %p243 = scmp.lt.s32.totalorder %s242, 5
        %s244 = scalar_select %p243, %s242, 5
        %s245 = scalar_lea.vmem %s3, %s244
        %p246 = pneg %p104
        %p247 = pneg %p101
        %p248 = pneg %p130
        %p249 = pneg %p127
        %s250 = sand.u32 %s117, 1
        %s251 = sand.u32 %s117, 1
        %s252 = smul.addr %s251, 16
        %s253 = scalar_lea.vmem [#allocation3], %s252
        %s254 = smul.u32 2, %s15
        %s255 = smul.u32 2, %s15
        %p256 = scmp.lt.s32.totalorder %s255, 5
        %s257 = scalar_select %p256, %s255, 5
        %s258 = scalar_lea.vmem %s3, %s257
        %s259 = smul.u32 2, %s15
        %s260 = smul.u32 2, %s15
        %v262 = vld [vmem:[%s228] sm:$0xff]
        %v263 = vld [vmem:[%s228 + $0x8] sm:$0xff]
        %v264 = vld [vmem:[%s228 + $0x10] sm:$0xff]
        %v265 = vld [vmem:[%s228 + $0x18] sm:$0xff]
        %v266 = vld [vmem:[%s1] sm:$0xf]
        %v267 = vld [vmem:[%s1 + $0x4] sm:$0xf]
        %v268 = vld [vmem:[%s2] sm:$0xff]
        %v269 = vld [vmem:[%s2 + $0x8] sm:$0xff]
        %271 = vset.pattern.permute.xlu0 0
        %272 = vperm.xlu0 %271, %v268
        %v273 = vpop.permute.xlu0 %272
        %276 = vset.pattern.permute.xlu0 0
        %277 = vperm.xlu0 %276, %v269
        %v278 = vpop.permute.xlu0 %277
        %v282 = vunpack.c.l.b16 %v266
        %v283 = vunpack.c.l.b16 %v267
        %v284 = vpack.c.b16 %v283, %v282
        %v289 = vunpack.c.l.b16 %v262
        %v290 = vunpack.c.h.b16 %v262
        %v291 = vunpack.c.l.b16 %v263
        %v292 = vunpack.c.h.b16 %v263
        %v293 = vunpack.c.l.b16 %v264
        %v294 = vunpack.c.h.b16 %v264
        %v295 = vunpack.c.l.b16 %v265
        %v296 = vunpack.c.h.b16 %v265
        %v297 = vpack.c.b16 %v291, %v289
        %v298 = vpack.c.b16 %v292, %v290
        %v299 = vpack.c.b16 %v295, %v293
        %v300 = vpack.c.b16 %v296, %v294
        %vm305 = vcmask 261120
        %v307 = vsel %vm305, %v284, 0
        %309 = vmatprep.subr.bf16.mxu0 0
        %310 = vmatpush1.bf16.msra.mxu0 0
        %311 = vmatprep.subr.bf16.mxu0 0
        %312 = vmatpush1.bf16.msra.mxu0 0
        %313 = vmatprep.subr.bf16.mxu0 0
        %314 = vmatpush1.bf16.msra.mxu0 0
        %315 = vmatprep.subr.bf16.mxu0 0
        %316 = vmatpush1.bf16.msra.mxu0 0
        %317 = vmatprep.subr.bf16.mxu0 0
        %318 = vmatpush1.bf16.msra.mxu0 0
        %319 = vmatprep.subr.bf16.mxu0 0
        %320 = vmatpush1.bf16.msra.mxu0 0
        %321 = vmatprep.subr.bf16.mxu0 %v300
        %322 = vmatpush1.bf16.msra.mxu0 %v299
        %323 = vmatprep.subr.bf16.mxu0 %v298
        %324 = vmatpush1.bf16.msra.mxu0 %v297
        %325 = vmatprep.subr.bf16.mxu0 0
        %326 = vmatpush2.bf16.msra.mxu0 0
        %327 = vmatprep.subr.bf16.mxu0 0
        %328 = vmatpush2.bf16.msra.mxu0 0
        %329 = vmatprep.subr.bf16.mxu0 0
        %330 = vmatpush2.bf16.msra.mxu0 0
        %331 = vmatprep.subr.bf16.mxu0 0
        %332 = vmatpush2.bf16.msra.mxu0 0
        %333 = vmatprep.subr.bf16.mxu0 0
        %334 = vmatpush2.bf16.msra.mxu0 0
        %335 = vmatprep.subr.bf16.mxu0 0
        %336 = vmatpush2.bf16.msra.mxu0 0
        %337 = vmatprep.subr.bf16.mxu0 0
        %338 = vmatpush2.bf16.msra.mxu0 0
        %339 = vmatprep.subr.bf16.mxu0 0
        %340 = vmatpush2.bf16.msra.mxu0 0
        %341 = vmatprep.mubr.bf16.mxu0 0
        %342 = vmatmul.mubr.bf16.gmra.mxu0 %v307
        %v343 = vpop.f32.mrf.mxu0
        %v344 = vadd.f32 %v273, %v343
        %v345 = vpop.f32.mrf.mxu0
        %v346 = vadd.f32 %v273, %v345
        %v347 = vpop.f32.mrf.mxu0
        %v348 = vadd.f32 %v278, %v347
        %v349 = vpop.f32.mrf.mxu0
        %v350 = vadd.f32 %v278, %v349
        %351 = vdwg.mxu0
        %v352 = vmax.f32 %v344, 0.0
        %v353 = vmax.f32 %v346, 0.0
        %v354 = vmax.f32 %v348, 0.0
        %v355 = vmax.f32 %v350, 0.0
        %v356 = vld [vmem:[%s258] sm:$0x3]
        %v358 = vlaneseq
        %v359 = vshrl.u32 %v358, 7
        %v360 = vsub.s32 0, %v359
        %v361 = vrot.slane %v356, %v360
        %v362 = vlaneseq
        %v363 = vshrl.u32 %v362, 7
        %v364 = vsub.s32 1, %v363
        %v365 = vrot.slane %v356, %v364
        %v368 = vmul.f32 %v352, %v361
        %v369 = vmul.f32 %v353, %v365
        %v370 = vmul.f32 %v354, %v361
        %v371 = vmul.f32 %v355, %v365
        %v372 = vpack.c.bf16 %v370, %v368
        %v373 = vpack.c.bf16 %v371, %v369
        %v376 = vunpack.c.l.b16 %v372
        %v377 = vunpack.c.l.b16 %v373
        %v378 = vunpack.c.h.b16 %v372
        %v379 = vunpack.c.h.b16 %v373
        %v380 = vpack.c.b16 %v377, %v376
        %v381 = vpack.c.b16 %v379, %v378
        %384 = vst [vmem:[%s253] sm:$0xff] %v380
        %385 = vst [vmem:[%s253 + $0x8] sm:$0xff] %v381
        %s386 = sand.u32 %s117, 1
        %s387 = sand.u32 %s117, 1
        %s388 = smul.addr %s387, 16
        %s389 = scalar_lea.vmem [#allocation3], %s388
        // Predicated region
        $region75: #{sp_head_forward.23} parent=69 // pred_check
          %p390 = pneg %p127
        $region76: #{sp_head_forward.23} parent=69 // pred_check_branch
          %392 = sbr.rel (%p390) target = $region78
        $region77: #{sp_head_forward.23} parent=69 // pred_region
          %s393 = smul.u32 2, %s15
          %s394 = smul.addr %s393, 4
          %s395 = scalar_lea.vmem %s4, %s394
          // Predicated region
          $region79: #{sp_head_forward.23} parent=77 // pred_check
            _
          $region80: #{sp_head_forward.23} parent=77 // pred_check_branch
            %397 = sbr.rel (0) target = $region82
          $region81: #{sp_head_forward.23} parent=77 // pred_region
            // Predicated region
            $region83: #{sp_head_forward.23} parent=81 // pred_check
              _
            $region84: #{sp_head_forward.23} parent=81 // pred_check_branch
              %399 = sbr.rel (0) target = $region86
            $region85: #{sp_head_forward.23} parent=81 // pred_region
              // Predicated region
              $region98: #{sp_head_forward.23} parent=85 // pred_check
                _
              $region99: #{sp_head_forward.23} parent=85 // pred_check_branch
                %417 = sbr.rel (0) target = $region101
              $region100: #{sp_head_forward.23} parent=85 // pred_region
                loop: start=0, step=1, limit=1
                $region102: #{sp_head_forward.23} parent=100 // loop_pre_header
                  _
                $region103: #{sp_head_forward.23} parent=100 // loop_header
                  %s419 = sphi 0, %s423
                  %p420 = scmp.ge.s32.totalorder %s419, 1
                  %s424 = sphi %s389, %s389
                  %s425 = sphi %s395, %s395
                $region104: #{sp_head_forward.23} parent=100 // loop_header_branch
                  %422 = sbr.rel (%p420) target = $region108
                $region105: #{sp_head_forward.23} parent=100 // loop_body
                  %v426 = vld [vmem:[%s424] sm:$0xff]
                  %427 = vst [vmem:[%s425] sm:$0xff] %v426
                  %v428 = vld [vmem:[%s424 + $0x8] sm:$0xff]
                  %429 = vst [vmem:[%s425 + $0x18] sm:$0xff] %v428
                $region106: #{sp_head_forward.23} parent=100 // loop_footer
                  %s423 = sadd.s32 1, %s419
                $region107: #{sp_head_forward.23} parent=100 // loop_footer_branch
                  %418 = sbr.rel target = $region103
                $region108: #{sp_head_forward.23} parent=100 // loop_exit
                  _
              $region101: #{sp_head_forward.23} parent=85 // pred_fallthru
                _
              // Predicated region
              $region109: #{sp_head_forward.23} parent=85 // pred_check
                _
              $region110: #{sp_head_forward.23} parent=85 // pred_check_branch
                %431 = sbr.rel target = $region112
              $region111: #{sp_head_forward.23} parent=85 // pred_region
                _
              $region112: #{sp_head_forward.23} parent=85 // pred_fallthru
                _
            $region86: #{sp_head_forward.23} parent=81 // pred_fallthru
              _
            // Predicated region
            $region87: #{sp_head_forward.23} parent=81 // pred_check
              _
            $region88: #{sp_head_forward.23} parent=81 // pred_check_branch
              %401 = sbr.rel target = $region90
            $region89: #{sp_head_forward.23} parent=81 // pred_region
              %s403 = ssub.s32 256, 1
              loop: start=0, step=1, limit=1
              $region91: #{sp_head_forward.23} parent=89 // loop_pre_header
                _
              $region92: #{sp_head_forward.23} parent=89 // loop_header
                %s405 = sphi 0, %s409
                %p406 = scmp.ge.s32.totalorder %s405, 1
                %s410 = sphi %s389, %s389
                %s411 = sphi %s395, %s395
              $region93: #{sp_head_forward.23} parent=89 // loop_header_branch
                %408 = sbr.rel (%p406) target = $region97
              $region94: #{sp_head_forward.23} parent=89 // loop_body
                %v412 = vld [vmem:[%s410] sm:%s403]
                %413 = vst [vmem:[%s411] sm:%s403] %v412
                %v414 = vld [vmem:[%s410 + $0x8] sm:%s403]
                %415 = vst [vmem:[%s411 + $0x18] sm:%s403] %v414
              $region95: #{sp_head_forward.23} parent=89 // loop_footer
                %s409 = sadd.s32 1, %s405
              $region96: #{sp_head_forward.23} parent=89 // loop_footer_branch
                %404 = sbr.rel target = $region92
              $region97: #{sp_head_forward.23} parent=89 // loop_exit
                _
            $region90: #{sp_head_forward.23} parent=81 // pred_fallthru
              _
          $region82: #{sp_head_forward.23} parent=77 // pred_fallthru
            _
          %432 = vnop
        $region78: #{sp_head_forward.23} parent=69 // pred_fallthru
          _
      $region70: #{sp_head_forward.23} parent=5 // pred_fallthru
        _
      %p433 = scmp.le.s32.totalorder 2, %s10
      // Predicated region
      $region113: #{sp_head_forward.23} parent=5 // pred_check
        %p434 = pneg %p433
      $region114: #{sp_head_forward.23} parent=5 // pred_check_branch
        %436 = sbr.rel (%p434) target = $region116
      $region115: #{sp_head_forward.23} parent=5 // pred_region
        %s437 = ssub.s32 %s10, 2
        // Predicated region
        $region117: #{sp_head_forward.23} parent=115 // pred_check
          %p438 = pneg %p133
        $region118: #{sp_head_forward.23} parent=115 // pred_check_branch
          %440 = sbr.rel (%p438) target = $region120
        $region119: #{sp_head_forward.23} parent=115 // pred_region
          %s441 = sand.u32 %s118, 1
          %s442 = sand.u32 %s118, 1
          %s443 = smul.addr %s442, 16
          %s444 = scalar_lea.vmem [#allocation3], %s443
        $region120: #{sp_head_forward.23} parent=115 // pred_fallthru
          _
      $region116: #{sp_head_forward.23} parent=5 // pred_fallthru
        _
    $region6: #{sp_head_forward.23} parent=1 // loop_footer
      %s14 = sadd.s32 1, %s10
    $region7: #{sp_head_forward.23} parent=1 // loop_footer_branch
      %9 = sbr.rel target = $region3
    $region8: #{sp_head_forward.23} parent=1 // loop_exit
      _

// kernel: sp_head_forward.25
$region0: #{sp_head_forward.25}
  #allocation0 [shape = 'u32[]', space=smem, size = 0x4, offset = 0x4, fixed_abs, tag = 'smem constant byte address 0x4 - core index']
  #allocation1 [shape = 'u32[144,128]{1,0:T(1,128)}', space=vmem, size = 0x12000, scoped, tag = 'internal scratch']
  %s0 = inlined_call_operand.vmem [shape: bf16[4,1024], index: 0, kind: input, shape index: {}, may-alias: {0,1,2}]
  %s1 = inlined_call_operand.vmem [shape: bf16[4,1024], index: 1, kind: input, shape index: {}, may-alias: {0,1,2}]
  %s2 = inlined_call_operand.vmem [shape: bf16[4,1024], index: 2, kind: input, shape index: {}, may-alias: {0,1,2}]
  %s3 = inlined_call_operand.vmem [shape: bf16[9,4,4], index: 3, kind: input, shape index: {}]
  %s4 = inlined_call_operand.vmem [shape: f32[4,1], index: 4, kind: input, shape index: {}]
  %s5 = inlined_call_operand.vmem [shape: f32[1,1024], index: 5, kind: input, shape index: {}]
  %s6 = inlined_call_operand.vmem [shape: bf16[4,1024], index: 6, kind: output, shape index: {}]
  %s7 = sld [smem:[#allocation0]]
  $region57: #{sp_head_forward.25} parent=0
    _
  %s9 = ssub.s32 1, %s7
  %s10 = scalar_select 0, %s9, %s7
  loop: start=0, step=1, limit=6
  $region2: #{sp_head_forward.25} parent=0 // loop_pre_header
    _
  $region3: #{sp_head_forward.25} parent=0 // loop_header
    %s12 = sphi 0, %s16
    %p13 = scmp.ge.s32.totalorder %s12, 6
    %s28 = sphi 0, %s30
    %s31 = sphi 0, %s28
    %s32 = sphi 0, %s31
    %s48 = sphi 0, %s32
    %s54 = sphi 0, %s56
    %s57 = sphi 0, %s54
    %s58 = sphi 0, %s57
    %s74 = sphi 0, %s58
    %s86 = sphi 0, %s88
    %s89 = sphi 0, %s86
    %s90 = sphi 0, %s89
    %s106 = sphi 0, %s90
    %s110 = sphi 0, %s110
    %s112 = sphi 0, %s110
    %s113 = sphi 0, %s112
    %s127 = sphi 0, %s113
    %s131 = sphi 0, %s131
    %s133 = sphi 0, %s131
    %s134 = sphi 0, %s133
    %s148 = sphi 0, %s134
    %s154 = sphi 0, %s156
    %s157 = sphi 0, %s154
    %s158 = sphi 0, %s157
    %s174 = sphi 0, %s158
    %s180 = sphi 0, %s182
    %s183 = sphi 0, %s180
    %s184 = sphi 0, %s183
    %s200 = sphi 0, %s184
  $region4: #{sp_head_forward.25} parent=0 // loop_header_branch
    %15 = sbr.rel (%p13) target = $region8
  $region5: #{sp_head_forward.25} parent=0 // loop_body
    %s17 = ssub.s32 %s12, 1
    %s18 = ssub.s32 %s12, 2
    %s19 = sadd.s32 %s12, 1
    %s20 = ssub.s32 %s12, 1
    %p21 = scmp.gt.s32.totalorder %s20, 0
    %s22 = scalar_select %p21, %s20, 0
    %s23 = ssub.s32 %s19, 1
    %p24 = scmp.gt.s32.totalorder %s23, 0
    %s25 = scalar_select %p24, %s23, 0
    %s26 = ssub.s32 %s22, %s25
    %p27 = scmp.eq.s32.totalorder %s26, 0
    %s29 = sadd.s32 %s28, 1
    %s30 = scalar_select %p27, %s28, %s29
    %p33 = pneg %p27
    %p34 = scmp.eq.s32.totalorder %s12, 3
    %p35 = por %p33, %p34
    %p36 = scmp.ne.s32.totalorder %s28, %s31
    %p37 = scmp.eq.s32.totalorder %s12, 0
    %p38 = por %p36, %p37
    %p39 = scmp.ne.s32.totalorder %s28, %s31
    %p40 = scmp.eq.s32.totalorder %s17, 3
    %p41 = por %p39, %p40
    %p42 = scmp.ne.s32.totalorder %s31, %s32
    %p43 = scmp.eq.s32.totalorder %s17, 0
    %p44 = por %p42, %p43
    %p45 = scmp.ne.s32.totalorder %s31, %s32
    %p46 = scmp.eq.s32.totalorder %s18, 3
    %p47 = por %p45, %p46
    %p49 = scmp.ne.s32.totalorder %s32, %s48
    %p50 = scmp.eq.s32.totalorder %s18, 0
    %p51 = por %p49, %p50
    %s52 = ssub.s32 %s12, %s19
    %p53 = scmp.eq.s32.totalorder %s52, 0
    %s55 = sadd.s32 %s54, 1
    %s56 = scalar_select %p53, %s54, %s55
    %p59 = pneg %p53
    %p60 = scmp.eq.s32.totalorder %s12, 3
    %p61 = por %p59, %p60
    %p62 = scmp.ne.s32.totalorder %s54, %s57
    %p63 = scmp.eq.s32.totalorder %s12, 0
    %p64 = por %p62, %p63
    %p65 = scmp.ne.s32.totalorder %s54, %s57
    %p66 = scmp.eq.s32.totalorder %s17, 3
    %p67 = por %p65, %p66
    %p68 = scmp.ne.s32.totalorder %s57, %s58
    %p69 = scmp.eq.s32.totalorder %s17, 0
    %p70 = por %p68, %p69
    %p71 = scmp.ne.s32.totalorder %s57, %s58
    %p72 = scmp.eq.s32.totalorder %s18, 3
    %p73 = por %p71, %p72
    %p75 = scmp.ne.s32.totalorder %s58, %s74
    %p76 = scmp.eq.s32.totalorder %s18, 0
    %p77 = por %p75, %p76
    %s78 = sadd.s32 %s12, 1
    %p79 = scmp.lt.s32.totalorder %s78, 3
    %s80 = scalar_select %p79, %s78, 3
    %s81 = sadd.s32 %s19, 1
    %p82 = scmp.lt.s32.totalorder %s81, 3
    %s83 = scalar_select %p82, %s81, 3
    %s84 = ssub.s32 %s80, %s83
    %p85 = scmp.eq.s32.totalorder %s84, 0
    %s87 = sadd.s32 %s86, 1
    %s88 = scalar_select %p85, %s86, %s87
    %p91 = pneg %p85
    %p92 = scmp.eq.s32.totalorder %s12, 3
    %p93 = por %p91, %p92
    %p94 = scmp.ne.s32.totalorder %s86, %s89
    %p95 = scmp.eq.s32.totalorder %s12, 0
    %p96 = por %p94, %p95
    %p97 = scmp.ne.s32.totalorder %s86, %s89
    %p98 = scmp.eq.s32.totalorder %s17, 3
    %p99 = por %p97, %p98
    %p100 = scmp.ne.s32.totalorder %s89, %s90
    %p101 = scmp.eq.s32.totalorder %s17, 0
    %p102 = por %p100, %p101
    %p103 = scmp.ne.s32.totalorder %s89, %s90
    %p104 = scmp.eq.s32.totalorder %s18, 3
    %p105 = por %p103, %p104
    %p107 = scmp.ne.s32.totalorder %s90, %s106
    %p108 = scmp.eq.s32.totalorder %s18, 0
    %p109 = por %p107, %p108
    %s111 = sadd.s32 %s110, 1
    %p114 = scmp.eq.s32.totalorder %s12, 3
    %p115 = scmp.ne.s32.totalorder %s110, %s112
    %p116 = scmp.eq.s32.totalorder %s12, 0
    %p117 = por %p115, %p116
    %p118 = scmp.ne.s32.totalorder %s110, %s112
    %p119 = scmp.eq.s32.totalorder %s17, 3
    %p120 = por %p118, %p119
    %p121 = scmp.ne.s32.totalorder %s112, %s113
    %p122 = scmp.eq.s32.totalorder %s17, 0
    %p123 = por %p121, %p122
    %p124 = scmp.ne.s32.totalorder %s112, %s113
    %p125 = scmp.eq.s32.totalorder %s18, 3
    %p126 = por %p124, %p125
    %p128 = scmp.ne.s32.totalorder %s113, %s127
    %p129 = scmp.eq.s32.totalorder %s18, 0
    %p130 = por %p128, %p129
    %s132 = sadd.s32 %s131, 1
    %p135 = scmp.eq.s32.totalorder %s12, 3
    %p136 = scmp.ne.s32.totalorder %s131, %s133
    %p137 = scmp.eq.s32.totalorder %s12, 0
    %p138 = por %p136, %p137
    %p139 = scmp.ne.s32.totalorder %s131, %s133
    %p140 = scmp.eq.s32.totalorder %s17, 3
    %p141 = por %p139, %p140
    %p142 = scmp.ne.s32.totalorder %s133, %s134
    %p143 = scmp.eq.s32.totalorder %s17, 0
    %p144 = por %p142, %p143
    %p145 = scmp.ne.s32.totalorder %s133, %s134
    %p146 = scmp.eq.s32.totalorder %s18, 3
    %p147 = por %p145, %p146
    %p149 = scmp.ne.s32.totalorder %s134, %s148
    %p150 = scmp.eq.s32.totalorder %s18, 0
    %p151 = por %p149, %p150
    %s152 = ssub.s32 %s12, %s19
    %p153 = scmp.eq.s32.totalorder %s152, 0
    %s155 = sadd.s32 %s154, 1
    %s156 = scalar_select %p153, %s154, %s155
    %p159 = pneg %p153
    %p160 = scmp.eq.s32.totalorder %s12, 3
    %p161 = por %p159, %p160
    %p162 = scmp.ne.s32.totalorder %s154, %s157
    %p163 = scmp.eq.s32.totalorder %s12, 0
    %p164 = por %p162, %p163
    %p165 = scmp.ne.s32.totalorder %s154, %s157
    %p166 = scmp.eq.s32.totalorder %s17, 3
    %p167 = por %p165, %p166
    %p168 = scmp.ne.s32.totalorder %s157, %s158
    %p169 = scmp.eq.s32.totalorder %s17, 0
    %p170 = por %p168, %p169
    %p171 = scmp.ne.s32.totalorder %s157, %s158
    %p172 = scmp.eq.s32.totalorder %s18, 3
    %p173 = por %p171, %p172
    %p175 = scmp.ne.s32.totalorder %s158, %s174
    %p176 = scmp.eq.s32.totalorder %s18, 0
    %p177 = por %p175, %p176
    %s178 = ssub.s32 %s12, %s19
    %p179 = scmp.eq.s32.totalorder %s178, 0
    %s181 = sadd.s32 %s180, 1
    %s182 = scalar_select %p179, %s180, %s181
    %p185 = pneg %p179
    %p186 = scmp.eq.s32.totalorder %s12, 3
    %p187 = por %p185, %p186
    %p188 = scmp.ne.s32.totalorder %s180, %s183
    %p189 = scmp.eq.s32.totalorder %s12, 0
    %p190 = por %p188, %p189
    %p191 = scmp.ne.s32.totalorder %s180, %s183
    %p192 = scmp.eq.s32.totalorder %s17, 3
    %p193 = por %p191, %p192
    %p194 = scmp.ne.s32.totalorder %s183, %s184
    %p195 = scmp.eq.s32.totalorder %s17, 0
    %p196 = por %p194, %p195
    %p197 = scmp.ne.s32.totalorder %s183, %s184
    %p198 = scmp.eq.s32.totalorder %s18, 3
    %p199 = por %p197, %p198
    %p201 = scmp.ne.s32.totalorder %s184, %s200
    %p202 = scmp.eq.s32.totalorder %s18, 0
    %p203 = por %p201, %p202
    %p204 = scmp.le.s32.totalorder 1, %s12
    %p205 = scmp.lt.s32.totalorder %s12, 5
    %p206 = pnand %p204, %p205
    %p207 = pneg %p206
    // Predicated region
    $region9: #{sp_head_forward.25} parent=5 // pred_check
      _
    $region10: #{sp_head_forward.25} parent=5 // pred_check_branch
      %209 = sbr.rel (%p206) target = $region12
    $region11: #{sp_head_forward.25} parent=5 // pred_region
      %s210 = ssub.s32 %s12, 1
      // Predicated region
      $region13: #{sp_head_forward.25} parent=11 // pred_check
        %p211 = pneg %p123
      $region14: #{sp_head_forward.25} parent=11 // pred_check_branch
        %213 = sbr.rel (%p211) target = $region16
      $region15: #{sp_head_forward.25} parent=11 // pred_region
        _
      $region16: #{sp_head_forward.25} parent=11 // pred_fallthru
        _
      // Predicated region
      $region17: #{sp_head_forward.25} parent=11 // pred_check
        %p214 = pneg %p144
      $region18: #{sp_head_forward.25} parent=11 // pred_check_branch
        %216 = sbr.rel (%p214) target = $region20
      $region19: #{sp_head_forward.25} parent=11 // pred_region
        _
      $region20: #{sp_head_forward.25} parent=11 // pred_fallthru
        _
    $region12: #{sp_head_forward.25} parent=5 // pred_fallthru
      _
    %p217 = scmp.lt.s32.totalorder %s12, 4
    // Predicated region
    $region21: #{sp_head_forward.25} parent=5 // pred_check
      %p218 = pneg %p217
    $region22: #{sp_head_forward.25} parent=5 // pred_check_branch
      %220 = sbr.rel (%p218) target = $region24
    $region23: #{sp_head_forward.25} parent=5 // pred_region
      // Predicated region
      $region25: #{sp_head_forward.25} parent=23 // pred_check
        %p221 = pneg %p38
      $region26: #{sp_head_forward.25} parent=23 // pred_check_branch
        %223 = sbr.rel (%p221) target = $region28
      $region27: #{sp_head_forward.25} parent=23 // pred_region
        %s224 = ssub.s32 %s12, 1
        %p225 = scmp.gt.s32.totalorder %s224, 0
        %s226 = scalar_select %p225, %s224, 0
        %s227 = smul.u32 2, %s226
        %p228 = scmp.lt.s32.totalorder %s227, 7
        %s229 = scalar_select %p228, %s227, 7
        %s230 = smul.addr %s229, 2
        %s231 = scalar_lea.vmem %s0, %s230
        %s232 = ssub.s32 %s12, 1
        %p233 = scmp.gt.s32.totalorder %s232, 0
        %s234 = scalar_select %p233, %s232, 0
        %s235 = smul.u32 2, %s234
      $region28: #{sp_head_forward.25} parent=23 // pred_fallthru
        _
      // Predicated region
      $region29: #{sp_head_forward.25} parent=23 // pred_check
        %p236 = pneg %p64
      $region30: #{sp_head_forward.25} parent=23 // pred_check_branch
        %238 = sbr.rel (%p236) target = $region32
      $region31: #{sp_head_forward.25} parent=23 // pred_region
        %s239 = smul.u32 2, %s12
        %p240 = scmp.lt.s32.totalorder %s239, 7
        %s241 = scalar_select %p240, %s239, 7
        %s242 = smul.addr %s241, 2
        %s243 = scalar_lea.vmem %s1, %s242
        %s244 = smul.u32 2, %s12
      $region32: #{sp_head_forward.25} parent=23 // pred_fallthru
        _
      // Predicated region
      $region33: #{sp_head_forward.25} parent=23 // pred_check
        %p245 = pneg %p96
      $region34: #{sp_head_forward.25} parent=23 // pred_check_branch
        %247 = sbr.rel (%p245) target = $region36
      $region35: #{sp_head_forward.25} parent=23 // pred_region
        %s248 = sadd.s32 %s12, 1
        %p249 = scmp.lt.s32.totalorder %s248, 3
        %s250 = scalar_select %p249, %s248, 3
        %s251 = smul.u32 2, %s250
        %p252 = scmp.lt.s32.totalorder %s251, 7
        %s253 = scalar_select %p252, %s251, 7
        %s254 = smul.addr %s253, 2
        %s255 = scalar_lea.vmem %s2, %s254
        %s256 = sadd.s32 %s12, 1
        %p257 = scmp.lt.s32.totalorder %s256, 3
        %s258 = scalar_select %p257, %s256, 3
        %s259 = smul.u32 2, %s258
      $region36: #{sp_head_forward.25} parent=23 // pred_fallthru
        _
      // Predicated region
      $region37: #{sp_head_forward.25} parent=23 // pred_check
        %p260 = pneg %p164
      $region38: #{sp_head_forward.25} parent=23 // pred_check_branch
        %262 = sbr.rel (%p260) target = $region40
      $region39: #{sp_head_forward.25} parent=23 // pred_region
        %s263 = smul.u32 2, %s12
        %p264 = scmp.lt.s32.totalorder %s263, 7
        %s265 = scalar_select %p264, %s263, 7
        %s266 = scalar_lea.vmem %s5, %s265
        %s267 = smul.u32 2, %s12
      $region40: #{sp_head_forward.25} parent=23 // pred_fallthru
        _
    $region24: #{sp_head_forward.25} parent=5 // pred_fallthru
      _
    %p268 = scmp.le.s32.totalorder 1, %s12
    %p269 = scmp.lt.s32.totalorder %s12, 5
    %p270 = pnand %p268, %p269
    %p271 = pneg %p270
    // Predicated region
    $region41: #{sp_head_forward.25} parent=5 // pred_check
      _
    $region42: #{sp_head_forward.25} parent=5 // pred_check_branch
      %273 = sbr.rel (%p270) target = $region44
    $region43: #{sp_head_forward.25} parent=5 // pred_region
      %s274 = ssub.s32 %s12, 1
      %s275 = ssub.s32 %s17, 1
      %p276 = scmp.gt.s32.totalorder %s275, 0
      %s277 = scalar_select %p276, %s275, 0
      %s278 = smul.u32 2, %s277
      %p279 = scmp.lt.s32.totalorder %s278, 7
      %s280 = scalar_select %p279, %s278, 7
      %s281 = smul.addr %s280, 2
      %s282 = scalar_lea.vmem %s0, %s281
      %p283 = pneg %p44
      %p284 = pneg %p41
      %s285 = smul.u32 2, %s17
      %p286 = scmp.lt.s32.totalorder %s285, 7
      %s287 = scalar_select %p286, %s285, 7
      %s288 = smul.addr %s287, 2
      %s289 = scalar_lea.vmem %s1, %s288
      %p290 = pneg %p70
      %p291 = pneg %p67
      %s292 = sadd.s32 %s17, 1
      %p293 = scmp.lt.s32.totalorder %s292, 3
      %s294 = scalar_select %p293, %s292, 3
      %s295 = smul.u32 2, %s294
      %p296 = scmp.lt.s32.totalorder %s295, 7
      %s297 = scalar_select %p296, %s295, 7
      %s298 = smul.addr %s297, 2
      %s299 = scalar_lea.vmem %s2, %s298
      %p300 = pneg %p102
      %p301 = pneg %p99
      %p302 = pneg %p123
      %p303 = pneg %p120
      %p304 = pneg %p144
      %p305 = pneg %p141
      %s306 = smul.u32 2, %s17
      %p307 = scmp.lt.s32.totalorder %s306, 7
      %s308 = scalar_select %p307, %s306, 7
      %s309 = scalar_lea.vmem %s5, %s308
      %p310 = pneg %p170
      %p311 = pneg %p167
      %p312 = pneg %p196
      %p313 = pneg %p193
      %s314 = smul.u32 2, %s17
      %p315 = scmp.lt.s32.totalorder %s314, 7
      %s316 = scalar_select %p315, %s314, 7
      %s317 = smul.addr %s316, 2
      %s318 = scalar_lea.vmem %s6, %s317
      %s319 = ssub.s32 %s17, 1
      %p320 = scmp.gt.s32.totalorder %s319, 0
      %s321 = scalar_select %p320, %s319, 0
      %s322 = smul.u32 2, %s321
      %p323 = scmp.lt.s32.totalorder %s322, 7
      %s324 = scalar_select %p323, %s322, 7
      %s325 = smul.addr %s324, 2
      %s326 = scalar_lea.vmem %s0, %s325
      %s327 = ssub.s32 %s17, 1
      %p328 = scmp.gt.s32.totalorder %s327, 0
      %s329 = scalar_select %p328, %s327, 0
      %s330 = smul.u32 2, %s329
      %s331 = smul.u32 2, %s17
      %p332 = scmp.lt.s32.totalorder %s331, 7
      %s333 = scalar_select %p332, %s331, 7
      %s334 = smul.addr %s333, 2
      %s335 = scalar_lea.vmem %s1, %s334
      %s336 = smul.u32 2, %s17
      %s337 = sadd.s32 %s17, 1
      %p338 = scmp.lt.s32.totalorder %s337, 3
      %s339 = scalar_select %p338, %s337, 3
      %s340 = smul.u32 2, %s339
      %p341 = scmp.lt.s32.totalorder %s340, 7
      %s342 = scalar_select %p341, %s340, 7
      %s343 = smul.addr %s342, 2
      %s344 = scalar_lea.vmem %s2, %s343
      %s345 = sadd.s32 %s17, 1
      %p346 = scmp.lt.s32.totalorder %s345, 3
      %s347 = scalar_select %p346, %s345, 3
      %s348 = smul.u32 2, %s347
      %s349 = smul.u32 2, %s17
      %p350 = scmp.lt.s32.totalorder %s349, 7
      %s351 = scalar_select %p350, %s349, 7
      %s352 = scalar_lea.vmem %s5, %s351
      %s353 = smul.u32 2, %s17
      %s354 = smul.u32 2, %s17
      %p355 = scmp.lt.s32.totalorder %s354, 7
      %s356 = scalar_select %p355, %s354, 7
      %s357 = smul.addr %s356, 2
      %s358 = scalar_lea.vmem %s6, %s357
      %s359 = smul.u32 2, %s17
      %v361 = vld [vmem:[%s335] sm:$0xf]
      %v362 = vld [vmem:[%s326] sm:$0xf]
      %v363 = vld [vmem:[%s344] sm:$0xf]
      %v364 = vld [vmem:[%s3] sm:$0x3]
      %v367 = vunpack.c.l.s4 1983009808
      %v368 = vunpack.c.0.s8 %v367
      %v369 = vlaneseq
      %v370 = vshrl.u32 %v369, 7
      %v371 = vsub.s32 %v368, %v370
      %v372 = vrot.slane %v362, %v371
      %v373 = vcombine.high %v372, %v372
      %374 = vrot.lane.b32.xlu0 %v373, 23
      %v375 = vpop.permute.xlu0 %374
      %v378 = vunpack.c.l.s4 1983009808
      %v379 = vunpack.c.0.s8 %v378
      %v380 = vlaneseq
      %v381 = vshrl.u32 %v380, 7
      %v382 = vsub.s32 %v379, %v381
      %v383 = vrot.slane %v361, %v382
      %v384 = vcombine.high %v383, %v383
      %385 = vrot.lane.b32.xlu0 %v383, 23
      %v386 = vpop.permute.xlu0 %385
      %387 = vrot.lane.b32.xlu0 %v384, 23
      %v388 = vpop.permute.xlu0 %387
      %vm389 = vcmask 187392
      %v390 = vsel %vm389, %v386, %v388
      %vm391 = vcmask 187392
      %v394 = vsel %vm391, %v375, %v386
      %s395 = scalar_lea.vmem %s3, 2
      %v396 = vld [vmem:[%s395] sm:$0x3]
      %397 = vrot.lane.b32.xlu0 %v373, 22
      %v398 = vpop.permute.xlu0 %397
      %399 = vrot.lane.b32.xlu0 %v383, 22
      %v400 = vpop.permute.xlu0 %399
      %401 = vrot.lane.b32.xlu0 %v384, 22
      %v402 = vpop.permute.xlu0 %401
      %vm403 = vcmask 179200
      %v404 = vsel %vm403, %v400, %v402
      %vm405 = vcmask 179200
      %v408 = vsel %vm405, %v398, %v400
      %vm409 = vcmask 31744
      %v411 = vsel %vm409, %v396, 0
      %vm413 = vcmask 1041408
      %v414 = vsel %vm413, %v408, 0
      %v417 = vsel %vm413, %v404, 0
      %419 = vmatprep.subr.bf16.mxu0 0
      %420 = vmatpush1.bf16.msra.mxu0 0
      %421 = vmatprep.subr.bf16.mxu0 0
      %422 = vmatpush1.bf16.msra.mxu0 0
      %423 = vmatprep.subr.bf16.mxu0 0
      %424 = vmatpush1.bf16.msra.mxu0 0
      %425 = vmatprep.subr.bf16.mxu0 0
      %426 = vmatpush1.bf16.msra.mxu0 0
      %427 = vmatprep.subr.bf16.mxu0 0
      %428 = vmatpush1.bf16.msra.mxu0 0
      %429 = vmatprep.subr.bf16.mxu0 0
      %430 = vmatpush1.bf16.msra.mxu0 0
      %431 = vmatprep.subr.bf16.mxu0 0
      %432 = vmatpush1.bf16.msra.mxu0 0
      %433 = vmatprep.subr.bf16.mxu0 %v417
      %434 = vmatpush1.bf16.msra.mxu0 %v414
      %435 = vmatprep.subr.bf16.mxu0 0
      %436 = vmatpush2.bf16.msra.mxu0 0
      %437 = vmatprep.subr.bf16.mxu0 0
      %438 = vmatpush2.bf16.msra.mxu0 0
      %439 = vmatprep.subr.bf16.mxu0 0
      %440 = vmatpush2.bf16.msra.mxu0 0
      %441 = vmatprep.subr.bf16.mxu0 0
      %442 = vmatpush2.bf16.msra.mxu0 0
      %443 = vmatprep.subr.bf16.mxu0 0
      %444 = vmatpush2.bf16.msra.mxu0 0
      %445 = vmatprep.subr.bf16.mxu0 0
      %446 = vmatpush2.bf16.msra.mxu0 0
      %447 = vmatprep.subr.bf16.mxu0 0
      %448 = vmatpush2.bf16.msra.mxu0 0
      %449 = vmatprep.subr.bf16.mxu0 0
      %450 = vmatpush2.bf16.msra.mxu0 0
      %451 = vmatprep.mubr.bf16.mxu0 0
      %452 = vmatmul.mubr.bf16.gmra.mxu0 %v411
      %v453 = vpop.f32.mrf.mxu0
      %v454 = vadd.f32 0.0, %v453
      %v455 = vpop.f32.mrf.mxu0
      %v456 = vadd.f32 0.0, %v455
      %v457 = vpop.f32.mrf.mxu0
      %v458 = vpop.f32.mrf.mxu0
      %459 = vdwg.mxu0
      %v461 = vsel %vm409, %v364, 0
      %v463 = vsel %vm413, %v394, 0
      %v466 = vsel %vm413, %v390, 0
      %468 = vmatprep.subr.bf16.mxu0 0
      %469 = vmatpush1.bf16.msra.mxu0 0
      %470 = vmatprep.subr.bf16.mxu0 0
      %471 = vmatpush1.bf16.msra.mxu0 0
      %472 = vmatprep.subr.bf16.mxu0 0
      %473 = vmatpush1.bf16.msra.mxu0 0
      %474 = vmatprep.subr.bf16.mxu0 0
      %475 = vmatpush1.bf16.msra.mxu0 0
      %476 = vmatprep.subr.bf16.mxu0 0
      %477 = vmatpush1.bf16.msra.mxu0 0
      %478 = vmatprep.subr.bf16.mxu0 0
      %479 = vmatpush1.bf16.msra.mxu0 0
      %480 = vmatprep.subr.bf16.mxu0 0
      %481 = vmatpush1.bf16.msra.mxu0 0
      %482 = vmatprep.subr.bf16.mxu0 %v466
      %483 = vmatpush1.bf16.msra.mxu0 %v463
      %484 = vmatprep.subr.bf16.mxu0 0
      %485 = vmatpush2.bf16.msra.mxu0 0
      %486 = vmatprep.subr.bf16.mxu0 0
      %487 = vmatpush2.bf16.msra.mxu0 0
      %488 = vmatprep.subr.bf16.mxu0 0
      %489 = vmatpush2.bf16.msra.mxu0 0
      %490 = vmatprep.subr.bf16.mxu0 0
      %491 = vmatpush2.bf16.msra.mxu0 0
      %492 = vmatprep.subr.bf16.mxu0 0
      %493 = vmatpush2.bf16.msra.mxu0 0
      %494 = vmatprep.subr.bf16.mxu0 0
      %495 = vmatpush2.bf16.msra.mxu0 0
      %496 = vmatprep.subr.bf16.mxu0 0
      %497 = vmatpush2.bf16.msra.mxu0 0
      %498 = vmatprep.subr.bf16.mxu0 0
      %499 = vmatpush2.bf16.msra.mxu0 0
      %500 = vmatprep.mubr.bf16.mxu0 0
      %501 = vmatmul.mubr.bf16.gmra.mxu0 %v461
      %v502 = vpop.f32.mrf.mxu0
      %v503 = vadd.f32 %v454, %v502
      %v504 = vpop.f32.mrf.mxu0
      %v505 = vadd.f32 %v456, %v504
      %v506 = vpop.f32.mrf.mxu0
      %v507 = vpop.f32.mrf.mxu0
      %508 = vdwg.mxu0
      %s509 = scalar_lea.vmem %s3, 4
      %v510 = vld [vmem:[%s509] sm:$0x3]
      %511 = vrot.lane.b32.xlu0 %v373, 21
      %v512 = vpop.permute.xlu0 %511
      %513 = vrot.lane.b32.xlu0 %v383, 21
      %v514 = vpop.permute.xlu0 %513
      %515 = vrot.lane.b32.xlu0 %v384, 21
      %v516 = vpop.permute.xlu0 %515
      %vm517 = vcmask 171008
      %v518 = vsel %vm517, %v514, %v516
      %vm519 = vcmask 171008
      %v522 = vsel %vm519, %v512, %v514
      %v524 = vsel %vm409, %v510, 0
      %v526 = vsel %vm413, %v522, 0
      %v529 = vsel %vm413, %v518, 0
      %531 = vmatprep.subr.bf16.mxu0 0
      %532 = vmatpush1.bf16.msra.mxu0 0
      %533 = vmatprep.subr.bf16.mxu0 0
      %534 = vmatpush1.bf16.msra.mxu0 0
      %535 = vmatprep.subr.bf16.mxu0 0
      %536 = vmatpush1.bf16.msra.mxu0 0
      %537 = vmatprep.subr.bf16.mxu0 0
      %538 = vmatpush1.bf16.msra.mxu0 0
      %539 = vmatprep.subr.bf16.mxu0 0
      %540 = vmatpush1.bf16.msra.mxu0 0
      %541 = vmatprep.subr.bf16.mxu0 0
      %542 = vmatpush1.bf16.msra.mxu0 0
      %543 = vmatprep.subr.bf16.mxu0 0
      %544 = vmatpush1.bf16.msra.mxu0 0
      %545 = vmatprep.subr.bf16.mxu0 %v529
      %546 = vmatpush1.bf16.msra.mxu0 %v526
      %547 = vmatprep.subr.bf16.mxu0 0
      %548 = vmatpush2.bf16.msra.mxu0 0
      %549 = vmatprep.subr.bf16.mxu0 0
      %550 = vmatpush2.bf16.msra.mxu0 0
      %551 = vmatprep.subr.bf16.mxu0 0
      %552 = vmatpush2.bf16.msra.mxu0 0
      %553 = vmatprep.subr.bf16.mxu0 0
      %554 = vmatpush2.bf16.msra.mxu0 0
      %555 = vmatprep.subr.bf16.mxu0 0
      %556 = vmatpush2.bf16.msra.mxu0 0
      %557 = vmatprep.subr.bf16.mxu0 0
      %558 = vmatpush2.bf16.msra.mxu0 0
      %559 = vmatprep.subr.bf16.mxu0 0
      %560 = vmatpush2.bf16.msra.mxu0 0
      %561 = vmatprep.subr.bf16.mxu0 0
      %562 = vmatpush2.bf16.msra.mxu0 0
      %563 = vmatprep.mubr.bf16.mxu0 0
      %564 = vmatmul.mubr.bf16.gmra.mxu0 %v524
      %v565 = vpop.f32.mrf.mxu0
      %v566 = vadd.f32 0.0, %v565
      %v567 = vpop.f32.mrf.mxu0
      %v568 = vadd.f32 0.0, %v567
      %v569 = vpop.f32.mrf.mxu0
      %v570 = vpop.f32.mrf.mxu0
      %571 = vdwg.mxu0
      %v572 = vadd.f32 %v503, %v566
      %v573 = vadd.f32 %v505, %v568
      %s574 = scalar_lea.vmem %s3, 6
      %v575 = vld [vmem:[%s574] sm:$0x3]
      %576 = vrot.lane.b32.xlu0 %v373, 1
      %v577 = vpop.permute.xlu0 %576
      %578 = vrot.lane.b32.xlu0 %v383, 1
      %v579 = vpop.permute.xlu0 %578
      %580 = vrot.lane.b32.xlu0 %v384, 1
      %v581 = vpop.permute.xlu0 %580
      %vm582 = vcmask 7168
      %v583 = vsel %vm582, %v579, %v581
      %vm584 = vcmask 7168
      %v587 = vsel %vm584, %v577, %v579
      %v589 = vsel %vm409, %v575, 0
      %v591 = vsel %vm413, %v587, 0
      %v594 = vsel %vm413, %v583, 0
      %596 = vmatprep.subr.bf16.mxu0 0
      %597 = vmatpush1.bf16.msra.mxu0 0
      %598 = vmatprep.subr.bf16.mxu0 0
      %599 = vmatpush1.bf16.msra.mxu0 0
      %600 = vmatprep.subr.bf16.mxu0 0
      %601 = vmatpush1.bf16.msra.mxu0 0
      %602 = vmatprep.subr.bf16.mxu0 0
      %603 = vmatpush1.bf16.msra.mxu0 0
      %604 = vmatprep.subr.bf16.mxu0 0
      %605 = vmatpush1.bf16.msra.mxu0 0
      %606 = vmatprep.subr.bf16.mxu0 0
      %607 = vmatpush1.bf16.msra.mxu0 0
      %608 = vmatprep.subr.bf16.mxu0 0
      %609 = vmatpush1.bf16.msra.mxu0 0
      %610 = vmatprep.subr.bf16.mxu0 %v594
      %611 = vmatpush1.bf16.msra.mxu0 %v591
      %612 = vmatprep.subr.bf16.mxu0 0
      %613 = vmatpush2.bf16.msra.mxu0 0
      %614 = vmatprep.subr.bf16.mxu0 0
      %615 = vmatpush2.bf16.msra.mxu0 0
      %616 = vmatprep.subr.bf16.mxu0 0
      %617 = vmatpush2.bf16.msra.mxu0 0
      %618 = vmatprep.subr.bf16.mxu0 0
      %619 = vmatpush2.bf16.msra.mxu0 0
      %620 = vmatprep.subr.bf16.mxu0 0
      %621 = vmatpush2.bf16.msra.mxu0 0
      %622 = vmatprep.subr.bf16.mxu0 0
      %623 = vmatpush2.bf16.msra.mxu0 0
      %624 = vmatprep.subr.bf16.mxu0 0
      %625 = vmatpush2.bf16.msra.mxu0 0
      %626 = vmatprep.subr.bf16.mxu0 0
      %627 = vmatpush2.bf16.msra.mxu0 0
      %628 = vmatprep.mubr.bf16.mxu0 0
      %629 = vmatmul.mubr.bf16.gmra.mxu0 %v589
      %v630 = vpop.f32.mrf.mxu0
      %v631 = vadd.f32 0.0, %v630
      %v632 = vpop.f32.mrf.mxu0
      %v633 = vadd.f32 0.0, %v632
      %v634 = vpop.f32.mrf.mxu0
      %v635 = vpop.f32.mrf.mxu0
      %636 = vdwg.mxu0
      %v637 = vadd.f32 %v572, %v631
      %v638 = vadd.f32 %v573, %v633
      %s639 = scalar_lea.vmem %s3, 8
      %v640 = vld [vmem:[%s639] sm:$0x3]
      %v642 = vsel %vm409, %v640, 0
      %v645 = vsel %vm413, %v383, 0
      %v648 = vsel %vm413, %v384, 0
      %650 = vmatprep.subr.bf16.mxu0 0
      %651 = vmatpush1.bf16.msra.mxu0 0
      %652 = vmatprep.subr.bf16.mxu0 0
      %653 = vmatpush1.bf16.msra.mxu0 0
      %654 = vmatprep.subr.bf16.mxu0 0
      %655 = vmatpush1.bf16.msra.mxu0 0
      %656 = vmatprep.subr.bf16.mxu0 0
      %657 = vmatpush1.bf16.msra.mxu0 0
      %658 = vmatprep.subr.bf16.mxu0 0
      %659 = vmatpush1.bf16.msra.mxu0 0
      %660 = vmatprep.subr.bf16.mxu0 0
      %661 = vmatpush1.bf16.msra.mxu0 0
      %662 = vmatprep.subr.bf16.mxu0 0
      %663 = vmatpush1.bf16.msra.mxu0 0
      %664 = vmatprep.subr.bf16.mxu0 %v648
      %665 = vmatpush1.bf16.msra.mxu0 %v645
      %666 = vmatprep.subr.bf16.mxu0 0
      %667 = vmatpush2.bf16.msra.mxu0 0
      %668 = vmatprep.subr.bf16.mxu0 0
      %669 = vmatpush2.bf16.msra.mxu0 0
      %670 = vmatprep.subr.bf16.mxu0 0
      %671 = vmatpush2.bf16.msra.mxu0 0
      %672 = vmatprep.subr.bf16.mxu0 0
      %673 = vmatpush2.bf16.msra.mxu0 0
      %674 = vmatprep.subr.bf16.mxu0 0
      %675 = vmatpush2.bf16.msra.mxu0 0
      %676 = vmatprep.subr.bf16.mxu0 0
      %677 = vmatpush2.bf16.msra.mxu0 0
      %678 = vmatprep.subr.bf16.mxu0 0
      %679 = vmatpush2.bf16.msra.mxu0 0
      %680 = vmatprep.subr.bf16.mxu0 0
      %681 = vmatpush2.bf16.msra.mxu0 0
      %682 = vmatprep.mubr.bf16.mxu0 0
      %683 = vmatmul.mubr.bf16.gmra.mxu0 %v642
      %v684 = vpop.f32.mrf.mxu0
      %v685 = vadd.f32 0.0, %v684
      %v686 = vpop.f32.mrf.mxu0
      %v687 = vadd.f32 0.0, %v686
      %v688 = vpop.f32.mrf.mxu0
      %v689 = vpop.f32.mrf.mxu0
      %690 = vdwg.mxu0
      %v691 = vadd.f32 %v637, %v685
      %v692 = vadd.f32 %v638, %v687
      %s693 = scalar_lea.vmem %s3, 10
      %v694 = vld [vmem:[%s693] sm:$0x3]
      %695 = vrot.lane.b32.xlu0 %v383, 127
      %v696 = vpop.permute.xlu0 %695
      %697 = vrot.lane.b32.xlu0 %v384, 127
      %v698 = vpop.permute.xlu0 %697
      %vm699 = vcmask 1039360
      %v700 = vsel %vm699, %v696, %v698
      %v703 = vunpack.c.l.s4 1983009808
      %v704 = vunpack.c.0.s8 %v703
      %v705 = vlaneseq
      %v706 = vshrl.u32 %v705, 7
      %v707 = vsub.s32 %v704, %v706
      %v708 = vrot.slane %v363, %v707
      %709 = vrot.lane.b32.xlu0 %v708, 127
      %v710 = vpop.permute.xlu0 %709
      %vm711 = vcmask 1039360
      %v714 = vsel %vm711, %v698, %v710
      %v716 = vsel %vm409, %v694, 0
      %v719 = vsel %vm413, %v700, 0
      %v721 = vsel %vm413, %v714, 0
      %723 = vmatprep.subr.bf16.mxu0 0
      %724 = vmatpush1.bf16.msra.mxu0 0
      %725 = vmatprep.subr.bf16.mxu0 0
      %726 = vmatpush1.bf16.msra.mxu0 0
      %727 = vmatprep.subr.bf16.mxu0 0
      %728 = vmatpush1.bf16.msra.mxu0 0
      %729 = vmatprep.subr.bf16.mxu0 0
      %730 = vmatpush1.bf16.msra.mxu0 0
      %731 = vmatprep.subr.bf16.mxu0 0
      %732 = vmatpush1.bf16.msra.mxu0 0
      %733 = vmatprep.subr.bf16.mxu0 0
      %734 = vmatpush1.bf16.msra.mxu0 0
      %735 = vmatprep.subr.bf16.mxu0 0
      %736 = vmatpush1.bf16.msra.mxu0 0
      %737 = vmatprep.subr.bf16.mxu0 %v721
      %738 = vmatpush1.bf16.msra.mxu0 %v719
      %739 = vmatprep.subr.bf16.mxu0 0
      %740 = vmatpush2.bf16.msra.mxu0 0
      %741 = vmatprep.subr.bf16.mxu0 0
      %742 = vmatpush2.bf16.msra.mxu0 0
      %743 = vmatprep.subr.bf16.mxu0 0
      %744 = vmatpush2.bf16.msra.mxu0 0
      %745 = vmatprep.subr.bf16.mxu0 0
      %746 = vmatpush2.bf16.msra.mxu0 0
      %747 = vmatprep.subr.bf16.mxu0 0
      %748 = vmatpush2.bf16.msra.mxu0 0
      %749 = vmatprep.subr.bf16.mxu0 0
      %750 = vmatpush2.bf16.msra.mxu0 0
      %751 = vmatprep.subr.bf16.mxu0 0
      %752 = vmatpush2.bf16.msra.mxu0 0
      %753 = vmatprep.subr.bf16.mxu0 0
      %754 = vmatpush2.bf16.msra.mxu0 0
      %755 = vmatprep.mubr.bf16.mxu0 0
      %756 = vmatmul.mubr.bf16.gmra.mxu0 %v716
      %v757 = vpop.f32.mrf.mxu0
      %v758 = vadd.f32 0.0, %v757
      %v759 = vpop.f32.mrf.mxu0
      %v760 = vadd.f32 0.0, %v759
      %v761 = vpop.f32.mrf.mxu0
      %v762 = vpop.f32.mrf.mxu0
      %763 = vdwg.mxu0
      %v764 = vadd.f32 %v691, %v758
      %v765 = vadd.f32 %v692, %v760
      %s766 = scalar_lea.vmem %s3, 12
      %v767 = vld [vmem:[%s766] sm:$0x3]
      %768 = vrot.lane.b32.xlu0 %v383, 107
      %v769 = vpop.permute.xlu0 %768
      %770 = vrot.lane.b32.xlu0 %v384, 107
      %v771 = vpop.permute.xlu0 %770
      %vm772 = vcmask 875520
      %v773 = vsel %vm772, %v769, %v771
      %774 = vrot.lane.b32.xlu0 %v708, 107
      %v775 = vpop.permute.xlu0 %774
      %vm776 = vcmask 875520
      %v779 = vsel %vm776, %v771, %v775
      %v781 = vsel %vm409, %v767, 0
      %v784 = vsel %vm413, %v773, 0
      %v786 = vsel %vm413, %v779, 0
      %788 = vmatprep.subr.bf16.mxu0 0
      %789 = vmatpush1.bf16.msra.mxu0 0
      %790 = vmatprep.subr.bf16.mxu0 0
      %791 = vmatpush1.bf16.msra.mxu0 0
      %792 = vmatprep.subr.bf16.mxu0 0
      %793 = vmatpush1.bf16.msra.mxu0 0
      %794 = vmatprep.subr.bf16.mxu0 0
      %795 = vmatpush1.bf16.msra.mxu0 0
      %796 = vmatprep.subr.bf16.mxu0 0
      %797 = vmatpush1.bf16.msra.mxu0 0
      %798 = vmatprep.subr.bf16.mxu0 0
      %799 = vmatpush1.bf16.msra.mxu0 0
      %800 = vmatprep.subr.bf16.mxu0 0
      %801 = vmatpush1.bf16.msra.mxu0 0
      %802 = vmatprep.subr.bf16.mxu0 %v786
      %803 = vmatpush1.bf16.msra.mxu0 %v784
      %804 = vmatprep.subr.bf16.mxu0 0
      %805 = vmatpush2.bf16.msra.mxu0 0
      %806 = vmatprep.subr.bf16.mxu0 0
      %807 = vmatpush2.bf16.msra.mxu0 0
      %808 = vmatprep.subr.bf16.mxu0 0
      %809 = vmatpush2.bf16.msra.mxu0 0
      %810 = vmatprep.subr.bf16.mxu0 0
      %811 = vmatpush2.bf16.msra.mxu0 0
      %812 = vmatprep.subr.bf16.mxu0 0
      %813 = vmatpush2.bf16.msra.mxu0 0
      %814 = vmatprep.subr.bf16.mxu0 0
      %815 = vmatpush2.bf16.msra.mxu0 0
      %816 = vmatprep.subr.bf16.mxu0 0
      %817 = vmatpush2.bf16.msra.mxu0 0
      %818 = vmatprep.subr.bf16.mxu0 0
      %819 = vmatpush2.bf16.msra.mxu0 0
      %820 = vmatprep.mubr.bf16.mxu0 0
      %821 = vmatmul.mubr.bf16.gmra.mxu0 %v781
      %v822 = vpop.f32.mrf.mxu0
      %v823 = vadd.f32 0.0, %v822
      %v824 = vpop.f32.mrf.mxu0
      %v825 = vadd.f32 0.0, %v824
      %v826 = vpop.f32.mrf.mxu0
      %v827 = vpop.f32.mrf.mxu0
      %828 = vdwg.mxu0
      %v829 = vadd.f32 %v764, %v823
      %v830 = vadd.f32 %v765, %v825
      %s831 = scalar_lea.vmem %s3, 14
      %v832 = vld [vmem:[%s831] sm:$0x3]
      %833 = vrot.lane.b32.xlu0 %v383, 106
      %v834 = vpop.permute.xlu0 %833
      %835 = vrot.lane.b32.xlu0 %v384, 106
      %v836 = vpop.permute.xlu0 %835
      %vm837 = vcmask 867328
      %v838 = vsel %vm837, %v834, %v836
      %839 = vrot.lane.b32.xlu0 %v708, 106
      %v840 = vpop.permute.xlu0 %839
      %vm841 = vcmask 867328
      %v844 = vsel %vm841, %v836, %v840
      %v846 = vsel %vm409, %v832, 0
      %v849 = vsel %vm413, %v838, 0
      %v851 = vsel %vm413, %v844, 0
      %853 = vmatprep.subr.bf16.mxu0 0
      %854 = vmatpush1.bf16.msra.mxu0 0
      %855 = vmatprep.subr.bf16.mxu0 0
      %856 = vmatpush1.bf16.msra.mxu0 0
      %857 = vmatprep.subr.bf16.mxu0 0
      %858 = vmatpush1.bf16.msra.mxu0 0
      %859 = vmatprep.subr.bf16.mxu0 0
      %860 = vmatpush1.bf16.msra.mxu0 0
      %861 = vmatprep.subr.bf16.mxu0 0
      %862 = vmatpush1.bf16.msra.mxu0 0
      %863 = vmatprep.subr.bf16.mxu0 0
      %864 = vmatpush1.bf16.msra.mxu0 0
      %865 = vmatprep.subr.bf16.mxu0 0
      %866 = vmatpush1.bf16.msra.mxu0 0
      %867 = vmatprep.subr.bf16.mxu0 %v851
      %868 = vmatpush1.bf16.msra.mxu0 %v849
      %869 = vmatprep.subr.bf16.mxu0 0
      %870 = vmatpush2.bf16.msra.mxu0 0
      %871 = vmatprep.subr.bf16.mxu0 0
      %872 = vmatpush2.bf16.msra.mxu0 0
      %873 = vmatprep.subr.bf16.mxu0 0
      %874 = vmatpush2.bf16.msra.mxu0 0
      %875 = vmatprep.subr.bf16.mxu0 0
      %876 = vmatpush2.bf16.msra.mxu0 0
      %877 = vmatprep.subr.bf16.mxu0 0
      %878 = vmatpush2.bf16.msra.mxu0 0
      %879 = vmatprep.subr.bf16.mxu0 0
      %880 = vmatpush2.bf16.msra.mxu0 0
      %881 = vmatprep.subr.bf16.mxu0 0
      %882 = vmatpush2.bf16.msra.mxu0 0
      %883 = vmatprep.subr.bf16.mxu0 0
      %884 = vmatpush2.bf16.msra.mxu0 0
      %885 = vmatprep.mubr.bf16.mxu0 0
      %886 = vmatmul.mubr.bf16.gmra.mxu0 %v846
      %v887 = vpop.f32.mrf.mxu0
      %v888 = vadd.f32 0.0, %v887
      %v889 = vpop.f32.mrf.mxu0
      %v890 = vadd.f32 0.0, %v889
      %v891 = vpop.f32.mrf.mxu0
      %v892 = vpop.f32.mrf.mxu0
      %893 = vdwg.mxu0
      %v894 = vadd.f32 %v829, %v888
      %v895 = vadd.f32 %v830, %v890
      %s896 = scalar_lea.vmem %s3, 16
      %v897 = vld [vmem:[%s896] sm:$0x3]
      %898 = vrot.lane.b32.xlu0 %v383, 105
      %v899 = vpop.permute.xlu0 %898
      %900 = vrot.lane.b32.xlu0 %v384, 105
      %v901 = vpop.permute.xlu0 %900
      %vm902 = vcmask 859136
      %v903 = vsel %vm902, %v899, %v901
      %904 = vrot.lane.b32.xlu0 %v708, 105
      %v905 = vpop.permute.xlu0 %904
      %vm906 = vcmask 859136
      %v909 = vsel %vm906, %v901, %v905
      %v911 = vsel %vm409, %v897, 0
      %v914 = vsel %vm413, %v903, 0
      %v916 = vsel %vm413, %v909, 0
      %918 = vmatprep.subr.bf16.mxu0 0
      %919 = vmatpush1.bf16.msra.mxu0 0
      %920 = vmatprep.subr.bf16.mxu0 0
      %921 = vmatpush1.bf16.msra.mxu0 0
      %922 = vmatprep.subr.bf16.mxu0 0
      %923 = vmatpush1.bf16.msra.mxu0 0
      %924 = vmatprep.subr.bf16.mxu0 0
      %925 = vmatpush1.bf16.msra.mxu0 0
      %926 = vmatprep.subr.bf16.mxu0 0
      %927 = vmatpush1.bf16.msra.mxu0 0
      %928 = vmatprep.subr.bf16.mxu0 0
      %929 = vmatpush1.bf16.msra.mxu0 0
      %930 = vmatprep.subr.bf16.mxu0 0
      %931 = vmatpush1.bf16.msra.mxu0 0
      %932 = vmatprep.subr.bf16.mxu0 %v916
      %933 = vmatpush1.bf16.msra.mxu0 %v914
      %934 = vmatprep.subr.bf16.mxu0 0
      %935 = vmatpush2.bf16.msra.mxu0 0
      %936 = vmatprep.subr.bf16.mxu0 0
      %937 = vmatpush2.bf16.msra.mxu0 0
      %938 = vmatprep.subr.bf16.mxu0 0
      %939 = vmatpush2.bf16.msra.mxu0 0
      %940 = vmatprep.subr.bf16.mxu0 0
      %941 = vmatpush2.bf16.msra.mxu0 0
      %942 = vmatprep.subr.bf16.mxu0 0
      %943 = vmatpush2.bf16.msra.mxu0 0
      %944 = vmatprep.subr.bf16.mxu0 0
      %945 = vmatpush2.bf16.msra.mxu0 0
      %946 = vmatprep.subr.bf16.mxu0 0
      %947 = vmatpush2.bf16.msra.mxu0 0
      %948 = vmatprep.subr.bf16.mxu0 0
      %949 = vmatpush2.bf16.msra.mxu0 0
      %950 = vmatprep.mubr.bf16.mxu0 0
      %951 = vmatmul.mubr.bf16.gmra.mxu0 %v911
      %v952 = vpop.f32.mrf.mxu0
      %v953 = vadd.f32 0.0, %v952
      %v954 = vpop.f32.mrf.mxu0
      %v955 = vadd.f32 0.0, %v954
      %v956 = vpop.f32.mrf.mxu0
      %v957 = vpop.f32.mrf.mxu0
      %958 = vdwg.mxu0
      %v959 = vadd.f32 %v894, %v953
      %v960 = vadd.f32 %v895, %v955
      %v961 = vld [vmem:[%s4] sm:$0xf]
      %963 = vset.pattern.permute.xlu0 0
      %964 = vperm.xlu0 %963, %v961
      %v965 = vpop.permute.xlu0 %964
      %v967 = vadd.f32 %v959, %v965
      %v968 = vadd.f32 %v960, %v965
      %v969 = vld [vmem:[%s352] sm:$0x3]
      %v971 = vlaneseq
      %v972 = vshrl.u32 %v971, 7
      %v973 = vsub.s32 0, %v972
      %v974 = vrot.slane %v969, %v973
      %v975 = vlaneseq
      %v976 = vshrl.u32 %v975, 7
      %v977 = vsub.s32 1, %v976
      %v978 = vrot.slane %v969, %v977
      %v981 = vmul.f32 %v967, %v974
      %v982 = vmul.f32 %v968, %v978
      %v983 = vpack.c.bf16 %v981, %v981
      %v984 = vpack.c.bf16 %v982, %v982
      %v987 = vcombine.low %v983, %v984
      %v989 = vunpack.c.l.s4 1983009808
      %v990 = vunpack.c.0.s8 %v989
      %v991 = vlaneseq
      %v992 = vshrl.u32 %v991, 7
      %v993 = vsub.s32 %v990, %v992
      %v994 = vrot.slane %v987, %v993
      %996 = vst [vmem:[%s358] sm:$0xf] %v994
      %s997 = smul.u32 2, %s17
      %p998 = scmp.lt.s32.totalorder %s997, 7
      %s999 = scalar_select %p998, %s997, 7
      %s1000 = smul.addr %s999, 2
      %s1001 = scalar_lea.vmem %s6, %s1000
      // Predicated region
      $region45: #{sp_head_forward.25} parent=43 // pred_check
        %p1002 = pneg %p193
      $region46: #{sp_head_forward.25} parent=43 // pred_check_branch
        %1004 = sbr.rel (%p1002) target = $region48
      $region47: #{sp_head_forward.25} parent=43 // pred_region
        %s1005 = smul.u32 2, %s17
      $region48: #{sp_head_forward.25} parent=43 // pred_fallthru
        _
    $region44: #{sp_head_forward.25} parent=5 // pred_fallthru
      _
    %p1006 = scmp.le.s32.totalorder 2, %s12
    // Predicated region
    $region49: #{sp_head_forward.25} parent=5 // pred_check
      %p1007 = pneg %p1006
    $region50: #{sp_head_forward.25} parent=5 // pred_check_branch
      %1009 = sbr.rel (%p1007) target = $region52
    $region51: #{sp_head_forward.25} parent=5 // pred_region
      %s1010 = ssub.s32 %s12, 2
      // Predicated region
      $region53: #{sp_head_forward.25} parent=51 // pred_check
        %p1011 = pneg %p199
      $region54: #{sp_head_forward.25} parent=51 // pred_check_branch
        %1013 = sbr.rel (%p1011) target = $region56
      $region55: #{sp_head_forward.25} parent=51 // pred_region
        %s1014 = smul.u32 2, %s18
        %p1015 = scmp.lt.s32.totalorder %s1014, 7
        %s1016 = scalar_select %p1015, %s1014, 7
        %s1017 = smul.addr %s1016, 2
        %s1018 = scalar_lea.vmem %s6, %s1017
      $region56: #{sp_head_forward.25} parent=51 // pred_fallthru
        _
    $region52: #{sp_head_forward.25} parent=5 // pred_fallthru
      _
  $region6: #{sp_head_forward.25} parent=0 // loop_footer
    %s16 = sadd.s32 1, %s12
  $region7: #{sp_head_forward.25} parent=0 // loop_footer_branch
    %11 = sbr.rel target = $region3
  $region8: #{sp_head_forward.25} parent=0 // loop_exit
    _

// kernel: sp_head_forward.26
$region0: #{sp_head_forward.26}
  #allocation0 [shape = 'u32[]', space=smem, size = 0x4, offset = 0x4, fixed_abs, tag = 'smem constant byte address 0x4 - core index']
  #allocation1 [shape = 'u32[144,128]{1,0:T(1,128)}', space=vmem, size = 0x12000, scoped, tag = 'internal scratch']
  %s0 = inlined_call_operand.vmem [shape: bf16[4,512], index: 0, kind: input, shape index: {}, may-alias: {0,1,2}]
  %s1 = inlined_call_operand.vmem [shape: bf16[4,512], index: 1, kind: input, shape index: {}, may-alias: {0,1,2}]
  %s2 = inlined_call_operand.vmem [shape: bf16[4,512], index: 2, kind: input, shape index: {}, may-alias: {0,1,2}]
  %s3 = inlined_call_operand.vmem [shape: bf16[9,4,4], index: 3, kind: input, shape index: {}]
  %s4 = inlined_call_operand.vmem [shape: f32[4,1], index: 4, kind: input, shape index: {}]
  %s5 = inlined_call_operand.vmem [shape: f32[1,512], index: 5, kind: input, shape index: {}]
  %s6 = inlined_call_operand.vmem [shape: bf16[4,512], index: 6, kind: output, shape index: {}]
  %s7 = sld [smem:[#allocation0]]
  $region57: #{sp_head_forward.26} parent=0
    _
  %s9 = ssub.s32 1, %s7
  %s10 = scalar_select 0, %s9, %s7
  loop: start=0, step=1, limit=4
  $region2: #{sp_head_forward.26} parent=0 // loop_pre_header
    _
  $region3: #{sp_head_forward.26} parent=0 // loop_header
    %s12 = sphi 0, %s16
    %p13 = scmp.ge.s32.totalorder %s12, 4
    %s28 = sphi 0, %s30
    %s31 = sphi 0, %s28
    %s32 = sphi 0, %s31
    %s48 = sphi 0, %s32
    %s54 = sphi 0, %s56
    %s57 = sphi 0, %s54
    %s58 = sphi 0, %s57
    %s74 = sphi 0, %s58
    %s86 = sphi 0, %s88
    %s89 = sphi 0, %s86
    %s90 = sphi 0, %s89
    %s106 = sphi 0, %s90
    %s110 = sphi 0, %s110
    %s112 = sphi 0, %s110
    %s113 = sphi 0, %s112
    %s127 = sphi 0, %s113
    %s131 = sphi 0, %s131
    %s133 = sphi 0, %s131
    %s134 = sphi 0, %s133
    %s148 = sphi 0, %s134
    %s154 = sphi 0, %s156
    %s157 = sphi 0, %s154
    %s158 = sphi 0, %s157
    %s174 = sphi 0, %s158
    %s180 = sphi 0, %s182
    %s183 = sphi 0, %s180
    %s184 = sphi 0, %s183
    %s200 = sphi 0, %s184
  $region4: #{sp_head_forward.26} parent=0 // loop_header_branch
    %15 = sbr.rel (%p13) target = $region8
  $region5: #{sp_head_forward.26} parent=0 // loop_body
    %s17 = ssub.s32 %s12, 1
    %s18 = ssub.s32 %s12, 2
    %s19 = sadd.s32 %s12, 1
    %s20 = ssub.s32 %s12, 1
    %p21 = scmp.gt.s32.totalorder %s20, 0
    %s22 = scalar_select %p21, %s20, 0
    %s23 = ssub.s32 %s19, 1
    %p24 = scmp.gt.s32.totalorder %s23, 0
    %s25 = scalar_select %p24, %s23, 0
    %s26 = ssub.s32 %s22, %s25
    %p27 = scmp.eq.s32.totalorder %s26, 0
    %s29 = sadd.s32 %s28, 1
    %s30 = scalar_select %p27, %s28, %s29
    %p33 = pneg %p27
    %p34 = scmp.eq.s32.totalorder %s12, 1
    %p35 = por %p33, %p34
    %p36 = scmp.ne.s32.totalorder %s28, %s31
    %p37 = scmp.eq.s32.totalorder %s12, 0
    %p38 = por %p36, %p37
    %p39 = scmp.ne.s32.totalorder %s28, %s31
    %p40 = scmp.eq.s32.totalorder %s17, 1
    %p41 = por %p39, %p40
    %p42 = scmp.ne.s32.totalorder %s31, %s32
    %p43 = scmp.eq.s32.totalorder %s17, 0
    %p44 = por %p42, %p43
    %p45 = scmp.ne.s32.totalorder %s31, %s32
    %p46 = scmp.eq.s32.totalorder %s18, 1
    %p47 = por %p45, %p46
    %p49 = scmp.ne.s32.totalorder %s32, %s48
    %p50 = scmp.eq.s32.totalorder %s18, 0
    %p51 = por %p49, %p50
    %s52 = ssub.s32 %s12, %s19
    %p53 = scmp.eq.s32.totalorder %s52, 0
    %s55 = sadd.s32 %s54, 1
    %s56 = scalar_select %p53, %s54, %s55
    %p59 = pneg %p53
    %p60 = scmp.eq.s32.totalorder %s12, 1
    %p61 = por %p59, %p60
    %p62 = scmp.ne.s32.totalorder %s54, %s57
    %p63 = scmp.eq.s32.totalorder %s12, 0
    %p64 = por %p62, %p63
    %p65 = scmp.ne.s32.totalorder %s54, %s57
    %p66 = scmp.eq.s32.totalorder %s17, 1
    %p67 = por %p65, %p66
    %p68 = scmp.ne.s32.totalorder %s57, %s58
    %p69 = scmp.eq.s32.totalorder %s17, 0
    %p70 = por %p68, %p69
    %p71 = scmp.ne.s32.totalorder %s57, %s58
    %p72 = scmp.eq.s32.totalorder %s18, 1
    %p73 = por %p71, %p72
    %p75 = scmp.ne.s32.totalorder %s58, %s74
    %p76 = scmp.eq.s32.totalorder %s18, 0
    %p77 = por %p75, %p76
    %s78 = sadd.s32 %s12, 1
    %p79 = scmp.lt.s32.totalorder %s78, 1
    %s80 = scalar_select %p79, %s78, 1
    %s81 = sadd.s32 %s19, 1
    %p82 = scmp.lt.s32.totalorder %s81, 1
    %s83 = scalar_select %p82, %s81, 1
    %s84 = ssub.s32 %s80, %s83
    %p85 = scmp.eq.s32.totalorder %s84, 0
    %s87 = sadd.s32 %s86, 1
    %s88 = scalar_select %p85, %s86, %s87
    %p91 = pneg %p85
    %p92 = scmp.eq.s32.totalorder %s12, 1
    %p93 = por %p91, %p92
    %p94 = scmp.ne.s32.totalorder %s86, %s89
    %p95 = scmp.eq.s32.totalorder %s12, 0
    %p96 = por %p94, %p95
    %p97 = scmp.ne.s32.totalorder %s86, %s89
    %p98 = scmp.eq.s32.totalorder %s17, 1
    %p99 = por %p97, %p98
    %p100 = scmp.ne.s32.totalorder %s89, %s90
    %p101 = scmp.eq.s32.totalorder %s17, 0
    %p102 = por %p100, %p101
    %p103 = scmp.ne.s32.totalorder %s89, %s90
    %p104 = scmp.eq.s32.totalorder %s18, 1
    %p105 = por %p103, %p104
    %p107 = scmp.ne.s32.totalorder %s90, %s106
    %p108 = scmp.eq.s32.totalorder %s18, 0
    %p109 = por %p107, %p108
    %s111 = sadd.s32 %s110, 1
    %p114 = scmp.eq.s32.totalorder %s12, 1
    %p115 = scmp.ne.s32.totalorder %s110, %s112
    %p116 = scmp.eq.s32.totalorder %s12, 0
    %p117 = por %p115, %p116
    %p118 = scmp.ne.s32.totalorder %s110, %s112
    %p119 = scmp.eq.s32.totalorder %s17, 1
    %p120 = por %p118, %p119
    %p121 = scmp.ne.s32.totalorder %s112, %s113
    %p122 = scmp.eq.s32.totalorder %s17, 0
    %p123 = por %p121, %p122
    %p124 = scmp.ne.s32.totalorder %s112, %s113
    %p125 = scmp.eq.s32.totalorder %s18, 1
    %p126 = por %p124, %p125
    %p128 = scmp.ne.s32.totalorder %s113, %s127
    %p129 = scmp.eq.s32.totalorder %s18, 0
    %p130 = por %p128, %p129
    %s132 = sadd.s32 %s131, 1
    %p135 = scmp.eq.s32.totalorder %s12, 1
    %p136 = scmp.ne.s32.totalorder %s131, %s133
    %p137 = scmp.eq.s32.totalorder %s12, 0
    %p138 = por %p136, %p137
    %p139 = scmp.ne.s32.totalorder %s131, %s133
    %p140 = scmp.eq.s32.totalorder %s17, 1
    %p141 = por %p139, %p140
    %p142 = scmp.ne.s32.totalorder %s133, %s134
    %p143 = scmp.eq.s32.totalorder %s17, 0
    %p144 = por %p142, %p143
    %p145 = scmp.ne.s32.totalorder %s133, %s134
    %p146 = scmp.eq.s32.totalorder %s18, 1
    %p147 = por %p145, %p146
    %p149 = scmp.ne.s32.totalorder %s134, %s148
    %p150 = scmp.eq.s32.totalorder %s18, 0
    %p151 = por %p149, %p150
    %s152 = ssub.s32 %s12, %s19
    %p153 = scmp.eq.s32.totalorder %s152, 0
    %s155 = sadd.s32 %s154, 1
    %s156 = scalar_select %p153, %s154, %s155
    %p159 = pneg %p153
    %p160 = scmp.eq.s32.totalorder %s12, 1
    %p161 = por %p159, %p160
    %p162 = scmp.ne.s32.totalorder %s154, %s157
    %p163 = scmp.eq.s32.totalorder %s12, 0
    %p164 = por %p162, %p163
    %p165 = scmp.ne.s32.totalorder %s154, %s157
    %p166 = scmp.eq.s32.totalorder %s17, 1
    %p167 = por %p165, %p166
    %p168 = scmp.ne.s32.totalorder %s157, %s158
    %p169 = scmp.eq.s32.totalorder %s17, 0
    %p170 = por %p168, %p169
    %p171 = scmp.ne.s32.totalorder %s157, %s158
    %p172 = scmp.eq.s32.totalorder %s18, 1
    %p173 = por %p171, %p172
    %p175 = scmp.ne.s32.totalorder %s158, %s174
    %p176 = scmp.eq.s32.totalorder %s18, 0
    %p177 = por %p175, %p176
    %s178 = ssub.s32 %s12, %s19
    %p179 = scmp.eq.s32.totalorder %s178, 0
    %s181 = sadd.s32 %s180, 1
    %s182 = scalar_select %p179, %s180, %s181
    %p185 = pneg %p179
    %p186 = scmp.eq.s32.totalorder %s12, 1
    %p187 = por %p185, %p186
    %p188 = scmp.ne.s32.totalorder %s180, %s183
    %p189 = scmp.eq.s32.totalorder %s12, 0
    %p190 = por %p188, %p189
    %p191 = scmp.ne.s32.totalorder %s180, %s183
    %p192 = scmp.eq.s32.totalorder %s17, 1
    %p193 = por %p191, %p192
    %p194 = scmp.ne.s32.totalorder %s183, %s184
    %p195 = scmp.eq.s32.totalorder %s17, 0
    %p196 = por %p194, %p195
    %p197 = scmp.ne.s32.totalorder %s183, %s184
    %p198 = scmp.eq.s32.totalorder %s18, 1
    %p199 = por %p197, %p198
    %p201 = scmp.ne.s32.totalorder %s184, %s200
    %p202 = scmp.eq.s32.totalorder %s18, 0
    %p203 = por %p201, %p202
    %p204 = scmp.le.s32.totalorder 1, %s12
    %p205 = scmp.lt.s32.totalorder %s12, 3
    %p206 = pnand %p204, %p205
    %p207 = pneg %p206
    // Predicated region
    $region9: #{sp_head_forward.26} parent=5 // pred_check
      _
    $region10: #{sp_head_forward.26} parent=5 // pred_check_branch
      %209 = sbr.rel (%p206) target = $region12
    $region11: #{sp_head_forward.26} parent=5 // pred_region
      %s210 = ssub.s32 %s12, 1
      // Predicated region
      $region13: #{sp_head_forward.26} parent=11 // pred_check
        %p211 = pneg %p123
      $region14: #{sp_head_forward.26} parent=11 // pred_check_branch
        %213 = sbr.rel (%p211) target = $region16
      $region15: #{sp_head_forward.26} parent=11 // pred_region
        _
      $region16: #{sp_head_forward.26} parent=11 // pred_fallthru
        _
      // Predicated region
      $region17: #{sp_head_forward.26} parent=11 // pred_check
        %p214 = pneg %p144
      $region18: #{sp_head_forward.26} parent=11 // pred_check_branch
        %216 = sbr.rel (%p214) target = $region20
      $region19: #{sp_head_forward.26} parent=11 // pred_region
        _
      $region20: #{sp_head_forward.26} parent=11 // pred_fallthru
        _
    $region12: #{sp_head_forward.26} parent=5 // pred_fallthru
      _
    %p217 = scmp.lt.s32.totalorder %s12, 2
    // Predicated region
    $region21: #{sp_head_forward.26} parent=5 // pred_check
      %p218 = pneg %p217
    $region22: #{sp_head_forward.26} parent=5 // pred_check_branch
      %220 = sbr.rel (%p218) target = $region24
    $region23: #{sp_head_forward.26} parent=5 // pred_region
      // Predicated region
      $region25: #{sp_head_forward.26} parent=23 // pred_check
        %p221 = pneg %p38
      $region26: #{sp_head_forward.26} parent=23 // pred_check_branch
        %223 = sbr.rel (%p221) target = $region28
      $region27: #{sp_head_forward.26} parent=23 // pred_region
        %s224 = ssub.s32 %s12, 1
        %p225 = scmp.gt.s32.totalorder %s224, 0
        %s226 = scalar_select %p225, %s224, 0
        %s227 = smul.u32 2, %s226
        %p228 = scmp.lt.s32.totalorder %s227, 3
        %s229 = scalar_select %p228, %s227, 3
        %s230 = smul.addr %s229, 2
        %s231 = scalar_lea.vmem %s0, %s230
        %s232 = ssub.s32 %s12, 1
        %p233 = scmp.gt.s32.totalorder %s232, 0
        %s234 = scalar_select %p233, %s232, 0
        %s235 = smul.u32 2, %s234
      $region28: #{sp_head_forward.26} parent=23 // pred_fallthru
        _
      // Predicated region
      $region29: #{sp_head_forward.26} parent=23 // pred_check
        %p236 = pneg %p64
      $region30: #{sp_head_forward.26} parent=23 // pred_check_branch
        %238 = sbr.rel (%p236) target = $region32
      $region31: #{sp_head_forward.26} parent=23 // pred_region
        %s239 = smul.u32 2, %s12
        %p240 = scmp.lt.s32.totalorder %s239, 3
        %s241 = scalar_select %p240, %s239, 3
        %s242 = smul.addr %s241, 2
        %s243 = scalar_lea.vmem %s1, %s242
        %s244 = smul.u32 2, %s12
      $region32: #{sp_head_forward.26} parent=23 // pred_fallthru
        _
      // Predicated region
      $region33: #{sp_head_forward.26} parent=23 // pred_check
        %p245 = pneg %p96
      $region34: #{sp_head_forward.26} parent=23 // pred_check_branch
        %247 = sbr.rel (%p245) target = $region36
      $region35: #{sp_head_forward.26} parent=23 // pred_region
        %s248 = sadd.s32 %s12, 1
        %p249 = scmp.lt.s32.totalorder %s248, 1
        %s250 = scalar_select %p249, %s248, 1
        %s251 = smul.u32 2, %s250
        %p252 = scmp.lt.s32.totalorder %s251, 3
        %s253 = scalar_select %p252, %s251, 3
        %s254 = smul.addr %s253, 2
        %s255 = scalar_lea.vmem %s2, %s254
        %s256 = sadd.s32 %s12, 1
        %p257 = scmp.lt.s32.totalorder %s256, 1
        %s258 = scalar_select %p257, %s256, 1
        %s259 = smul.u32 2, %s258
      $region36: #{sp_head_forward.26} parent=23 // pred_fallthru
        _
      // Predicated region
      $region37: #{sp_head_forward.26} parent=23 // pred_check
        %p260 = pneg %p164
      $region38: #{sp_head_forward.26} parent=23 // pred_check_branch
        %262 = sbr.rel (%p260) target = $region40
      $region39: #{sp_head_forward.26} parent=23 // pred_region
        %s263 = smul.u32 2, %s12
        %p264 = scmp.lt.s32.totalorder %s263, 3
        %s265 = scalar_select %p264, %s263, 3
        %s266 = scalar_lea.vmem %s5, %s265
        %s267 = smul.u32 2, %s12
      $region40: #{sp_head_forward.26} parent=23 // pred_fallthru
        _
    $region24: #{sp_head_forward.26} parent=5 // pred_fallthru
      _
    %p268 = scmp.le.s32.totalorder 1, %s12
    %p269 = scmp.lt.s32.totalorder %s12, 3
    %p270 = pnand %p268, %p269
    %p271 = pneg %p270
    // Predicated region
    $region41: #{sp_head_forward.26} parent=5 // pred_check
      _
    $region42: #{sp_head_forward.26} parent=5 // pred_check_branch
      %273 = sbr.rel (%p270) target = $region44
    $region43: #{sp_head_forward.26} parent=5 // pred_region
      %s274 = ssub.s32 %s12, 1
      %s275 = ssub.s32 %s17, 1
      %p276 = scmp.gt.s32.totalorder %s275, 0
      %s277 = scalar_select %p276, %s275, 0
      %s278 = smul.u32 2, %s277
      %p279 = scmp.lt.s32.totalorder %s278, 3
      %s280 = scalar_select %p279, %s278, 3
      %s281 = smul.addr %s280, 2
      %s282 = scalar_lea.vmem %s0, %s281
      %p283 = pneg %p44
      %p284 = pneg %p41
      %s285 = smul.u32 2, %s17
      %p286 = scmp.lt.s32.totalorder %s285, 3
      %s287 = scalar_select %p286, %s285, 3
      %s288 = smul.addr %s287, 2
      %s289 = scalar_lea.vmem %s1, %s288
      %p290 = pneg %p70
      %p291 = pneg %p67
      %s292 = sadd.s32 %s17, 1
      %p293 = scmp.lt.s32.totalorder %s292, 1
      %s294 = scalar_select %p293, %s292, 1
      %s295 = smul.u32 2, %s294
      %p296 = scmp.lt.s32.totalorder %s295, 3
      %s297 = scalar_select %p296, %s295, 3
      %s298 = smul.addr %s297, 2
      %s299 = scalar_lea.vmem %s2, %s298
      %p300 = pneg %p102
      %p301 = pneg %p99
      %p302 = pneg %p123
      %p303 = pneg %p120
      %p304 = pneg %p144
      %p305 = pneg %p141
      %s306 = smul.u32 2, %s17
      %p307 = scmp.lt.s32.totalorder %s306, 3
      %s308 = scalar_select %p307, %s306, 3
      %s309 = scalar_lea.vmem %s5, %s308
      %p310 = pneg %p170
      %p311 = pneg %p167
      %p312 = pneg %p196
      %p313 = pneg %p193
      %s314 = smul.u32 2, %s17
      %p315 = scmp.lt.s32.totalorder %s314, 3
      %s316 = scalar_select %p315, %s314, 3
      %s317 = smul.addr %s316, 2
      %s318 = scalar_lea.vmem %s6, %s317
      %s319 = ssub.s32 %s17, 1
      %p320 = scmp.gt.s32.totalorder %s319, 0
      %s321 = scalar_select %p320, %s319, 0
      %s322 = smul.u32 2, %s321
      %p323 = scmp.lt.s32.totalorder %s322, 3
      %s324 = scalar_select %p323, %s322, 3
      %s325 = smul.addr %s324, 2
      %s326 = scalar_lea.vmem %s0, %s325
      %s327 = ssub.s32 %s17, 1
      %p328 = scmp.gt.s32.totalorder %s327, 0
      %s329 = scalar_select %p328, %s327, 0
      %s330 = smul.u32 2, %s329
      %s331 = smul.u32 2, %s17
      %p332 = scmp.lt.s32.totalorder %s331, 3
      %s333 = scalar_select %p332, %s331, 3
      %s334 = smul.addr %s333, 2
      %s335 = scalar_lea.vmem %s1, %s334
      %s336 = smul.u32 2, %s17
      %s337 = sadd.s32 %s17, 1
      %p338 = scmp.lt.s32.totalorder %s337, 1
      %s339 = scalar_select %p338, %s337, 1
      %s340 = smul.u32 2, %s339
      %p341 = scmp.lt.s32.totalorder %s340, 3
      %s342 = scalar_select %p341, %s340, 3
      %s343 = smul.addr %s342, 2
      %s344 = scalar_lea.vmem %s2, %s343
      %s345 = sadd.s32 %s17, 1
      %p346 = scmp.lt.s32.totalorder %s345, 1
      %s347 = scalar_select %p346, %s345, 1
      %s348 = smul.u32 2, %s347
      %s349 = smul.u32 2, %s17
      %p350 = scmp.lt.s32.totalorder %s349, 3
      %s351 = scalar_select %p350, %s349, 3
      %s352 = scalar_lea.vmem %s5, %s351
      %s353 = smul.u32 2, %s17
      %s354 = smul.u32 2, %s17
      %p355 = scmp.lt.s32.totalorder %s354, 3
      %s356 = scalar_select %p355, %s354, 3
      %s357 = smul.addr %s356, 2
      %s358 = scalar_lea.vmem %s6, %s357
      %s359 = smul.u32 2, %s17
      %v361 = vld [vmem:[%s335] sm:$0xf]
      %v362 = vld [vmem:[%s326] sm:$0xf]
      %v363 = vld [vmem:[%s344] sm:$0xf]
      %v364 = vld [vmem:[%s3] sm:$0x3]
      %v367 = vunpack.c.l.s4 1983009808
      %v368 = vunpack.c.0.s8 %v367
      %v369 = vlaneseq
      %v370 = vshrl.u32 %v369, 7
      %v371 = vsub.s32 %v368, %v370
      %v372 = vrot.slane %v362, %v371
      %v373 = vcombine.high %v372, %v372
      %374 = vrot.lane.b32.xlu0 %v373, 15
      %v375 = vpop.permute.xlu0 %374
      %v378 = vunpack.c.l.s4 1983009808
      %v379 = vunpack.c.0.s8 %v378
      %v380 = vlaneseq
      %v381 = vshrl.u32 %v380, 7
      %v382 = vsub.s32 %v379, %v381
      %v383 = vrot.slane %v361, %v382
      %v384 = vcombine.high %v383, %v383
      %385 = vrot.lane.b32.xlu0 %v383, 15
      %v386 = vpop.permute.xlu0 %385
      %387 = vrot.lane.b32.xlu0 %v384, 15
      %v388 = vpop.permute.xlu0 %387
      %vm389 = vcmask 121856
      %v390 = vsel %vm389, %v386, %v388
      %vm391 = vcmask 121856
      %v394 = vsel %vm391, %v375, %v386
      %s395 = scalar_lea.vmem %s3, 2
      %v396 = vld [vmem:[%s395] sm:$0x3]
      %397 = vrot.lane.b32.xlu0 %v373, 14
      %v398 = vpop.permute.xlu0 %397
      %399 = vrot.lane.b32.xlu0 %v383, 14
      %v400 = vpop.permute.xlu0 %399
      %401 = vrot.lane.b32.xlu0 %v384, 14
      %v402 = vpop.permute.xlu0 %401
      %vm403 = vcmask 113664
      %v404 = vsel %vm403, %v400, %v402
      %vm405 = vcmask 113664
      %v408 = vsel %vm405, %v398, %v400
      %vm409 = vcmask 31744
      %v411 = vsel %vm409, %v396, 0
      %vm413 = vcmask 1041408
      %v414 = vsel %vm413, %v408, 0
      %v417 = vsel %vm413, %v404, 0
      %419 = vmatprep.subr.bf16.mxu0 0
      %420 = vmatpush1.bf16.msra.mxu0 0
      %421 = vmatprep.subr.bf16.mxu0 0
      %422 = vmatpush1.bf16.msra.mxu0 0
      %423 = vmatprep.subr.bf16.mxu0 0
      %424 = vmatpush1.bf16.msra.mxu0 0
      %425 = vmatprep.subr.bf16.mxu0 0
      %426 = vmatpush1.bf16.msra.mxu0 0
      %427 = vmatprep.subr.bf16.mxu0 0
      %428 = vmatpush1.bf16.msra.mxu0 0
      %429 = vmatprep.subr.bf16.mxu0 0
      %430 = vmatpush1.bf16.msra.mxu0 0
      %431 = vmatprep.subr.bf16.mxu0 0
      %432 = vmatpush1.bf16.msra.mxu0 0
      %433 = vmatprep.subr.bf16.mxu0 %v417
      %434 = vmatpush1.bf16.msra.mxu0 %v414
      %435 = vmatprep.subr.bf16.mxu0 0
      %436 = vmatpush2.bf16.msra.mxu0 0
      %437 = vmatprep.subr.bf16.mxu0 0
      %438 = vmatpush2.bf16.msra.mxu0 0
      %439 = vmatprep.subr.bf16.mxu0 0
      %440 = vmatpush2.bf16.msra.mxu0 0
      %441 = vmatprep.subr.bf16.mxu0 0
      %442 = vmatpush2.bf16.msra.mxu0 0
      %443 = vmatprep.subr.bf16.mxu0 0
      %444 = vmatpush2.bf16.msra.mxu0 0
      %445 = vmatprep.subr.bf16.mxu0 0
      %446 = vmatpush2.bf16.msra.mxu0 0
      %447 = vmatprep.subr.bf16.mxu0 0
      %448 = vmatpush2.bf16.msra.mxu0 0
      %449 = vmatprep.subr.bf16.mxu0 0
      %450 = vmatpush2.bf16.msra.mxu0 0
      %451 = vmatprep.mubr.bf16.mxu0 0
      %452 = vmatmul.mubr.bf16.gmra.mxu0 %v411
      %v453 = vpop.f32.mrf.mxu0
      %v454 = vadd.f32 0.0, %v453
      %v455 = vpop.f32.mrf.mxu0
      %v456 = vadd.f32 0.0, %v455
      %v457 = vpop.f32.mrf.mxu0
      %v458 = vpop.f32.mrf.mxu0
      %459 = vdwg.mxu0
      %v461 = vsel %vm409, %v364, 0
      %v463 = vsel %vm413, %v394, 0
      %v466 = vsel %vm413, %v390, 0
      %468 = vmatprep.subr.bf16.mxu0 0
      %469 = vmatpush1.bf16.msra.mxu0 0
      %470 = vmatprep.subr.bf16.mxu0 0
      %471 = vmatpush1.bf16.msra.mxu0 0
      %472 = vmatprep.subr.bf16.mxu0 0
      %473 = vmatpush1.bf16.msra.mxu0 0
      %474 = vmatprep.subr.bf16.mxu0 0
      %475 = vmatpush1.bf16.msra.mxu0 0
      %476 = vmatprep.subr.bf16.mxu0 0
      %477 = vmatpush1.bf16.msra.mxu0 0
      %478 = vmatprep.subr.bf16.mxu0 0
      %479 = vmatpush1.bf16.msra.mxu0 0
      %480 = vmatprep.subr.bf16.mxu0 0
      %481 = vmatpush1.bf16.msra.mxu0 0
      %482 = vmatprep.subr.bf16.mxu0 %v466
      %483 = vmatpush1.bf16.msra.mxu0 %v463
      %484 = vmatprep.subr.bf16.mxu0 0
      %485 = vmatpush2.bf16.msra.mxu0 0
      %486 = vmatprep.subr.bf16.mxu0 0
      %487 = vmatpush2.bf16.msra.mxu0 0
      %488 = vmatprep.subr.bf16.mxu0 0
      %489 = vmatpush2.bf16.msra.mxu0 0
      %490 = vmatprep.subr.bf16.mxu0 0
      %491 = vmatpush2.bf16.msra.mxu0 0
      %492 = vmatprep.subr.bf16.mxu0 0
      %493 = vmatpush2.bf16.msra.mxu0 0
      %494 = vmatprep.subr.bf16.mxu0 0
      %495 = vmatpush2.bf16.msra.mxu0 0
      %496 = vmatprep.subr.bf16.mxu0 0
      %497 = vmatpush2.bf16.msra.mxu0 0
      %498 = vmatprep.subr.bf16.mxu0 0
      %499 = vmatpush2.bf16.msra.mxu0 0
      %500 = vmatprep.mubr.bf16.mxu0 0
      %501 = vmatmul.mubr.bf16.gmra.mxu0 %v461
      %v502 = vpop.f32.mrf.mxu0
      %v503 = vadd.f32 %v454, %v502
      %v504 = vpop.f32.mrf.mxu0
      %v505 = vadd.f32 %v456, %v504
      %v506 = vpop.f32.mrf.mxu0
      %v507 = vpop.f32.mrf.mxu0
      %508 = vdwg.mxu0
      %s509 = scalar_lea.vmem %s3, 4
      %v510 = vld [vmem:[%s509] sm:$0x3]
      %511 = vrot.lane.b32.xlu0 %v373, 13
      %v512 = vpop.permute.xlu0 %511
      %513 = vrot.lane.b32.xlu0 %v383, 13
      %v514 = vpop.permute.xlu0 %513
      %515 = vrot.lane.b32.xlu0 %v384, 13
      %v516 = vpop.permute.xlu0 %515
      %vm517 = vcmask 105472
      %v518 = vsel %vm517, %v514, %v516
      %vm519 = vcmask 105472
      %v522 = vsel %vm519, %v512, %v514
      %v524 = vsel %vm409, %v510, 0
      %v526 = vsel %vm413, %v522, 0
      %v529 = vsel %vm413, %v518, 0
      %531 = vmatprep.subr.bf16.mxu0 0
      %532 = vmatpush1.bf16.msra.mxu0 0
      %533 = vmatprep.subr.bf16.mxu0 0
      %534 = vmatpush1.bf16.msra.mxu0 0
      %535 = vmatprep.subr.bf16.mxu0 0
      %536 = vmatpush1.bf16.msra.mxu0 0
      %537 = vmatprep.subr.bf16.mxu0 0
      %538 = vmatpush1.bf16.msra.mxu0 0
      %539 = vmatprep.subr.bf16.mxu0 0
      %540 = vmatpush1.bf16.msra.mxu0 0
      %541 = vmatprep.subr.bf16.mxu0 0
      %542 = vmatpush1.bf16.msra.mxu0 0
      %543 = vmatprep.subr.bf16.mxu0 0
      %544 = vmatpush1.bf16.msra.mxu0 0
      %545 = vmatprep.subr.bf16.mxu0 %v529
      %546 = vmatpush1.bf16.msra.mxu0 %v526
      %547 = vmatprep.subr.bf16.mxu0 0
      %548 = vmatpush2.bf16.msra.mxu0 0
      %549 = vmatprep.subr.bf16.mxu0 0
      %550 = vmatpush2.bf16.msra.mxu0 0
      %551 = vmatprep.subr.bf16.mxu0 0
      %552 = vmatpush2.bf16.msra.mxu0 0
      %553 = vmatprep.subr.bf16.mxu0 0
      %554 = vmatpush2.bf16.msra.mxu0 0
      %555 = vmatprep.subr.bf16.mxu0 0
      %556 = vmatpush2.bf16.msra.mxu0 0
      %557 = vmatprep.subr.bf16.mxu0 0
      %558 = vmatpush2.bf16.msra.mxu0 0
      %559 = vmatprep.subr.bf16.mxu0 0
      %560 = vmatpush2.bf16.msra.mxu0 0
      %561 = vmatprep.subr.bf16.mxu0 0
      %562 = vmatpush2.bf16.msra.mxu0 0
      %563 = vmatprep.mubr.bf16.mxu0 0
      %564 = vmatmul.mubr.bf16.gmra.mxu0 %v524
      %v565 = vpop.f32.mrf.mxu0
      %v566 = vadd.f32 0.0, %v565
      %v567 = vpop.f32.mrf.mxu0
      %v568 = vadd.f32 0.0, %v567
      %v569 = vpop.f32.mrf.mxu0
      %v570 = vpop.f32.mrf.mxu0
      %571 = vdwg.mxu0
      %v572 = vadd.f32 %v503, %v566
      %v573 = vadd.f32 %v505, %v568
      %s574 = scalar_lea.vmem %s3, 6
      %v575 = vld [vmem:[%s574] sm:$0x3]
      %576 = vrot.lane.b32.xlu0 %v373, 1
      %v577 = vpop.permute.xlu0 %576
      %578 = vrot.lane.b32.xlu0 %v383, 1
      %v579 = vpop.permute.xlu0 %578
      %580 = vrot.lane.b32.xlu0 %v384, 1
      %v581 = vpop.permute.xlu0 %580
      %vm582 = vcmask 7168
      %v583 = vsel %vm582, %v579, %v581
      %vm584 = vcmask 7168
      %v587 = vsel %vm584, %v577, %v579
      %v589 = vsel %vm409, %v575, 0
      %v591 = vsel %vm413, %v587, 0
      %v594 = vsel %vm413, %v583, 0
      %596 = vmatprep.subr.bf16.mxu0 0
      %597 = vmatpush1.bf16.msra.mxu0 0
      %598 = vmatprep.subr.bf16.mxu0 0
      %599 = vmatpush1.bf16.msra.mxu0 0
      %600 = vmatprep.subr.bf16.mxu0 0
      %601 = vmatpush1.bf16.msra.mxu0 0
      %602 = vmatprep.subr.bf16.mxu0 0
      %603 = vmatpush1.bf16.msra.mxu0 0
      %604 = vmatprep.subr.bf16.mxu0 0
      %605 = vmatpush1.bf16.msra.mxu0 0
      %606 = vmatprep.subr.bf16.mxu0 0
      %607 = vmatpush1.bf16.msra.mxu0 0
      %608 = vmatprep.subr.bf16.mxu0 0
      %609 = vmatpush1.bf16.msra.mxu0 0
      %610 = vmatprep.subr.bf16.mxu0 %v594
      %611 = vmatpush1.bf16.msra.mxu0 %v591
      %612 = vmatprep.subr.bf16.mxu0 0
      %613 = vmatpush2.bf16.msra.mxu0 0
      %614 = vmatprep.subr.bf16.mxu0 0
      %615 = vmatpush2.bf16.msra.mxu0 0
      %616 = vmatprep.subr.bf16.mxu0 0
      %617 = vmatpush2.bf16.msra.mxu0 0
      %618 = vmatprep.subr.bf16.mxu0 0
      %619 = vmatpush2.bf16.msra.mxu0 0
      %620 = vmatprep.subr.bf16.mxu0 0
      %621 = vmatpush2.bf16.msra.mxu0 0
      %622 = vmatprep.subr.bf16.mxu0 0
      %623 = vmatpush2.bf16.msra.mxu0 0
      %624 = vmatprep.subr.bf16.mxu0 0
      %625 = vmatpush2.bf16.msra.mxu0 0
      %626 = vmatprep.subr.bf16.mxu0 0
      %627 = vmatpush2.bf16.msra.mxu0 0
      %628 = vmatprep.mubr.bf16.mxu0 0
      %629 = vmatmul.mubr.bf16.gmra.mxu0 %v589
      %v630 = vpop.f32.mrf.mxu0
      %v631 = vadd.f32 0.0, %v630
      %v632 = vpop.f32.mrf.mxu0
      %v633 = vadd.f32 0.0, %v632
      %v634 = vpop.f32.mrf.mxu0
      %v635 = vpop.f32.mrf.mxu0
      %636 = vdwg.mxu0
      %v637 = vadd.f32 %v572, %v631
      %v638 = vadd.f32 %v573, %v633
      %s639 = scalar_lea.vmem %s3, 8
      %v640 = vld [vmem:[%s639] sm:$0x3]
      %v642 = vsel %vm409, %v640, 0
      %v645 = vsel %vm413, %v383, 0
      %v648 = vsel %vm413, %v384, 0
      %650 = vmatprep.subr.bf16.mxu0 0
      %651 = vmatpush1.bf16.msra.mxu0 0
      %652 = vmatprep.subr.bf16.mxu0 0
      %653 = vmatpush1.bf16.msra.mxu0 0
      %654 = vmatprep.subr.bf16.mxu0 0
      %655 = vmatpush1.bf16.msra.mxu0 0
      %656 = vmatprep.subr.bf16.mxu0 0
      %657 = vmatpush1.bf16.msra.mxu0 0
      %658 = vmatprep.subr.bf16.mxu0 0
      %659 = vmatpush1.bf16.msra.mxu0 0
      %660 = vmatprep.subr.bf16.mxu0 0
      %661 = vmatpush1.bf16.msra.mxu0 0
      %662 = vmatprep.subr.bf16.mxu0 0
      %663 = vmatpush1.bf16.msra.mxu0 0
      %664 = vmatprep.subr.bf16.mxu0 %v648
      %665 = vmatpush1.bf16.msra.mxu0 %v645
      %666 = vmatprep.subr.bf16.mxu0 0
      %667 = vmatpush2.bf16.msra.mxu0 0
      %668 = vmatprep.subr.bf16.mxu0 0
      %669 = vmatpush2.bf16.msra.mxu0 0
      %670 = vmatprep.subr.bf16.mxu0 0
      %671 = vmatpush2.bf16.msra.mxu0 0
      %672 = vmatprep.subr.bf16.mxu0 0
      %673 = vmatpush2.bf16.msra.mxu0 0
      %674 = vmatprep.subr.bf16.mxu0 0
      %675 = vmatpush2.bf16.msra.mxu0 0
      %676 = vmatprep.subr.bf16.mxu0 0
      %677 = vmatpush2.bf16.msra.mxu0 0
      %678 = vmatprep.subr.bf16.mxu0 0
      %679 = vmatpush2.bf16.msra.mxu0 0
      %680 = vmatprep.subr.bf16.mxu0 0
      %681 = vmatpush2.bf16.msra.mxu0 0
      %682 = vmatprep.mubr.bf16.mxu0 0
      %683 = vmatmul.mubr.bf16.gmra.mxu0 %v642
      %v684 = vpop.f32.mrf.mxu0
      %v685 = vadd.f32 0.0, %v684
      %v686 = vpop.f32.mrf.mxu0
      %v687 = vadd.f32 0.0, %v686
      %v688 = vpop.f32.mrf.mxu0
      %v689 = vpop.f32.mrf.mxu0
      %690 = vdwg.mxu0
      %v691 = vadd.f32 %v637, %v685
      %v692 = vadd.f32 %v638, %v687
      %s693 = scalar_lea.vmem %s3, 10
      %v694 = vld [vmem:[%s693] sm:$0x3]
      %695 = vrot.lane.b32.xlu0 %v383, 127
      %v696 = vpop.permute.xlu0 %695
      %697 = vrot.lane.b32.xlu0 %v384, 127
      %v698 = vpop.permute.xlu0 %697
      %vm699 = vcmask 1039360
      %v700 = vsel %vm699, %v696, %v698
      %v703 = vunpack.c.l.s4 1983009808
      %v704 = vunpack.c.0.s8 %v703
      %v705 = vlaneseq
      %v706 = vshrl.u32 %v705, 7
      %v707 = vsub.s32 %v704, %v706
      %v708 = vrot.slane %v363, %v707
      %709 = vrot.lane.b32.xlu0 %v708, 127
      %v710 = vpop.permute.xlu0 %709
      %vm711 = vcmask 1039360
      %v714 = vsel %vm711, %v698, %v710
      %v716 = vsel %vm409, %v694, 0
      %v719 = vsel %vm413, %v700, 0
      %v721 = vsel %vm413, %v714, 0
      %723 = vmatprep.subr.bf16.mxu0 0
      %724 = vmatpush1.bf16.msra.mxu0 0
      %725 = vmatprep.subr.bf16.mxu0 0
      %726 = vmatpush1.bf16.msra.mxu0 0
      %727 = vmatprep.subr.bf16.mxu0 0
      %728 = vmatpush1.bf16.msra.mxu0 0
      %729 = vmatprep.subr.bf16.mxu0 0
      %730 = vmatpush1.bf16.msra.mxu0 0
      %731 = vmatprep.subr.bf16.mxu0 0
      %732 = vmatpush1.bf16.msra.mxu0 0
      %733 = vmatprep.subr.bf16.mxu0 0
      %734 = vmatpush1.bf16.msra.mxu0 0
      %735 = vmatprep.subr.bf16.mxu0 0
      %736 = vmatpush1.bf16.msra.mxu0 0
      %737 = vmatprep.subr.bf16.mxu0 %v721
      %738 = vmatpush1.bf16.msra.mxu0 %v719
      %739 = vmatprep.subr.bf16.mxu0 0
      %740 = vmatpush2.bf16.msra.mxu0 0
      %741 = vmatprep.subr.bf16.mxu0 0
      %742 = vmatpush2.bf16.msra.mxu0 0
      %743 = vmatprep.subr.bf16.mxu0 0
      %744 = vmatpush2.bf16.msra.mxu0 0
      %745 = vmatprep.subr.bf16.mxu0 0
      %746 = vmatpush2.bf16.msra.mxu0 0
      %747 = vmatprep.subr.bf16.mxu0 0
      %748 = vmatpush2.bf16.msra.mxu0 0
      %749 = vmatprep.subr.bf16.mxu0 0
      %750 = vmatpush2.bf16.msra.mxu0 0
      %751 = vmatprep.subr.bf16.mxu0 0
      %752 = vmatpush2.bf16.msra.mxu0 0
      %753 = vmatprep.subr.bf16.mxu0 0
      %754 = vmatpush2.bf16.msra.mxu0 0
      %755 = vmatprep.mubr.bf16.mxu0 0
      %756 = vmatmul.mubr.bf16.gmra.mxu0 %v716
      %v757 = vpop.f32.mrf.mxu0
      %v758 = vadd.f32 0.0, %v757
      %v759 = vpop.f32.mrf.mxu0
      %v760 = vadd.f32 0.0, %v759
      %v761 = vpop.f32.mrf.mxu0
      %v762 = vpop.f32.mrf.mxu0
      %763 = vdwg.mxu0
      %v764 = vadd.f32 %v691, %v758
      %v765 = vadd.f32 %v692, %v760
      %s766 = scalar_lea.vmem %s3, 12
      %v767 = vld [vmem:[%s766] sm:$0x3]
      %768 = vrot.lane.b32.xlu0 %v383, 115
      %v769 = vpop.permute.xlu0 %768
      %770 = vrot.lane.b32.xlu0 %v384, 115
      %v771 = vpop.permute.xlu0 %770
      %vm772 = vcmask 941056
      %v773 = vsel %vm772, %v769, %v771
      %774 = vrot.lane.b32.xlu0 %v708, 115
      %v775 = vpop.permute.xlu0 %774
      %vm776 = vcmask 941056
      %v779 = vsel %vm776, %v771, %v775
      %v781 = vsel %vm409, %v767, 0
      %v784 = vsel %vm413, %v773, 0
      %v786 = vsel %vm413, %v779, 0
      %788 = vmatprep.subr.bf16.mxu0 0
      %789 = vmatpush1.bf16.msra.mxu0 0
      %790 = vmatprep.subr.bf16.mxu0 0
      %791 = vmatpush1.bf16.msra.mxu0 0
      %792 = vmatprep.subr.bf16.mxu0 0
      %793 = vmatpush1.bf16.msra.mxu0 0
      %794 = vmatprep.subr.bf16.mxu0 0
      %795 = vmatpush1.bf16.msra.mxu0 0
      %796 = vmatprep.subr.bf16.mxu0 0
      %797 = vmatpush1.bf16.msra.mxu0 0
      %798 = vmatprep.subr.bf16.mxu0 0
      %799 = vmatpush1.bf16.msra.mxu0 0
      %800 = vmatprep.subr.bf16.mxu0 0
      %801 = vmatpush1.bf16.msra.mxu0 0
      %802 = vmatprep.subr.bf16.mxu0 %v786
      %803 = vmatpush1.bf16.msra.mxu0 %v784
      %804 = vmatprep.subr.bf16.mxu0 0
      %805 = vmatpush2.bf16.msra.mxu0 0
      %806 = vmatprep.subr.bf16.mxu0 0
      %807 = vmatpush2.bf16.msra.mxu0 0
      %808 = vmatprep.subr.bf16.mxu0 0
      %809 = vmatpush2.bf16.msra.mxu0 0
      %810 = vmatprep.subr.bf16.mxu0 0
      %811 = vmatpush2.bf16.msra.mxu0 0
      %812 = vmatprep.subr.bf16.mxu0 0
      %813 = vmatpush2.bf16.msra.mxu0 0
      %814 = vmatprep.subr.bf16.mxu0 0
      %815 = vmatpush2.bf16.msra.mxu0 0
      %816 = vmatprep.subr.bf16.mxu0 0
      %817 = vmatpush2.bf16.msra.mxu0 0
      %818 = vmatprep.subr.bf16.mxu0 0
      %819 = vmatpush2.bf16.msra.mxu0 0
      %820 = vmatprep.mubr.bf16.mxu0 0
      %821 = vmatmul.mubr.bf16.gmra.mxu0 %v781
      %v822 = vpop.f32.mrf.mxu0
      %v823 = vadd.f32 0.0, %v822
      %v824 = vpop.f32.mrf.mxu0
      %v825 = vadd.f32 0.0, %v824
      %v826 = vpop.f32.mrf.mxu0
      %v827 = vpop.f32.mrf.mxu0
      %828 = vdwg.mxu0
      %v829 = vadd.f32 %v764, %v823
      %v830 = vadd.f32 %v765, %v825
      %s831 = scalar_lea.vmem %s3, 14
      %v832 = vld [vmem:[%s831] sm:$0x3]
      %833 = vrot.lane.b32.xlu0 %v383, 114
      %v834 = vpop.permute.xlu0 %833
      %835 = vrot.lane.b32.xlu0 %v384, 114
      %v836 = vpop.permute.xlu0 %835
      %vm837 = vcmask 932864
      %v838 = vsel %vm837, %v834, %v836
      %839 = vrot.lane.b32.xlu0 %v708, 114
      %v840 = vpop.permute.xlu0 %839
      %vm841 = vcmask 932864
      %v844 = vsel %vm841, %v836, %v840
      %v846 = vsel %vm409, %v832, 0
      %v849 = vsel %vm413, %v838, 0
      %v851 = vsel %vm413, %v844, 0
      %853 = vmatprep.subr.bf16.mxu0 0
      %854 = vmatpush1.bf16.msra.mxu0 0
      %855 = vmatprep.subr.bf16.mxu0 0
      %856 = vmatpush1.bf16.msra.mxu0 0
      %857 = vmatprep.subr.bf16.mxu0 0
      %858 = vmatpush1.bf16.msra.mxu0 0
      %859 = vmatprep.subr.bf16.mxu0 0
      %860 = vmatpush1.bf16.msra.mxu0 0
      %861 = vmatprep.subr.bf16.mxu0 0
      %862 = vmatpush1.bf16.msra.mxu0 0
      %863 = vmatprep.subr.bf16.mxu0 0
      %864 = vmatpush1.bf16.msra.mxu0 0
      %865 = vmatprep.subr.bf16.mxu0 0
      %866 = vmatpush1.bf16.msra.mxu0 0
      %867 = vmatprep.subr.bf16.mxu0 %v851
      %868 = vmatpush1.bf16.msra.mxu0 %v849
      %869 = vmatprep.subr.bf16.mxu0 0
      %870 = vmatpush2.bf16.msra.mxu0 0
      %871 = vmatprep.subr.bf16.mxu0 0
      %872 = vmatpush2.bf16.msra.mxu0 0
      %873 = vmatprep.subr.bf16.mxu0 0
      %874 = vmatpush2.bf16.msra.mxu0 0
      %875 = vmatprep.subr.bf16.mxu0 0
      %876 = vmatpush2.bf16.msra.mxu0 0
      %877 = vmatprep.subr.bf16.mxu0 0
      %878 = vmatpush2.bf16.msra.mxu0 0
      %879 = vmatprep.subr.bf16.mxu0 0
      %880 = vmatpush2.bf16.msra.mxu0 0
      %881 = vmatprep.subr.bf16.mxu0 0
      %882 = vmatpush2.bf16.msra.mxu0 0
      %883 = vmatprep.subr.bf16.mxu0 0
      %884 = vmatpush2.bf16.msra.mxu0 0
      %885 = vmatprep.mubr.bf16.mxu0 0
      %886 = vmatmul.mubr.bf16.gmra.mxu0 %v846
      %v887 = vpop.f32.mrf.mxu0
      %v888 = vadd.f32 0.0, %v887
      %v889 = vpop.f32.mrf.mxu0
      %v890 = vadd.f32 0.0, %v889
      %v891 = vpop.f32.mrf.mxu0
      %v892 = vpop.f32.mrf.mxu0
      %893 = vdwg.mxu0
      %v894 = vadd.f32 %v829, %v888
      %v895 = vadd.f32 %v830, %v890
      %s896 = scalar_lea.vmem %s3, 16
      %v897 = vld [vmem:[%s896] sm:$0x3]
      %898 = vrot.lane.b32.xlu0 %v383, 113
      %v899 = vpop.permute.xlu0 %898
      %900 = vrot.lane.b32.xlu0 %v384, 113
      %v901 = vpop.permute.xlu0 %900
      %vm902 = vcmask 924672
      %v903 = vsel %vm902, %v899, %v901
      %904 = vrot.lane.b32.xlu0 %v708, 113
      %v905 = vpop.permute.xlu0 %904
      %vm906 = vcmask 924672
      %v909 = vsel %vm906, %v901, %v905
      %v911 = vsel %vm409, %v897, 0
      %v914 = vsel %vm413, %v903, 0
      %v916 = vsel %vm413, %v909, 0
      %918 = vmatprep.subr.bf16.mxu0 0
      %919 = vmatpush1.bf16.msra.mxu0 0
      %920 = vmatprep.subr.bf16.mxu0 0
      %921 = vmatpush1.bf16.msra.mxu0 0
      %922 = vmatprep.subr.bf16.mxu0 0
      %923 = vmatpush1.bf16.msra.mxu0 0
      %924 = vmatprep.subr.bf16.mxu0 0
      %925 = vmatpush1.bf16.msra.mxu0 0
      %926 = vmatprep.subr.bf16.mxu0 0
      %927 = vmatpush1.bf16.msra.mxu0 0
      %928 = vmatprep.subr.bf16.mxu0 0
      %929 = vmatpush1.bf16.msra.mxu0 0
      %930 = vmatprep.subr.bf16.mxu0 0
      %931 = vmatpush1.bf16.msra.mxu0 0
      %932 = vmatprep.subr.bf16.mxu0 %v916
      %933 = vmatpush1.bf16.msra.mxu0 %v914
      %934 = vmatprep.subr.bf16.mxu0 0
      %935 = vmatpush2.bf16.msra.mxu0 0
      %936 = vmatprep.subr.bf16.mxu0 0
      %937 = vmatpush2.bf16.msra.mxu0 0
      %938 = vmatprep.subr.bf16.mxu0 0
      %939 = vmatpush2.bf16.msra.mxu0 0
      %940 = vmatprep.subr.bf16.mxu0 0
      %941 = vmatpush2.bf16.msra.mxu0 0
      %942 = vmatprep.subr.bf16.mxu0 0
      %943 = vmatpush2.bf16.msra.mxu0 0
      %944 = vmatprep.subr.bf16.mxu0 0
      %945 = vmatpush2.bf16.msra.mxu0 0
      %946 = vmatprep.subr.bf16.mxu0 0
      %947 = vmatpush2.bf16.msra.mxu0 0
      %948 = vmatprep.subr.bf16.mxu0 0
      %949 = vmatpush2.bf16.msra.mxu0 0
      %950 = vmatprep.mubr.bf16.mxu0 0
      %951 = vmatmul.mubr.bf16.gmra.mxu0 %v911
      %v952 = vpop.f32.mrf.mxu0
      %v953 = vadd.f32 0.0, %v952
      %v954 = vpop.f32.mrf.mxu0
      %v955 = vadd.f32 0.0, %v954
      %v956 = vpop.f32.mrf.mxu0
      %v957 = vpop.f32.mrf.mxu0
      %958 = vdwg.mxu0
      %v959 = vadd.f32 %v894, %v953
      %v960 = vadd.f32 %v895, %v955
      %v961 = vld [vmem:[%s4] sm:$0xf]
      %963 = vset.pattern.permute.xlu0 0
      %964 = vperm.xlu0 %963, %v961
      %v965 = vpop.permute.xlu0 %964
      %v967 = vadd.f32 %v959, %v965
      %v968 = vadd.f32 %v960, %v965
      %v969 = vld [vmem:[%s352] sm:$0x3]
      %v971 = vlaneseq
      %v972 = vshrl.u32 %v971, 7
      %v973 = vsub.s32 0, %v972
      %v974 = vrot.slane %v969, %v973
      %v975 = vlaneseq
      %v976 = vshrl.u32 %v975, 7
      %v977 = vsub.s32 1, %v976
      %v978 = vrot.slane %v969, %v977
      %v981 = vmul.f32 %v967, %v974
      %v982 = vmul.f32 %v968, %v978
      %v983 = vpack.c.bf16 %v981, %v981
      %v984 = vpack.c.bf16 %v982, %v982
      %v987 = vcombine.low %v983, %v984
      %v989 = vunpack.c.l.s4 1983009808
      %v990 = vunpack.c.0.s8 %v989
      %v991 = vlaneseq
      %v992 = vshrl.u32 %v991, 7
      %v993 = vsub.s32 %v990, %v992
      %v994 = vrot.slane %v987, %v993
      %996 = vst [vmem:[%s358] sm:$0xf] %v994
      %s997 = smul.u32 2, %s17
      %p998 = scmp.lt.s32.totalorder %s997, 3
      %s999 = scalar_select %p998, %s997, 3
      %s1000 = smul.addr %s999, 2
      %s1001 = scalar_lea.vmem %s6, %s1000
      // Predicated region
      $region45: #{sp_head_forward.26} parent=43 // pred_check
        %p1002 = pneg %p193
      $region46: #{sp_head_forward.26} parent=43 // pred_check_branch
        %1004 = sbr.rel (%p1002) target = $region48
      $region47: #{sp_head_forward.26} parent=43 // pred_region
        %s1005 = smul.u32 2, %s17
      $region48: #{sp_head_forward.26} parent=43 // pred_fallthru
        _
    $region44: #{sp_head_forward.26} parent=5 // pred_fallthru
      _
    %p1006 = scmp.le.s32.totalorder 2, %s12
    // Predicated region
    $region49: #{sp_head_forward.26} parent=5 // pred_check
      %p1007 = pneg %p1006
    $region50: #{sp_head_forward.26} parent=5 // pred_check_branch
      %1009 = sbr.rel (%p1007) target = $region52
    $region51: #{sp_head_forward.26} parent=5 // pred_region
      %s1010 = ssub.s32 %s12, 2
      // Predicated region
      $region53: #{sp_head_forward.26} parent=51 // pred_check
        %p1011 = pneg %p199
      $region54: #{sp_head_forward.26} parent=51 // pred_check_branch
        %1013 = sbr.rel (%p1011) target = $region56
      $region55: #{sp_head_forward.26} parent=51 // pred_region
        %s1014 = smul.u32 2, %s18
        %p1015 = scmp.lt.s32.totalorder %s1014, 3
        %s1016 = scalar_select %p1015, %s1014, 3
        %s1017 = smul.addr %s1016, 2
        %s1018 = scalar_lea.vmem %s6, %s1017
      $region56: #{sp_head_forward.26} parent=51 // pred_fallthru
        _
    $region52: #{sp_head_forward.26} parent=5 // pred_fallthru
      _
  $region6: #{sp_head_forward.26} parent=0 // loop_footer
    %s16 = sadd.s32 1, %s12
  $region7: #{sp_head_forward.26} parent=0 // loop_footer_branch
    %11 = sbr.rel target = $region3
  $region8: #{sp_head_forward.26} parent=0 // loop_exit
    _

// kernel: sp_head_forward.31
$region0: #{sp_head_forward.31}
  #allocation0 [shape = 'u32[]', space=smem, size = 0x4, offset = 0x4, fixed_abs, tag = 'smem constant byte address 0x4 - core index']
  #allocation1 [shape = 'u32[144,128]{1,0:T(1,128)}', space=vmem, size = 0x12000, scoped, tag = 'internal scratch']
  %s0 = inlined_call_operand.vmem [shape: bf16[4,768], index: 0, kind: input, shape index: {}, may-alias: {0,1,2}]
  %s1 = inlined_call_operand.vmem [shape: bf16[4,768], index: 1, kind: input, shape index: {}, may-alias: {0,1,2}]
  %s2 = inlined_call_operand.vmem [shape: bf16[4,768], index: 2, kind: input, shape index: {}, may-alias: {0,1,2}]
  %s3 = inlined_call_operand.vmem [shape: bf16[9,4,4], index: 3, kind: input, shape index: {}]
  %s4 = inlined_call_operand.vmem [shape: f32[4,1], index: 4, kind: input, shape index: {}]
  %s5 = inlined_call_operand.vmem [shape: f32[1,768], index: 5, kind: input, shape index: {}]
  %s6 = inlined_call_operand.vmem [shape: bf16[4,768], index: 6, kind: output, shape index: {}]
  %s7 = sld [smem:[#allocation0]]
  $region57: #{sp_head_forward.31} parent=0
    _
  %s9 = ssub.s32 1, %s7
  %s10 = scalar_select 0, %s9, %s7
  loop: start=0, step=1, limit=5
  $region2: #{sp_head_forward.31} parent=0 // loop_pre_header
    _
  $region3: #{sp_head_forward.31} parent=0 // loop_header
    %s12 = sphi 0, %s16
    %p13 = scmp.ge.s32.totalorder %s12, 5
    %s28 = sphi 0, %s30
    %s31 = sphi 0, %s28
    %s32 = sphi 0, %s31
    %s48 = sphi 0, %s32
    %s54 = sphi 0, %s56
    %s57 = sphi 0, %s54
    %s58 = sphi 0, %s57
    %s74 = sphi 0, %s58
    %s86 = sphi 0, %s88
    %s89 = sphi 0, %s86
    %s90 = sphi 0, %s89
    %s106 = sphi 0, %s90
    %s110 = sphi 0, %s110
    %s112 = sphi 0, %s110
    %s113 = sphi 0, %s112
    %s127 = sphi 0, %s113
    %s131 = sphi 0, %s131
    %s133 = sphi 0, %s131
    %s134 = sphi 0, %s133
    %s148 = sphi 0, %s134
    %s154 = sphi 0, %s156
    %s157 = sphi 0, %s154
    %s158 = sphi 0, %s157
    %s174 = sphi 0, %s158
    %s180 = sphi 0, %s182
    %s183 = sphi 0, %s180
    %s184 = sphi 0, %s183
    %s200 = sphi 0, %s184
  $region4: #{sp_head_forward.31} parent=0 // loop_header_branch
    %15 = sbr.rel (%p13) target = $region8
  $region5: #{sp_head_forward.31} parent=0 // loop_body
    %s17 = ssub.s32 %s12, 1
    %s18 = ssub.s32 %s12, 2
    %s19 = sadd.s32 %s12, 1
    %s20 = ssub.s32 %s12, 1
    %p21 = scmp.gt.s32.totalorder %s20, 0
    %s22 = scalar_select %p21, %s20, 0
    %s23 = ssub.s32 %s19, 1
    %p24 = scmp.gt.s32.totalorder %s23, 0
    %s25 = scalar_select %p24, %s23, 0
    %s26 = ssub.s32 %s22, %s25
    %p27 = scmp.eq.s32.totalorder %s26, 0
    %s29 = sadd.s32 %s28, 1
    %s30 = scalar_select %p27, %s28, %s29
    %p33 = pneg %p27
    %p34 = scmp.eq.s32.totalorder %s12, 2
    %p35 = por %p33, %p34
    %p36 = scmp.ne.s32.totalorder %s28, %s31
    %p37 = scmp.eq.s32.totalorder %s12, 0
    %p38 = por %p36, %p37
    %p39 = scmp.ne.s32.totalorder %s28, %s31
    %p40 = scmp.eq.s32.totalorder %s17, 2
    %p41 = por %p39, %p40
    %p42 = scmp.ne.s32.totalorder %s31, %s32
    %p43 = scmp.eq.s32.totalorder %s17, 0
    %p44 = por %p42, %p43
    %p45 = scmp.ne.s32.totalorder %s31, %s32
    %p46 = scmp.eq.s32.totalorder %s18, 2
    %p47 = por %p45, %p46
    %p49 = scmp.ne.s32.totalorder %s32, %s48
    %p50 = scmp.eq.s32.totalorder %s18, 0
    %p51 = por %p49, %p50
    %s52 = ssub.s32 %s12, %s19
    %p53 = scmp.eq.s32.totalorder %s52, 0
    %s55 = sadd.s32 %s54, 1
    %s56 = scalar_select %p53, %s54, %s55
    %p59 = pneg %p53
    %p60 = scmp.eq.s32.totalorder %s12, 2
    %p61 = por %p59, %p60
    %p62 = scmp.ne.s32.totalorder %s54, %s57
    %p63 = scmp.eq.s32.totalorder %s12, 0
    %p64 = por %p62, %p63
    %p65 = scmp.ne.s32.totalorder %s54, %s57
    %p66 = scmp.eq.s32.totalorder %s17, 2
    %p67 = por %p65, %p66
    %p68 = scmp.ne.s32.totalorder %s57, %s58
    %p69 = scmp.eq.s32.totalorder %s17, 0
    %p70 = por %p68, %p69
    %p71 = scmp.ne.s32.totalorder %s57, %s58
    %p72 = scmp.eq.s32.totalorder %s18, 2
    %p73 = por %p71, %p72
    %p75 = scmp.ne.s32.totalorder %s58, %s74
    %p76 = scmp.eq.s32.totalorder %s18, 0
    %p77 = por %p75, %p76
    %s78 = sadd.s32 %s12, 1
    %p79 = scmp.lt.s32.totalorder %s78, 2
    %s80 = scalar_select %p79, %s78, 2
    %s81 = sadd.s32 %s19, 1
    %p82 = scmp.lt.s32.totalorder %s81, 2
    %s83 = scalar_select %p82, %s81, 2
    %s84 = ssub.s32 %s80, %s83
    %p85 = scmp.eq.s32.totalorder %s84, 0
    %s87 = sadd.s32 %s86, 1
    %s88 = scalar_select %p85, %s86, %s87
    %p91 = pneg %p85
    %p92 = scmp.eq.s32.totalorder %s12, 2
    %p93 = por %p91, %p92
    %p94 = scmp.ne.s32.totalorder %s86, %s89
    %p95 = scmp.eq.s32.totalorder %s12, 0
    %p96 = por %p94, %p95
    %p97 = scmp.ne.s32.totalorder %s86, %s89
    %p98 = scmp.eq.s32.totalorder %s17, 2
    %p99 = por %p97, %p98
    %p100 = scmp.ne.s32.totalorder %s89, %s90
    %p101 = scmp.eq.s32.totalorder %s17, 0
    %p102 = por %p100, %p101
    %p103 = scmp.ne.s32.totalorder %s89, %s90
    %p104 = scmp.eq.s32.totalorder %s18, 2
    %p105 = por %p103, %p104
    %p107 = scmp.ne.s32.totalorder %s90, %s106
    %p108 = scmp.eq.s32.totalorder %s18, 0
    %p109 = por %p107, %p108
    %s111 = sadd.s32 %s110, 1
    %p114 = scmp.eq.s32.totalorder %s12, 2
    %p115 = scmp.ne.s32.totalorder %s110, %s112
    %p116 = scmp.eq.s32.totalorder %s12, 0
    %p117 = por %p115, %p116
    %p118 = scmp.ne.s32.totalorder %s110, %s112
    %p119 = scmp.eq.s32.totalorder %s17, 2
    %p120 = por %p118, %p119
    %p121 = scmp.ne.s32.totalorder %s112, %s113
    %p122 = scmp.eq.s32.totalorder %s17, 0
    %p123 = por %p121, %p122
    %p124 = scmp.ne.s32.totalorder %s112, %s113
    %p125 = scmp.eq.s32.totalorder %s18, 2
    %p126 = por %p124, %p125
    %p128 = scmp.ne.s32.totalorder %s113, %s127
    %p129 = scmp.eq.s32.totalorder %s18, 0
    %p130 = por %p128, %p129
    %s132 = sadd.s32 %s131, 1
    %p135 = scmp.eq.s32.totalorder %s12, 2
    %p136 = scmp.ne.s32.totalorder %s131, %s133
    %p137 = scmp.eq.s32.totalorder %s12, 0
    %p138 = por %p136, %p137
    %p139 = scmp.ne.s32.totalorder %s131, %s133
    %p140 = scmp.eq.s32.totalorder %s17, 2
    %p141 = por %p139, %p140
    %p142 = scmp.ne.s32.totalorder %s133, %s134
    %p143 = scmp.eq.s32.totalorder %s17, 0
    %p144 = por %p142, %p143
    %p145 = scmp.ne.s32.totalorder %s133, %s134
    %p146 = scmp.eq.s32.totalorder %s18, 2
    %p147 = por %p145, %p146
    %p149 = scmp.ne.s32.totalorder %s134, %s148
    %p150 = scmp.eq.s32.totalorder %s18, 0
    %p151 = por %p149, %p150
    %s152 = ssub.s32 %s12, %s19
    %p153 = scmp.eq.s32.totalorder %s152, 0
    %s155 = sadd.s32 %s154, 1
    %s156 = scalar_select %p153, %s154, %s155
    %p159 = pneg %p153
    %p160 = scmp.eq.s32.totalorder %s12, 2
    %p161 = por %p159, %p160
    %p162 = scmp.ne.s32.totalorder %s154, %s157
    %p163 = scmp.eq.s32.totalorder %s12, 0
    %p164 = por %p162, %p163
    %p165 = scmp.ne.s32.totalorder %s154, %s157
    %p166 = scmp.eq.s32.totalorder %s17, 2
    %p167 = por %p165, %p166
    %p168 = scmp.ne.s32.totalorder %s157, %s158
    %p169 = scmp.eq.s32.totalorder %s17, 0
    %p170 = por %p168, %p169
    %p171 = scmp.ne.s32.totalorder %s157, %s158
    %p172 = scmp.eq.s32.totalorder %s18, 2
    %p173 = por %p171, %p172
    %p175 = scmp.ne.s32.totalorder %s158, %s174
    %p176 = scmp.eq.s32.totalorder %s18, 0
    %p177 = por %p175, %p176
    %s178 = ssub.s32 %s12, %s19
    %p179 = scmp.eq.s32.totalorder %s178, 0
    %s181 = sadd.s32 %s180, 1
    %s182 = scalar_select %p179, %s180, %s181
    %p185 = pneg %p179
    %p186 = scmp.eq.s32.totalorder %s12, 2
    %p187 = por %p185, %p186
    %p188 = scmp.ne.s32.totalorder %s180, %s183
    %p189 = scmp.eq.s32.totalorder %s12, 0
    %p190 = por %p188, %p189
    %p191 = scmp.ne.s32.totalorder %s180, %s183
    %p192 = scmp.eq.s32.totalorder %s17, 2
    %p193 = por %p191, %p192
    %p194 = scmp.ne.s32.totalorder %s183, %s184
    %p195 = scmp.eq.s32.totalorder %s17, 0
    %p196 = por %p194, %p195
    %p197 = scmp.ne.s32.totalorder %s183, %s184
    %p198 = scmp.eq.s32.totalorder %s18, 2
    %p199 = por %p197, %p198
    %p201 = scmp.ne.s32.totalorder %s184, %s200
    %p202 = scmp.eq.s32.totalorder %s18, 0
    %p203 = por %p201, %p202
    %p204 = scmp.le.s32.totalorder 1, %s12
    %p205 = scmp.lt.s32.totalorder %s12, 4
    %p206 = pnand %p204, %p205
    %p207 = pneg %p206
    // Predicated region
    $region9: #{sp_head_forward.31} parent=5 // pred_check
      _
    $region10: #{sp_head_forward.31} parent=5 // pred_check_branch
      %209 = sbr.rel (%p206) target = $region12
    $region11: #{sp_head_forward.31} parent=5 // pred_region
      %s210 = ssub.s32 %s12, 1
      // Predicated region
      $region13: #{sp_head_forward.31} parent=11 // pred_check
        %p211 = pneg %p123
      $region14: #{sp_head_forward.31} parent=11 // pred_check_branch
        %213 = sbr.rel (%p211) target = $region16
      $region15: #{sp_head_forward.31} parent=11 // pred_region
        _
      $region16: #{sp_head_forward.31} parent=11 // pred_fallthru
        _
      // Predicated region
      $region17: #{sp_head_forward.31} parent=11 // pred_check
        %p214 = pneg %p144
      $region18: #{sp_head_forward.31} parent=11 // pred_check_branch
        %216 = sbr.rel (%p214) target = $region20
      $region19: #{sp_head_forward.31} parent=11 // pred_region
        _
      $region20: #{sp_head_forward.31} parent=11 // pred_fallthru
        _
    $region12: #{sp_head_forward.31} parent=5 // pred_fallthru
      _
    %p217 = scmp.lt.s32.totalorder %s12, 3
    // Predicated region
    $region21: #{sp_head_forward.31} parent=5 // pred_check
      %p218 = pneg %p217
    $region22: #{sp_head_forward.31} parent=5 // pred_check_branch
      %220 = sbr.rel (%p218) target = $region24
    $region23: #{sp_head_forward.31} parent=5 // pred_region
      // Predicated region
      $region25: #{sp_head_forward.31} parent=23 // pred_check
        %p221 = pneg %p38
      $region26: #{sp_head_forward.31} parent=23 // pred_check_branch
        %223 = sbr.rel (%p221) target = $region28
      $region27: #{sp_head_forward.31} parent=23 // pred_region
        %s224 = ssub.s32 %s12, 1
        %p225 = scmp.gt.s32.totalorder %s224, 0
        %s226 = scalar_select %p225, %s224, 0
        %s227 = smul.u32 2, %s226
        %p228 = scmp.lt.s32.totalorder %s227, 5
        %s229 = scalar_select %p228, %s227, 5
        %s230 = smul.addr %s229, 2
        %s231 = scalar_lea.vmem %s0, %s230
        %s232 = ssub.s32 %s12, 1
        %p233 = scmp.gt.s32.totalorder %s232, 0
        %s234 = scalar_select %p233, %s232, 0
        %s235 = smul.u32 2, %s234
      $region28: #{sp_head_forward.31} parent=23 // pred_fallthru
        _
      // Predicated region
      $region29: #{sp_head_forward.31} parent=23 // pred_check
        %p236 = pneg %p64
      $region30: #{sp_head_forward.31} parent=23 // pred_check_branch
        %238 = sbr.rel (%p236) target = $region32
      $region31: #{sp_head_forward.31} parent=23 // pred_region
        %s239 = smul.u32 2, %s12
        %p240 = scmp.lt.s32.totalorder %s239, 5
        %s241 = scalar_select %p240, %s239, 5
        %s242 = smul.addr %s241, 2
        %s243 = scalar_lea.vmem %s1, %s242
        %s244 = smul.u32 2, %s12
      $region32: #{sp_head_forward.31} parent=23 // pred_fallthru
        _
      // Predicated region
      $region33: #{sp_head_forward.31} parent=23 // pred_check
        %p245 = pneg %p96
      $region34: #{sp_head_forward.31} parent=23 // pred_check_branch
        %247 = sbr.rel (%p245) target = $region36
      $region35: #{sp_head_forward.31} parent=23 // pred_region
        %s248 = sadd.s32 %s12, 1
        %p249 = scmp.lt.s32.totalorder %s248, 2
        %s250 = scalar_select %p249, %s248, 2
        %s251 = smul.u32 2, %s250
        %p252 = scmp.lt.s32.totalorder %s251, 5
        %s253 = scalar_select %p252, %s251, 5
        %s254 = smul.addr %s253, 2
        %s255 = scalar_lea.vmem %s2, %s254
        %s256 = sadd.s32 %s12, 1
        %p257 = scmp.lt.s32.totalorder %s256, 2
        %s258 = scalar_select %p257, %s256, 2
        %s259 = smul.u32 2, %s258
      $region36: #{sp_head_forward.31} parent=23 // pred_fallthru
        _
      // Predicated region
      $region37: #{sp_head_forward.31} parent=23 // pred_check
        %p260 = pneg %p164
      $region38: #{sp_head_forward.31} parent=23 // pred_check_branch
        %262 = sbr.rel (%p260) target = $region40
      $region39: #{sp_head_forward.31} parent=23 // pred_region
        %s263 = smul.u32 2, %s12
        %p264 = scmp.lt.s32.totalorder %s263, 5
        %s265 = scalar_select %p264, %s263, 5
        %s266 = scalar_lea.vmem %s5, %s265
        %s267 = smul.u32 2, %s12
      $region40: #{sp_head_forward.31} parent=23 // pred_fallthru
        _
    $region24: #{sp_head_forward.31} parent=5 // pred_fallthru
      _
    %p268 = scmp.le.s32.totalorder 1, %s12
    %p269 = scmp.lt.s32.totalorder %s12, 4
    %p270 = pnand %p268, %p269
    %p271 = pneg %p270
    // Predicated region
    $region41: #{sp_head_forward.31} parent=5 // pred_check
      _
    $region42: #{sp_head_forward.31} parent=5 // pred_check_branch
      %273 = sbr.rel (%p270) target = $region44
    $region43: #{sp_head_forward.31} parent=5 // pred_region
      %s274 = ssub.s32 %s12, 1
      %s275 = ssub.s32 %s17, 1
      %p276 = scmp.gt.s32.totalorder %s275, 0
      %s277 = scalar_select %p276, %s275, 0
      %s278 = smul.u32 2, %s277
      %p279 = scmp.lt.s32.totalorder %s278, 5
      %s280 = scalar_select %p279, %s278, 5
      %s281 = smul.addr %s280, 2
      %s282 = scalar_lea.vmem %s0, %s281
      %p283 = pneg %p44
      %p284 = pneg %p41
      %s285 = smul.u32 2, %s17
      %p286 = scmp.lt.s32.totalorder %s285, 5
      %s287 = scalar_select %p286, %s285, 5
      %s288 = smul.addr %s287, 2
      %s289 = scalar_lea.vmem %s1, %s288
      %p290 = pneg %p70
      %p291 = pneg %p67
      %s292 = sadd.s32 %s17, 1
      %p293 = scmp.lt.s32.totalorder %s292, 2
      %s294 = scalar_select %p293, %s292, 2
      %s295 = smul.u32 2, %s294
      %p296 = scmp.lt.s32.totalorder %s295, 5
      %s297 = scalar_select %p296, %s295, 5
      %s298 = smul.addr %s297, 2
      %s299 = scalar_lea.vmem %s2, %s298
      %p300 = pneg %p102
      %p301 = pneg %p99
      %p302 = pneg %p123
      %p303 = pneg %p120
      %p304 = pneg %p144
      %p305 = pneg %p141
      %s306 = smul.u32 2, %s17
      %p307 = scmp.lt.s32.totalorder %s306, 5
      %s308 = scalar_select %p307, %s306, 5
      %s309 = scalar_lea.vmem %s5, %s308
      %p310 = pneg %p170
      %p311 = pneg %p167
      %p312 = pneg %p196
      %p313 = pneg %p193
      %s314 = smul.u32 2, %s17
      %p315 = scmp.lt.s32.totalorder %s314, 5
      %s316 = scalar_select %p315, %s314, 5
      %s317 = smul.addr %s316, 2
      %s318 = scalar_lea.vmem %s6, %s317
      %s319 = ssub.s32 %s17, 1
      %p320 = scmp.gt.s32.totalorder %s319, 0
      %s321 = scalar_select %p320, %s319, 0
      %s322 = smul.u32 2, %s321
      %p323 = scmp.lt.s32.totalorder %s322, 5
      %s324 = scalar_select %p323, %s322, 5
      %s325 = smul.addr %s324, 2
      %s326 = scalar_lea.vmem %s0, %s325
      %s327 = ssub.s32 %s17, 1
      %p328 = scmp.gt.s32.totalorder %s327, 0
      %s329 = scalar_select %p328, %s327, 0
      %s330 = smul.u32 2, %s329
      %s331 = smul.u32 2, %s17
      %p332 = scmp.lt.s32.totalorder %s331, 5
      %s333 = scalar_select %p332, %s331, 5
      %s334 = smul.addr %s333, 2
      %s335 = scalar_lea.vmem %s1, %s334
      %s336 = smul.u32 2, %s17
      %s337 = sadd.s32 %s17, 1
      %p338 = scmp.lt.s32.totalorder %s337, 2
      %s339 = scalar_select %p338, %s337, 2
      %s340 = smul.u32 2, %s339
      %p341 = scmp.lt.s32.totalorder %s340, 5
      %s342 = scalar_select %p341, %s340, 5
      %s343 = smul.addr %s342, 2
      %s344 = scalar_lea.vmem %s2, %s343
      %s345 = sadd.s32 %s17, 1
      %p346 = scmp.lt.s32.totalorder %s345, 2
      %s347 = scalar_select %p346, %s345, 2
      %s348 = smul.u32 2, %s347
      %s349 = smul.u32 2, %s17
      %p350 = scmp.lt.s32.totalorder %s349, 5
      %s351 = scalar_select %p350, %s349, 5
      %s352 = scalar_lea.vmem %s5, %s351
      %s353 = smul.u32 2, %s17
      %s354 = smul.u32 2, %s17
      %p355 = scmp.lt.s32.totalorder %s354, 5
      %s356 = scalar_select %p355, %s354, 5
      %s357 = smul.addr %s356, 2
      %s358 = scalar_lea.vmem %s6, %s357
      %s359 = smul.u32 2, %s17
      %v361 = vld [vmem:[%s335] sm:$0xf]
      %v362 = vld [vmem:[%s326] sm:$0xf]
      %v363 = vld [vmem:[%s344] sm:$0xf]
      %v364 = vld [vmem:[%s3] sm:$0x3]
      %v367 = vunpack.c.l.s4 1983009808
      %v368 = vunpack.c.0.s8 %v367
      %v369 = vlaneseq
      %v370 = vshrl.u32 %v369, 7
      %v371 = vsub.s32 %v368, %v370
      %v372 = vrot.slane %v362, %v371
      %v373 = vcombine.high %v372, %v372
      %374 = vrot.lane.b32.xlu0 %v373, 19
      %v375 = vpop.permute.xlu0 %374
      %v378 = vunpack.c.l.s4 1983009808
      %v379 = vunpack.c.0.s8 %v378
      %v380 = vlaneseq
      %v381 = vshrl.u32 %v380, 7
      %v382 = vsub.s32 %v379, %v381
      %v383 = vrot.slane %v361, %v382
      %v384 = vcombine.high %v383, %v383
      %385 = vrot.lane.b32.xlu0 %v383, 19
      %v386 = vpop.permute.xlu0 %385
      %387 = vrot.lane.b32.xlu0 %v384, 19
      %v388 = vpop.permute.xlu0 %387
      %vm389 = vcmask 154624
      %v390 = vsel %vm389, %v386, %v388
      %vm391 = vcmask 154624
      %v394 = vsel %vm391, %v375, %v386
      %s395 = scalar_lea.vmem %s3, 2
      %v396 = vld [vmem:[%s395] sm:$0x3]
      %397 = vrot.lane.b32.xlu0 %v373, 18
      %v398 = vpop.permute.xlu0 %397
      %399 = vrot.lane.b32.xlu0 %v383, 18
      %v400 = vpop.permute.xlu0 %399
      %401 = vrot.lane.b32.xlu0 %v384, 18
      %v402 = vpop.permute.xlu0 %401
      %vm403 = vcmask 146432
      %v404 = vsel %vm403, %v400, %v402
      %vm405 = vcmask 146432
      %v408 = vsel %vm405, %v398, %v400
      %vm409 = vcmask 31744
      %v411 = vsel %vm409, %v396, 0
      %vm413 = vcmask 1041408
      %v414 = vsel %vm413, %v408, 0
      %v417 = vsel %vm413, %v404, 0
      %419 = vmatprep.subr.bf16.mxu0 0
      %420 = vmatpush1.bf16.msra.mxu0 0
      %421 = vmatprep.subr.bf16.mxu0 0
      %422 = vmatpush1.bf16.msra.mxu0 0
      %423 = vmatprep.subr.bf16.mxu0 0
      %424 = vmatpush1.bf16.msra.mxu0 0
      %425 = vmatprep.subr.bf16.mxu0 0
      %426 = vmatpush1.bf16.msra.mxu0 0
      %427 = vmatprep.subr.bf16.mxu0 0
      %428 = vmatpush1.bf16.msra.mxu0 0
      %429 = vmatprep.subr.bf16.mxu0 0
      %430 = vmatpush1.bf16.msra.mxu0 0
      %431 = vmatprep.subr.bf16.mxu0 0
      %432 = vmatpush1.bf16.msra.mxu0 0
      %433 = vmatprep.subr.bf16.mxu0 %v417
      %434 = vmatpush1.bf16.msra.mxu0 %v414
      %435 = vmatprep.subr.bf16.mxu0 0
      %436 = vmatpush2.bf16.msra.mxu0 0
      %437 = vmatprep.subr.bf16.mxu0 0
      %438 = vmatpush2.bf16.msra.mxu0 0
      %439 = vmatprep.subr.bf16.mxu0 0
      %440 = vmatpush2.bf16.msra.mxu0 0
      %441 = vmatprep.subr.bf16.mxu0 0
      %442 = vmatpush2.bf16.msra.mxu0 0
      %443 = vmatprep.subr.bf16.mxu0 0
      %444 = vmatpush2.bf16.msra.mxu0 0
      %445 = vmatprep.subr.bf16.mxu0 0
      %446 = vmatpush2.bf16.msra.mxu0 0
      %447 = vmatprep.subr.bf16.mxu0 0
      %448 = vmatpush2.bf16.msra.mxu0 0
      %449 = vmatprep.subr.bf16.mxu0 0
      %450 = vmatpush2.bf16.msra.mxu0 0
      %451 = vmatprep.mubr.bf16.mxu0 0
      %452 = vmatmul.mubr.bf16.gmra.mxu0 %v411
      %v453 = vpop.f32.mrf.mxu0
      %v454 = vadd.f32 0.0, %v453
      %v455 = vpop.f32.mrf.mxu0
      %v456 = vadd.f32 0.0, %v455
      %v457 = vpop.f32.mrf.mxu0
      %v458 = vpop.f32.mrf.mxu0
      %459 = vdwg.mxu0
      %v461 = vsel %vm409, %v364, 0
      %v463 = vsel %vm413, %v394, 0
      %v466 = vsel %vm413, %v390, 0
      %468 = vmatprep.subr.bf16.mxu0 0
      %469 = vmatpush1.bf16.msra.mxu0 0
      %470 = vmatprep.subr.bf16.mxu0 0
      %471 = vmatpush1.bf16.msra.mxu0 0
      %472 = vmatprep.subr.bf16.mxu0 0
      %473 = vmatpush1.bf16.msra.mxu0 0
      %474 = vmatprep.subr.bf16.mxu0 0
      %475 = vmatpush1.bf16.msra.mxu0 0
      %476 = vmatprep.subr.bf16.mxu0 0
      %477 = vmatpush1.bf16.msra.mxu0 0
      %478 = vmatprep.subr.bf16.mxu0 0
      %479 = vmatpush1.bf16.msra.mxu0 0
      %480 = vmatprep.subr.bf16.mxu0 0
      %481 = vmatpush1.bf16.msra.mxu0 0
      %482 = vmatprep.subr.bf16.mxu0 %v466
      %483 = vmatpush1.bf16.msra.mxu0 %v463
      %484 = vmatprep.subr.bf16.mxu0 0
      %485 = vmatpush2.bf16.msra.mxu0 0
      %486 = vmatprep.subr.bf16.mxu0 0
      %487 = vmatpush2.bf16.msra.mxu0 0
      %488 = vmatprep.subr.bf16.mxu0 0
      %489 = vmatpush2.bf16.msra.mxu0 0
      %490 = vmatprep.subr.bf16.mxu0 0
      %491 = vmatpush2.bf16.msra.mxu0 0
      %492 = vmatprep.subr.bf16.mxu0 0
      %493 = vmatpush2.bf16.msra.mxu0 0
      %494 = vmatprep.subr.bf16.mxu0 0
      %495 = vmatpush2.bf16.msra.mxu0 0
      %496 = vmatprep.subr.bf16.mxu0 0
      %497 = vmatpush2.bf16.msra.mxu0 0
      %498 = vmatprep.subr.bf16.mxu0 0
      %499 = vmatpush2.bf16.msra.mxu0 0
      %500 = vmatprep.mubr.bf16.mxu0 0
      %501 = vmatmul.mubr.bf16.gmra.mxu0 %v461
      %v502 = vpop.f32.mrf.mxu0
      %v503 = vadd.f32 %v454, %v502
      %v504 = vpop.f32.mrf.mxu0
      %v505 = vadd.f32 %v456, %v504
      %v506 = vpop.f32.mrf.mxu0
      %v507 = vpop.f32.mrf.mxu0
      %508 = vdwg.mxu0
      %s509 = scalar_lea.vmem %s3, 4
      %v510 = vld [vmem:[%s509] sm:$0x3]
      %511 = vrot.lane.b32.xlu0 %v373, 17
      %v512 = vpop.permute.xlu0 %511
      %513 = vrot.lane.b32.xlu0 %v383, 17
      %v514 = vpop.permute.xlu0 %513
      %515 = vrot.lane.b32.xlu0 %v384, 17
      %v516 = vpop.permute.xlu0 %515
      %vm517 = vcmask 138240
      %v518 = vsel %vm517, %v514, %v516
      %vm519 = vcmask 138240
      %v522 = vsel %vm519, %v512, %v514
      %v524 = vsel %vm409, %v510, 0
      %v526 = vsel %vm413, %v522, 0
      %v529 = vsel %vm413, %v518, 0
      %531 = vmatprep.subr.bf16.mxu0 0
      %532 = vmatpush1.bf16.msra.mxu0 0
      %533 = vmatprep.subr.bf16.mxu0 0
      %534 = vmatpush1.bf16.msra.mxu0 0
      %535 = vmatprep.subr.bf16.mxu0 0
      %536 = vmatpush1.bf16.msra.mxu0 0
      %537 = vmatprep.subr.bf16.mxu0 0
      %538 = vmatpush1.bf16.msra.mxu0 0
      %539 = vmatprep.subr.bf16.mxu0 0
      %540 = vmatpush1.bf16.msra.mxu0 0
      %541 = vmatprep.subr.bf16.mxu0 0
      %542 = vmatpush1.bf16.msra.mxu0 0
      %543 = vmatprep.subr.bf16.mxu0 0
      %544 = vmatpush1.bf16.msra.mxu0 0
      %545 = vmatprep.subr.bf16.mxu0 %v529
      %546 = vmatpush1.bf16.msra.mxu0 %v526
      %547 = vmatprep.subr.bf16.mxu0 0
      %548 = vmatpush2.bf16.msra.mxu0 0
      %549 = vmatprep.subr.bf16.mxu0 0
      %550 = vmatpush2.bf16.msra.mxu0 0
      %551 = vmatprep.subr.bf16.mxu0 0
      %552 = vmatpush2.bf16.msra.mxu0 0
      %553 = vmatprep.subr.bf16.mxu0 0
      %554 = vmatpush2.bf16.msra.mxu0 0
      %555 = vmatprep.subr.bf16.mxu0 0
      %556 = vmatpush2.bf16.msra.mxu0 0
      %557 = vmatprep.subr.bf16.mxu0 0
      %558 = vmatpush2.bf16.msra.mxu0 0
      %559 = vmatprep.subr.bf16.mxu0 0
      %560 = vmatpush2.bf16.msra.mxu0 0
      %561 = vmatprep.subr.bf16.mxu0 0
      %562 = vmatpush2.bf16.msra.mxu0 0
      %563 = vmatprep.mubr.bf16.mxu0 0
      %564 = vmatmul.mubr.bf16.gmra.mxu0 %v524
      %v565 = vpop.f32.mrf.mxu0
      %v566 = vadd.f32 0.0, %v565
      %v567 = vpop.f32.mrf.mxu0
      %v568 = vadd.f32 0.0, %v567
      %v569 = vpop.f32.mrf.mxu0
      %v570 = vpop.f32.mrf.mxu0
      %571 = vdwg.mxu0
      %v572 = vadd.f32 %v503, %v566
      %v573 = vadd.f32 %v505, %v568
      %s574 = scalar_lea.vmem %s3, 6
      %v575 = vld [vmem:[%s574] sm:$0x3]
      %576 = vrot.lane.b32.xlu0 %v373, 1
      %v577 = vpop.permute.xlu0 %576
      %578 = vrot.lane.b32.xlu0 %v383, 1
      %v579 = vpop.permute.xlu0 %578
      %580 = vrot.lane.b32.xlu0 %v384, 1
      %v581 = vpop.permute.xlu0 %580
      %vm582 = vcmask 7168
      %v583 = vsel %vm582, %v579, %v581
      %vm584 = vcmask 7168
      %v587 = vsel %vm584, %v577, %v579
      %v589 = vsel %vm409, %v575, 0
      %v591 = vsel %vm413, %v587, 0
      %v594 = vsel %vm413, %v583, 0
      %596 = vmatprep.subr.bf16.mxu0 0
      %597 = vmatpush1.bf16.msra.mxu0 0
      %598 = vmatprep.subr.bf16.mxu0 0
      %599 = vmatpush1.bf16.msra.mxu0 0
      %600 = vmatprep.subr.bf16.mxu0 0
      %601 = vmatpush1.bf16.msra.mxu0 0
      %602 = vmatprep.subr.bf16.mxu0 0
      %603 = vmatpush1.bf16.msra.mxu0 0
      %604 = vmatprep.subr.bf16.mxu0 0
      %605 = vmatpush1.bf16.msra.mxu0 0
      %606 = vmatprep.subr.bf16.mxu0 0
      %607 = vmatpush1.bf16.msra.mxu0 0
      %608 = vmatprep.subr.bf16.mxu0 0
      %609 = vmatpush1.bf16.msra.mxu0 0
      %610 = vmatprep.subr.bf16.mxu0 %v594
      %611 = vmatpush1.bf16.msra.mxu0 %v591
      %612 = vmatprep.subr.bf16.mxu0 0
      %613 = vmatpush2.bf16.msra.mxu0 0
      %614 = vmatprep.subr.bf16.mxu0 0
      %615 = vmatpush2.bf16.msra.mxu0 0
      %616 = vmatprep.subr.bf16.mxu0 0
      %617 = vmatpush2.bf16.msra.mxu0 0
      %618 = vmatprep.subr.bf16.mxu0 0
      %619 = vmatpush2.bf16.msra.mxu0 0
      %620 = vmatprep.subr.bf16.mxu0 0
      %621 = vmatpush2.bf16.msra.mxu0 0
      %622 = vmatprep.subr.bf16.mxu0 0
      %623 = vmatpush2.bf16.msra.mxu0 0
      %624 = vmatprep.subr.bf16.mxu0 0
      %625 = vmatpush2.bf16.msra.mxu0 0
      %626 = vmatprep.subr.bf16.mxu0 0
      %627 = vmatpush2.bf16.msra.mxu0 0
      %628 = vmatprep.mubr.bf16.mxu0 0
      %629 = vmatmul.mubr.bf16.gmra.mxu0 %v589
      %v630 = vpop.f32.mrf.mxu0
      %v631 = vadd.f32 0.0, %v630
      %v632 = vpop.f32.mrf.mxu0
      %v633 = vadd.f32 0.0, %v632
      %v634 = vpop.f32.mrf.mxu0
      %v635 = vpop.f32.mrf.mxu0
      %636 = vdwg.mxu0
      %v637 = vadd.f32 %v572, %v631
      %v638 = vadd.f32 %v573, %v633
      %s639 = scalar_lea.vmem %s3, 8
      %v640 = vld [vmem:[%s639] sm:$0x3]
      %v642 = vsel %vm409, %v640, 0
      %v645 = vsel %vm413, %v383, 0
      %v648 = vsel %vm413, %v384, 0
      %650 = vmatprep.subr.bf16.mxu0 0
      %651 = vmatpush1.bf16.msra.mxu0 0
      %652 = vmatprep.subr.bf16.mxu0 0
      %653 = vmatpush1.bf16.msra.mxu0 0
      %654 = vmatprep.subr.bf16.mxu0 0
      %655 = vmatpush1.bf16.msra.mxu0 0
      %656 = vmatprep.subr.bf16.mxu0 0
      %657 = vmatpush1.bf16.msra.mxu0 0
      %658 = vmatprep.subr.bf16.mxu0 0
      %659 = vmatpush1.bf16.msra.mxu0 0
      %660 = vmatprep.subr.bf16.mxu0 0
      %661 = vmatpush1.bf16.msra.mxu0 0
      %662 = vmatprep.subr.bf16.mxu0 0
      %663 = vmatpush1.bf16.msra.mxu0 0
      %664 = vmatprep.subr.bf16.mxu0 %v648
      %665 = vmatpush1.bf16.msra.mxu0 %v645
      %666 = vmatprep.subr.bf16.mxu0 0
      %667 = vmatpush2.bf16.msra.mxu0 0
      %668 = vmatprep.subr.bf16.mxu0 0
      %669 = vmatpush2.bf16.msra.mxu0 0
      %670 = vmatprep.subr.bf16.mxu0 0
      %671 = vmatpush2.bf16.msra.mxu0 0
      %672 = vmatprep.subr.bf16.mxu0 0
      %673 = vmatpush2.bf16.msra.mxu0 0
      %674 = vmatprep.subr.bf16.mxu0 0
      %675 = vmatpush2.bf16.msra.mxu0 0
      %676 = vmatprep.subr.bf16.mxu0 0
      %677 = vmatpush2.bf16.msra.mxu0 0
      %678 = vmatprep.subr.bf16.mxu0 0
      %679 = vmatpush2.bf16.msra.mxu0 0
      %680 = vmatprep.subr.bf16.mxu0 0
      %681 = vmatpush2.bf16.msra.mxu0 0
      %682 = vmatprep.mubr.bf16.mxu0 0
      %683 = vmatmul.mubr.bf16.gmra.mxu0 %v642
      %v684 = vpop.f32.mrf.mxu0
      %v685 = vadd.f32 0.0, %v684
      %v686 = vpop.f32.mrf.mxu0
      %v687 = vadd.f32 0.0, %v686
      %v688 = vpop.f32.mrf.mxu0
      %v689 = vpop.f32.mrf.mxu0
      %690 = vdwg.mxu0
      %v691 = vadd.f32 %v637, %v685
      %v692 = vadd.f32 %v638, %v687
      %s693 = scalar_lea.vmem %s3, 10
      %v694 = vld [vmem:[%s693] sm:$0x3]
      %695 = vrot.lane.b32.xlu0 %v383, 127
      %v696 = vpop.permute.xlu0 %695
      %697 = vrot.lane.b32.xlu0 %v384, 127
      %v698 = vpop.permute.xlu0 %697
      %vm699 = vcmask 1039360
      %v700 = vsel %vm699, %v696, %v698
      %v703 = vunpack.c.l.s4 1983009808
      %v704 = vunpack.c.0.s8 %v703
      %v705 = vlaneseq
      %v706 = vshrl.u32 %v705, 7
      %v707 = vsub.s32 %v704, %v706
      %v708 = vrot.slane %v363, %v707
      %709 = vrot.lane.b32.xlu0 %v708, 127
      %v710 = vpop.permute.xlu0 %709
      %vm711 = vcmask 1039360
      %v714 = vsel %vm711, %v698, %v710
      %v716 = vsel %vm409, %v694, 0
      %v719 = vsel %vm413, %v700, 0
      %v721 = vsel %vm413, %v714, 0
      %723 = vmatprep.subr.bf16.mxu0 0
      %724 = vmatpush1.bf16.msra.mxu0 0
      %725 = vmatprep.subr.bf16.mxu0 0
      %726 = vmatpush1.bf16.msra.mxu0 0
      %727 = vmatprep.subr.bf16.mxu0 0
      %728 = vmatpush1.bf16.msra.mxu0 0
      %729 = vmatprep.subr.bf16.mxu0 0
      %730 = vmatpush1.bf16.msra.mxu0 0
      %731 = vmatprep.subr.bf16.mxu0 0
      %732 = vmatpush1.bf16.msra.mxu0 0
      %733 = vmatprep.subr.bf16.mxu0 0
      %734 = vmatpush1.bf16.msra.mxu0 0
      %735 = vmatprep.subr.bf16.mxu0 0
      %736 = vmatpush1.bf16.msra.mxu0 0
      %737 = vmatprep.subr.bf16.mxu0 %v721
      %738 = vmatpush1.bf16.msra.mxu0 %v719
      %739 = vmatprep.subr.bf16.mxu0 0
      %740 = vmatpush2.bf16.msra.mxu0 0
      %741 = vmatprep.subr.bf16.mxu0 0
      %742 = vmatpush2.bf16.msra.mxu0 0
      %743 = vmatprep.subr.bf16.mxu0 0
      %744 = vmatpush2.bf16.msra.mxu0 0
      %745 = vmatprep.subr.bf16.mxu0 0
      %746 = vmatpush2.bf16.msra.mxu0 0
      %747 = vmatprep.subr.bf16.mxu0 0
      %748 = vmatpush2.bf16.msra.mxu0 0
      %749 = vmatprep.subr.bf16.mxu0 0
      %750 = vmatpush2.bf16.msra.mxu0 0
      %751 = vmatprep.subr.bf16.mxu0 0
      %752 = vmatpush2.bf16.msra.mxu0 0
      %753 = vmatprep.subr.bf16.mxu0 0
      %754 = vmatpush2.bf16.msra.mxu0 0
      %755 = vmatprep.mubr.bf16.mxu0 0
      %756 = vmatmul.mubr.bf16.gmra.mxu0 %v716
      %v757 = vpop.f32.mrf.mxu0
      %v758 = vadd.f32 0.0, %v757
      %v759 = vpop.f32.mrf.mxu0
      %v760 = vadd.f32 0.0, %v759
      %v761 = vpop.f32.mrf.mxu0
      %v762 = vpop.f32.mrf.mxu0
      %763 = vdwg.mxu0
      %v764 = vadd.f32 %v691, %v758
      %v765 = vadd.f32 %v692, %v760
      %s766 = scalar_lea.vmem %s3, 12
      %v767 = vld [vmem:[%s766] sm:$0x3]
      %768 = vrot.lane.b32.xlu0 %v383, 111
      %v769 = vpop.permute.xlu0 %768
      %770 = vrot.lane.b32.xlu0 %v384, 111
      %v771 = vpop.permute.xlu0 %770
      %vm772 = vcmask 908288
      %v773 = vsel %vm772, %v769, %v771
      %774 = vrot.lane.b32.xlu0 %v708, 111
      %v775 = vpop.permute.xlu0 %774
      %vm776 = vcmask 908288
      %v779 = vsel %vm776, %v771, %v775
      %v781 = vsel %vm409, %v767, 0
      %v784 = vsel %vm413, %v773, 0
      %v786 = vsel %vm413, %v779, 0
      %788 = vmatprep.subr.bf16.mxu0 0
      %789 = vmatpush1.bf16.msra.mxu0 0
      %790 = vmatprep.subr.bf16.mxu0 0
      %791 = vmatpush1.bf16.msra.mxu0 0
      %792 = vmatprep.subr.bf16.mxu0 0
      %793 = vmatpush1.bf16.msra.mxu0 0
      %794 = vmatprep.subr.bf16.mxu0 0
      %795 = vmatpush1.bf16.msra.mxu0 0
      %796 = vmatprep.subr.bf16.mxu0 0
      %797 = vmatpush1.bf16.msra.mxu0 0
      %798 = vmatprep.subr.bf16.mxu0 0
      %799 = vmatpush1.bf16.msra.mxu0 0
      %800 = vmatprep.subr.bf16.mxu0 0
      %801 = vmatpush1.bf16.msra.mxu0 0
      %802 = vmatprep.subr.bf16.mxu0 %v786
      %803 = vmatpush1.bf16.msra.mxu0 %v784
      %804 = vmatprep.subr.bf16.mxu0 0
      %805 = vmatpush2.bf16.msra.mxu0 0
      %806 = vmatprep.subr.bf16.mxu0 0
      %807 = vmatpush2.bf16.msra.mxu0 0
      %808 = vmatprep.subr.bf16.mxu0 0
      %809 = vmatpush2.bf16.msra.mxu0 0
      %810 = vmatprep.subr.bf16.mxu0 0
      %811 = vmatpush2.bf16.msra.mxu0 0
      %812 = vmatprep.subr.bf16.mxu0 0
      %813 = vmatpush2.bf16.msra.mxu0 0
      %814 = vmatprep.subr.bf16.mxu0 0
      %815 = vmatpush2.bf16.msra.mxu0 0
      %816 = vmatprep.subr.bf16.mxu0 0
      %817 = vmatpush2.bf16.msra.mxu0 0
      %818 = vmatprep.subr.bf16.mxu0 0
      %819 = vmatpush2.bf16.msra.mxu0 0
      %820 = vmatprep.mubr.bf16.mxu0 0
      %821 = vmatmul.mubr.bf16.gmra.mxu0 %v781
      %v822 = vpop.f32.mrf.mxu0
      %v823 = vadd.f32 0.0, %v822
      %v824 = vpop.f32.mrf.mxu0
      %v825 = vadd.f32 0.0, %v824
      %v826 = vpop.f32.mrf.mxu0
      %v827 = vpop.f32.mrf.mxu0
      %828 = vdwg.mxu0
      %v829 = vadd.f32 %v764, %v823
      %v830 = vadd.f32 %v765, %v825
      %s831 = scalar_lea.vmem %s3, 14
      %v832 = vld [vmem:[%s831] sm:$0x3]
      %833 = vrot.lane.b32.xlu0 %v383, 110
      %v834 = vpop.permute.xlu0 %833
      %835 = vrot.lane.b32.xlu0 %v384, 110
      %v836 = vpop.permute.xlu0 %835
      %vm837 = vcmask 900096
      %v838 = vsel %vm837, %v834, %v836
      %839 = vrot.lane.b32.xlu0 %v708, 110
      %v840 = vpop.permute.xlu0 %839
      %vm841 = vcmask 900096
      %v844 = vsel %vm841, %v836, %v840
      %v846 = vsel %vm409, %v832, 0
      %v849 = vsel %vm413, %v838, 0
      %v851 = vsel %vm413, %v844, 0
      %853 = vmatprep.subr.bf16.mxu0 0
      %854 = vmatpush1.bf16.msra.mxu0 0
      %855 = vmatprep.subr.bf16.mxu0 0
      %856 = vmatpush1.bf16.msra.mxu0 0
      %857 = vmatprep.subr.bf16.mxu0 0
      %858 = vmatpush1.bf16.msra.mxu0 0
      %859 = vmatprep.subr.bf16.mxu0 0
      %860 = vmatpush1.bf16.msra.mxu0 0
      %861 = vmatprep.subr.bf16.mxu0 0
      %862 = vmatpush1.bf16.msra.mxu0 0
      %863 = vmatprep.subr.bf16.mxu0 0
      %864 = vmatpush1.bf16.msra.mxu0 0
      %865 = vmatprep.subr.bf16.mxu0 0
      %866 = vmatpush1.bf16.msra.mxu0 0
      %867 = vmatprep.subr.bf16.mxu0 %v851
      %868 = vmatpush1.bf16.msra.mxu0 %v849
      %869 = vmatprep.subr.bf16.mxu0 0
      %870 = vmatpush2.bf16.msra.mxu0 0
      %871 = vmatprep.subr.bf16.mxu0 0
      %872 = vmatpush2.bf16.msra.mxu0 0
      %873 = vmatprep.subr.bf16.mxu0 0
      %874 = vmatpush2.bf16.msra.mxu0 0
      %875 = vmatprep.subr.bf16.mxu0 0
      %876 = vmatpush2.bf16.msra.mxu0 0
      %877 = vmatprep.subr.bf16.mxu0 0
      %878 = vmatpush2.bf16.msra.mxu0 0
      %879 = vmatprep.subr.bf16.mxu0 0
      %880 = vmatpush2.bf16.msra.mxu0 0
      %881 = vmatprep.subr.bf16.mxu0 0
      %882 = vmatpush2.bf16.msra.mxu0 0
      %883 = vmatprep.subr.bf16.mxu0 0
      %884 = vmatpush2.bf16.msra.mxu0 0
      %885 = vmatprep.mubr.bf16.mxu0 0
      %886 = vmatmul.mubr.bf16.gmra.mxu0 %v846
      %v887 = vpop.f32.mrf.mxu0
      %v888 = vadd.f32 0.0, %v887
      %v889 = vpop.f32.mrf.mxu0
      %v890 = vadd.f32 0.0, %v889
      %v891 = vpop.f32.mrf.mxu0
      %v892 = vpop.f32.mrf.mxu0
      %893 = vdwg.mxu0
      %v894 = vadd.f32 %v829, %v888
      %v895 = vadd.f32 %v830, %v890
      %s896 = scalar_lea.vmem %s3, 16
      %v897 = vld [vmem:[%s896] sm:$0x3]
      %898 = vrot.lane.b32.xlu0 %v383, 109
      %v899 = vpop.permute.xlu0 %898
      %900 = vrot.lane.b32.xlu0 %v384, 109
      %v901 = vpop.permute.xlu0 %900
      %vm902 = vcmask 891904
      %v903 = vsel %vm902, %v899, %v901
      %904 = vrot.lane.b32.xlu0 %v708, 109
      %v905 = vpop.permute.xlu0 %904
      %vm906 = vcmask 891904
      %v909 = vsel %vm906, %v901, %v905
      %v911 = vsel %vm409, %v897, 0
      %v914 = vsel %vm413, %v903, 0
      %v916 = vsel %vm413, %v909, 0
      %918 = vmatprep.subr.bf16.mxu0 0
      %919 = vmatpush1.bf16.msra.mxu0 0
      %920 = vmatprep.subr.bf16.mxu0 0
      %921 = vmatpush1.bf16.msra.mxu0 0
      %922 = vmatprep.subr.bf16.mxu0 0
      %923 = vmatpush1.bf16.msra.mxu0 0
      %924 = vmatprep.subr.bf16.mxu0 0
      %925 = vmatpush1.bf16.msra.mxu0 0
      %926 = vmatprep.subr.bf16.mxu0 0
      %927 = vmatpush1.bf16.msra.mxu0 0
      %928 = vmatprep.subr.bf16.mxu0 0
      %929 = vmatpush1.bf16.msra.mxu0 0
      %930 = vmatprep.subr.bf16.mxu0 0
      %931 = vmatpush1.bf16.msra.mxu0 0
      %932 = vmatprep.subr.bf16.mxu0 %v916
      %933 = vmatpush1.bf16.msra.mxu0 %v914
      %934 = vmatprep.subr.bf16.mxu0 0
      %935 = vmatpush2.bf16.msra.mxu0 0
      %936 = vmatprep.subr.bf16.mxu0 0
      %937 = vmatpush2.bf16.msra.mxu0 0
      %938 = vmatprep.subr.bf16.mxu0 0
      %939 = vmatpush2.bf16.msra.mxu0 0
      %940 = vmatprep.subr.bf16.mxu0 0
      %941 = vmatpush2.bf16.msra.mxu0 0
      %942 = vmatprep.subr.bf16.mxu0 0
      %943 = vmatpush2.bf16.msra.mxu0 0
      %944 = vmatprep.subr.bf16.mxu0 0
      %945 = vmatpush2.bf16.msra.mxu0 0
      %946 = vmatprep.subr.bf16.mxu0 0
      %947 = vmatpush2.bf16.msra.mxu0 0
      %948 = vmatprep.subr.bf16.mxu0 0
      %949 = vmatpush2.bf16.msra.mxu0 0
      %950 = vmatprep.mubr.bf16.mxu0 0
      %951 = vmatmul.mubr.bf16.gmra.mxu0 %v911
      %v952 = vpop.f32.mrf.mxu0
      %v953 = vadd.f32 0.0, %v952
      %v954 = vpop.f32.mrf.mxu0
      %v955 = vadd.f32 0.0, %v954
      %v956 = vpop.f32.mrf.mxu0
      %v957 = vpop.f32.mrf.mxu0
      %958 = vdwg.mxu0
      %v959 = vadd.f32 %v894, %v953
      %v960 = vadd.f32 %v895, %v955
      %v961 = vld [vmem:[%s4] sm:$0xf]
      %963 = vset.pattern.permute.xlu0 0
      %964 = vperm.xlu0 %963, %v961
      %v965 = vpop.permute.xlu0 %964
      %v967 = vadd.f32 %v959, %v965
      %v968 = vadd.f32 %v960, %v965
      %v969 = vmax.f32 %v967, 0.0
      %v970 = vmax.f32 %v968, 0.0
      %v971 = vld [vmem:[%s352] sm:$0x3]
      %v973 = vlaneseq
      %v974 = vshrl.u32 %v973, 7
      %v975 = vsub.s32 0, %v974
      %v976 = vrot.slane %v971, %v975
      %v977 = vlaneseq
      %v978 = vshrl.u32 %v977, 7
      %v979 = vsub.s32 1, %v978
      %v980 = vrot.slane %v971, %v979
      %v983 = vmul.f32 %v969, %v976
      %v984 = vmul.f32 %v970, %v980
      %v985 = vpack.c.bf16 %v983, %v983
      %v986 = vpack.c.bf16 %v984, %v984
      %v989 = vcombine.low %v985, %v986
      %v991 = vunpack.c.l.s4 1983009808
      %v992 = vunpack.c.0.s8 %v991
      %v993 = vlaneseq
      %v994 = vshrl.u32 %v993, 7
      %v995 = vsub.s32 %v992, %v994
      %v996 = vrot.slane %v989, %v995
      %998 = vst [vmem:[%s358] sm:$0xf] %v996
      %s999 = smul.u32 2, %s17
      %p1000 = scmp.lt.s32.totalorder %s999, 5
      %s1001 = scalar_select %p1000, %s999, 5
      %s1002 = smul.addr %s1001, 2
      %s1003 = scalar_lea.vmem %s6, %s1002
      // Predicated region
      $region45: #{sp_head_forward.31} parent=43 // pred_check
        %p1004 = pneg %p193
      $region46: #{sp_head_forward.31} parent=43 // pred_check_branch
        %1006 = sbr.rel (%p1004) target = $region48
      $region47: #{sp_head_forward.31} parent=43 // pred_region
        %s1007 = smul.u32 2, %s17
      $region48: #{sp_head_forward.31} parent=43 // pred_fallthru
        _
    $region44: #{sp_head_forward.31} parent=5 // pred_fallthru
      _
    %p1008 = scmp.le.s32.totalorder 2, %s12
    // Predicated region
    $region49: #{sp_head_forward.31} parent=5 // pred_check
      %p1009 = pneg %p1008
    $region50: #{sp_head_forward.31} parent=5 // pred_check_branch
      %1011 = sbr.rel (%p1009) target = $region52
    $region51: #{sp_head_forward.31} parent=5 // pred_region
      %s1012 = ssub.s32 %s12, 2
      // Predicated region
      $region53: #{sp_head_forward.31} parent=51 // pred_check
        %p1013 = pneg %p199
      $region54: #{sp_head_forward.31} parent=51 // pred_check_branch
        %1015 = sbr.rel (%p1013) target = $region56
      $region55: #{sp_head_forward.31} parent=51 // pred_region
        %s1016 = smul.u32 2, %s18
        %p1017 = scmp.lt.s32.totalorder %s1016, 5
        %s1018 = scalar_select %p1017, %s1016, 5
        %s1019 = smul.addr %s1018, 2
        %s1020 = scalar_lea.vmem %s6, %s1019
      $region56: #{sp_head_forward.31} parent=51 // pred_fallthru
        _
    $region52: #{sp_head_forward.31} parent=5 // pred_fallthru
      _
  $region6: #{sp_head_forward.31} parent=0 // loop_footer
    %s16 = sadd.s32 1, %s12
  $region7: #{sp_head_forward.31} parent=0 // loop_footer_branch
    %11 = sbr.rel target = $region3
  $region8: #{sp_head_forward.31} parent=0 // loop_exit
    _

// kernel: sp_head_forward.29
$region0: #{sp_head_forward.29}
  #allocation0 [shape = 'u32[]', space=smem, size = 0x4, offset = 0x4, fixed_abs, tag = 'smem constant byte address 0x4 - core index']
  #allocation1 [shape = 'u32[144,128]{1,0:T(1,128)}', space=vmem, size = 0x12000, scoped, tag = 'internal scratch']
  %s0 = inlined_call_operand.vmem [shape: bf16[4,768], index: 0, kind: input, shape index: {}, may-alias: {0,1,2}]
  %s1 = inlined_call_operand.vmem [shape: bf16[4,768], index: 1, kind: input, shape index: {}, may-alias: {0,1,2}]
  %s2 = inlined_call_operand.vmem [shape: bf16[4,768], index: 2, kind: input, shape index: {}, may-alias: {0,1,2}]
  %s3 = inlined_call_operand.vmem [shape: bf16[9,4,4], index: 3, kind: input, shape index: {}]
  %s4 = inlined_call_operand.vmem [shape: f32[4,1], index: 4, kind: input, shape index: {}]
  %s5 = inlined_call_operand.vmem [shape: f32[1,768], index: 5, kind: input, shape index: {}]
  %s6 = inlined_call_operand.vmem [shape: bf16[4,768], index: 6, kind: input, shape index: {}]
  %s7 = inlined_call_operand.vmem [shape: bf16[4,768], index: 7, kind: input, shape index: {}]
  %s8 = inlined_call_operand.vmem [shape: bf16[4,768], index: 8, kind: output, shape index: {}]
  %s9 = sld [smem:[#allocation0]]
  $region65: #{sp_head_forward.29} parent=0
    _
  %s11 = ssub.s32 1, %s9
  %s12 = scalar_select 0, %s11, %s9
  loop: start=0, step=1, limit=5
  $region2: #{sp_head_forward.29} parent=0 // loop_pre_header
    _
  $region3: #{sp_head_forward.29} parent=0 // loop_header
    %s14 = sphi 0, %s18
    %p15 = scmp.ge.s32.totalorder %s14, 5
    %s30 = sphi 0, %s32
    %s33 = sphi 0, %s30
    %s34 = sphi 0, %s33
    %s50 = sphi 0, %s34
    %s56 = sphi 0, %s58
    %s59 = sphi 0, %s56
    %s60 = sphi 0, %s59
    %s76 = sphi 0, %s60
    %s88 = sphi 0, %s90
    %s91 = sphi 0, %s88
    %s92 = sphi 0, %s91
    %s108 = sphi 0, %s92
    %s112 = sphi 0, %s112
    %s114 = sphi 0, %s112
    %s115 = sphi 0, %s114
    %s129 = sphi 0, %s115
    %s133 = sphi 0, %s133
    %s135 = sphi 0, %s133
    %s136 = sphi 0, %s135
    %s150 = sphi 0, %s136
    %s156 = sphi 0, %s158
    %s159 = sphi 0, %s156
    %s160 = sphi 0, %s159
    %s176 = sphi 0, %s160
    %s182 = sphi 0, %s184
    %s185 = sphi 0, %s182
    %s186 = sphi 0, %s185
    %s202 = sphi 0, %s186
    %s208 = sphi 0, %s210
    %s211 = sphi 0, %s208
    %s212 = sphi 0, %s211
    %s228 = sphi 0, %s212
    %s234 = sphi 0, %s236
    %s237 = sphi 0, %s234
    %s238 = sphi 0, %s237
    %s254 = sphi 0, %s238
  $region4: #{sp_head_forward.29} parent=0 // loop_header_branch
    %17 = sbr.rel (%p15) target = $region8
  $region5: #{sp_head_forward.29} parent=0 // loop_body
    %s19 = ssub.s32 %s14, 1
    %s20 = ssub.s32 %s14, 2
    %s21 = sadd.s32 %s14, 1
    %s22 = ssub.s32 %s14, 1
    %p23 = scmp.gt.s32.totalorder %s22, 0
    %s24 = scalar_select %p23, %s22, 0
    %s25 = ssub.s32 %s21, 1
    %p26 = scmp.gt.s32.totalorder %s25, 0
    %s27 = scalar_select %p26, %s25, 0
    %s28 = ssub.s32 %s24, %s27
    %p29 = scmp.eq.s32.totalorder %s28, 0
    %s31 = sadd.s32 %s30, 1
    %s32 = scalar_select %p29, %s30, %s31
    %p35 = pneg %p29
    %p36 = scmp.eq.s32.totalorder %s14, 2
    %p37 = por %p35, %p36
    %p38 = scmp.ne.s32.totalorder %s30, %s33
    %p39 = scmp.eq.s32.totalorder %s14, 0
    %p40 = por %p38, %p39
    %p41 = scmp.ne.s32.totalorder %s30, %s33
    %p42 = scmp.eq.s32.totalorder %s19, 2
    %p43 = por %p41, %p42
    %p44 = scmp.ne.s32.totalorder %s33, %s34
    %p45 = scmp.eq.s32.totalorder %s19, 0
    %p46 = por %p44, %p45
    %p47 = scmp.ne.s32.totalorder %s33, %s34
    %p48 = scmp.eq.s32.totalorder %s20, 2
    %p49 = por %p47, %p48
    %p51 = scmp.ne.s32.totalorder %s34, %s50
    %p52 = scmp.eq.s32.totalorder %s20, 0
    %p53 = por %p51, %p52
    %s54 = ssub.s32 %s14, %s21
    %p55 = scmp.eq.s32.totalorder %s54, 0
    %s57 = sadd.s32 %s56, 1
    %s58 = scalar_select %p55, %s56, %s57
    %p61 = pneg %p55
    %p62 = scmp.eq.s32.totalorder %s14, 2
    %p63 = por %p61, %p62
    %p64 = scmp.ne.s32.totalorder %s56, %s59
    %p65 = scmp.eq.s32.totalorder %s14, 0
    %p66 = por %p64, %p65
    %p67 = scmp.ne.s32.totalorder %s56, %s59
    %p68 = scmp.eq.s32.totalorder %s19, 2
    %p69 = por %p67, %p68
    %p70 = scmp.ne.s32.totalorder %s59, %s60
    %p71 = scmp.eq.s32.totalorder %s19, 0
    %p72 = por %p70, %p71
    %p73 = scmp.ne.s32.totalorder %s59, %s60
    %p74 = scmp.eq.s32.totalorder %s20, 2
    %p75 = por %p73, %p74
    %p77 = scmp.ne.s32.totalorder %s60, %s76
    %p78 = scmp.eq.s32.totalorder %s20, 0
    %p79 = por %p77, %p78
    %s80 = sadd.s32 %s14, 1
    %p81 = scmp.lt.s32.totalorder %s80, 2
    %s82 = scalar_select %p81, %s80, 2
    %s83 = sadd.s32 %s21, 1
    %p84 = scmp.lt.s32.totalorder %s83, 2
    %s85 = scalar_select %p84, %s83, 2
    %s86 = ssub.s32 %s82, %s85
    %p87 = scmp.eq.s32.totalorder %s86, 0
    %s89 = sadd.s32 %s88, 1
    %s90 = scalar_select %p87, %s88, %s89
    %p93 = pneg %p87
    %p94 = scmp.eq.s32.totalorder %s14, 2
    %p95 = por %p93, %p94
    %p96 = scmp.ne.s32.totalorder %s88, %s91
    %p97 = scmp.eq.s32.totalorder %s14, 0
    %p98 = por %p96, %p97
    %p99 = scmp.ne.s32.totalorder %s88, %s91
    %p100 = scmp.eq.s32.totalorder %s19, 2
    %p101 = por %p99, %p100
    %p102 = scmp.ne.s32.totalorder %s91, %s92
    %p103 = scmp.eq.s32.totalorder %s19, 0
    %p104 = por %p102, %p103
    %p105 = scmp.ne.s32.totalorder %s91, %s92
    %p106 = scmp.eq.s32.totalorder %s20, 2
    %p107 = por %p105, %p106
    %p109 = scmp.ne.s32.totalorder %s92, %s108
    %p110 = scmp.eq.s32.totalorder %s20, 0
    %p111 = por %p109, %p110
    %s113 = sadd.s32 %s112, 1
    %p116 = scmp.eq.s32.totalorder %s14, 2
    %p117 = scmp.ne.s32.totalorder %s112, %s114
    %p118 = scmp.eq.s32.totalorder %s14, 0
    %p119 = por %p117, %p118
    %p120 = scmp.ne.s32.totalorder %s112, %s114
    %p121 = scmp.eq.s32.totalorder %s19, 2
    %p122 = por %p120, %p121
    %p123 = scmp.ne.s32.totalorder %s114, %s115
    %p124 = scmp.eq.s32.totalorder %s19, 0
    %p125 = por %p123, %p124
    %p126 = scmp.ne.s32.totalorder %s114, %s115
    %p127 = scmp.eq.s32.totalorder %s20, 2
    %p128 = por %p126, %p127
    %p130 = scmp.ne.s32.totalorder %s115, %s129
    %p131 = scmp.eq.s32.totalorder %s20, 0
    %p132 = por %p130, %p131
    %s134 = sadd.s32 %s133, 1
    %p137 = scmp.eq.s32.totalorder %s14, 2
    %p138 = scmp.ne.s32.totalorder %s133, %s135
    %p139 = scmp.eq.s32.totalorder %s14, 0
    %p140 = por %p138, %p139
    %p141 = scmp.ne.s32.totalorder %s133, %s135
    %p142 = scmp.eq.s32.totalorder %s19, 2
    %p143 = por %p141, %p142
    %p144 = scmp.ne.s32.totalorder %s135, %s136
    %p145 = scmp.eq.s32.totalorder %s19, 0
    %p146 = por %p144, %p145
    %p147 = scmp.ne.s32.totalorder %s135, %s136
    %p148 = scmp.eq.s32.totalorder %s20, 2
    %p149 = por %p147, %p148
    %p151 = scmp.ne.s32.totalorder %s136, %s150
    %p152 = scmp.eq.s32.totalorder %s20, 0
    %p153 = por %p151, %p152
    %s154 = ssub.s32 %s14, %s21
    %p155 = scmp.eq.s32.totalorder %s154, 0
    %s157 = sadd.s32 %s156, 1
    %s158 = scalar_select %p155, %s156, %s157
    %p161 = pneg %p155
    %p162 = scmp.eq.s32.totalorder %s14, 2
    %p163 = por %p161, %p162
    %p164 = scmp.ne.s32.totalorder %s156, %s159
    %p165 = scmp.eq.s32.totalorder %s14, 0
    %p166 = por %p164, %p165
    %p167 = scmp.ne.s32.totalorder %s156, %s159
    %p168 = scmp.eq.s32.totalorder %s19, 2
    %p169 = por %p167, %p168
    %p170 = scmp.ne.s32.totalorder %s159, %s160
    %p171 = scmp.eq.s32.totalorder %s19, 0
    %p172 = por %p170, %p171
    %p173 = scmp.ne.s32.totalorder %s159, %s160
    %p174 = scmp.eq.s32.totalorder %s20, 2
    %p175 = por %p173, %p174
    %p177 = scmp.ne.s32.totalorder %s160, %s176
    %p178 = scmp.eq.s32.totalorder %s20, 0
    %p179 = por %p177, %p178
    %s180 = ssub.s32 %s14, %s21
    %p181 = scmp.eq.s32.totalorder %s180, 0
    %s183 = sadd.s32 %s182, 1
    %s184 = scalar_select %p181, %s182, %s183
    %p187 = pneg %p181
    %p188 = scmp.eq.s32.totalorder %s14, 2
    %p189 = por %p187, %p188
    %p190 = scmp.ne.s32.totalorder %s182, %s185
    %p191 = scmp.eq.s32.totalorder %s14, 0
    %p192 = por %p190, %p191
    %p193 = scmp.ne.s32.totalorder %s182, %s185
    %p194 = scmp.eq.s32.totalorder %s19, 2
    %p195 = por %p193, %p194
    %p196 = scmp.ne.s32.totalorder %s185, %s186
    %p197 = scmp.eq.s32.totalorder %s19, 0
    %p198 = por %p196, %p197
    %p199 = scmp.ne.s32.totalorder %s185, %s186
    %p200 = scmp.eq.s32.totalorder %s20, 2
    %p201 = por %p199, %p200
    %p203 = scmp.ne.s32.totalorder %s186, %s202
    %p204 = scmp.eq.s32.totalorder %s20, 0
    %p205 = por %p203, %p204
    %s206 = ssub.s32 %s14, %s21
    %p207 = scmp.eq.s32.totalorder %s206, 0
    %s209 = sadd.s32 %s208, 1
    %s210 = scalar_select %p207, %s208, %s209
    %p213 = pneg %p207
    %p214 = scmp.eq.s32.totalorder %s14, 2
    %p215 = por %p213, %p214
    %p216 = scmp.ne.s32.totalorder %s208, %s211
    %p217 = scmp.eq.s32.totalorder %s14, 0
    %p218 = por %p216, %p217
    %p219 = scmp.ne.s32.totalorder %s208, %s211
    %p220 = scmp.eq.s32.totalorder %s19, 2
    %p221 = por %p219, %p220
    %p222 = scmp.ne.s32.totalorder %s211, %s212
    %p223 = scmp.eq.s32.totalorder %s19, 0
    %p224 = por %p222, %p223
    %p225 = scmp.ne.s32.totalorder %s211, %s212
    %p226 = scmp.eq.s32.totalorder %s20, 2
    %p227 = por %p225, %p226
    %p229 = scmp.ne.s32.totalorder %s212, %s228
    %p230 = scmp.eq.s32.totalorder %s20, 0
    %p231 = por %p229, %p230
    %s232 = ssub.s32 %s14, %s21
    %p233 = scmp.eq.s32.totalorder %s232, 0
    %s235 = sadd.s32 %s234, 1
    %s236 = scalar_select %p233, %s234, %s235
    %p239 = pneg %p233
    %p240 = scmp.eq.s32.totalorder %s14, 2
    %p241 = por %p239, %p240
    %p242 = scmp.ne.s32.totalorder %s234, %s237
    %p243 = scmp.eq.s32.totalorder %s14, 0
    %p244 = por %p242, %p243
    %p245 = scmp.ne.s32.totalorder %s234, %s237
    %p246 = scmp.eq.s32.totalorder %s19, 2
    %p247 = por %p245, %p246
    %p248 = scmp.ne.s32.totalorder %s237, %s238
    %p249 = scmp.eq.s32.totalorder %s19, 0
    %p250 = por %p248, %p249
    %p251 = scmp.ne.s32.totalorder %s237, %s238
    %p252 = scmp.eq.s32.totalorder %s20, 2
    %p253 = por %p251, %p252
    %p255 = scmp.ne.s32.totalorder %s238, %s254
    %p256 = scmp.eq.s32.totalorder %s20, 0
    %p257 = por %p255, %p256
    %p258 = scmp.le.s32.totalorder 1, %s14
    %p259 = scmp.lt.s32.totalorder %s14, 4
    %p260 = pnand %p258, %p259
    %p261 = pneg %p260
    // Predicated region
    $region9: #{sp_head_forward.29} parent=5 // pred_check
      _
    $region10: #{sp_head_forward.29} parent=5 // pred_check_branch
      %263 = sbr.rel (%p260) target = $region12
    $region11: #{sp_head_forward.29} parent=5 // pred_region
      %s264 = ssub.s32 %s14, 1
      // Predicated region
      $region13: #{sp_head_forward.29} parent=11 // pred_check
        %p265 = pneg %p125
      $region14: #{sp_head_forward.29} parent=11 // pred_check_branch
        %267 = sbr.rel (%p265) target = $region16
      $region15: #{sp_head_forward.29} parent=11 // pred_region
        _
      $region16: #{sp_head_forward.29} parent=11 // pred_fallthru
        _
      // Predicated region
      $region17: #{sp_head_forward.29} parent=11 // pred_check
        %p268 = pneg %p146
      $region18: #{sp_head_forward.29} parent=11 // pred_check_branch
        %270 = sbr.rel (%p268) target = $region20
      $region19: #{sp_head_forward.29} parent=11 // pred_region
        _
      $region20: #{sp_head_forward.29} parent=11 // pred_fallthru
        _
    $region12: #{sp_head_forward.29} parent=5 // pred_fallthru
      _
    %p271 = scmp.lt.s32.totalorder %s14, 3
    // Predicated region
    $region21: #{sp_head_forward.29} parent=5 // pred_check
      %p272 = pneg %p271
    $region22: #{sp_head_forward.29} parent=5 // pred_check_branch
      %274 = sbr.rel (%p272) target = $region24
    $region23: #{sp_head_forward.29} parent=5 // pred_region
      // Predicated region
      $region25: #{sp_head_forward.29} parent=23 // pred_check
        %p275 = pneg %p40
      $region26: #{sp_head_forward.29} parent=23 // pred_check_branch
        %277 = sbr.rel (%p275) target = $region28
      $region27: #{sp_head_forward.29} parent=23 // pred_region
        %s278 = ssub.s32 %s14, 1
        %p279 = scmp.gt.s32.totalorder %s278, 0
        %s280 = scalar_select %p279, %s278, 0
        %s281 = smul.u32 2, %s280
        %p282 = scmp.lt.s32.totalorder %s281, 5
        %s283 = scalar_select %p282, %s281, 5
        %s284 = smul.addr %s283, 2
        %s285 = scalar_lea.vmem %s0, %s284
        %s286 = ssub.s32 %s14, 1
        %p287 = scmp.gt.s32.totalorder %s286, 0
        %s288 = scalar_select %p287, %s286, 0
        %s289 = smul.u32 2, %s288
      $region28: #{sp_head_forward.29} parent=23 // pred_fallthru
        _
      // Predicated region
      $region29: #{sp_head_forward.29} parent=23 // pred_check
        %p290 = pneg %p66
      $region30: #{sp_head_forward.29} parent=23 // pred_check_branch
        %292 = sbr.rel (%p290) target = $region32
      $region31: #{sp_head_forward.29} parent=23 // pred_region
        %s293 = smul.u32 2, %s14
        %p294 = scmp.lt.s32.totalorder %s293, 5
        %s295 = scalar_select %p294, %s293, 5
        %s296 = smul.addr %s295, 2
        %s297 = scalar_lea.vmem %s1, %s296
        %s298 = smul.u32 2, %s14
      $region32: #{sp_head_forward.29} parent=23 // pred_fallthru
        _
      // Predicated region
      $region33: #{sp_head_forward.29} parent=23 // pred_check
        %p299 = pneg %p98
      $region34: #{sp_head_forward.29} parent=23 // pred_check_branch
        %301 = sbr.rel (%p299) target = $region36
      $region35: #{sp_head_forward.29} parent=23 // pred_region
        %s302 = sadd.s32 %s14, 1
        %p303 = scmp.lt.s32.totalorder %s302, 2
        %s304 = scalar_select %p303, %s302, 2
        %s305 = smul.u32 2, %s304
        %p306 = scmp.lt.s32.totalorder %s305, 5
        %s307 = scalar_select %p306, %s305, 5
        %s308 = smul.addr %s307, 2
        %s309 = scalar_lea.vmem %s2, %s308
        %s310 = sadd.s32 %s14, 1
        %p311 = scmp.lt.s32.totalorder %s310, 2
        %s312 = scalar_select %p311, %s310, 2
        %s313 = smul.u32 2, %s312
      $region36: #{sp_head_forward.29} parent=23 // pred_fallthru
        _
      // Predicated region
      $region37: #{sp_head_forward.29} parent=23 // pred_check
        %p314 = pneg %p166
      $region38: #{sp_head_forward.29} parent=23 // pred_check_branch
        %316 = sbr.rel (%p314) target = $region40
      $region39: #{sp_head_forward.29} parent=23 // pred_region
        %s317 = smul.u32 2, %s14
        %p318 = scmp.lt.s32.totalorder %s317, 5
        %s319 = scalar_select %p318, %s317, 5
        %s320 = scalar_lea.vmem %s5, %s319
        %s321 = smul.u32 2, %s14
      $region40: #{sp_head_forward.29} parent=23 // pred_fallthru
        _
      // Predicated region
      $region41: #{sp_head_forward.29} parent=23 // pred_check
        %p322 = pneg %p192
      $region42: #{sp_head_forward.29} parent=23 // pred_check_branch
        %324 = sbr.rel (%p322) target = $region44
      $region43: #{sp_head_forward.29} parent=23 // pred_region
        %s325 = smul.u32 2, %s14
        %p326 = scmp.lt.s32.totalorder %s325, 5
        %s327 = scalar_select %p326, %s325, 5
        %s328 = smul.addr %s327, 2
        %s329 = scalar_lea.vmem %s6, %s328
        %s330 = smul.u32 2, %s14
      $region44: #{sp_head_forward.29} parent=23 // pred_fallthru
        _
      // Predicated region
      $region45: #{sp_head_forward.29} parent=23 // pred_check
        %p331 = pneg %p218
      $region46: #{sp_head_forward.29} parent=23 // pred_check_branch
        %333 = sbr.rel (%p331) target = $region48
      $region47: #{sp_head_forward.29} parent=23 // pred_region
        %s334 = smul.u32 2, %s14
        %p335 = scmp.lt.s32.totalorder %s334, 5
        %s336 = scalar_select %p335, %s334, 5
        %s337 = smul.addr %s336, 2
        %s338 = scalar_lea.vmem %s7, %s337
        %s339 = smul.u32 2, %s14
      $region48: #{sp_head_forward.29} parent=23 // pred_fallthru
        _
    $region24: #{sp_head_forward.29} parent=5 // pred_fallthru
      _
    %p340 = scmp.le.s32.totalorder 1, %s14
    %p341 = scmp.lt.s32.totalorder %s14, 4
    %p342 = pnand %p340, %p341
    %p343 = pneg %p342
    // Predicated region
    $region49: #{sp_head_forward.29} parent=5 // pred_check
      _
    $region50: #{sp_head_forward.29} parent=5 // pred_check_branch
      %345 = sbr.rel (%p342) target = $region52
    $region51: #{sp_head_forward.29} parent=5 // pred_region
      %s346 = ssub.s32 %s14, 1
      %s347 = ssub.s32 %s19, 1
      %p348 = scmp.gt.s32.totalorder %s347, 0
      %s349 = scalar_select %p348, %s347, 0
      %s350 = smul.u32 2, %s349
      %p351 = scmp.lt.s32.totalorder %s350, 5
      %s352 = scalar_select %p351, %s350, 5
      %s353 = smul.addr %s352, 2
      %s354 = scalar_lea.vmem %s0, %s353
      %p355 = pneg %p46
      %p356 = pneg %p43
      %s357 = smul.u32 2, %s19
      %p358 = scmp.lt.s32.totalorder %s357, 5
      %s359 = scalar_select %p358, %s357, 5
      %s360 = smul.addr %s359, 2
      %s361 = scalar_lea.vmem %s1, %s360
      %p362 = pneg %p72
      %p363 = pneg %p69
      %s364 = sadd.s32 %s19, 1
      %p365 = scmp.lt.s32.totalorder %s364, 2
      %s366 = scalar_select %p365, %s364, 2
      %s367 = smul.u32 2, %s366
      %p368 = scmp.lt.s32.totalorder %s367, 5
      %s369 = scalar_select %p368, %s367, 5
      %s370 = smul.addr %s369, 2
      %s371 = scalar_lea.vmem %s2, %s370
      %p372 = pneg %p104
      %p373 = pneg %p101
      %p374 = pneg %p125
      %p375 = pneg %p122
      %p376 = pneg %p146
      %p377 = pneg %p143
      %s378 = smul.u32 2, %s19
      %p379 = scmp.lt.s32.totalorder %s378, 5
      %s380 = scalar_select %p379, %s378, 5
      %s381 = scalar_lea.vmem %s5, %s380
      %p382 = pneg %p172
      %p383 = pneg %p169
      %s384 = smul.u32 2, %s19
      %p385 = scmp.lt.s32.totalorder %s384, 5
      %s386 = scalar_select %p385, %s384, 5
      %s387 = smul.addr %s386, 2
      %s388 = scalar_lea.vmem %s6, %s387
      %p389 = pneg %p198
      %p390 = pneg %p195
      %s391 = smul.u32 2, %s19
      %p392 = scmp.lt.s32.totalorder %s391, 5
      %s393 = scalar_select %p392, %s391, 5
      %s394 = smul.addr %s393, 2
      %s395 = scalar_lea.vmem %s7, %s394
      %p396 = pneg %p224
      %p397 = pneg %p221
      %p398 = pneg %p250
      %p399 = pneg %p247
      %s400 = smul.u32 2, %s19
      %p401 = scmp.lt.s32.totalorder %s400, 5
      %s402 = scalar_select %p401, %s400, 5
      %s403 = smul.addr %s402, 2
      %s404 = scalar_lea.vmem %s8, %s403
      %s405 = ssub.s32 %s19, 1
      %p406 = scmp.gt.s32.totalorder %s405, 0
      %s407 = scalar_select %p406, %s405, 0
      %s408 = smul.u32 2, %s407
      %p409 = scmp.lt.s32.totalorder %s408, 5
      %s410 = scalar_select %p409, %s408, 5
      %s411 = smul.addr %s410, 2
      %s412 = scalar_lea.vmem %s0, %s411
      %s413 = ssub.s32 %s19, 1
      %p414 = scmp.gt.s32.totalorder %s413, 0
      %s415 = scalar_select %p414, %s413, 0
      %s416 = smul.u32 2, %s415
      %s417 = smul.u32 2, %s19
      %p418 = scmp.lt.s32.totalorder %s417, 5
      %s419 = scalar_select %p418, %s417, 5
      %s420 = smul.addr %s419, 2
      %s421 = scalar_lea.vmem %s1, %s420
      %s422 = smul.u32 2, %s19
      %s423 = sadd.s32 %s19, 1
      %p424 = scmp.lt.s32.totalorder %s423, 2
      %s425 = scalar_select %p424, %s423, 2
      %s426 = smul.u32 2, %s425
      %p427 = scmp.lt.s32.totalorder %s426, 5
      %s428 = scalar_select %p427, %s426, 5
      %s429 = smul.addr %s428, 2
      %s430 = scalar_lea.vmem %s2, %s429
      %s431 = sadd.s32 %s19, 1
      %p432 = scmp.lt.s32.totalorder %s431, 2
      %s433 = scalar_select %p432, %s431, 2
      %s434 = smul.u32 2, %s433
      %s435 = smul.u32 2, %s19
      %p436 = scmp.lt.s32.totalorder %s435, 5
      %s437 = scalar_select %p436, %s435, 5
      %s438 = scalar_lea.vmem %s5, %s437
      %s439 = smul.u32 2, %s19
      %s440 = smul.u32 2, %s19
      %p441 = scmp.lt.s32.totalorder %s440, 5
      %s442 = scalar_select %p441, %s440, 5
      %s443 = smul.addr %s442, 2
      %s444 = scalar_lea.vmem %s6, %s443
      %s445 = smul.u32 2, %s19
      %s446 = smul.u32 2, %s19
      %p447 = scmp.lt.s32.totalorder %s446, 5
      %s448 = scalar_select %p447, %s446, 5
      %s449 = smul.addr %s448, 2
      %s450 = scalar_lea.vmem %s7, %s449
      %s451 = smul.u32 2, %s19
      %s452 = smul.u32 2, %s19
      %p453 = scmp.lt.s32.totalorder %s452, 5
      %s454 = scalar_select %p453, %s452, 5
      %s455 = smul.addr %s454, 2
      %s456 = scalar_lea.vmem %s8, %s455
      %s457 = smul.u32 2, %s19
      %v459 = vld [vmem:[%s421] sm:$0xf]
      %v460 = vld [vmem:[%s412] sm:$0xf]
      %v461 = vld [vmem:[%s430] sm:$0xf]
      %v462 = vld [vmem:[%s3] sm:$0x3]
      %v465 = vunpack.c.l.s4 1983009808
      %v466 = vunpack.c.0.s8 %v465
      %v467 = vlaneseq
      %v468 = vshrl.u32 %v467, 7
      %v469 = vsub.s32 %v466, %v468
      %v470 = vrot.slane %v460, %v469
      %v471 = vcombine.high %v470, %v470
      %472 = vrot.lane.b32.xlu0 %v471, 19
      %v473 = vpop.permute.xlu0 %472
      %v476 = vunpack.c.l.s4 1983009808
      %v477 = vunpack.c.0.s8 %v476
      %v478 = vlaneseq
      %v479 = vshrl.u32 %v478, 7
      %v480 = vsub.s32 %v477, %v479
      %v481 = vrot.slane %v459, %v480
      %v482 = vcombine.high %v481, %v481
      %483 = vrot.lane.b32.xlu0 %v481, 19
      %v484 = vpop.permute.xlu0 %483
      %485 = vrot.lane.b32.xlu0 %v482, 19
      %v486 = vpop.permute.xlu0 %485
      %vm487 = vcmask 154624
      %v488 = vsel %vm487, %v484, %v486
      %vm489 = vcmask 154624
      %v492 = vsel %vm489, %v473, %v484
      %s493 = scalar_lea.vmem %s3, 2
      %v494 = vld [vmem:[%s493] sm:$0x3]
      %495 = vrot.lane.b32.xlu0 %v471, 18
      %v496 = vpop.permute.xlu0 %495
      %497 = vrot.lane.b32.xlu0 %v481, 18
      %v498 = vpop.permute.xlu0 %497
      %499 = vrot.lane.b32.xlu0 %v482, 18
      %v500 = vpop.permute.xlu0 %499
      %vm501 = vcmask 146432
      %v502 = vsel %vm501, %v498, %v500
      %vm503 = vcmask 146432
      %v506 = vsel %vm503, %v496, %v498
      %vm507 = vcmask 31744
      %v509 = vsel %vm507, %v494, 0
      %vm511 = vcmask 1041408
      %v512 = vsel %vm511, %v506, 0
      %v515 = vsel %vm511, %v502, 0
      %517 = vmatprep.subr.bf16.mxu0 0
      %518 = vmatpush1.bf16.msra.mxu0 0
      %519 = vmatprep.subr.bf16.mxu0 0
      %520 = vmatpush1.bf16.msra.mxu0 0
      %521 = vmatprep.subr.bf16.mxu0 0
      %522 = vmatpush1.bf16.msra.mxu0 0
      %523 = vmatprep.subr.bf16.mxu0 0
      %524 = vmatpush1.bf16.msra.mxu0 0
      %525 = vmatprep.subr.bf16.mxu0 0
      %526 = vmatpush1.bf16.msra.mxu0 0
      %527 = vmatprep.subr.bf16.mxu0 0
      %528 = vmatpush1.bf16.msra.mxu0 0
      %529 = vmatprep.subr.bf16.mxu0 0
      %530 = vmatpush1.bf16.msra.mxu0 0
      %531 = vmatprep.subr.bf16.mxu0 %v515
      %532 = vmatpush1.bf16.msra.mxu0 %v512
      %533 = vmatprep.subr.bf16.mxu0 0
      %534 = vmatpush2.bf16.msra.mxu0 0
      %535 = vmatprep.subr.bf16.mxu0 0
      %536 = vmatpush2.bf16.msra.mxu0 0
      %537 = vmatprep.subr.bf16.mxu0 0
      %538 = vmatpush2.bf16.msra.mxu0 0
      %539 = vmatprep.subr.bf16.mxu0 0
      %540 = vmatpush2.bf16.msra.mxu0 0
      %541 = vmatprep.subr.bf16.mxu0 0
      %542 = vmatpush2.bf16.msra.mxu0 0
      %543 = vmatprep.subr.bf16.mxu0 0
      %544 = vmatpush2.bf16.msra.mxu0 0
      %545 = vmatprep.subr.bf16.mxu0 0
      %546 = vmatpush2.bf16.msra.mxu0 0
      %547 = vmatprep.subr.bf16.mxu0 0
      %548 = vmatpush2.bf16.msra.mxu0 0
      %549 = vmatprep.mubr.bf16.mxu0 0
      %550 = vmatmul.mubr.bf16.gmra.mxu0 %v509
      %v551 = vpop.f32.mrf.mxu0
      %v552 = vadd.f32 0.0, %v551
      %v553 = vpop.f32.mrf.mxu0
      %v554 = vadd.f32 0.0, %v553
      %v555 = vpop.f32.mrf.mxu0
      %v556 = vpop.f32.mrf.mxu0
      %557 = vdwg.mxu0
      %v559 = vsel %vm507, %v462, 0
      %v561 = vsel %vm511, %v492, 0
      %v564 = vsel %vm511, %v488, 0
      %566 = vmatprep.subr.bf16.mxu0 0
      %567 = vmatpush1.bf16.msra.mxu0 0
      %568 = vmatprep.subr.bf16.mxu0 0
      %569 = vmatpush1.bf16.msra.mxu0 0
      %570 = vmatprep.subr.bf16.mxu0 0
      %571 = vmatpush1.bf16.msra.mxu0 0
      %572 = vmatprep.subr.bf16.mxu0 0
      %573 = vmatpush1.bf16.msra.mxu0 0
      %574 = vmatprep.subr.bf16.mxu0 0
      %575 = vmatpush1.bf16.msra.mxu0 0
      %576 = vmatprep.subr.bf16.mxu0 0
      %577 = vmatpush1.bf16.msra.mxu0 0
      %578 = vmatprep.subr.bf16.mxu0 0
      %579 = vmatpush1.bf16.msra.mxu0 0
      %580 = vmatprep.subr.bf16.mxu0 %v564
      %581 = vmatpush1.bf16.msra.mxu0 %v561
      %582 = vmatprep.subr.bf16.mxu0 0
      %583 = vmatpush2.bf16.msra.mxu0 0
      %584 = vmatprep.subr.bf16.mxu0 0
      %585 = vmatpush2.bf16.msra.mxu0 0
      %586 = vmatprep.subr.bf16.mxu0 0
      %587 = vmatpush2.bf16.msra.mxu0 0
      %588 = vmatprep.subr.bf16.mxu0 0
      %589 = vmatpush2.bf16.msra.mxu0 0
      %590 = vmatprep.subr.bf16.mxu0 0
      %591 = vmatpush2.bf16.msra.mxu0 0
      %592 = vmatprep.subr.bf16.mxu0 0
      %593 = vmatpush2.bf16.msra.mxu0 0
      %594 = vmatprep.subr.bf16.mxu0 0
      %595 = vmatpush2.bf16.msra.mxu0 0
      %596 = vmatprep.subr.bf16.mxu0 0
      %597 = vmatpush2.bf16.msra.mxu0 0
      %598 = vmatprep.mubr.bf16.mxu0 0
      %599 = vmatmul.mubr.bf16.gmra.mxu0 %v559
      %v600 = vpop.f32.mrf.mxu0
      %v601 = vadd.f32 %v552, %v600
      %v602 = vpop.f32.mrf.mxu0
      %v603 = vadd.f32 %v554, %v602
      %v604 = vpop.f32.mrf.mxu0
      %v605 = vpop.f32.mrf.mxu0
      %606 = vdwg.mxu0
      %s607 = scalar_lea.vmem %s3, 4
      %v608 = vld [vmem:[%s607] sm:$0x3]
      %609 = vrot.lane.b32.xlu0 %v471, 17
      %v610 = vpop.permute.xlu0 %609
      %611 = vrot.lane.b32.xlu0 %v481, 17
      %v612 = vpop.permute.xlu0 %611
      %613 = vrot.lane.b32.xlu0 %v482, 17
      %v614 = vpop.permute.xlu0 %613
      %vm615 = vcmask 138240
      %v616 = vsel %vm615, %v612, %v614
      %vm617 = vcmask 138240
      %v620 = vsel %vm617, %v610, %v612
      %v622 = vsel %vm507, %v608, 0
      %v624 = vsel %vm511, %v620, 0
      %v627 = vsel %vm511, %v616, 0
      %629 = vmatprep.subr.bf16.mxu0 0
      %630 = vmatpush1.bf16.msra.mxu0 0
      %631 = vmatprep.subr.bf16.mxu0 0
      %632 = vmatpush1.bf16.msra.mxu0 0
      %633 = vmatprep.subr.bf16.mxu0 0
      %634 = vmatpush1.bf16.msra.mxu0 0
      %635 = vmatprep.subr.bf16.mxu0 0
      %636 = vmatpush1.bf16.msra.mxu0 0
      %637 = vmatprep.subr.bf16.mxu0 0
      %638 = vmatpush1.bf16.msra.mxu0 0
      %639 = vmatprep.subr.bf16.mxu0 0
      %640 = vmatpush1.bf16.msra.mxu0 0
      %641 = vmatprep.subr.bf16.mxu0 0
      %642 = vmatpush1.bf16.msra.mxu0 0
      %643 = vmatprep.subr.bf16.mxu0 %v627
      %644 = vmatpush1.bf16.msra.mxu0 %v624
      %645 = vmatprep.subr.bf16.mxu0 0
      %646 = vmatpush2.bf16.msra.mxu0 0
      %647 = vmatprep.subr.bf16.mxu0 0
      %648 = vmatpush2.bf16.msra.mxu0 0
      %649 = vmatprep.subr.bf16.mxu0 0
      %650 = vmatpush2.bf16.msra.mxu0 0
      %651 = vmatprep.subr.bf16.mxu0 0
      %652 = vmatpush2.bf16.msra.mxu0 0
      %653 = vmatprep.subr.bf16.mxu0 0
      %654 = vmatpush2.bf16.msra.mxu0 0
      %655 = vmatprep.subr.bf16.mxu0 0
      %656 = vmatpush2.bf16.msra.mxu0 0
      %657 = vmatprep.subr.bf16.mxu0 0
      %658 = vmatpush2.bf16.msra.mxu0 0
      %659 = vmatprep.subr.bf16.mxu0 0
      %660 = vmatpush2.bf16.msra.mxu0 0
      %661 = vmatprep.mubr.bf16.mxu0 0
      %662 = vmatmul.mubr.bf16.gmra.mxu0 %v622
      %v663 = vpop.f32.mrf.mxu0
      %v664 = vadd.f32 0.0, %v663
      %v665 = vpop.f32.mrf.mxu0
      %v666 = vadd.f32 0.0, %v665
      %v667 = vpop.f32.mrf.mxu0
      %v668 = vpop.f32.mrf.mxu0
      %669 = vdwg.mxu0
      %v670 = vadd.f32 %v601, %v664
      %v671 = vadd.f32 %v603, %v666
      %s672 = scalar_lea.vmem %s3, 6
      %v673 = vld [vmem:[%s672] sm:$0x3]
      %674 = vrot.lane.b32.xlu0 %v471, 1
      %v675 = vpop.permute.xlu0 %674
      %676 = vrot.lane.b32.xlu0 %v481, 1
      %v677 = vpop.permute.xlu0 %676
      %678 = vrot.lane.b32.xlu0 %v482, 1
      %v679 = vpop.permute.xlu0 %678
      %vm680 = vcmask 7168
      %v681 = vsel %vm680, %v677, %v679
      %vm682 = vcmask 7168
      %v685 = vsel %vm682, %v675, %v677
      %v687 = vsel %vm507, %v673, 0
      %v689 = vsel %vm511, %v685, 0
      %v692 = vsel %vm511, %v681, 0
      %694 = vmatprep.subr.bf16.mxu0 0
      %695 = vmatpush1.bf16.msra.mxu0 0
      %696 = vmatprep.subr.bf16.mxu0 0
      %697 = vmatpush1.bf16.msra.mxu0 0
      %698 = vmatprep.subr.bf16.mxu0 0
      %699 = vmatpush1.bf16.msra.mxu0 0
      %700 = vmatprep.subr.bf16.mxu0 0
      %701 = vmatpush1.bf16.msra.mxu0 0
      %702 = vmatprep.subr.bf16.mxu0 0
      %703 = vmatpush1.bf16.msra.mxu0 0
      %704 = vmatprep.subr.bf16.mxu0 0
      %705 = vmatpush1.bf16.msra.mxu0 0
      %706 = vmatprep.subr.bf16.mxu0 0
      %707 = vmatpush1.bf16.msra.mxu0 0
      %708 = vmatprep.subr.bf16.mxu0 %v692
      %709 = vmatpush1.bf16.msra.mxu0 %v689
      %710 = vmatprep.subr.bf16.mxu0 0
      %711 = vmatpush2.bf16.msra.mxu0 0
      %712 = vmatprep.subr.bf16.mxu0 0
      %713 = vmatpush2.bf16.msra.mxu0 0
      %714 = vmatprep.subr.bf16.mxu0 0
      %715 = vmatpush2.bf16.msra.mxu0 0
      %716 = vmatprep.subr.bf16.mxu0 0
      %717 = vmatpush2.bf16.msra.mxu0 0
      %718 = vmatprep.subr.bf16.mxu0 0
      %719 = vmatpush2.bf16.msra.mxu0 0
      %720 = vmatprep.subr.bf16.mxu0 0
      %721 = vmatpush2.bf16.msra.mxu0 0
      %722 = vmatprep.subr.bf16.mxu0 0
      %723 = vmatpush2.bf16.msra.mxu0 0
      %724 = vmatprep.subr.bf16.mxu0 0
      %725 = vmatpush2.bf16.msra.mxu0 0
      %726 = vmatprep.mubr.bf16.mxu0 0
      %727 = vmatmul.mubr.bf16.gmra.mxu0 %v687
      %v728 = vpop.f32.mrf.mxu0
      %v729 = vadd.f32 0.0, %v728
      %v730 = vpop.f32.mrf.mxu0
      %v731 = vadd.f32 0.0, %v730
      %v732 = vpop.f32.mrf.mxu0
      %v733 = vpop.f32.mrf.mxu0
      %734 = vdwg.mxu0
      %v735 = vadd.f32 %v670, %v729
      %v736 = vadd.f32 %v671, %v731
      %s737 = scalar_lea.vmem %s3, 8
      %v738 = vld [vmem:[%s737] sm:$0x3]
      %v740 = vsel %vm507, %v738, 0
      %v743 = vsel %vm511, %v481, 0
      %v746 = vsel %vm511, %v482, 0
      %748 = vmatprep.subr.bf16.mxu0 0
      %749 = vmatpush1.bf16.msra.mxu0 0
      %750 = vmatprep.subr.bf16.mxu0 0
      %751 = vmatpush1.bf16.msra.mxu0 0
      %752 = vmatprep.subr.bf16.mxu0 0
      %753 = vmatpush1.bf16.msra.mxu0 0
      %754 = vmatprep.subr.bf16.mxu0 0
      %755 = vmatpush1.bf16.msra.mxu0 0
      %756 = vmatprep.subr.bf16.mxu0 0
      %757 = vmatpush1.bf16.msra.mxu0 0
      %758 = vmatprep.subr.bf16.mxu0 0
      %759 = vmatpush1.bf16.msra.mxu0 0
      %760 = vmatprep.subr.bf16.mxu0 0
      %761 = vmatpush1.bf16.msra.mxu0 0
      %762 = vmatprep.subr.bf16.mxu0 %v746
      %763 = vmatpush1.bf16.msra.mxu0 %v743
      %764 = vmatprep.subr.bf16.mxu0 0
      %765 = vmatpush2.bf16.msra.mxu0 0
      %766 = vmatprep.subr.bf16.mxu0 0
      %767 = vmatpush2.bf16.msra.mxu0 0
      %768 = vmatprep.subr.bf16.mxu0 0
      %769 = vmatpush2.bf16.msra.mxu0 0
      %770 = vmatprep.subr.bf16.mxu0 0
      %771 = vmatpush2.bf16.msra.mxu0 0
      %772 = vmatprep.subr.bf16.mxu0 0
      %773 = vmatpush2.bf16.msra.mxu0 0
      %774 = vmatprep.subr.bf16.mxu0 0
      %775 = vmatpush2.bf16.msra.mxu0 0
      %776 = vmatprep.subr.bf16.mxu0 0
      %777 = vmatpush2.bf16.msra.mxu0 0
      %778 = vmatprep.subr.bf16.mxu0 0
      %779 = vmatpush2.bf16.msra.mxu0 0
      %780 = vmatprep.mubr.bf16.mxu0 0
      %781 = vmatmul.mubr.bf16.gmra.mxu0 %v740
      %v782 = vpop.f32.mrf.mxu0
      %v783 = vadd.f32 0.0, %v782
      %v784 = vpop.f32.mrf.mxu0
      %v785 = vadd.f32 0.0, %v784
      %v786 = vpop.f32.mrf.mxu0
      %v787 = vpop.f32.mrf.mxu0
      %788 = vdwg.mxu0
      %v789 = vadd.f32 %v735, %v783
      %v790 = vadd.f32 %v736, %v785
      %s791 = scalar_lea.vmem %s3, 10
      %v792 = vld [vmem:[%s791] sm:$0x3]
      %793 = vrot.lane.b32.xlu0 %v481, 127
      %v794 = vpop.permute.xlu0 %793
      %795 = vrot.lane.b32.xlu0 %v482, 127
      %v796 = vpop.permute.xlu0 %795
      %vm797 = vcmask 1039360
      %v798 = vsel %vm797, %v794, %v796
      %v801 = vunpack.c.l.s4 1983009808
      %v802 = vunpack.c.0.s8 %v801
      %v803 = vlaneseq
      %v804 = vshrl.u32 %v803, 7
      %v805 = vsub.s32 %v802, %v804
      %v806 = vrot.slane %v461, %v805
      %807 = vrot.lane.b32.xlu0 %v806, 127
      %v808 = vpop.permute.xlu0 %807
      %vm809 = vcmask 1039360
      %v812 = vsel %vm809, %v796, %v808
      %v814 = vsel %vm507, %v792, 0
      %v817 = vsel %vm511, %v798, 0
      %v819 = vsel %vm511, %v812, 0
      %821 = vmatprep.subr.bf16.mxu0 0
      %822 = vmatpush1.bf16.msra.mxu0 0
      %823 = vmatprep.subr.bf16.mxu0 0
      %824 = vmatpush1.bf16.msra.mxu0 0
      %825 = vmatprep.subr.bf16.mxu0 0
      %826 = vmatpush1.bf16.msra.mxu0 0
      %827 = vmatprep.subr.bf16.mxu0 0
      %828 = vmatpush1.bf16.msra.mxu0 0
      %829 = vmatprep.subr.bf16.mxu0 0
      %830 = vmatpush1.bf16.msra.mxu0 0
      %831 = vmatprep.subr.bf16.mxu0 0
      %832 = vmatpush1.bf16.msra.mxu0 0
      %833 = vmatprep.subr.bf16.mxu0 0
      %834 = vmatpush1.bf16.msra.mxu0 0
      %835 = vmatprep.subr.bf16.mxu0 %v819
      %836 = vmatpush1.bf16.msra.mxu0 %v817
      %837 = vmatprep.subr.bf16.mxu0 0
      %838 = vmatpush2.bf16.msra.mxu0 0
      %839 = vmatprep.subr.bf16.mxu0 0
      %840 = vmatpush2.bf16.msra.mxu0 0
      %841 = vmatprep.subr.bf16.mxu0 0
      %842 = vmatpush2.bf16.msra.mxu0 0
      %843 = vmatprep.subr.bf16.mxu0 0
      %844 = vmatpush2.bf16.msra.mxu0 0
      %845 = vmatprep.subr.bf16.mxu0 0
      %846 = vmatpush2.bf16.msra.mxu0 0
      %847 = vmatprep.subr.bf16.mxu0 0
      %848 = vmatpush2.bf16.msra.mxu0 0
      %849 = vmatprep.subr.bf16.mxu0 0
      %850 = vmatpush2.bf16.msra.mxu0 0
      %851 = vmatprep.subr.bf16.mxu0 0
      %852 = vmatpush2.bf16.msra.mxu0 0
      %853 = vmatprep.mubr.bf16.mxu0 0
      %854 = vmatmul.mubr.bf16.gmra.mxu0 %v814
      %v855 = vpop.f32.mrf.mxu0
      %v856 = vadd.f32 0.0, %v855
      %v857 = vpop.f32.mrf.mxu0
      %v858 = vadd.f32 0.0, %v857
      %v859 = vpop.f32.mrf.mxu0
      %v860 = vpop.f32.mrf.mxu0
      %861 = vdwg.mxu0
      %v862 = vadd.f32 %v789, %v856
      %v863 = vadd.f32 %v790, %v858
      %s864 = scalar_lea.vmem %s3, 12
      %v865 = vld [vmem:[%s864] sm:$0x3]
      %866 = vrot.lane.b32.xlu0 %v481, 111
      %v867 = vpop.permute.xlu0 %866
      %868 = vrot.lane.b32.xlu0 %v482, 111
      %v869 = vpop.permute.xlu0 %868
      %vm870 = vcmask 908288
      %v871 = vsel %vm870, %v867, %v869
      %872 = vrot.lane.b32.xlu0 %v806, 111
      %v873 = vpop.permute.xlu0 %872
      %vm874 = vcmask 908288
      %v877 = vsel %vm874, %v869, %v873
      %v879 = vsel %vm507, %v865, 0
      %v882 = vsel %vm511, %v871, 0
      %v884 = vsel %vm511, %v877, 0
      %886 = vmatprep.subr.bf16.mxu0 0
      %887 = vmatpush1.bf16.msra.mxu0 0
      %888 = vmatprep.subr.bf16.mxu0 0
      %889 = vmatpush1.bf16.msra.mxu0 0
      %890 = vmatprep.subr.bf16.mxu0 0
      %891 = vmatpush1.bf16.msra.mxu0 0
      %892 = vmatprep.subr.bf16.mxu0 0
      %893 = vmatpush1.bf16.msra.mxu0 0
      %894 = vmatprep.subr.bf16.mxu0 0
      %895 = vmatpush1.bf16.msra.mxu0 0
      %896 = vmatprep.subr.bf16.mxu0 0
      %897 = vmatpush1.bf16.msra.mxu0 0
      %898 = vmatprep.subr.bf16.mxu0 0
      %899 = vmatpush1.bf16.msra.mxu0 0
      %900 = vmatprep.subr.bf16.mxu0 %v884
      %901 = vmatpush1.bf16.msra.mxu0 %v882
      %902 = vmatprep.subr.bf16.mxu0 0
      %903 = vmatpush2.bf16.msra.mxu0 0
      %904 = vmatprep.subr.bf16.mxu0 0
      %905 = vmatpush2.bf16.msra.mxu0 0
      %906 = vmatprep.subr.bf16.mxu0 0
      %907 = vmatpush2.bf16.msra.mxu0 0
      %908 = vmatprep.subr.bf16.mxu0 0
      %909 = vmatpush2.bf16.msra.mxu0 0
      %910 = vmatprep.subr.bf16.mxu0 0
      %911 = vmatpush2.bf16.msra.mxu0 0
      %912 = vmatprep.subr.bf16.mxu0 0
      %913 = vmatpush2.bf16.msra.mxu0 0
      %914 = vmatprep.subr.bf16.mxu0 0
      %915 = vmatpush2.bf16.msra.mxu0 0
      %916 = vmatprep.subr.bf16.mxu0 0
      %917 = vmatpush2.bf16.msra.mxu0 0
      %918 = vmatprep.mubr.bf16.mxu0 0
      %919 = vmatmul.mubr.bf16.gmra.mxu0 %v879
      %v920 = vpop.f32.mrf.mxu0
      %v921 = vadd.f32 0.0, %v920
      %v922 = vpop.f32.mrf.mxu0
      %v923 = vadd.f32 0.0, %v922
      %v924 = vpop.f32.mrf.mxu0
      %v925 = vpop.f32.mrf.mxu0
      %926 = vdwg.mxu0
      %v927 = vadd.f32 %v862, %v921
      %v928 = vadd.f32 %v863, %v923
      %s929 = scalar_lea.vmem %s3, 14
      %v930 = vld [vmem:[%s929] sm:$0x3]
      %931 = vrot.lane.b32.xlu0 %v481, 110
      %v932 = vpop.permute.xlu0 %931
      %933 = vrot.lane.b32.xlu0 %v482, 110
      %v934 = vpop.permute.xlu0 %933
      %vm935 = vcmask 900096
      %v936 = vsel %vm935, %v932, %v934
      %937 = vrot.lane.b32.xlu0 %v806, 110
      %v938 = vpop.permute.xlu0 %937
      %vm939 = vcmask 900096
      %v942 = vsel %vm939, %v934, %v938
      %v944 = vsel %vm507, %v930, 0
      %v947 = vsel %vm511, %v936, 0
      %v949 = vsel %vm511, %v942, 0
      %951 = vmatprep.subr.bf16.mxu0 0
      %952 = vmatpush1.bf16.msra.mxu0 0
      %953 = vmatprep.subr.bf16.mxu0 0
      %954 = vmatpush1.bf16.msra.mxu0 0
      %955 = vmatprep.subr.bf16.mxu0 0
      %956 = vmatpush1.bf16.msra.mxu0 0
      %957 = vmatprep.subr.bf16.mxu0 0
      %958 = vmatpush1.bf16.msra.mxu0 0
      %959 = vmatprep.subr.bf16.mxu0 0
      %960 = vmatpush1.bf16.msra.mxu0 0
      %961 = vmatprep.subr.bf16.mxu0 0
      %962 = vmatpush1.bf16.msra.mxu0 0
      %963 = vmatprep.subr.bf16.mxu0 0
      %964 = vmatpush1.bf16.msra.mxu0 0
      %965 = vmatprep.subr.bf16.mxu0 %v949
      %966 = vmatpush1.bf16.msra.mxu0 %v947
      %967 = vmatprep.subr.bf16.mxu0 0
      %968 = vmatpush2.bf16.msra.mxu0 0
      %969 = vmatprep.subr.bf16.mxu0 0
      %970 = vmatpush2.bf16.msra.mxu0 0
      %971 = vmatprep.subr.bf16.mxu0 0
      %972 = vmatpush2.bf16.msra.mxu0 0
      %973 = vmatprep.subr.bf16.mxu0 0
      %974 = vmatpush2.bf16.msra.mxu0 0
      %975 = vmatprep.subr.bf16.mxu0 0
      %976 = vmatpush2.bf16.msra.mxu0 0
      %977 = vmatprep.subr.bf16.mxu0 0
      %978 = vmatpush2.bf16.msra.mxu0 0
      %979 = vmatprep.subr.bf16.mxu0 0
      %980 = vmatpush2.bf16.msra.mxu0 0
      %981 = vmatprep.subr.bf16.mxu0 0
      %982 = vmatpush2.bf16.msra.mxu0 0
      %983 = vmatprep.mubr.bf16.mxu0 0
      %984 = vmatmul.mubr.bf16.gmra.mxu0 %v944
      %v985 = vpop.f32.mrf.mxu0
      %v986 = vadd.f32 0.0, %v985
      %v987 = vpop.f32.mrf.mxu0
      %v988 = vadd.f32 0.0, %v987
      %v989 = vpop.f32.mrf.mxu0
      %v990 = vpop.f32.mrf.mxu0
      %991 = vdwg.mxu0
      %v992 = vadd.f32 %v927, %v986
      %v993 = vadd.f32 %v928, %v988
      %s994 = scalar_lea.vmem %s3, 16
      %v995 = vld [vmem:[%s994] sm:$0x3]
      %996 = vrot.lane.b32.xlu0 %v481, 109
      %v997 = vpop.permute.xlu0 %996
      %998 = vrot.lane.b32.xlu0 %v482, 109
      %v999 = vpop.permute.xlu0 %998
      %vm1000 = vcmask 891904
      %v1001 = vsel %vm1000, %v997, %v999
      %1002 = vrot.lane.b32.xlu0 %v806, 109
      %v1003 = vpop.permute.xlu0 %1002
      %vm1004 = vcmask 891904
      %v1007 = vsel %vm1004, %v999, %v1003
      %v1009 = vsel %vm507, %v995, 0
      %v1012 = vsel %vm511, %v1001, 0
      %v1014 = vsel %vm511, %v1007, 0
      %1016 = vmatprep.subr.bf16.mxu0 0
      %1017 = vmatpush1.bf16.msra.mxu0 0
      %1018 = vmatprep.subr.bf16.mxu0 0
      %1019 = vmatpush1.bf16.msra.mxu0 0
      %1020 = vmatprep.subr.bf16.mxu0 0
      %1021 = vmatpush1.bf16.msra.mxu0 0
      %1022 = vmatprep.subr.bf16.mxu0 0
      %1023 = vmatpush1.bf16.msra.mxu0 0
      %1024 = vmatprep.subr.bf16.mxu0 0
      %1025 = vmatpush1.bf16.msra.mxu0 0
      %1026 = vmatprep.subr.bf16.mxu0 0
      %1027 = vmatpush1.bf16.msra.mxu0 0
      %1028 = vmatprep.subr.bf16.mxu0 0
      %1029 = vmatpush1.bf16.msra.mxu0 0
      %1030 = vmatprep.subr.bf16.mxu0 %v1014
      %1031 = vmatpush1.bf16.msra.mxu0 %v1012
      %1032 = vmatprep.subr.bf16.mxu0 0
      %1033 = vmatpush2.bf16.msra.mxu0 0
      %1034 = vmatprep.subr.bf16.mxu0 0
      %1035 = vmatpush2.bf16.msra.mxu0 0
      %1036 = vmatprep.subr.bf16.mxu0 0
      %1037 = vmatpush2.bf16.msra.mxu0 0
      %1038 = vmatprep.subr.bf16.mxu0 0
      %1039 = vmatpush2.bf16.msra.mxu0 0
      %1040 = vmatprep.subr.bf16.mxu0 0
      %1041 = vmatpush2.bf16.msra.mxu0 0
      %1042 = vmatprep.subr.bf16.mxu0 0
      %1043 = vmatpush2.bf16.msra.mxu0 0
      %1044 = vmatprep.subr.bf16.mxu0 0
      %1045 = vmatpush2.bf16.msra.mxu0 0
      %1046 = vmatprep.subr.bf16.mxu0 0
      %1047 = vmatpush2.bf16.msra.mxu0 0
      %1048 = vmatprep.mubr.bf16.mxu0 0
      %1049 = vmatmul.mubr.bf16.gmra.mxu0 %v1009
      %v1050 = vpop.f32.mrf.mxu0
      %v1051 = vadd.f32 0.0, %v1050
      %v1052 = vpop.f32.mrf.mxu0
      %v1053 = vadd.f32 0.0, %v1052
      %v1054 = vpop.f32.mrf.mxu0
      %v1055 = vpop.f32.mrf.mxu0
      %1056 = vdwg.mxu0
      %v1057 = vadd.f32 %v992, %v1051
      %v1058 = vadd.f32 %v993, %v1053
      %v1059 = vld [vmem:[%s4] sm:$0xf]
      %1061 = vset.pattern.permute.xlu0 0
      %1062 = vperm.xlu0 %1061, %v1059
      %v1063 = vpop.permute.xlu0 %1062
      %v1065 = vadd.f32 %v1057, %v1063
      %v1066 = vadd.f32 %v1058, %v1063
      %v1067 = vld [vmem:[%s444] sm:$0xf]
      %v1068 = vunpack.c.l.bf16 %v1067
      %v1070 = vcombine.high %v1068, %v1068
      %v1072 = vadd.f32 %v1065, %v1068
      %v1073 = vadd.f32 %v1066, %v1070
      %v1074 = vld [vmem:[%s450] sm:$0xf]
      %v1075 = vunpack.c.l.bf16 %v1074
      %v1077 = vcombine.high %v1075, %v1075
      %v1079 = vadd.f32 %v1072, %v1075
      %v1080 = vadd.f32 %v1073, %v1077
      %v1081 = vmax.f32 %v1079, 0.0
      %v1082 = vmax.f32 %v1080, 0.0
      %v1083 = vld [vmem:[%s438] sm:$0x3]
      %v1085 = vlaneseq
      %v1086 = vshrl.u32 %v1085, 7
      %v1087 = vsub.s32 0, %v1086
      %v1088 = vrot.slane %v1083, %v1087
      %v1089 = vlaneseq
      %v1090 = vshrl.u32 %v1089, 7
      %v1091 = vsub.s32 1, %v1090
      %v1092 = vrot.slane %v1083, %v1091
      %v1095 = vmul.f32 %v1081, %v1088
      %v1096 = vmul.f32 %v1082, %v1092
      %v1097 = vpack.c.bf16 %v1095, %v1095
      %v1098 = vpack.c.bf16 %v1096, %v1096
      %v1101 = vcombine.low %v1097, %v1098
      %v1103 = vunpack.c.l.s4 1983009808
      %v1104 = vunpack.c.0.s8 %v1103
      %v1105 = vlaneseq
      %v1106 = vshrl.u32 %v1105, 7
      %v1107 = vsub.s32 %v1104, %v1106
      %v1108 = vrot.slane %v1101, %v1107
      %1110 = vst [vmem:[%s456] sm:$0xf] %v1108
      %s1111 = smul.u32 2, %s19
      %p1112 = scmp.lt.s32.totalorder %s1111, 5
      %s1113 = scalar_select %p1112, %s1111, 5
      %s1114 = smul.addr %s1113, 2
      %s1115 = scalar_lea.vmem %s8, %s1114
      // Predicated region
      $region53: #{sp_head_forward.29} parent=51 // pred_check
        %p1116 = pneg %p247
      $region54: #{sp_head_forward.29} parent=51 // pred_check_branch
        %1118 = sbr.rel (%p1116) target = $region56
      $region55: #{sp_head_forward.29} parent=51 // pred_region
        %s1119 = smul.u32 2, %s19
      $region56: #{sp_head_forward.29} parent=51 // pred_fallthru
        _
    $region52: #{sp_head_forward.29} parent=5 // pred_fallthru
      _
    %p1120 = scmp.le.s32.totalorder 2, %s14
    // Predicated region
    $region57: #{sp_head_forward.29} parent=5 // pred_check
      %p1121 = pneg %p1120
    $region58: #{sp_head_forward.29} parent=5 // pred_check_branch
      %1123 = sbr.rel (%p1121) target = $region60
    $region59: #{sp_head_forward.29} parent=5 // pred_region
      %s1124 = ssub.s32 %s14, 2
      // Predicated region
      $region61: #{sp_head_forward.29} parent=59 // pred_check
        %p1125 = pneg %p253
      $region62: #{sp_head_forward.29} parent=59 // pred_check_branch
        %1127 = sbr.rel (%p1125) target = $region64
      $region63: #{sp_head_forward.29} parent=59 // pred_region
        %s1128 = smul.u32 2, %s20
        %p1129 = scmp.lt.s32.totalorder %s1128, 5
        %s1130 = scalar_select %p1129, %s1128, 5
        %s1131 = smul.addr %s1130, 2
        %s1132 = scalar_lea.vmem %s8, %s1131
      $region64: #{sp_head_forward.29} parent=59 // pred_fallthru
        _
    $region60: #{sp_head_forward.29} parent=5 // pred_fallthru
      _
  $region6: #{sp_head_forward.29} parent=0 // loop_footer
    %s18 = sadd.s32 1, %s14
  $region7: #{sp_head_forward.29} parent=0 // loop_footer_branch
    %13 = sbr.rel target = $region3
  $region8: #{sp_head_forward.29} parent=0 // loop_exit
    _

// kernel: sp_head_forward.28
$region0: #{sp_head_forward.28}
  #allocation0 [shape = 'u32[]', space=smem, size = 0x4, offset = 0x4, fixed_abs, tag = 'smem constant byte address 0x4 - core index']
  #allocation1 [shape = 'u32[144,128]{1,0:T(1,128)}', space=vmem, size = 0x12000, scoped, tag = 'internal scratch']
  %s0 = inlined_call_operand.vmem [shape: bf16[4,256], index: 0, kind: input, shape index: {}, may-alias: {0,1,2}]
  %s1 = inlined_call_operand.vmem [shape: bf16[4,256], index: 1, kind: input, shape index: {}, may-alias: {0,1,2}]
  %s2 = inlined_call_operand.vmem [shape: bf16[4,256], index: 2, kind: input, shape index: {}, may-alias: {0,1,2}]
  %s3 = inlined_call_operand.vmem [shape: bf16[3,4,4], index: 3, kind: input, shape index: {}]
  %s4 = inlined_call_operand.vmem [shape: f32[4,1], index: 4, kind: input, shape index: {}]
  %s5 = inlined_call_operand.vmem [shape: f32[1,256], index: 5, kind: input, shape index: {}]
  %s6 = inlined_call_operand.vmem [shape: bf16[4,256], index: 6, kind: output, shape index: {}]
  %s7 = sld [smem:[#allocation0]]
  $region34: #{sp_head_forward.28} parent=0
    _
  %s9 = ssub.s32 1, %s7
  %s10 = scalar_select 0, %s9, %s7
  // Predicated region
  $region2: #{sp_head_forward.28} parent=0 // pred_check
    _
  $region3: #{sp_head_forward.28} parent=0 // pred_check_branch
    %12 = sbr.rel (0) target = $region5
  $region4: #{sp_head_forward.28} parent=0 // pred_region
    %s13 = ssub.s32 0, 1
    %p14 = scmp.gt.s32.totalorder %s13, 0
    %s15 = scalar_select %p14, %s13, 0
    %s16 = smul.u32 2, %s15
    %p17 = scmp.lt.s32.totalorder %s16, 1
    %s18 = scalar_select %p17, %s16, 1
    %s19 = smul.addr %s18, 2
    %s20 = scalar_lea.vmem %s0, %s19
    %s21 = ssub.s32 0, 1
    %p22 = scmp.gt.s32.totalorder %s21, 0
    %s23 = scalar_select %p22, %s21, 0
    %s24 = smul.u32 2, %s23
  $region5: #{sp_head_forward.28} parent=0 // pred_fallthru
    _
  // Predicated region
  $region6: #{sp_head_forward.28} parent=0 // pred_check
    _
  $region7: #{sp_head_forward.28} parent=0 // pred_check_branch
    %26 = sbr.rel (0) target = $region9
  $region8: #{sp_head_forward.28} parent=0 // pred_region
    _
  $region9: #{sp_head_forward.28} parent=0 // pred_fallthru
    _
  // Predicated region
  $region10: #{sp_head_forward.28} parent=0 // pred_check
    _
  $region11: #{sp_head_forward.28} parent=0 // pred_check_branch
    %28 = sbr.rel (0) target = $region13
  $region12: #{sp_head_forward.28} parent=0 // pred_region
    %s29 = sadd.s32 0, 1
    %p30 = scmp.lt.s32.totalorder %s29, 0
    %s31 = scalar_select %p30, %s29, 0
    %s32 = smul.u32 2, %s31
    %p33 = scmp.lt.s32.totalorder %s32, 1
    %s34 = scalar_select %p33, %s32, 1
    %s35 = smul.addr %s34, 2
    %s36 = scalar_lea.vmem %s2, %s35
    %s37 = sadd.s32 0, 1
    %p38 = scmp.lt.s32.totalorder %s37, 0
    %s39 = scalar_select %p38, %s37, 0
    %s40 = smul.u32 2, %s39
  $region13: #{sp_head_forward.28} parent=0 // pred_fallthru
    _
  // Predicated region
  $region14: #{sp_head_forward.28} parent=0 // pred_check
    _
  $region15: #{sp_head_forward.28} parent=0 // pred_check_branch
    %42 = sbr.rel (0) target = $region17
  $region16: #{sp_head_forward.28} parent=0 // pred_region
    _
  $region17: #{sp_head_forward.28} parent=0 // pred_fallthru
    _
  // Predicated region
  $region18: #{sp_head_forward.28} parent=0 // pred_check
    _
  $region19: #{sp_head_forward.28} parent=0 // pred_check_branch
    %44 = sbr.rel (0) target = $region21
  $region20: #{sp_head_forward.28} parent=0 // pred_region
    _
  $region21: #{sp_head_forward.28} parent=0 // pred_fallthru
    _
  // Predicated region
  $region22: #{sp_head_forward.28} parent=0 // pred_check
    _
  $region23: #{sp_head_forward.28} parent=0 // pred_check_branch
    %46 = sbr.rel (0) target = $region25
  $region24: #{sp_head_forward.28} parent=0 // pred_region
    _
  $region25: #{sp_head_forward.28} parent=0 // pred_fallthru
    _
  %s47 = ssub.s32 0, 1
  %p48 = scmp.gt.s32.totalorder %s47, 0
  %s49 = scalar_select %p48, %s47, 0
  %s50 = smul.u32 2, %s49
  %p51 = scmp.lt.s32.totalorder %s50, 1
  %s52 = scalar_select %p51, %s50, 1
  %s53 = smul.addr %s52, 2
  %s54 = scalar_lea.vmem %s0, %s53
  %s55 = sadd.s32 0, 1
  %p56 = scmp.lt.s32.totalorder %s55, 0
  %s57 = scalar_select %p56, %s55, 0
  %s58 = smul.u32 2, %s57
  %p59 = scmp.lt.s32.totalorder %s58, 1
  %s60 = scalar_select %p59, %s58, 1
  %s61 = smul.addr %s60, 2
  %s62 = scalar_lea.vmem %s2, %s61
  %s63 = ssub.s32 0, 1
  %p64 = scmp.gt.s32.totalorder %s63, 0
  %s65 = scalar_select %p64, %s63, 0
  %s66 = smul.u32 2, %s65
  %p67 = scmp.lt.s32.totalorder %s66, 1
  %s68 = scalar_select %p67, %s66, 1
  %s69 = smul.addr %s68, 2
  %s70 = scalar_lea.vmem %s0, %s69
  %s71 = ssub.s32 0, 1
  %p72 = scmp.gt.s32.totalorder %s71, 0
  %s73 = scalar_select %p72, %s71, 0
  %s74 = smul.u32 2, %s73
  %s75 = sadd.s32 0, 1
  %p76 = scmp.lt.s32.totalorder %s75, 0
  %s77 = scalar_select %p76, %s75, 0
  %s78 = smul.u32 2, %s77
  %p79 = scmp.lt.s32.totalorder %s78, 1
  %s80 = scalar_select %p79, %s78, 1
  %s81 = smul.addr %s80, 2
  %s82 = scalar_lea.vmem %s2, %s81
  %s83 = sadd.s32 0, 1
  %p84 = scmp.lt.s32.totalorder %s83, 0
  %s85 = scalar_select %p84, %s83, 0
  %s86 = smul.u32 2, %s85
  %v88 = vld [vmem:[%s1] sm:$0xf]
  %v89 = vld [vmem:[%s70] sm:$0xf]
  %v90 = vld [vmem:[%s82] sm:$0xf]
  %v91 = vld [vmem:[%s3] sm:$0x3]
  %v94 = vunpack.c.l.s4 1983009808
  %v95 = vunpack.c.0.s8 %v94
  %v96 = vlaneseq
  %v97 = vshrl.u32 %v96, 7
  %v98 = vsub.s32 %v95, %v97
  %v99 = vrot.slane %v89, %v98
  %v100 = vcombine.high %v99, %v99
  %101 = vrot.lane.b32.xlu0 %v100, 3
  %v102 = vpop.permute.xlu0 %101
  %v105 = vunpack.c.l.s4 1983009808
  %v106 = vunpack.c.0.s8 %v105
  %v107 = vlaneseq
  %v108 = vshrl.u32 %v107, 7
  %v109 = vsub.s32 %v106, %v108
  %v110 = vrot.slane %v88, %v109
  %v111 = vcombine.high %v110, %v110
  %112 = vrot.lane.b32.xlu0 %v110, 3
  %v113 = vpop.permute.xlu0 %112
  %114 = vrot.lane.b32.xlu0 %v111, 3
  %v115 = vpop.permute.xlu0 %114
  %vm116 = vcmask 23552
  %v117 = vsel %vm116, %v113, %v115
  %vm118 = vcmask 23552
  %v121 = vsel %vm118, %v102, %v113
  %s122 = scalar_lea.vmem %s3, 2
  %v123 = vld [vmem:[%s122] sm:$0x3]
  %vm124 = vcmask 31744
  %v126 = vsel %vm124, %v123, 0
  %vm128 = vcmask 1041408
  %v130 = vsel %vm128, %v110, 0
  %v133 = vsel %vm128, %v111, 0
  %135 = vmatprep.subr.bf16.mxu0 0
  %136 = vmatpush1.bf16.msra.mxu0 0
  %137 = vmatprep.subr.bf16.mxu0 0
  %138 = vmatpush1.bf16.msra.mxu0 0
  %139 = vmatprep.subr.bf16.mxu0 0
  %140 = vmatpush1.bf16.msra.mxu0 0
  %141 = vmatprep.subr.bf16.mxu0 0
  %142 = vmatpush1.bf16.msra.mxu0 0
  %143 = vmatprep.subr.bf16.mxu0 0
  %144 = vmatpush1.bf16.msra.mxu0 0
  %145 = vmatprep.subr.bf16.mxu0 0
  %146 = vmatpush1.bf16.msra.mxu0 0
  %147 = vmatprep.subr.bf16.mxu0 0
  %148 = vmatpush1.bf16.msra.mxu0 0
  %149 = vmatprep.subr.bf16.mxu0 %v133
  %150 = vmatpush1.bf16.msra.mxu0 %v130
  %151 = vmatprep.subr.bf16.mxu0 0
  %152 = vmatpush2.bf16.msra.mxu0 0
  %153 = vmatprep.subr.bf16.mxu0 0
  %154 = vmatpush2.bf16.msra.mxu0 0
  %155 = vmatprep.subr.bf16.mxu0 0
  %156 = vmatpush2.bf16.msra.mxu0 0
  %157 = vmatprep.subr.bf16.mxu0 0
  %158 = vmatpush2.bf16.msra.mxu0 0
  %159 = vmatprep.subr.bf16.mxu0 0
  %160 = vmatpush2.bf16.msra.mxu0 0
  %161 = vmatprep.subr.bf16.mxu0 0
  %162 = vmatpush2.bf16.msra.mxu0 0
  %163 = vmatprep.subr.bf16.mxu0 0
  %164 = vmatpush2.bf16.msra.mxu0 0
  %165 = vmatprep.subr.bf16.mxu0 0
  %166 = vmatpush2.bf16.msra.mxu0 0
  %167 = vmatprep.mubr.bf16.mxu0 0
  %168 = vmatmul.mubr.bf16.gmra.mxu0 %v126
  %v169 = vpop.f32.mrf.mxu0
  %v170 = vadd.f32 0.0, %v169
  %v171 = vpop.f32.mrf.mxu0
  %v172 = vadd.f32 0.0, %v171
  %v173 = vpop.f32.mrf.mxu0
  %v174 = vpop.f32.mrf.mxu0
  %175 = vdwg.mxu0
  %v177 = vsel %vm124, %v91, 0
  %v179 = vsel %vm128, %v121, 0
  %v182 = vsel %vm128, %v117, 0
  %184 = vmatprep.subr.bf16.mxu0 0
  %185 = vmatpush1.bf16.msra.mxu0 0
  %186 = vmatprep.subr.bf16.mxu0 0
  %187 = vmatpush1.bf16.msra.mxu0 0
  %188 = vmatprep.subr.bf16.mxu0 0
  %189 = vmatpush1.bf16.msra.mxu0 0
  %190 = vmatprep.subr.bf16.mxu0 0
  %191 = vmatpush1.bf16.msra.mxu0 0
  %192 = vmatprep.subr.bf16.mxu0 0
  %193 = vmatpush1.bf16.msra.mxu0 0
  %194 = vmatprep.subr.bf16.mxu0 0
  %195 = vmatpush1.bf16.msra.mxu0 0
  %196 = vmatprep.subr.bf16.mxu0 0
  %197 = vmatpush1.bf16.msra.mxu0 0
  %198 = vmatprep.subr.bf16.mxu0 %v182
  %199 = vmatpush1.bf16.msra.mxu0 %v179
  %200 = vmatprep.subr.bf16.mxu0 0
  %201 = vmatpush2.bf16.msra.mxu0 0
  %202 = vmatprep.subr.bf16.mxu0 0
  %203 = vmatpush2.bf16.msra.mxu0 0
  %204 = vmatprep.subr.bf16.mxu0 0
  %205 = vmatpush2.bf16.msra.mxu0 0
  %206 = vmatprep.subr.bf16.mxu0 0
  %207 = vmatpush2.bf16.msra.mxu0 0
  %208 = vmatprep.subr.bf16.mxu0 0
  %209 = vmatpush2.bf16.msra.mxu0 0
  %210 = vmatprep.subr.bf16.mxu0 0
  %211 = vmatpush2.bf16.msra.mxu0 0
  %212 = vmatprep.subr.bf16.mxu0 0
  %213 = vmatpush2.bf16.msra.mxu0 0
  %214 = vmatprep.subr.bf16.mxu0 0
  %215 = vmatpush2.bf16.msra.mxu0 0
  %216 = vmatprep.mubr.bf16.mxu0 0
  %217 = vmatmul.mubr.bf16.gmra.mxu0 %v177
  %v218 = vpop.f32.mrf.mxu0
  %v219 = vadd.f32 %v170, %v218
  %v220 = vpop.f32.mrf.mxu0
  %v221 = vadd.f32 %v172, %v220
  %v222 = vpop.f32.mrf.mxu0
  %v223 = vpop.f32.mrf.mxu0
  %224 = vdwg.mxu0
  %s225 = scalar_lea.vmem %s3, 4
  %v226 = vld [vmem:[%s225] sm:$0x3]
  %227 = vrot.lane.b32.xlu0 %v110, 125
  %v228 = vpop.permute.xlu0 %227
  %229 = vrot.lane.b32.xlu0 %v111, 125
  %v230 = vpop.permute.xlu0 %229
  %vm231 = vcmask 1022976
  %v232 = vsel %vm231, %v228, %v230
  %v235 = vunpack.c.l.s4 1983009808
  %v236 = vunpack.c.0.s8 %v235
  %v237 = vlaneseq
  %v238 = vshrl.u32 %v237, 7
  %v239 = vsub.s32 %v236, %v238
  %v240 = vrot.slane %v90, %v239
  %241 = vrot.lane.b32.xlu0 %v240, 125
  %v242 = vpop.permute.xlu0 %241
  %vm243 = vcmask 1022976
  %v246 = vsel %vm243, %v230, %v242
  %v248 = vsel %vm124, %v226, 0
  %v251 = vsel %vm128, %v232, 0
  %v253 = vsel %vm128, %v246, 0
  %255 = vmatprep.subr.bf16.mxu0 0
  %256 = vmatpush1.bf16.msra.mxu0 0
  %257 = vmatprep.subr.bf16.mxu0 0
  %258 = vmatpush1.bf16.msra.mxu0 0
  %259 = vmatprep.subr.bf16.mxu0 0
  %260 = vmatpush1.bf16.msra.mxu0 0
  %261 = vmatprep.subr.bf16.mxu0 0
  %262 = vmatpush1.bf16.msra.mxu0 0
  %263 = vmatprep.subr.bf16.mxu0 0
  %264 = vmatpush1.bf16.msra.mxu0 0
  %265 = vmatprep.subr.bf16.mxu0 0
  %266 = vmatpush1.bf16.msra.mxu0 0
  %267 = vmatprep.subr.bf16.mxu0 0
  %268 = vmatpush1.bf16.msra.mxu0 0
  %269 = vmatprep.subr.bf16.mxu0 %v253
  %270 = vmatpush1.bf16.msra.mxu0 %v251
  %271 = vmatprep.subr.bf16.mxu0 0
  %272 = vmatpush2.bf16.msra.mxu0 0
  %273 = vmatprep.subr.bf16.mxu0 0
  %274 = vmatpush2.bf16.msra.mxu0 0
  %275 = vmatprep.subr.bf16.mxu0 0
  %276 = vmatpush2.bf16.msra.mxu0 0
  %277 = vmatprep.subr.bf16.mxu0 0
  %278 = vmatpush2.bf16.msra.mxu0 0
  %279 = vmatprep.subr.bf16.mxu0 0
  %280 = vmatpush2.bf16.msra.mxu0 0
  %281 = vmatprep.subr.bf16.mxu0 0
  %282 = vmatpush2.bf16.msra.mxu0 0
  %283 = vmatprep.subr.bf16.mxu0 0
  %284 = vmatpush2.bf16.msra.mxu0 0
  %285 = vmatprep.subr.bf16.mxu0 0
  %286 = vmatpush2.bf16.msra.mxu0 0
  %287 = vmatprep.mubr.bf16.mxu0 0
  %288 = vmatmul.mubr.bf16.gmra.mxu0 %v248
  %v289 = vpop.f32.mrf.mxu0
  %v290 = vadd.f32 0.0, %v289
  %v291 = vpop.f32.mrf.mxu0
  %v292 = vadd.f32 0.0, %v291
  %v293 = vpop.f32.mrf.mxu0
  %v294 = vpop.f32.mrf.mxu0
  %295 = vdwg.mxu0
  %v296 = vadd.f32 %v219, %v290
  %v297 = vadd.f32 %v221, %v292
  %v298 = vld [vmem:[%s4] sm:$0xf]
  %300 = vset.pattern.permute.xlu0 0
  %301 = vperm.xlu0 %300, %v298
  %v302 = vpop.permute.xlu0 %301
  %v304 = vadd.f32 %v296, %v302
  %v305 = vadd.f32 %v297, %v302
  %v306 = vld [vmem:[%s5] sm:$0x3]
  %v308 = vlaneseq
  %v309 = vshrl.u32 %v308, 7
  %v310 = vsub.s32 0, %v309
  %v311 = vrot.slane %v306, %v310
  %v312 = vlaneseq
  %v313 = vshrl.u32 %v312, 7
  %v314 = vsub.s32 1, %v313
  %v315 = vrot.slane %v306, %v314
  %v318 = vmul.f32 %v304, %v311
  %v319 = vmul.f32 %v305, %v315
  %v320 = vpack.c.bf16 %v318, %v318
  %v321 = vpack.c.bf16 %v319, %v319
  %v324 = vcombine.low %v320, %v321
  %v326 = vunpack.c.l.s4 1983009808
  %v327 = vunpack.c.0.s8 %v326
  %v328 = vlaneseq
  %v329 = vshrl.u32 %v328, 7
  %v330 = vsub.s32 %v327, %v329
  %v331 = vrot.slane %v324, %v330
  %333 = vst [vmem:[%s6] sm:$0xf] %v331
  // Predicated region
  $region26: #{sp_head_forward.28} parent=0 // pred_check
    _
  $region27: #{sp_head_forward.28} parent=0 // pred_check_branch
    %335 = sbr.rel (0) target = $region29
  $region28: #{sp_head_forward.28} parent=0 // pred_region
    _
  $region29: #{sp_head_forward.28} parent=0 // pred_fallthru
    _
  // Predicated region
  $region30: #{sp_head_forward.28} parent=0 // pred_check
    _
  $region31: #{sp_head_forward.28} parent=0 // pred_check_branch
    %337 = sbr.rel (0) target = $region33
  $region32: #{sp_head_forward.28} parent=0 // pred_region
    _
  $region33: #{sp_head_forward.28} parent=0 // pred_fallthru
    _

// kernel: sp_head_forward.27
$region0: #{sp_head_forward.27}
  #allocation0 [shape = 'u32[]', space=smem, size = 0x4, offset = 0x4, fixed_abs, tag = 'smem constant byte address 0x4 - core index']
  #allocation1 [shape = 'u32[144,128]{1,0:T(1,128)}', space=vmem, size = 0x12000, scoped, tag = 'internal scratch']
  %s0 = inlined_call_operand.vmem [shape: bf16[4,256], index: 0, kind: input, shape index: {}, may-alias: {0,1,2}]
  %s1 = inlined_call_operand.vmem [shape: bf16[4,256], index: 1, kind: input, shape index: {}, may-alias: {0,1,2}]
  %s2 = inlined_call_operand.vmem [shape: bf16[4,256], index: 2, kind: input, shape index: {}, may-alias: {0,1,2}]
  %s3 = inlined_call_operand.vmem [shape: bf16[3,4,4], index: 3, kind: input, shape index: {}]
  %s4 = inlined_call_operand.vmem [shape: f32[4,1], index: 4, kind: input, shape index: {}]
  %s5 = inlined_call_operand.vmem [shape: f32[1,256], index: 5, kind: input, shape index: {}]
  %s6 = inlined_call_operand.vmem [shape: bf16[4,256], index: 6, kind: output, shape index: {}]
  %s7 = sld [smem:[#allocation0]]
  $region34: #{sp_head_forward.27} parent=0
    _
  %s9 = ssub.s32 1, %s7
  %s10 = scalar_select 0, %s9, %s7
  // Predicated region
  $region2: #{sp_head_forward.27} parent=0 // pred_check
    _
  $region3: #{sp_head_forward.27} parent=0 // pred_check_branch
    %12 = sbr.rel (0) target = $region5
  $region4: #{sp_head_forward.27} parent=0 // pred_region
    %s13 = ssub.s32 0, 1
    %p14 = scmp.gt.s32.totalorder %s13, 0
    %s15 = scalar_select %p14, %s13, 0
    %s16 = smul.u32 2, %s15
    %p17 = scmp.lt.s32.totalorder %s16, 1
    %s18 = scalar_select %p17, %s16, 1
    %s19 = smul.addr %s18, 2
    %s20 = scalar_lea.vmem %s0, %s19
    %s21 = ssub.s32 0, 1
    %p22 = scmp.gt.s32.totalorder %s21, 0
    %s23 = scalar_select %p22, %s21, 0
    %s24 = smul.u32 2, %s23
  $region5: #{sp_head_forward.27} parent=0 // pred_fallthru
    _
  // Predicated region
  $region6: #{sp_head_forward.27} parent=0 // pred_check
    _
  $region7: #{sp_head_forward.27} parent=0 // pred_check_branch
    %26 = sbr.rel (0) target = $region9
  $region8: #{sp_head_forward.27} parent=0 // pred_region
    _
  $region9: #{sp_head_forward.27} parent=0 // pred_fallthru
    _
  // Predicated region
  $region10: #{sp_head_forward.27} parent=0 // pred_check
    _
  $region11: #{sp_head_forward.27} parent=0 // pred_check_branch
    %28 = sbr.rel (0) target = $region13
  $region12: #{sp_head_forward.27} parent=0 // pred_region
    %s29 = sadd.s32 0, 1
    %p30 = scmp.lt.s32.totalorder %s29, 0
    %s31 = scalar_select %p30, %s29, 0
    %s32 = smul.u32 2, %s31
    %p33 = scmp.lt.s32.totalorder %s32, 1
    %s34 = scalar_select %p33, %s32, 1
    %s35 = smul.addr %s34, 2
    %s36 = scalar_lea.vmem %s2, %s35
    %s37 = sadd.s32 0, 1
    %p38 = scmp.lt.s32.totalorder %s37, 0
    %s39 = scalar_select %p38, %s37, 0
    %s40 = smul.u32 2, %s39
  $region13: #{sp_head_forward.27} parent=0 // pred_fallthru
    _
  // Predicated region
  $region14: #{sp_head_forward.27} parent=0 // pred_check
    _
  $region15: #{sp_head_forward.27} parent=0 // pred_check_branch
    %42 = sbr.rel (0) target = $region17
  $region16: #{sp_head_forward.27} parent=0 // pred_region
    _
  $region17: #{sp_head_forward.27} parent=0 // pred_fallthru
    _
  // Predicated region
  $region18: #{sp_head_forward.27} parent=0 // pred_check
    _
  $region19: #{sp_head_forward.27} parent=0 // pred_check_branch
    %44 = sbr.rel (0) target = $region21
  $region20: #{sp_head_forward.27} parent=0 // pred_region
    _
  $region21: #{sp_head_forward.27} parent=0 // pred_fallthru
    _
  // Predicated region
  $region22: #{sp_head_forward.27} parent=0 // pred_check
    _
  $region23: #{sp_head_forward.27} parent=0 // pred_check_branch
    %46 = sbr.rel (0) target = $region25
  $region24: #{sp_head_forward.27} parent=0 // pred_region
    _
  $region25: #{sp_head_forward.27} parent=0 // pred_fallthru
    _
  %s47 = ssub.s32 0, 1
  %p48 = scmp.gt.s32.totalorder %s47, 0
  %s49 = scalar_select %p48, %s47, 0
  %s50 = smul.u32 2, %s49
  %p51 = scmp.lt.s32.totalorder %s50, 1
  %s52 = scalar_select %p51, %s50, 1
  %s53 = smul.addr %s52, 2
  %s54 = scalar_lea.vmem %s0, %s53
  %s55 = sadd.s32 0, 1
  %p56 = scmp.lt.s32.totalorder %s55, 0
  %s57 = scalar_select %p56, %s55, 0
  %s58 = smul.u32 2, %s57
  %p59 = scmp.lt.s32.totalorder %s58, 1
  %s60 = scalar_select %p59, %s58, 1
  %s61 = smul.addr %s60, 2
  %s62 = scalar_lea.vmem %s2, %s61
  %s63 = ssub.s32 0, 1
  %p64 = scmp.gt.s32.totalorder %s63, 0
  %s65 = scalar_select %p64, %s63, 0
  %s66 = smul.u32 2, %s65
  %p67 = scmp.lt.s32.totalorder %s66, 1
  %s68 = scalar_select %p67, %s66, 1
  %s69 = smul.addr %s68, 2
  %s70 = scalar_lea.vmem %s0, %s69
  %s71 = ssub.s32 0, 1
  %p72 = scmp.gt.s32.totalorder %s71, 0
  %s73 = scalar_select %p72, %s71, 0
  %s74 = smul.u32 2, %s73
  %s75 = sadd.s32 0, 1
  %p76 = scmp.lt.s32.totalorder %s75, 0
  %s77 = scalar_select %p76, %s75, 0
  %s78 = smul.u32 2, %s77
  %p79 = scmp.lt.s32.totalorder %s78, 1
  %s80 = scalar_select %p79, %s78, 1
  %s81 = smul.addr %s80, 2
  %s82 = scalar_lea.vmem %s2, %s81
  %s83 = sadd.s32 0, 1
  %p84 = scmp.lt.s32.totalorder %s83, 0
  %s85 = scalar_select %p84, %s83, 0
  %s86 = smul.u32 2, %s85
  %v88 = vld [vmem:[%s1] sm:$0xf]
  %v89 = vld [vmem:[%s70] sm:$0xf]
  %v90 = vld [vmem:[%s82] sm:$0xf]
  %v91 = vld [vmem:[%s3] sm:$0x3]
  %v94 = vunpack.c.l.s4 1983009808
  %v95 = vunpack.c.0.s8 %v94
  %v96 = vlaneseq
  %v97 = vshrl.u32 %v96, 7
  %v98 = vsub.s32 %v95, %v97
  %v99 = vrot.slane %v89, %v98
  %v100 = vcombine.high %v99, %v99
  %101 = vrot.lane.b32.xlu0 %v100, 1
  %v102 = vpop.permute.xlu0 %101
  %v105 = vunpack.c.l.s4 1983009808
  %v106 = vunpack.c.0.s8 %v105
  %v107 = vlaneseq
  %v108 = vshrl.u32 %v107, 7
  %v109 = vsub.s32 %v106, %v108
  %v110 = vrot.slane %v88, %v109
  %v111 = vcombine.high %v110, %v110
  %112 = vrot.lane.b32.xlu0 %v110, 1
  %v113 = vpop.permute.xlu0 %112
  %114 = vrot.lane.b32.xlu0 %v111, 1
  %v115 = vpop.permute.xlu0 %114
  %vm116 = vcmask 7168
  %v117 = vsel %vm116, %v113, %v115
  %vm118 = vcmask 7168
  %v121 = vsel %vm118, %v102, %v113
  %s122 = scalar_lea.vmem %s3, 2
  %v123 = vld [vmem:[%s122] sm:$0x3]
  %vm124 = vcmask 31744
  %v126 = vsel %vm124, %v123, 0
  %vm128 = vcmask 1041408
  %v130 = vsel %vm128, %v110, 0
  %v133 = vsel %vm128, %v111, 0
  %135 = vmatprep.subr.bf16.mxu0 0
  %136 = vmatpush1.bf16.msra.mxu0 0
  %137 = vmatprep.subr.bf16.mxu0 0
  %138 = vmatpush1.bf16.msra.mxu0 0
  %139 = vmatprep.subr.bf16.mxu0 0
  %140 = vmatpush1.bf16.msra.mxu0 0
  %141 = vmatprep.subr.bf16.mxu0 0
  %142 = vmatpush1.bf16.msra.mxu0 0
  %143 = vmatprep.subr.bf16.mxu0 0
  %144 = vmatpush1.bf16.msra.mxu0 0
  %145 = vmatprep.subr.bf16.mxu0 0
  %146 = vmatpush1.bf16.msra.mxu0 0
  %147 = vmatprep.subr.bf16.mxu0 0
  %148 = vmatpush1.bf16.msra.mxu0 0
  %149 = vmatprep.subr.bf16.mxu0 %v133
  %150 = vmatpush1.bf16.msra.mxu0 %v130
  %151 = vmatprep.subr.bf16.mxu0 0
  %152 = vmatpush2.bf16.msra.mxu0 0
  %153 = vmatprep.subr.bf16.mxu0 0
  %154 = vmatpush2.bf16.msra.mxu0 0
  %155 = vmatprep.subr.bf16.mxu0 0
  %156 = vmatpush2.bf16.msra.mxu0 0
  %157 = vmatprep.subr.bf16.mxu0 0
  %158 = vmatpush2.bf16.msra.mxu0 0
  %159 = vmatprep.subr.bf16.mxu0 0
  %160 = vmatpush2.bf16.msra.mxu0 0
  %161 = vmatprep.subr.bf16.mxu0 0
  %162 = vmatpush2.bf16.msra.mxu0 0
  %163 = vmatprep.subr.bf16.mxu0 0
  %164 = vmatpush2.bf16.msra.mxu0 0
  %165 = vmatprep.subr.bf16.mxu0 0
  %166 = vmatpush2.bf16.msra.mxu0 0
  %167 = vmatprep.mubr.bf16.mxu0 0
  %168 = vmatmul.mubr.bf16.gmra.mxu0 %v126
  %v169 = vpop.f32.mrf.mxu0
  %v170 = vadd.f32 0.0, %v169
  %v171 = vpop.f32.mrf.mxu0
  %v172 = vadd.f32 0.0, %v171
  %v173 = vpop.f32.mrf.mxu0
  %v174 = vpop.f32.mrf.mxu0
  %175 = vdwg.mxu0
  %v177 = vsel %vm124, %v91, 0
  %v179 = vsel %vm128, %v121, 0
  %v182 = vsel %vm128, %v117, 0
  %184 = vmatprep.subr.bf16.mxu0 0
  %185 = vmatpush1.bf16.msra.mxu0 0
  %186 = vmatprep.subr.bf16.mxu0 0
  %187 = vmatpush1.bf16.msra.mxu0 0
  %188 = vmatprep.subr.bf16.mxu0 0
  %189 = vmatpush1.bf16.msra.mxu0 0
  %190 = vmatprep.subr.bf16.mxu0 0
  %191 = vmatpush1.bf16.msra.mxu0 0
  %192 = vmatprep.subr.bf16.mxu0 0
  %193 = vmatpush1.bf16.msra.mxu0 0
  %194 = vmatprep.subr.bf16.mxu0 0
  %195 = vmatpush1.bf16.msra.mxu0 0
  %196 = vmatprep.subr.bf16.mxu0 0
  %197 = vmatpush1.bf16.msra.mxu0 0
  %198 = vmatprep.subr.bf16.mxu0 %v182
  %199 = vmatpush1.bf16.msra.mxu0 %v179
  %200 = vmatprep.subr.bf16.mxu0 0
  %201 = vmatpush2.bf16.msra.mxu0 0
  %202 = vmatprep.subr.bf16.mxu0 0
  %203 = vmatpush2.bf16.msra.mxu0 0
  %204 = vmatprep.subr.bf16.mxu0 0
  %205 = vmatpush2.bf16.msra.mxu0 0
  %206 = vmatprep.subr.bf16.mxu0 0
  %207 = vmatpush2.bf16.msra.mxu0 0
  %208 = vmatprep.subr.bf16.mxu0 0
  %209 = vmatpush2.bf16.msra.mxu0 0
  %210 = vmatprep.subr.bf16.mxu0 0
  %211 = vmatpush2.bf16.msra.mxu0 0
  %212 = vmatprep.subr.bf16.mxu0 0
  %213 = vmatpush2.bf16.msra.mxu0 0
  %214 = vmatprep.subr.bf16.mxu0 0
  %215 = vmatpush2.bf16.msra.mxu0 0
  %216 = vmatprep.mubr.bf16.mxu0 0
  %217 = vmatmul.mubr.bf16.gmra.mxu0 %v177
  %v218 = vpop.f32.mrf.mxu0
  %v219 = vadd.f32 %v170, %v218
  %v220 = vpop.f32.mrf.mxu0
  %v221 = vadd.f32 %v172, %v220
  %v222 = vpop.f32.mrf.mxu0
  %v223 = vpop.f32.mrf.mxu0
  %224 = vdwg.mxu0
  %s225 = scalar_lea.vmem %s3, 4
  %v226 = vld [vmem:[%s225] sm:$0x3]
  %227 = vrot.lane.b32.xlu0 %v110, 127
  %v228 = vpop.permute.xlu0 %227
  %229 = vrot.lane.b32.xlu0 %v111, 127
  %v230 = vpop.permute.xlu0 %229
  %vm231 = vcmask 1039360
  %v232 = vsel %vm231, %v228, %v230
  %v235 = vunpack.c.l.s4 1983009808
  %v236 = vunpack.c.0.s8 %v235
  %v237 = vlaneseq
  %v238 = vshrl.u32 %v237, 7
  %v239 = vsub.s32 %v236, %v238
  %v240 = vrot.slane %v90, %v239
  %241 = vrot.lane.b32.xlu0 %v240, 127
  %v242 = vpop.permute.xlu0 %241
  %vm243 = vcmask 1039360
  %v246 = vsel %vm243, %v230, %v242
  %v248 = vsel %vm124, %v226, 0
  %v251 = vsel %vm128, %v232, 0
  %v253 = vsel %vm128, %v246, 0
  %255 = vmatprep.subr.bf16.mxu0 0
  %256 = vmatpush1.bf16.msra.mxu0 0
  %257 = vmatprep.subr.bf16.mxu0 0
  %258 = vmatpush1.bf16.msra.mxu0 0
  %259 = vmatprep.subr.bf16.mxu0 0
  %260 = vmatpush1.bf16.msra.mxu0 0
  %261 = vmatprep.subr.bf16.mxu0 0
  %262 = vmatpush1.bf16.msra.mxu0 0
  %263 = vmatprep.subr.bf16.mxu0 0
  %264 = vmatpush1.bf16.msra.mxu0 0
  %265 = vmatprep.subr.bf16.mxu0 0
  %266 = vmatpush1.bf16.msra.mxu0 0
  %267 = vmatprep.subr.bf16.mxu0 0
  %268 = vmatpush1.bf16.msra.mxu0 0
  %269 = vmatprep.subr.bf16.mxu0 %v253
  %270 = vmatpush1.bf16.msra.mxu0 %v251
  %271 = vmatprep.subr.bf16.mxu0 0
  %272 = vmatpush2.bf16.msra.mxu0 0
  %273 = vmatprep.subr.bf16.mxu0 0
  %274 = vmatpush2.bf16.msra.mxu0 0
  %275 = vmatprep.subr.bf16.mxu0 0
  %276 = vmatpush2.bf16.msra.mxu0 0
  %277 = vmatprep.subr.bf16.mxu0 0
  %278 = vmatpush2.bf16.msra.mxu0 0
  %279 = vmatprep.subr.bf16.mxu0 0
  %280 = vmatpush2.bf16.msra.mxu0 0
  %281 = vmatprep.subr.bf16.mxu0 0
  %282 = vmatpush2.bf16.msra.mxu0 0
  %283 = vmatprep.subr.bf16.mxu0 0
  %284 = vmatpush2.bf16.msra.mxu0 0
  %285 = vmatprep.subr.bf16.mxu0 0
  %286 = vmatpush2.bf16.msra.mxu0 0
  %287 = vmatprep.mubr.bf16.mxu0 0
  %288 = vmatmul.mubr.bf16.gmra.mxu0 %v248
  %v289 = vpop.f32.mrf.mxu0
  %v290 = vadd.f32 0.0, %v289
  %v291 = vpop.f32.mrf.mxu0
  %v292 = vadd.f32 0.0, %v291
  %v293 = vpop.f32.mrf.mxu0
  %v294 = vpop.f32.mrf.mxu0
  %295 = vdwg.mxu0
  %v296 = vadd.f32 %v219, %v290
  %v297 = vadd.f32 %v221, %v292
  %v298 = vld [vmem:[%s4] sm:$0xf]
  %300 = vset.pattern.permute.xlu0 0
  %301 = vperm.xlu0 %300, %v298
  %v302 = vpop.permute.xlu0 %301
  %v304 = vadd.f32 %v296, %v302
  %v305 = vadd.f32 %v297, %v302
  %v306 = vld [vmem:[%s5] sm:$0x3]
  %v308 = vlaneseq
  %v309 = vshrl.u32 %v308, 7
  %v310 = vsub.s32 0, %v309
  %v311 = vrot.slane %v306, %v310
  %v312 = vlaneseq
  %v313 = vshrl.u32 %v312, 7
  %v314 = vsub.s32 1, %v313
  %v315 = vrot.slane %v306, %v314
  %v318 = vmul.f32 %v304, %v311
  %v319 = vmul.f32 %v305, %v315
  %v320 = vpack.c.bf16 %v318, %v318
  %v321 = vpack.c.bf16 %v319, %v319
  %v324 = vcombine.low %v320, %v321
  %v326 = vunpack.c.l.s4 1983009808
  %v327 = vunpack.c.0.s8 %v326
  %v328 = vlaneseq
  %v329 = vshrl.u32 %v328, 7
  %v330 = vsub.s32 %v327, %v329
  %v331 = vrot.slane %v324, %v330
  %333 = vst [vmem:[%s6] sm:$0xf] %v331
  // Predicated region
  $region26: #{sp_head_forward.27} parent=0 // pred_check
    _
  $region27: #{sp_head_forward.27} parent=0 // pred_check_branch
    %335 = sbr.rel (0) target = $region29
  $region28: #{sp_head_forward.27} parent=0 // pred_region
    _
  $region29: #{sp_head_forward.27} parent=0 // pred_fallthru
    _
  // Predicated region
  $region30: #{sp_head_forward.27} parent=0 // pred_check
    _
  $region31: #{sp_head_forward.27} parent=0 // pred_check_branch
    %337 = sbr.rel (0) target = $region33
  $region32: #{sp_head_forward.27} parent=0 // pred_region
    _
  $region33: #{sp_head_forward.27} parent=0 // pred_fallthru
    _

// kernel: sp_head_forward.33
$region0: #{sp_head_forward.33}
  #allocation0 [shape = 'u32[]', space=smem, size = 0x4, offset = 0x4, fixed_abs, tag = 'smem constant byte address 0x4 - core index']
  #allocation1 [shape = 'u32[144,128]{1,0:T(1,128)}', space=vmem, size = 0x12000, scoped, tag = 'internal scratch']
  %s0 = inlined_call_operand.vmem [shape: bf16[8,768], index: 0, kind: input, shape index: {}]
  %s1 = inlined_call_operand.vmem [shape: bf16[1,16,8], index: 1, kind: input, shape index: {}]
  %s2 = inlined_call_operand.vmem [shape: f32[16,1], index: 2, kind: input, shape index: {}]
  %s3 = inlined_call_operand.vmem [shape: f32[1,768], index: 3, kind: input, shape index: {}]
  %s4 = inlined_call_operand.vmem [shape: bf16[16,768], index: 4, kind: input, shape index: {}]
  %s5 = inlined_call_operand.vmem [shape: bf16[16,768], index: 5, kind: output, shape index: {}]
  %s6 = sld [smem:[#allocation0]]
  $region125: #{sp_head_forward.33} parent=0
    _
  %s8 = ssub.s32 1, %s6
  %s9 = scalar_select 0, %s8, %s6
  $region1: #{sp_head_forward.33} parent=0
    #allocation2 [shape = 'u8[16384]{0}', space=vmem, size = 0x4000, scoped, tag = 'input window, operand 4']
    #allocation3 [shape = 'u8[16384]{0}', space=vmem, size = 0x4000, scoped, tag = 'output window, operand 0']
    loop: start=0, step=1, limit=5
    $region2: #{sp_head_forward.33} parent=1 // loop_pre_header
      _
    $region3: #{sp_head_forward.33} parent=1 // loop_header
      %s11 = sphi 0, %s15
      %p12 = scmp.ge.s32.totalorder %s11, 5
      %s21 = sphi 0, %s23
      %s24 = sphi 0, %s21
      %s25 = sphi 0, %s24
      %s41 = sphi 0, %s25
      %s45 = sphi 0, %s45
      %s47 = sphi 0, %s45
      %s48 = sphi 0, %s47
      %s62 = sphi 0, %s48
      %s66 = sphi 0, %s66
      %s68 = sphi 0, %s66
      %s69 = sphi 0, %s68
      %s83 = sphi 0, %s69
      %s89 = sphi 0, %s91
      %s92 = sphi 0, %s89
      %s93 = sphi 0, %s92
      %s109 = sphi 0, %s93
      %s115 = sphi 0, %s117
      %s118 = sphi 0, %s115
      %s119 = sphi 0, %s118
      %s135 = sphi 0, %s119
      %s141 = sphi 0, %s143
      %s144 = sphi 0, %s141
      %s145 = sphi 0, %s144
      %s161 = sphi 0, %s145
    $region4: #{sp_head_forward.33} parent=1 // loop_header_branch
      %14 = sbr.rel (%p12) target = $region8
    $region5: #{sp_head_forward.33} parent=1 // loop_body
      %s16 = ssub.s32 %s11, 1
      %s17 = ssub.s32 %s11, 2
      %s18 = sadd.s32 %s11, 1
      %s19 = ssub.s32 %s11, %s18
      %p20 = scmp.eq.s32.totalorder %s19, 0
      %s22 = sadd.s32 %s21, 1
      %s23 = scalar_select %p20, %s21, %s22
      %p26 = pneg %p20
      %p27 = scmp.eq.s32.totalorder %s11, 2
      %p28 = por %p26, %p27
      %p29 = scmp.ne.s32.totalorder %s21, %s24
      %p30 = scmp.eq.s32.totalorder %s11, 0
      %p31 = por %p29, %p30
      %p32 = scmp.ne.s32.totalorder %s21, %s24
      %p33 = scmp.eq.s32.totalorder %s16, 2
      %p34 = por %p32, %p33
      %p35 = scmp.ne.s32.totalorder %s24, %s25
      %p36 = scmp.eq.s32.totalorder %s16, 0
      %p37 = por %p35, %p36
      %p38 = scmp.ne.s32.totalorder %s24, %s25
      %p39 = scmp.eq.s32.totalorder %s17, 2
      %p40 = por %p38, %p39
      %p42 = scmp.ne.s32.totalorder %s25, %s41
      %p43 = scmp.eq.s32.totalorder %s17, 0
      %p44 = por %p42, %p43
      %s46 = sadd.s32 %s45, 1
      %p49 = scmp.eq.s32.totalorder %s11, 2
      %p50 = scmp.ne.s32.totalorder %s45, %s47
      %p51 = scmp.eq.s32.totalorder %s11, 0
      %p52 = por %p50, %p51
      %p53 = scmp.ne.s32.totalorder %s45, %s47
      %p54 = scmp.eq.s32.totalorder %s16, 2
      %p55 = por %p53, %p54
      %p56 = scmp.ne.s32.totalorder %s47, %s48
      %p57 = scmp.eq.s32.totalorder %s16, 0
      %p58 = por %p56, %p57
      %p59 = scmp.ne.s32.totalorder %s47, %s48
      %p60 = scmp.eq.s32.totalorder %s17, 2
      %p61 = por %p59, %p60
      %p63 = scmp.ne.s32.totalorder %s48, %s62
      %p64 = scmp.eq.s32.totalorder %s17, 0
      %p65 = por %p63, %p64
      %s67 = sadd.s32 %s66, 1
      %p70 = scmp.eq.s32.totalorder %s11, 2
      %p71 = scmp.ne.s32.totalorder %s66, %s68
      %p72 = scmp.eq.s32.totalorder %s11, 0
      %p73 = por %p71, %p72
      %p74 = scmp.ne.s32.totalorder %s66, %s68
      %p75 = scmp.eq.s32.totalorder %s16, 2
      %p76 = por %p74, %p75
      %p77 = scmp.ne.s32.totalorder %s68, %s69
      %p78 = scmp.eq.s32.totalorder %s16, 0
      %p79 = por %p77, %p78
      %p80 = scmp.ne.s32.totalorder %s68, %s69
      %p81 = scmp.eq.s32.totalorder %s17, 2
      %p82 = por %p80, %p81
      %p84 = scmp.ne.s32.totalorder %s69, %s83
      %p85 = scmp.eq.s32.totalorder %s17, 0
      %p86 = por %p84, %p85
      %s87 = ssub.s32 %s11, %s18
      %p88 = scmp.eq.s32.totalorder %s87, 0
      %s90 = sadd.s32 %s89, 1
      %s91 = scalar_select %p88, %s89, %s90
      %p94 = pneg %p88
      %p95 = scmp.eq.s32.totalorder %s11, 2
      %p96 = por %p94, %p95
      %p97 = scmp.ne.s32.totalorder %s89, %s92
      %p98 = scmp.eq.s32.totalorder %s11, 0
      %p99 = por %p97, %p98
      %p100 = scmp.ne.s32.totalorder %s89, %s92
      %p101 = scmp.eq.s32.totalorder %s16, 2
      %p102 = por %p100, %p101
      %p103 = scmp.ne.s32.totalorder %s92, %s93
      %p104 = scmp.eq.s32.totalorder %s16, 0
      %p105 = por %p103, %p104
      %p106 = scmp.ne.s32.totalorder %s92, %s93
      %p107 = scmp.eq.s32.totalorder %s17, 2
      %p108 = por %p106, %p107
      %p110 = scmp.ne.s32.totalorder %s93, %s109
      %p111 = scmp.eq.s32.totalorder %s17, 0
      %p112 = por %p110, %p111
      %s113 = ssub.s32 %s11, %s18
      %p114 = scmp.eq.s32.totalorder %s113, 0
      %s116 = sadd.s32 %s115, 1
      %s117 = scalar_select %p114, %s115, %s116
      %p120 = pneg %p114
      %p121 = scmp.eq.s32.totalorder %s11, 2
      %p122 = por %p120, %p121
      %p123 = scmp.ne.s32.totalorder %s115, %s118
      %p124 = scmp.eq.s32.totalorder %s11, 0
      %p125 = por %p123, %p124
      %p126 = scmp.ne.s32.totalorder %s115, %s118
      %p127 = scmp.eq.s32.totalorder %s16, 2
      %p128 = por %p126, %p127
      %p129 = scmp.ne.s32.totalorder %s118, %s119
      %p130 = scmp.eq.s32.totalorder %s16, 0
      %p131 = por %p129, %p130
      %p132 = scmp.ne.s32.totalorder %s118, %s119
      %p133 = scmp.eq.s32.totalorder %s17, 2
      %p134 = por %p132, %p133
      %p136 = scmp.ne.s32.totalorder %s119, %s135
      %p137 = scmp.eq.s32.totalorder %s17, 0
      %p138 = por %p136, %p137
      %s139 = ssub.s32 %s11, %s18
      %p140 = scmp.eq.s32.totalorder %s139, 0
      %s142 = sadd.s32 %s141, 1
      %s143 = scalar_select %p140, %s141, %s142
      %p146 = pneg %p140
      %p147 = scmp.eq.s32.totalorder %s11, 2
      %p148 = por %p146, %p147
      %p149 = scmp.ne.s32.totalorder %s141, %s144
      %p150 = scmp.eq.s32.totalorder %s11, 0
      %p151 = por %p149, %p150
      %p152 = scmp.ne.s32.totalorder %s141, %s144
      %p153 = scmp.eq.s32.totalorder %s16, 2
      %p154 = por %p152, %p153
      %p155 = scmp.ne.s32.totalorder %s144, %s145
      %p156 = scmp.eq.s32.totalorder %s16, 0
      %p157 = por %p155, %p156
      %p158 = scmp.ne.s32.totalorder %s144, %s145
      %p159 = scmp.eq.s32.totalorder %s17, 2
      %p160 = por %p158, %p159
      %p162 = scmp.ne.s32.totalorder %s145, %s161
      %p163 = scmp.eq.s32.totalorder %s17, 0
      %p164 = por %p162, %p163
      %p165 = scmp.le.s32.totalorder 1, %s11
      %p166 = scmp.lt.s32.totalorder %s11, 4
      %p167 = pnand %p165, %p166
      %p168 = pneg %p167
      // Predicated region
      $region9: #{sp_head_forward.33} parent=5 // pred_check
        _
      $region10: #{sp_head_forward.33} parent=5 // pred_check_branch
        %170 = sbr.rel (%p167) target = $region12
      $region11: #{sp_head_forward.33} parent=5 // pred_region
        %s171 = ssub.s32 %s11, 1
        // Predicated region
        $region13: #{sp_head_forward.33} parent=11 // pred_check
          %p172 = pneg %p58
        $region14: #{sp_head_forward.33} parent=11 // pred_check_branch
          %174 = sbr.rel (%p172) target = $region16
        $region15: #{sp_head_forward.33} parent=11 // pred_region
          _
        $region16: #{sp_head_forward.33} parent=11 // pred_fallthru
          _
        // Predicated region
        $region17: #{sp_head_forward.33} parent=11 // pred_check
          %p175 = pneg %p79
        $region18: #{sp_head_forward.33} parent=11 // pred_check_branch
          %177 = sbr.rel (%p175) target = $region20
        $region19: #{sp_head_forward.33} parent=11 // pred_region
          _
        $region20: #{sp_head_forward.33} parent=11 // pred_fallthru
          _
      $region12: #{sp_head_forward.33} parent=5 // pred_fallthru
        _
      %p178 = scmp.lt.s32.totalorder %s11, 3
      // Predicated region
      $region21: #{sp_head_forward.33} parent=5 // pred_check
        %p179 = pneg %p178
      $region22: #{sp_head_forward.33} parent=5 // pred_check_branch
        %181 = sbr.rel (%p179) target = $region24
      $region23: #{sp_head_forward.33} parent=5 // pred_region
        // Predicated region
        $region25: #{sp_head_forward.33} parent=23 // pred_check
          %p182 = pneg %p31
        $region26: #{sp_head_forward.33} parent=23 // pred_check_branch
          %184 = sbr.rel (%p182) target = $region28
        $region27: #{sp_head_forward.33} parent=23 // pred_region
          %s185 = smul.u32 2, %s11
          %p186 = scmp.lt.s32.totalorder %s185, 5
          %s187 = scalar_select %p186, %s185, 5
          %s188 = smul.addr %s187, 4
          %s189 = scalar_lea.vmem %s0, %s188
          %s190 = smul.u32 2, %s11
        $region28: #{sp_head_forward.33} parent=23 // pred_fallthru
          _
        // Predicated region
        $region29: #{sp_head_forward.33} parent=23 // pred_check
          %p191 = pneg %p99
        $region30: #{sp_head_forward.33} parent=23 // pred_check_branch
          %193 = sbr.rel (%p191) target = $region32
        $region31: #{sp_head_forward.33} parent=23 // pred_region
          %s194 = smul.u32 2, %s11
          %p195 = scmp.lt.s32.totalorder %s194, 5
          %s196 = scalar_select %p195, %s194, 5
          %s197 = scalar_lea.vmem %s3, %s196
          %s198 = smul.u32 2, %s11
        $region32: #{sp_head_forward.33} parent=23 // pred_fallthru
          _
        // Predicated region
        $region33: #{sp_head_forward.33} parent=23 // pred_check
          %p199 = pneg %p125
        $region34: #{sp_head_forward.33} parent=23 // pred_check_branch
          %201 = sbr.rel (%p199) target = $region36
        $region35: #{sp_head_forward.33} parent=23 // pred_region
          %s202 = sand.u32 %s115, 1
          %s203 = sand.u32 %s115, 1
          %s204 = smul.addr %s203, 16
          %s205 = scalar_lea.vmem [#allocation2], %s204
          %s206 = smul.u32 2, %s11
          %s207 = smul.addr %s206, 4
          %s208 = scalar_lea.vmem %s4, %s207
          // Predicated region
          $region37: #{sp_head_forward.33} parent=35 // pred_check
            _
          $region38: #{sp_head_forward.33} parent=35 // pred_check_branch
            %210 = sbr.rel (0) target = $region40
          $region39: #{sp_head_forward.33} parent=35 // pred_region
            // Predicated region
            $region41: #{sp_head_forward.33} parent=39 // pred_check
              _
            $region42: #{sp_head_forward.33} parent=39 // pred_check_branch
              %212 = sbr.rel (0) target = $region44
            $region43: #{sp_head_forward.33} parent=39 // pred_region
              // Predicated region
              $region56: #{sp_head_forward.33} parent=43 // pred_check
                _
              $region57: #{sp_head_forward.33} parent=43 // pred_check_branch
                %230 = sbr.rel (0) target = $region59
              $region58: #{sp_head_forward.33} parent=43 // pred_region
                loop: start=0, step=1, limit=1
                $region60: #{sp_head_forward.33} parent=58 // loop_pre_header
                  _
                $region61: #{sp_head_forward.33} parent=58 // loop_header
                  %s232 = sphi 0, %s236
                  %p233 = scmp.ge.s32.totalorder %s232, 1
                  %s237 = sphi %s208, %s208
                  %s238 = sphi %s205, %s205
                $region62: #{sp_head_forward.33} parent=58 // loop_header_branch
                  %235 = sbr.rel (%p233) target = $region66
                $region63: #{sp_head_forward.33} parent=58 // loop_body
                  %v239 = vld [vmem:[%s237] sm:$0xff]
                  %240 = vst [vmem:[%s238] sm:$0xff] %v239
                  %v241 = vld [vmem:[%s237 + $0x18] sm:$0xff]
                  %242 = vst [vmem:[%s238 + $0x8] sm:$0xff] %v241
                $region64: #{sp_head_forward.33} parent=58 // loop_footer
                  %s236 = sadd.s32 1, %s232
                $region65: #{sp_head_forward.33} parent=58 // loop_footer_branch
                  %231 = sbr.rel target = $region61
                $region66: #{sp_head_forward.33} parent=58 // loop_exit
                  _
              $region59: #{sp_head_forward.33} parent=43 // pred_fallthru
                _
              // Predicated region
              $region67: #{sp_head_forward.33} parent=43 // pred_check
                _
              $region68: #{sp_head_forward.33} parent=43 // pred_check_branch
                %244 = sbr.rel target = $region70
              $region69: #{sp_head_forward.33} parent=43 // pred_region
                _
              $region70: #{sp_head_forward.33} parent=43 // pred_fallthru
                _
            $region44: #{sp_head_forward.33} parent=39 // pred_fallthru
              _
            // Predicated region
            $region45: #{sp_head_forward.33} parent=39 // pred_check
              _
            $region46: #{sp_head_forward.33} parent=39 // pred_check_branch
              %214 = sbr.rel target = $region48
            $region47: #{sp_head_forward.33} parent=39 // pred_region
              %s216 = ssub.s32 256, 1
              loop: start=0, step=1, limit=1
              $region49: #{sp_head_forward.33} parent=47 // loop_pre_header
                _
              $region50: #{sp_head_forward.33} parent=47 // loop_header
                %s218 = sphi 0, %s222
                %p219 = scmp.ge.s32.totalorder %s218, 1
                %s223 = sphi %s208, %s208
                %s224 = sphi %s205, %s205
              $region51: #{sp_head_forward.33} parent=47 // loop_header_branch
                %221 = sbr.rel (%p219) target = $region55
              $region52: #{sp_head_forward.33} parent=47 // loop_body
                %v225 = vld [vmem:[%s223] sm:%s216]
                %226 = vst [vmem:[%s224] sm:%s216] %v225
                %v227 = vld [vmem:[%s223 + $0x18] sm:%s216]
                %228 = vst [vmem:[%s224 + $0x8] sm:%s216] %v227
              $region53: #{sp_head_forward.33} parent=47 // loop_footer
                %s222 = sadd.s32 1, %s218
              $region54: #{sp_head_forward.33} parent=47 // loop_footer_branch
                %217 = sbr.rel target = $region50
              $region55: #{sp_head_forward.33} parent=47 // loop_exit
                _
            $region48: #{sp_head_forward.33} parent=39 // pred_fallthru
              _
          $region40: #{sp_head_forward.33} parent=35 // pred_fallthru
            _
          %245 = vnop
        $region36: #{sp_head_forward.33} parent=23 // pred_fallthru
          _
      $region24: #{sp_head_forward.33} parent=5 // pred_fallthru
        _
      %p246 = scmp.le.s32.totalorder 1, %s11
      %p247 = scmp.lt.s32.totalorder %s11, 4
      %p248 = pnand %p246, %p247
      %p249 = pneg %p248
      // Predicated region
      $region71: #{sp_head_forward.33} parent=5 // pred_check
        _
      $region72: #{sp_head_forward.33} parent=5 // pred_check_branch
        %251 = sbr.rel (%p248) target = $region74
      $region73: #{sp_head_forward.33} parent=5 // pred_region
        %s252 = ssub.s32 %s11, 1
        %s253 = sand.u32 %s118, 1
        %s254 = sand.u32 %s118, 1
        %s255 = smul.addr %s254, 16
        %s256 = scalar_lea.vmem [#allocation2], %s255
        // Predicated region
        $region75: #{sp_head_forward.33} parent=73 // pred_check
          %p257 = pneg %p131
        $region76: #{sp_head_forward.33} parent=73 // pred_check_branch
          %259 = sbr.rel (%p257) target = $region78
        $region77: #{sp_head_forward.33} parent=73 // pred_region
          _
        $region78: #{sp_head_forward.33} parent=73 // pred_fallthru
          _
        %s260 = smul.u32 2, %s16
        %p261 = scmp.lt.s32.totalorder %s260, 5
        %s262 = scalar_select %p261, %s260, 5
        %s263 = smul.addr %s262, 4
        %s264 = scalar_lea.vmem %s0, %s263
        %p265 = pneg %p37
        %p266 = pneg %p34
        %p267 = pneg %p58
        %p268 = pneg %p55
        %p269 = pneg %p79
        %p270 = pneg %p76
        %s271 = smul.u32 2, %s16
        %p272 = scmp.lt.s32.totalorder %s271, 5
        %s273 = scalar_select %p272, %s271, 5
        %s274 = scalar_lea.vmem %s3, %s273
        %p275 = pneg %p105
        %p276 = pneg %p102
        %s277 = sand.u32 %s118, 1
        %s278 = sand.u32 %s118, 1
        %s279 = smul.addr %s278, 16
        %s280 = scalar_lea.vmem [#allocation2], %s279
        %p281 = pneg %p131
        %p282 = pneg %p128
        %p283 = pneg %p157
        %p284 = pneg %p154
        %s285 = sand.u32 %s144, 1
        %s286 = sand.u32 %s144, 1
        %s287 = smul.addr %s286, 16
        %s288 = scalar_lea.vmem [#allocation3], %s287
        %s289 = smul.u32 2, %s16
        %p290 = scmp.lt.s32.totalorder %s289, 5
        %s291 = scalar_select %p290, %s289, 5
        %s292 = smul.addr %s291, 4
        %s293 = scalar_lea.vmem %s0, %s292
        %s294 = smul.u32 2, %s16
        %s295 = smul.u32 2, %s16
        %p296 = scmp.lt.s32.totalorder %s295, 5
        %s297 = scalar_select %p296, %s295, 5
        %s298 = scalar_lea.vmem %s3, %s297
        %s299 = smul.u32 2, %s16
        %s300 = smul.u32 2, %s16
        %s301 = smul.u32 2, %s16
        %v303 = vld [vmem:[%s293] sm:$0xff]
        %v304 = vld [vmem:[%s1] sm:$0xf]
        %v305 = vld [vmem:[%s1 + $0x4] sm:$0xf]
        %v306 = vld [vmem:[%s2] sm:$0xff]
        %v307 = vld [vmem:[%s2 + $0x8] sm:$0xff]
        %309 = vset.pattern.permute.xlu0 0
        %310 = vperm.xlu0 %309, %v306
        %v311 = vpop.permute.xlu0 %310
        %314 = vset.pattern.permute.xlu0 0
        %315 = vperm.xlu0 %314, %v307
        %v316 = vpop.permute.xlu0 %315
        %v320 = vunpack.c.l.b16 %v304
        %v321 = vunpack.c.l.b16 %v305
        %v322 = vpack.c.b16 %v321, %v320
        %v324 = vunpack.c.l.b16 %v303
        %v325 = vunpack.c.h.b16 %v303
        %v326 = vpack.c.b16 %v324, %v324
        %v327 = vpack.c.b16 %v325, %v325
        %vm328 = vcmask 64512
        %v330 = vsel %vm328, %v322, 0
        %vm332 = vcmask 1043456
        %v334 = vsel %vm332, %v326, 0
        %v337 = vsel %vm332, %v327, 0
        %339 = vmatprep.subr.bf16.mxu0 0
        %340 = vmatpush1.bf16.msra.mxu0 0
        %341 = vmatprep.subr.bf16.mxu0 0
        %342 = vmatpush1.bf16.msra.mxu0 0
        %343 = vmatprep.subr.bf16.mxu0 0
        %344 = vmatpush1.bf16.msra.mxu0 0
        %345 = vmatprep.subr.bf16.mxu0 0
        %346 = vmatpush1.bf16.msra.mxu0 0
        %347 = vmatprep.subr.bf16.mxu0 0
        %348 = vmatpush1.bf16.msra.mxu0 0
        %349 = vmatprep.subr.bf16.mxu0 0
        %350 = vmatpush1.bf16.msra.mxu0 0
        %351 = vmatprep.subr.bf16.mxu0 0
        %352 = vmatpush1.bf16.msra.mxu0 0
        %353 = vmatprep.subr.bf16.mxu0 %v337
        %354 = vmatpush1.bf16.msra.mxu0 %v334
        %355 = vmatprep.subr.bf16.mxu0 0
        %356 = vmatpush2.bf16.msra.mxu0 0
        %357 = vmatprep.subr.bf16.mxu0 0
        %358 = vmatpush2.bf16.msra.mxu0 0
        %359 = vmatprep.subr.bf16.mxu0 0
        %360 = vmatpush2.bf16.msra.mxu0 0
        %361 = vmatprep.subr.bf16.mxu0 0
        %362 = vmatpush2.bf16.msra.mxu0 0
        %363 = vmatprep.subr.bf16.mxu0 0
        %364 = vmatpush2.bf16.msra.mxu0 0
        %365 = vmatprep.subr.bf16.mxu0 0
        %366 = vmatpush2.bf16.msra.mxu0 0
        %367 = vmatprep.subr.bf16.mxu0 0
        %368 = vmatpush2.bf16.msra.mxu0 0
        %369 = vmatprep.subr.bf16.mxu0 0
        %370 = vmatpush2.bf16.msra.mxu0 0
        %371 = vmatprep.mubr.bf16.mxu0 0
        %372 = vmatmul.mubr.bf16.gmra.mxu0 %v330
        %v373 = vpop.f32.mrf.mxu0
        %v374 = vadd.f32 %v311, %v373
        %v375 = vpop.f32.mrf.mxu0
        %v376 = vadd.f32 %v311, %v375
        %v377 = vpop.f32.mrf.mxu0
        %v378 = vadd.f32 %v316, %v377
        %v379 = vpop.f32.mrf.mxu0
        %v380 = vadd.f32 %v316, %v379
        %381 = vdwg.mxu0
        %v382 = vld [vmem:[%s256] sm:$0xff]
        %v383 = vld [vmem:[%s256 + $0x8] sm:$0xff]
        %v384 = vunpack.c.l.bf16 %v382
        %v385 = vunpack.c.h.bf16 %v382
        %v386 = vunpack.c.l.bf16 %v383
        %v387 = vunpack.c.h.bf16 %v383
        %v388 = vadd.f32 %v374, %v384
        %v389 = vadd.f32 %v376, %v385
        %v390 = vadd.f32 %v378, %v386
        %v391 = vadd.f32 %v380, %v387
        %v392 = vmax.f32 %v388, 0.0
        %v393 = vmax.f32 %v389, 0.0
        %v394 = vmax.f32 %v390, 0.0
        %v395 = vmax.f32 %v391, 0.0
        %v396 = vld [vmem:[%s298] sm:$0x3]
        %v398 = vlaneseq
        %v399 = vshrl.u32 %v398, 7
        %v400 = vsub.s32 0, %v399
        %v401 = vrot.slane %v396, %v400
        %v402 = vlaneseq
        %v403 = vshrl.u32 %v402, 7
        %v404 = vsub.s32 1, %v403
        %v405 = vrot.slane %v396, %v404
        %v408 = vmul.f32 %v392, %v401
        %v409 = vmul.f32 %v393, %v405
        %v410 = vmul.f32 %v394, %v401
        %v411 = vmul.f32 %v395, %v405
        %v412 = vpack.c.bf16 %v410, %v408
        %v413 = vpack.c.bf16 %v411, %v409
        %v416 = vunpack.c.l.b16 %v412
        %v417 = vunpack.c.l.b16 %v413
        %v418 = vunpack.c.h.b16 %v412
        %v419 = vunpack.c.h.b16 %v413
        %v420 = vpack.c.b16 %v417, %v416
        %v421 = vpack.c.b16 %v419, %v418
        %424 = vst [vmem:[%s288] sm:$0xff] %v420
        %425 = vst [vmem:[%s288 + $0x8] sm:$0xff] %v421
        %s426 = sand.u32 %s144, 1
        %s427 = sand.u32 %s144, 1
        %s428 = smul.addr %s427, 16
        %s429 = scalar_lea.vmem [#allocation3], %s428
        // Predicated region
        $region79: #{sp_head_forward.33} parent=73 // pred_check
          %p430 = pneg %p154
        $region80: #{sp_head_forward.33} parent=73 // pred_check_branch
          %432 = sbr.rel (%p430) target = $region82
        $region81: #{sp_head_forward.33} parent=73 // pred_region
          %s433 = smul.u32 2, %s16
          %s434 = smul.addr %s433, 4
          %s435 = scalar_lea.vmem %s5, %s434
          // Predicated region
          $region83: #{sp_head_forward.33} parent=81 // pred_check
            _
          $region84: #{sp_head_forward.33} parent=81 // pred_check_branch
            %437 = sbr.rel (0) target = $region86
          $region85: #{sp_head_forward.33} parent=81 // pred_region
            // Predicated region
            $region87: #{sp_head_forward.33} parent=85 // pred_check
              _
            $region88: #{sp_head_forward.33} parent=85 // pred_check_branch
              %439 = sbr.rel (0) target = $region90
            $region89: #{sp_head_forward.33} parent=85 // pred_region
              // Predicated region
              $region102: #{sp_head_forward.33} parent=89 // pred_check
                _
              $region103: #{sp_head_forward.33} parent=89 // pred_check_branch
                %457 = sbr.rel (0) target = $region105
              $region104: #{sp_head_forward.33} parent=89 // pred_region
                loop: start=0, step=1, limit=1
                $region106: #{sp_head_forward.33} parent=104 // loop_pre_header
                  _
                $region107: #{sp_head_forward.33} parent=104 // loop_header
                  %s459 = sphi 0, %s463
                  %p460 = scmp.ge.s32.totalorder %s459, 1
                  %s464 = sphi %s429, %s429
                  %s465 = sphi %s435, %s435
                $region108: #{sp_head_forward.33} parent=104 // loop_header_branch
                  %462 = sbr.rel (%p460) target = $region112
                $region109: #{sp_head_forward.33} parent=104 // loop_body
                  %v466 = vld [vmem:[%s464] sm:$0xff]
                  %467 = vst [vmem:[%s465] sm:$0xff] %v466
                  %v468 = vld [vmem:[%s464 + $0x8] sm:$0xff]
                  %469 = vst [vmem:[%s465 + $0x18] sm:$0xff] %v468
                $region110: #{sp_head_forward.33} parent=104 // loop_footer
                  %s463 = sadd.s32 1, %s459
                $region111: #{sp_head_forward.33} parent=104 // loop_footer_branch
                  %458 = sbr.rel target = $region107
                $region112: #{sp_head_forward.33} parent=104 // loop_exit
                  _
              $region105: #{sp_head_forward.33} parent=89 // pred_fallthru
                _
              // Predicated region
              $region113: #{sp_head_forward.33} parent=89 // pred_check
                _
              $region114: #{sp_head_forward.33} parent=89 // pred_check_branch
                %471 = sbr.rel target = $region116
              $region115: #{sp_head_forward.33} parent=89 // pred_region
                _
              $region116: #{sp_head_forward.33} parent=89 // pred_fallthru
                _
            $region90: #{sp_head_forward.33} parent=85 // pred_fallthru
              _
            // Predicated region
            $region91: #{sp_head_forward.33} parent=85 // pred_check
              _
            $region92: #{sp_head_forward.33} parent=85 // pred_check_branch
              %441 = sbr.rel target = $region94
            $region93: #{sp_head_forward.33} parent=85 // pred_region
              %s443 = ssub.s32 256, 1
              loop: start=0, step=1, limit=1
              $region95: #{sp_head_forward.33} parent=93 // loop_pre_header
                _
              $region96: #{sp_head_forward.33} parent=93 // loop_header
                %s445 = sphi 0, %s449
                %p446 = scmp.ge.s32.totalorder %s445, 1
                %s450 = sphi %s429, %s429
                %s451 = sphi %s435, %s435
              $region97: #{sp_head_forward.33} parent=93 // loop_header_branch
                %448 = sbr.rel (%p446) target = $region101
              $region98: #{sp_head_forward.33} parent=93 // loop_body
                %v452 = vld [vmem:[%s450] sm:%s443]
                %453 = vst [vmem:[%s451] sm:%s443] %v452
                %v454 = vld [vmem:[%s450 + $0x8] sm:%s443]
                %455 = vst [vmem:[%s451 + $0x18] sm:%s443] %v454
              $region99: #{sp_head_forward.33} parent=93 // loop_footer
                %s449 = sadd.s32 1, %s445
              $region100: #{sp_head_forward.33} parent=93 // loop_footer_branch
                %444 = sbr.rel target = $region96
              $region101: #{sp_head_forward.33} parent=93 // loop_exit
                _
            $region94: #{sp_head_forward.33} parent=85 // pred_fallthru
              _
          $region86: #{sp_head_forward.33} parent=81 // pred_fallthru
            _
          %472 = vnop
        $region82: #{sp_head_forward.33} parent=73 // pred_fallthru
          _
      $region74: #{sp_head_forward.33} parent=5 // pred_fallthru
        _
      %p473 = scmp.le.s32.totalorder 2, %s11
      // Predicated region
      $region117: #{sp_head_forward.33} parent=5 // pred_check
        %p474 = pneg %p473
      $region118: #{sp_head_forward.33} parent=5 // pred_check_branch
        %476 = sbr.rel (%p474) target = $region120
      $region119: #{sp_head_forward.33} parent=5 // pred_region
        %s477 = ssub.s32 %s11, 2
        // Predicated region
        $region121: #{sp_head_forward.33} parent=119 // pred_check
          %p478 = pneg %p160
        $region122: #{sp_head_forward.33} parent=119 // pred_check_branch
          %480 = sbr.rel (%p478) target = $region124
        $region123: #{sp_head_forward.33} parent=119 // pred_region
          %s481 = sand.u32 %s145, 1
          %s482 = sand.u32 %s145, 1
          %s483 = smul.addr %s482, 16
          %s484 = scalar_lea.vmem [#allocation3], %s483
        $region124: #{sp_head_forward.33} parent=119 // pred_fallthru
          _
      $region120: #{sp_head_forward.33} parent=5 // pred_fallthru
        _
    $region6: #{sp_head_forward.33} parent=1 // loop_footer
      %s15 = sadd.s32 1, %s11
    $region7: #{sp_head_forward.33} parent=1 // loop_footer_branch
      %10 = sbr.rel target = $region3
    $region8: #{sp_head_forward.33} parent=1 // loop_exit
      _

// kernel: sp_head_forward.30
$region0: #{sp_head_forward.30}
  #allocation0 [shape = 'u32[]', space=smem, size = 0x4, offset = 0x4, fixed_abs, tag = 'smem constant byte address 0x4 - core index']
  #allocation1 [shape = 'u32[144,128]{1,0:T(1,128)}', space=vmem, size = 0x12000, scoped, tag = 'internal scratch']
  %s0 = inlined_call_operand.vmem [shape: bf16[4,768], index: 0, kind: input, shape index: {}]
  %s1 = inlined_call_operand.vmem [shape: bf16[4,768], index: 1, kind: input, shape index: {}]
  %s2 = inlined_call_operand.vmem [shape: bf16[4,768], index: 2, kind: output, shape index: {}]
  %s3 = sld [smem:[#allocation0]]
  $region41: #{sp_head_forward.30} parent=0
    _
  %s5 = ssub.s32 1, %s3
  %s6 = scalar_select 0, %s5, %s3
  loop: start=0, step=1, limit=5
  $region2: #{sp_head_forward.30} parent=0 // loop_pre_header
    _
  $region3: #{sp_head_forward.30} parent=0 // loop_header
    %s8 = sphi 0, %s12
    %p9 = scmp.ge.s32.totalorder %s8, 5
    %s18 = sphi 0, %s20
    %s21 = sphi 0, %s18
    %s22 = sphi 0, %s21
    %s38 = sphi 0, %s22
    %s44 = sphi 0, %s46
    %s47 = sphi 0, %s44
    %s48 = sphi 0, %s47
    %s64 = sphi 0, %s48
    %s70 = sphi 0, %s72
    %s73 = sphi 0, %s70
    %s74 = sphi 0, %s73
    %s90 = sphi 0, %s74
  $region4: #{sp_head_forward.30} parent=0 // loop_header_branch
    %11 = sbr.rel (%p9) target = $region8
  $region5: #{sp_head_forward.30} parent=0 // loop_body
    %s13 = ssub.s32 %s8, 1
    %s14 = ssub.s32 %s8, 2
    %s15 = sadd.s32 %s8, 1
    %s16 = ssub.s32 %s8, %s15
    %p17 = scmp.eq.s32.totalorder %s16, 0
    %s19 = sadd.s32 %s18, 1
    %s20 = scalar_select %p17, %s18, %s19
    %p23 = pneg %p17
    %p24 = scmp.eq.s32.totalorder %s8, 2
    %p25 = por %p23, %p24
    %p26 = scmp.ne.s32.totalorder %s18, %s21
    %p27 = scmp.eq.s32.totalorder %s8, 0
    %p28 = por %p26, %p27
    %p29 = scmp.ne.s32.totalorder %s18, %s21
    %p30 = scmp.eq.s32.totalorder %s13, 2
    %p31 = por %p29, %p30
    %p32 = scmp.ne.s32.totalorder %s21, %s22
    %p33 = scmp.eq.s32.totalorder %s13, 0
    %p34 = por %p32, %p33
    %p35 = scmp.ne.s32.totalorder %s21, %s22
    %p36 = scmp.eq.s32.totalorder %s14, 2
    %p37 = por %p35, %p36
    %p39 = scmp.ne.s32.totalorder %s22, %s38
    %p40 = scmp.eq.s32.totalorder %s14, 0
    %p41 = por %p39, %p40
    %s42 = ssub.s32 %s8, %s15
    %p43 = scmp.eq.s32.totalorder %s42, 0
    %s45 = sadd.s32 %s44, 1
    %s46 = scalar_select %p43, %s44, %s45
    %p49 = pneg %p43
    %p50 = scmp.eq.s32.totalorder %s8, 2
    %p51 = por %p49, %p50
    %p52 = scmp.ne.s32.totalorder %s44, %s47
    %p53 = scmp.eq.s32.totalorder %s8, 0
    %p54 = por %p52, %p53
    %p55 = scmp.ne.s32.totalorder %s44, %s47
    %p56 = scmp.eq.s32.totalorder %s13, 2
    %p57 = por %p55, %p56
    %p58 = scmp.ne.s32.totalorder %s47, %s48
    %p59 = scmp.eq.s32.totalorder %s13, 0
    %p60 = por %p58, %p59
    %p61 = scmp.ne.s32.totalorder %s47, %s48
    %p62 = scmp.eq.s32.totalorder %s14, 2
    %p63 = por %p61, %p62
    %p65 = scmp.ne.s32.totalorder %s48, %s64
    %p66 = scmp.eq.s32.totalorder %s14, 0
    %p67 = por %p65, %p66
    %s68 = ssub.s32 %s8, %s15
    %p69 = scmp.eq.s32.totalorder %s68, 0
    %s71 = sadd.s32 %s70, 1
    %s72 = scalar_select %p69, %s70, %s71
    %p75 = pneg %p69
    %p76 = scmp.eq.s32.totalorder %s8, 2
    %p77 = por %p75, %p76
    %p78 = scmp.ne.s32.totalorder %s70, %s73
    %p79 = scmp.eq.s32.totalorder %s8, 0
    %p80 = por %p78, %p79
    %p81 = scmp.ne.s32.totalorder %s70, %s73
    %p82 = scmp.eq.s32.totalorder %s13, 2
    %p83 = por %p81, %p82
    %p84 = scmp.ne.s32.totalorder %s73, %s74
    %p85 = scmp.eq.s32.totalorder %s13, 0
    %p86 = por %p84, %p85
    %p87 = scmp.ne.s32.totalorder %s73, %s74
    %p88 = scmp.eq.s32.totalorder %s14, 2
    %p89 = por %p87, %p88
    %p91 = scmp.ne.s32.totalorder %s74, %s90
    %p92 = scmp.eq.s32.totalorder %s14, 0
    %p93 = por %p91, %p92
    %p94 = scmp.le.s32.totalorder 1, %s8
    %p95 = scmp.lt.s32.totalorder %s8, 4
    %p96 = pnand %p94, %p95
    %p97 = pneg %p96
    // Predicated region
    $region9: #{sp_head_forward.30} parent=5 // pred_check
      _
    $region10: #{sp_head_forward.30} parent=5 // pred_check_branch
      %99 = sbr.rel (%p96) target = $region12
    $region11: #{sp_head_forward.30} parent=5 // pred_region
      %s100 = ssub.s32 %s8, 1
    $region12: #{sp_head_forward.30} parent=5 // pred_fallthru
      _
    %p101 = scmp.lt.s32.totalorder %s8, 3
    // Predicated region
    $region13: #{sp_head_forward.30} parent=5 // pred_check
      %p102 = pneg %p101
    $region14: #{sp_head_forward.30} parent=5 // pred_check_branch
      %104 = sbr.rel (%p102) target = $region16
    $region15: #{sp_head_forward.30} parent=5 // pred_region
      // Predicated region
      $region17: #{sp_head_forward.30} parent=15 // pred_check
        %p105 = pneg %p28
      $region18: #{sp_head_forward.30} parent=15 // pred_check_branch
        %107 = sbr.rel (%p105) target = $region20
      $region19: #{sp_head_forward.30} parent=15 // pred_region
        %s108 = smul.u32 2, %s8
        %p109 = scmp.lt.s32.totalorder %s108, 5
        %s110 = scalar_select %p109, %s108, 5
        %s111 = smul.addr %s110, 2
        %s112 = scalar_lea.vmem %s0, %s111
        %s113 = smul.u32 2, %s8
      $region20: #{sp_head_forward.30} parent=15 // pred_fallthru
        _
      // Predicated region
      $region21: #{sp_head_forward.30} parent=15 // pred_check
        %p114 = pneg %p54
      $region22: #{sp_head_forward.30} parent=15 // pred_check_branch
        %116 = sbr.rel (%p114) target = $region24
      $region23: #{sp_head_forward.30} parent=15 // pred_region
        %s117 = smul.u32 2, %s8
        %p118 = scmp.lt.s32.totalorder %s117, 5
        %s119 = scalar_select %p118, %s117, 5
        %s120 = smul.addr %s119, 2
        %s121 = scalar_lea.vmem %s1, %s120
        %s122 = smul.u32 2, %s8
      $region24: #{sp_head_forward.30} parent=15 // pred_fallthru
        _
    $region16: #{sp_head_forward.30} parent=5 // pred_fallthru
      _
    %p123 = scmp.le.s32.totalorder 1, %s8
    %p124 = scmp.lt.s32.totalorder %s8, 4
    %p125 = pnand %p123, %p124
    %p126 = pneg %p125
    // Predicated region
    $region25: #{sp_head_forward.30} parent=5 // pred_check
      _
    $region26: #{sp_head_forward.30} parent=5 // pred_check_branch
      %128 = sbr.rel (%p125) target = $region28
    $region27: #{sp_head_forward.30} parent=5 // pred_region
      %s129 = ssub.s32 %s8, 1
      %s130 = smul.u32 2, %s13
      %p131 = scmp.lt.s32.totalorder %s130, 5
      %s132 = scalar_select %p131, %s130, 5
      %s133 = smul.addr %s132, 2
      %s134 = scalar_lea.vmem %s0, %s133
      %p135 = pneg %p34
      %p136 = pneg %p31
      %s137 = smul.u32 2, %s13
      %p138 = scmp.lt.s32.totalorder %s137, 5
      %s139 = scalar_select %p138, %s137, 5
      %s140 = smul.addr %s139, 2
      %s141 = scalar_lea.vmem %s1, %s140
      %p142 = pneg %p60
      %p143 = pneg %p57
      %p144 = pneg %p86
      %p145 = pneg %p83
      %s146 = smul.u32 2, %s13
      %p147 = scmp.lt.s32.totalorder %s146, 5
      %s148 = scalar_select %p147, %s146, 5
      %s149 = smul.addr %s148, 2
      %s150 = scalar_lea.vmem %s2, %s149
      %s151 = smul.u32 2, %s13
      %p152 = scmp.lt.s32.totalorder %s151, 5
      %s153 = scalar_select %p152, %s151, 5
      %s154 = smul.addr %s153, 2
      %s155 = scalar_lea.vmem %s0, %s154
      %s156 = smul.u32 2, %s13
      %s157 = smul.u32 2, %s13
      %p158 = scmp.lt.s32.totalorder %s157, 5
      %s159 = scalar_select %p158, %s157, 5
      %s160 = smul.addr %s159, 2
      %s161 = scalar_lea.vmem %s1, %s160
      %s162 = smul.u32 2, %s13
      %s163 = smul.u32 2, %s13
      %p164 = scmp.lt.s32.totalorder %s163, 5
      %s165 = scalar_select %p164, %s163, 5
      %s166 = smul.addr %s165, 2
      %s167 = scalar_lea.vmem %s2, %s166
      %s168 = smul.u32 2, %s13
      %v169 = vld [vmem:[%s155] sm:$0xf]
      %v170 = vunpack.c.l.bf16 %v169
      %v171 = vld [vmem:[%s161] sm:$0xf]
      %v172 = vunpack.c.l.bf16 %v171
      %v173 = vadd.f32 %v170, %v172
      %v174 = vmax.f32 %v173, 0.0
      %v176 = vcombine.high %v174, %v174
      %v178 = vpack.c.bf16 %v174, %v174
      %v179 = vpack.c.bf16 %v176, %v176
      %v182 = vcombine.low %v178, %v179
      %v184 = vunpack.c.l.s4 1983009808
      %v185 = vunpack.c.0.s8 %v184
      %v186 = vlaneseq
      %v187 = vshrl.u32 %v186, 7
      %v188 = vsub.s32 %v185, %v187
      %v189 = vrot.slane %v182, %v188
      %191 = vst [vmem:[%s167] sm:$0xf] %v189
      %s192 = smul.u32 2, %s13
      %p193 = scmp.lt.s32.totalorder %s192, 5
      %s194 = scalar_select %p193, %s192, 5
      %s195 = smul.addr %s194, 2
      %s196 = scalar_lea.vmem %s2, %s195
      // Predicated region
      $region29: #{sp_head_forward.30} parent=27 // pred_check
        %p197 = pneg %p83
      $region30: #{sp_head_forward.30} parent=27 // pred_check_branch
        %199 = sbr.rel (%p197) target = $region32
      $region31: #{sp_head_forward.30} parent=27 // pred_region
        %s200 = smul.u32 2, %s13
      $region32: #{sp_head_forward.30} parent=27 // pred_fallthru
        _
    $region28: #{sp_head_forward.30} parent=5 // pred_fallthru
      _
    %p201 = scmp.le.s32.totalorder 2, %s8
    // Predicated region
    $region33: #{sp_head_forward.30} parent=5 // pred_check
      %p202 = pneg %p201
    $region34: #{sp_head_forward.30} parent=5 // pred_check_branch
      %204 = sbr.rel (%p202) target = $region36
    $region35: #{sp_head_forward.30} parent=5 // pred_region
      %s205 = ssub.s32 %s8, 2
      // Predicated region
      $region37: #{sp_head_forward.30} parent=35 // pred_check
        %p206 = pneg %p89
      $region38: #{sp_head_forward.30} parent=35 // pred_check_branch
        %208 = sbr.rel (%p206) target = $region40
      $region39: #{sp_head_forward.30} parent=35 // pred_region
        %s209 = smul.u32 2, %s14
        %p210 = scmp.lt.s32.totalorder %s209, 5
        %s211 = scalar_select %p210, %s209, 5
        %s212 = smul.addr %s211, 2
        %s213 = scalar_lea.vmem %s2, %s212
      $region40: #{sp_head_forward.30} parent=35 // pred_fallthru
        _
    $region36: #{sp_head_forward.30} parent=5 // pred_fallthru
      _
  $region6: #{sp_head_forward.30} parent=0 // loop_footer
    %s12 = sadd.s32 1, %s8
  $region7: #{sp_head_forward.30} parent=0 // loop_footer_branch
    %7 = sbr.rel target = $region3
  $region8: #{sp_head_forward.30} parent=0 // loop_exit
    _

// kernel: sp_head_forward.45
$region0: #{sp_head_forward.45}
  #allocation0 [shape = 'u32[]', space=smem, size = 0x4, offset = 0x4, fixed_abs, tag = 'smem constant byte address 0x4 - core index']
  #allocation1 [shape = 'u32[144,128]{1,0:T(1,128)}', space=vmem, size = 0x12000, scoped, tag = 'internal scratch']
  %s0 = inlined_call_operand.vmem [shape: bf16[8,768], index: 0, kind: input, shape index: {}]
  %s1 = inlined_call_operand.vmem [shape: bf16[1,8,8], index: 1, kind: input, shape index: {}]
  %s2 = inlined_call_operand.vmem [shape: f32[8,1], index: 2, kind: input, shape index: {}]
  %s3 = inlined_call_operand.vmem [shape: f32[1,768], index: 3, kind: input, shape index: {}]
  %s4 = inlined_call_operand.vmem [shape: bf16[8,768], index: 4, kind: output, shape index: {}]
  %s5 = sld [smem:[#allocation0]]
  $region49: #{sp_head_forward.45} parent=0
    _
  %s7 = ssub.s32 1, %s5
  %s8 = scalar_select 0, %s7, %s5
  loop: start=0, step=1, limit=5
  $region2: #{sp_head_forward.45} parent=0 // loop_pre_header
    _
  $region3: #{sp_head_forward.45} parent=0 // loop_header
    %s10 = sphi 0, %s14
    %p11 = scmp.ge.s32.totalorder %s10, 5
    %s20 = sphi 0, %s22
    %s23 = sphi 0, %s20
    %s24 = sphi 0, %s23
    %s40 = sphi 0, %s24
    %s44 = sphi 0, %s44
    %s46 = sphi 0, %s44
    %s47 = sphi 0, %s46
    %s61 = sphi 0, %s47
    %s65 = sphi 0, %s65
    %s67 = sphi 0, %s65
    %s68 = sphi 0, %s67
    %s82 = sphi 0, %s68
    %s88 = sphi 0, %s90
    %s91 = sphi 0, %s88
    %s92 = sphi 0, %s91
    %s108 = sphi 0, %s92
    %s114 = sphi 0, %s116
    %s117 = sphi 0, %s114
    %s118 = sphi 0, %s117
    %s134 = sphi 0, %s118
  $region4: #{sp_head_forward.45} parent=0 // loop_header_branch
    %13 = sbr.rel (%p11) target = $region8
  $region5: #{sp_head_forward.45} parent=0 // loop_body
    %s15 = ssub.s32 %s10, 1
    %s16 = ssub.s32 %s10, 2
    %s17 = sadd.s32 %s10, 1
    %s18 = ssub.s32 %s10, %s17
    %p19 = scmp.eq.s32.totalorder %s18, 0
    %s21 = sadd.s32 %s20, 1
    %s22 = scalar_select %p19, %s20, %s21
    %p25 = pneg %p19
    %p26 = scmp.eq.s32.totalorder %s10, 2
    %p27 = por %p25, %p26
    %p28 = scmp.ne.s32.totalorder %s20, %s23
    %p29 = scmp.eq.s32.totalorder %s10, 0
    %p30 = por %p28, %p29
    %p31 = scmp.ne.s32.totalorder %s20, %s23
    %p32 = scmp.eq.s32.totalorder %s15, 2
    %p33 = por %p31, %p32
    %p34 = scmp.ne.s32.totalorder %s23, %s24
    %p35 = scmp.eq.s32.totalorder %s15, 0
    %p36 = por %p34, %p35
    %p37 = scmp.ne.s32.totalorder %s23, %s24
    %p38 = scmp.eq.s32.totalorder %s16, 2
    %p39 = por %p37, %p38
    %p41 = scmp.ne.s32.totalorder %s24, %s40
    %p42 = scmp.eq.s32.totalorder %s16, 0
    %p43 = por %p41, %p42
    %s45 = sadd.s32 %s44, 1
    %p48 = scmp.eq.s32.totalorder %s10, 2
    %p49 = scmp.ne.s32.totalorder %s44, %s46
    %p50 = scmp.eq.s32.totalorder %s10, 0
    %p51 = por %p49, %p50
    %p52 = scmp.ne.s32.totalorder %s44, %s46
    %p53 = scmp.eq.s32.totalorder %s15, 2
    %p54 = por %p52, %p53
    %p55 = scmp.ne.s32.totalorder %s46, %s47
    %p56 = scmp.eq.s32.totalorder %s15, 0
    %p57 = por %p55, %p56
    %p58 = scmp.ne.s32.totalorder %s46, %s47
    %p59 = scmp.eq.s32.totalorder %s16, 2
    %p60 = por %p58, %p59
    %p62 = scmp.ne.s32.totalorder %s47, %s61
    %p63 = scmp.eq.s32.totalorder %s16, 0
    %p64 = por %p62, %p63
    %s66 = sadd.s32 %s65, 1
    %p69 = scmp.eq.s32.totalorder %s10, 2
    %p70 = scmp.ne.s32.totalorder %s65, %s67
    %p71 = scmp.eq.s32.totalorder %s10, 0
    %p72 = por %p70, %p71
    %p73 = scmp.ne.s32.totalorder %s65, %s67
    %p74 = scmp.eq.s32.totalorder %s15, 2
    %p75 = por %p73, %p74
    %p76 = scmp.ne.s32.totalorder %s67, %s68
    %p77 = scmp.eq.s32.totalorder %s15, 0
    %p78 = por %p76, %p77
    %p79 = scmp.ne.s32.totalorder %s67, %s68
    %p80 = scmp.eq.s32.totalorder %s16, 2
    %p81 = por %p79, %p80
    %p83 = scmp.ne.s32.totalorder %s68, %s82
    %p84 = scmp.eq.s32.totalorder %s16, 0
    %p85 = por %p83, %p84
    %s86 = ssub.s32 %s10, %s17
    %p87 = scmp.eq.s32.totalorder %s86, 0
    %s89 = sadd.s32 %s88, 1
    %s90 = scalar_select %p87, %s88, %s89
    %p93 = pneg %p87
    %p94 = scmp.eq.s32.totalorder %s10, 2
    %p95 = por %p93, %p94
    %p96 = scmp.ne.s32.totalorder %s88, %s91
    %p97 = scmp.eq.s32.totalorder %s10, 0
    %p98 = por %p96, %p97
    %p99 = scmp.ne.s32.totalorder %s88, %s91
    %p100 = scmp.eq.s32.totalorder %s15, 2
    %p101 = por %p99, %p100
    %p102 = scmp.ne.s32.totalorder %s91, %s92
    %p103 = scmp.eq.s32.totalorder %s15, 0
    %p104 = por %p102, %p103
    %p105 = scmp.ne.s32.totalorder %s91, %s92
    %p106 = scmp.eq.s32.totalorder %s16, 2
    %p107 = por %p105, %p106
    %p109 = scmp.ne.s32.totalorder %s92, %s108
    %p110 = scmp.eq.s32.totalorder %s16, 0
    %p111 = por %p109, %p110
    %s112 = ssub.s32 %s10, %s17
    %p113 = scmp.eq.s32.totalorder %s112, 0
    %s115 = sadd.s32 %s114, 1
    %s116 = scalar_select %p113, %s114, %s115
    %p119 = pneg %p113
    %p120 = scmp.eq.s32.totalorder %s10, 2
    %p121 = por %p119, %p120
    %p122 = scmp.ne.s32.totalorder %s114, %s117
    %p123 = scmp.eq.s32.totalorder %s10, 0
    %p124 = por %p122, %p123
    %p125 = scmp.ne.s32.totalorder %s114, %s117
    %p126 = scmp.eq.s32.totalorder %s15, 2
    %p127 = por %p125, %p126
    %p128 = scmp.ne.s32.totalorder %s117, %s118
    %p129 = scmp.eq.s32.totalorder %s15, 0
    %p130 = por %p128, %p129
    %p131 = scmp.ne.s32.totalorder %s117, %s118
    %p132 = scmp.eq.s32.totalorder %s16, 2
    %p133 = por %p131, %p132
    %p135 = scmp.ne.s32.totalorder %s118, %s134
    %p136 = scmp.eq.s32.totalorder %s16, 0
    %p137 = por %p135, %p136
    %p138 = scmp.le.s32.totalorder 1, %s10
    %p139 = scmp.lt.s32.totalorder %s10, 4
    %p140 = pnand %p138, %p139
    %p141 = pneg %p140
    // Predicated region
    $region9: #{sp_head_forward.45} parent=5 // pred_check
      _
    $region10: #{sp_head_forward.45} parent=5 // pred_check_branch
      %143 = sbr.rel (%p140) target = $region12
    $region11: #{sp_head_forward.45} parent=5 // pred_region
      %s144 = ssub.s32 %s10, 1
      // Predicated region
      $region13: #{sp_head_forward.45} parent=11 // pred_check
        %p145 = pneg %p57
      $region14: #{sp_head_forward.45} parent=11 // pred_check_branch
        %147 = sbr.rel (%p145) target = $region16
      $region15: #{sp_head_forward.45} parent=11 // pred_region
        _
      $region16: #{sp_head_forward.45} parent=11 // pred_fallthru
        _
      // Predicated region
      $region17: #{sp_head_forward.45} parent=11 // pred_check
        %p148 = pneg %p78
      $region18: #{sp_head_forward.45} parent=11 // pred_check_branch
        %150 = sbr.rel (%p148) target = $region20
      $region19: #{sp_head_forward.45} parent=11 // pred_region
        _
      $region20: #{sp_head_forward.45} parent=11 // pred_fallthru
        _
    $region12: #{sp_head_forward.45} parent=5 // pred_fallthru
      _
    %p151 = scmp.lt.s32.totalorder %s10, 3
    // Predicated region
    $region21: #{sp_head_forward.45} parent=5 // pred_check
      %p152 = pneg %p151
    $region22: #{sp_head_forward.45} parent=5 // pred_check_branch
      %154 = sbr.rel (%p152) target = $region24
    $region23: #{sp_head_forward.45} parent=5 // pred_region
      // Predicated region
      $region25: #{sp_head_forward.45} parent=23 // pred_check
        %p155 = pneg %p30
      $region26: #{sp_head_forward.45} parent=23 // pred_check_branch
        %157 = sbr.rel (%p155) target = $region28
      $region27: #{sp_head_forward.45} parent=23 // pred_region
        %s158 = smul.u32 2, %s10
        %p159 = scmp.lt.s32.totalorder %s158, 5
        %s160 = scalar_select %p159, %s158, 5
        %s161 = smul.addr %s160, 4
        %s162 = scalar_lea.vmem %s0, %s161
        %s163 = smul.u32 2, %s10
      $region28: #{sp_head_forward.45} parent=23 // pred_fallthru
        _
      // Predicated region
      $region29: #{sp_head_forward.45} parent=23 // pred_check
        %p164 = pneg %p98
      $region30: #{sp_head_forward.45} parent=23 // pred_check_branch
        %166 = sbr.rel (%p164) target = $region32
      $region31: #{sp_head_forward.45} parent=23 // pred_region
        %s167 = smul.u32 2, %s10
        %p168 = scmp.lt.s32.totalorder %s167, 5
        %s169 = scalar_select %p168, %s167, 5
        %s170 = scalar_lea.vmem %s3, %s169
        %s171 = smul.u32 2, %s10
      $region32: #{sp_head_forward.45} parent=23 // pred_fallthru
        _
    $region24: #{sp_head_forward.45} parent=5 // pred_fallthru
      _
    %p172 = scmp.le.s32.totalorder 1, %s10
    %p173 = scmp.lt.s32.totalorder %s10, 4
    %p174 = pnand %p172, %p173
    %p175 = pneg %p174
    // Predicated region
    $region33: #{sp_head_forward.45} parent=5 // pred_check
      _
    $region34: #{sp_head_forward.45} parent=5 // pred_check_branch
      %177 = sbr.rel (%p174) target = $region36
    $region35: #{sp_head_forward.45} parent=5 // pred_region
      %s178 = ssub.s32 %s10, 1
      %s179 = smul.u32 2, %s15
      %p180 = scmp.lt.s32.totalorder %s179, 5
      %s181 = scalar_select %p180, %s179, 5
      %s182 = smul.addr %s181, 4
      %s183 = scalar_lea.vmem %s0, %s182
      %p184 = pneg %p36
      %p185 = pneg %p33
      %p186 = pneg %p57
      %p187 = pneg %p54
      %p188 = pneg %p78
      %p189 = pneg %p75
      %s190 = smul.u32 2, %s15
      %p191 = scmp.lt.s32.totalorder %s190, 5
      %s192 = scalar_select %p191, %s190, 5
      %s193 = scalar_lea.vmem %s3, %s192
      %p194 = pneg %p104
      %p195 = pneg %p101
      %p196 = pneg %p130
      %p197 = pneg %p127
      %s198 = smul.u32 2, %s15
      %p199 = scmp.lt.s32.totalorder %s198, 5
      %s200 = scalar_select %p199, %s198, 5
      %s201 = smul.addr %s200, 4
      %s202 = scalar_lea.vmem %s4, %s201
      %s203 = smul.u32 2, %s15
      %p204 = scmp.lt.s32.totalorder %s203, 5
      %s205 = scalar_select %p204, %s203, 5
      %s206 = smul.addr %s205, 4
      %s207 = scalar_lea.vmem %s0, %s206
      %s208 = smul.u32 2, %s15
      %s209 = smul.u32 2, %s15
      %p210 = scmp.lt.s32.totalorder %s209, 5
      %s211 = scalar_select %p210, %s209, 5
      %s212 = scalar_lea.vmem %s3, %s211
      %s213 = smul.u32 2, %s15
      %s214 = smul.u32 2, %s15
      %p215 = scmp.lt.s32.totalorder %s214, 5
      %s216 = scalar_select %p215, %s214, 5
      %s217 = smul.addr %s216, 4
      %s218 = scalar_lea.vmem %s4, %s217
      %s219 = smul.u32 2, %s15
      %v221 = vld [vmem:[%s207] sm:$0xff]
      %v222 = vld [vmem:[%s1] sm:$0xf]
      %v223 = vld [vmem:[%s2] sm:$0xff]
      %225 = vset.pattern.permute.xlu0 0
      %226 = vperm.xlu0 %225, %v223
      %v227 = vpop.permute.xlu0 %226
      %v230 = vunpack.c.l.b16 %v221
      %v231 = vunpack.c.h.b16 %v221
      %v232 = vpack.c.b16 %v230, %v230
      %v233 = vpack.c.b16 %v231, %v231
      %vm234 = vcmask 64512
      %v236 = vsel %vm234, %v222, 0
      %vm238 = vcmask 1043456
      %v240 = vsel %vm238, %v232, 0
      %v243 = vsel %vm238, %v233, 0
      %245 = vmatprep.subr.bf16.mxu0 0
      %246 = vmatpush1.bf16.msra.mxu0 0
      %247 = vmatprep.subr.bf16.mxu0 0
      %248 = vmatpush1.bf16.msra.mxu0 0
      %249 = vmatprep.subr.bf16.mxu0 0
      %250 = vmatpush1.bf16.msra.mxu0 0
      %251 = vmatprep.subr.bf16.mxu0 0
      %252 = vmatpush1.bf16.msra.mxu0 0
      %253 = vmatprep.subr.bf16.mxu0 0
      %254 = vmatpush1.bf16.msra.mxu0 0
      %255 = vmatprep.subr.bf16.mxu0 0
      %256 = vmatpush1.bf16.msra.mxu0 0
      %257 = vmatprep.subr.bf16.mxu0 0
      %258 = vmatpush1.bf16.msra.mxu0 0
      %259 = vmatprep.subr.bf16.mxu0 %v243
      %260 = vmatpush1.bf16.msra.mxu0 %v240
      %261 = vmatprep.subr.bf16.mxu0 0
      %262 = vmatpush2.bf16.msra.mxu0 0
      %263 = vmatprep.subr.bf16.mxu0 0
      %264 = vmatpush2.bf16.msra.mxu0 0
      %265 = vmatprep.subr.bf16.mxu0 0
      %266 = vmatpush2.bf16.msra.mxu0 0
      %267 = vmatprep.subr.bf16.mxu0 0
      %268 = vmatpush2.bf16.msra.mxu0 0
      %269 = vmatprep.subr.bf16.mxu0 0
      %270 = vmatpush2.bf16.msra.mxu0 0
      %271 = vmatprep.subr.bf16.mxu0 0
      %272 = vmatpush2.bf16.msra.mxu0 0
      %273 = vmatprep.subr.bf16.mxu0 0
      %274 = vmatpush2.bf16.msra.mxu0 0
      %275 = vmatprep.subr.bf16.mxu0 0
      %276 = vmatpush2.bf16.msra.mxu0 0
      %277 = vmatprep.mubr.bf16.mxu0 0
      %278 = vmatmul.mubr.bf16.gmra.mxu0 %v236
      %v279 = vpop.f32.mrf.mxu0
      %v280 = vadd.f32 %v227, %v279
      %v281 = vpop.f32.mrf.mxu0
      %v282 = vadd.f32 %v227, %v281
      %v283 = vpop.f32.mrf.mxu0
      %v284 = vpop.f32.mrf.mxu0
      %285 = vdwg.mxu0
      %v286 = vld [vmem:[%s212] sm:$0x3]
      %v288 = vlaneseq
      %v289 = vshrl.u32 %v288, 7
      %v290 = vsub.s32 0, %v289
      %v291 = vrot.slane %v286, %v290
      %v292 = vlaneseq
      %v293 = vshrl.u32 %v292, 7
      %v294 = vsub.s32 1, %v293
      %v295 = vrot.slane %v286, %v294
      %v298 = vmul.f32 %v280, %v291
      %v299 = vmul.f32 %v282, %v295
      %v300 = vpack.c.bf16 %v298, %v298
      %v301 = vpack.c.bf16 %v299, %v299
      %v304 = vunpack.c.l.b16 %v300
      %v305 = vunpack.c.l.b16 %v301
      %v306 = vpack.c.b16 %v305, %v304
      %308 = vst [vmem:[%s218] sm:$0xff] %v306
      %s309 = smul.u32 2, %s15
      %p310 = scmp.lt.s32.totalorder %s309, 5
      %s311 = scalar_select %p310, %s309, 5
      %s312 = smul.addr %s311, 4
      %s313 = scalar_lea.vmem %s4, %s312
      // Predicated region
      $region37: #{sp_head_forward.45} parent=35 // pred_check
        %p314 = pneg %p127
      $region38: #{sp_head_forward.45} parent=35 // pred_check_branch
        %316 = sbr.rel (%p314) target = $region40
      $region39: #{sp_head_forward.45} parent=35 // pred_region
        %s317 = smul.u32 2, %s15
      $region40: #{sp_head_forward.45} parent=35 // pred_fallthru
        _
    $region36: #{sp_head_forward.45} parent=5 // pred_fallthru
      _
    %p318 = scmp.le.s32.totalorder 2, %s10
    // Predicated region
    $region41: #{sp_head_forward.45} parent=5 // pred_check
      %p319 = pneg %p318
    $region42: #{sp_head_forward.45} parent=5 // pred_check_branch
      %321 = sbr.rel (%p319) target = $region44
    $region43: #{sp_head_forward.45} parent=5 // pred_region
      %s322 = ssub.s32 %s10, 2
      // Predicated region
      $region45: #{sp_head_forward.45} parent=43 // pred_check
        %p323 = pneg %p133
      $region46: #{sp_head_forward.45} parent=43 // pred_check_branch
        %325 = sbr.rel (%p323) target = $region48
      $region47: #{sp_head_forward.45} parent=43 // pred_region
        %s326 = smul.u32 2, %s16
        %p327 = scmp.lt.s32.totalorder %s326, 5
        %s328 = scalar_select %p327, %s326, 5
        %s329 = smul.addr %s328, 4
        %s330 = scalar_lea.vmem %s4, %s329
      $region48: #{sp_head_forward.45} parent=43 // pred_fallthru
        _
    $region44: #{sp_head_forward.45} parent=5 // pred_fallthru
      _
  $region6: #{sp_head_forward.45} parent=0 // loop_footer
    %s14 = sadd.s32 1, %s10
  $region7: #{sp_head_forward.45} parent=0 // loop_footer_branch
    %9 = sbr.rel target = $region3
  $region8: #{sp_head_forward.45} parent=0 // loop_exit
    _

// kernel: sp_head_forward.44
$region0: #{sp_head_forward.44}
  #allocation0 [shape = 'u32[]', space=smem, size = 0x4, offset = 0x4, fixed_abs, tag = 'smem constant byte address 0x4 - core index']
  #allocation1 [shape = 'u32[144,128]{1,0:T(1,128)}', space=vmem, size = 0x12000, scoped, tag = 'internal scratch']
  %s0 = inlined_call_operand.vmem [shape: bf16[16,768], index: 0, kind: input, shape index: {}, may-alias: {0,1,2}]
  %s1 = inlined_call_operand.vmem [shape: bf16[16,768], index: 1, kind: input, shape index: {}, may-alias: {0,1,2}]
  %s2 = inlined_call_operand.vmem [shape: bf16[16,768], index: 2, kind: input, shape index: {}, may-alias: {0,1,2}]
  %s3 = inlined_call_operand.vmem [shape: bf16[9,8,16], index: 3, kind: input, shape index: {}]
  %s4 = inlined_call_operand.vmem [shape: f32[8,1], index: 4, kind: input, shape index: {}]
  %s5 = inlined_call_operand.vmem [shape: f32[1,768], index: 5, kind: input, shape index: {}]
  %s6 = inlined_call_operand.vmem [shape: bf16[8,768], index: 6, kind: output, shape index: {}]
  %s7 = sld [smem:[#allocation0]]
  $region171: #{sp_head_forward.44} parent=0
    _
  %s9 = ssub.s32 1, %s7
  %s10 = scalar_select 0, %s9, %s7
  $region1: #{sp_head_forward.44} parent=0
    #allocation2 [shape = 'u8[16384]{0}', space=vmem, size = 0x4000, scoped, tag = 'input window, operand 0']
    #allocation3 [shape = 'u8[16384]{0}', space=vmem, size = 0x4000, scoped, tag = 'input window, operand 1']
    #allocation4 [shape = 'u8[16384]{0}', space=vmem, size = 0x4000, scoped, tag = 'input window, operand 2']
    loop: start=0, step=1, limit=5
    $region2: #{sp_head_forward.44} parent=1 // loop_pre_header
      _
    $region3: #{sp_head_forward.44} parent=1 // loop_header
      %s12 = sphi 0, %s16
      %p13 = scmp.ge.s32.totalorder %s12, 5
      %s28 = sphi 0, %s30
      %s31 = sphi 0, %s28
      %s32 = sphi 0, %s31
      %s48 = sphi 0, %s32
      %s54 = sphi 0, %s56
      %s57 = sphi 0, %s54
      %s58 = sphi 0, %s57
      %s74 = sphi 0, %s58
      %s86 = sphi 0, %s88
      %s89 = sphi 0, %s86
      %s90 = sphi 0, %s89
      %s106 = sphi 0, %s90
      %s110 = sphi 0, %s110
      %s112 = sphi 0, %s110
      %s113 = sphi 0, %s112
      %s127 = sphi 0, %s113
      %s131 = sphi 0, %s131
      %s133 = sphi 0, %s131
      %s134 = sphi 0, %s133
      %s148 = sphi 0, %s134
      %s154 = sphi 0, %s156
      %s157 = sphi 0, %s154
      %s158 = sphi 0, %s157
      %s174 = sphi 0, %s158
      %s180 = sphi 0, %s182
      %s183 = sphi 0, %s180
      %s184 = sphi 0, %s183
      %s200 = sphi 0, %s184
    $region4: #{sp_head_forward.44} parent=1 // loop_header_branch
      %15 = sbr.rel (%p13) target = $region8
    $region5: #{sp_head_forward.44} parent=1 // loop_body
      %s17 = ssub.s32 %s12, 1
      %s18 = ssub.s32 %s12, 2
      %s19 = sadd.s32 %s12, 1
      %s20 = ssub.s32 %s12, 1
      %p21 = scmp.gt.s32.totalorder %s20, 0
      %s22 = scalar_select %p21, %s20, 0
      %s23 = ssub.s32 %s19, 1
      %p24 = scmp.gt.s32.totalorder %s23, 0
      %s25 = scalar_select %p24, %s23, 0
      %s26 = ssub.s32 %s22, %s25
      %p27 = scmp.eq.s32.totalorder %s26, 0
      %s29 = sadd.s32 %s28, 1
      %s30 = scalar_select %p27, %s28, %s29
      %p33 = pneg %p27
      %p34 = scmp.eq.s32.totalorder %s12, 2
      %p35 = por %p33, %p34
      %p36 = scmp.ne.s32.totalorder %s28, %s31
      %p37 = scmp.eq.s32.totalorder %s12, 0
      %p38 = por %p36, %p37
      %p39 = scmp.ne.s32.totalorder %s28, %s31
      %p40 = scmp.eq.s32.totalorder %s17, 2
      %p41 = por %p39, %p40
      %p42 = scmp.ne.s32.totalorder %s31, %s32
      %p43 = scmp.eq.s32.totalorder %s17, 0
      %p44 = por %p42, %p43
      %p45 = scmp.ne.s32.totalorder %s31, %s32
      %p46 = scmp.eq.s32.totalorder %s18, 2
      %p47 = por %p45, %p46
      %p49 = scmp.ne.s32.totalorder %s32, %s48
      %p50 = scmp.eq.s32.totalorder %s18, 0
      %p51 = por %p49, %p50
      %s52 = ssub.s32 %s12, %s19
      %p53 = scmp.eq.s32.totalorder %s52, 0
      %s55 = sadd.s32 %s54, 1
      %s56 = scalar_select %p53, %s54, %s55
      %p59 = pneg %p53
      %p60 = scmp.eq.s32.totalorder %s12, 2
      %p61 = por %p59, %p60
      %p62 = scmp.ne.s32.totalorder %s54, %s57
      %p63 = scmp.eq.s32.totalorder %s12, 0
      %p64 = por %p62, %p63
      %p65 = scmp.ne.s32.totalorder %s54, %s57
      %p66 = scmp.eq.s32.totalorder %s17, 2
      %p67 = por %p65, %p66
      %p68 = scmp.ne.s32.totalorder %s57, %s58
      %p69 = scmp.eq.s32.totalorder %s17, 0
      %p70 = por %p68, %p69
      %p71 = scmp.ne.s32.totalorder %s57, %s58
      %p72 = scmp.eq.s32.totalorder %s18, 2
      %p73 = por %p71, %p72
      %p75 = scmp.ne.s32.totalorder %s58, %s74
      %p76 = scmp.eq.s32.totalorder %s18, 0
      %p77 = por %p75, %p76
      %s78 = sadd.s32 %s12, 1
      %p79 = scmp.lt.s32.totalorder %s78, 2
      %s80 = scalar_select %p79, %s78, 2
      %s81 = sadd.s32 %s19, 1
      %p82 = scmp.lt.s32.totalorder %s81, 2
      %s83 = scalar_select %p82, %s81, 2
      %s84 = ssub.s32 %s80, %s83
      %p85 = scmp.eq.s32.totalorder %s84, 0
      %s87 = sadd.s32 %s86, 1
      %s88 = scalar_select %p85, %s86, %s87
      %p91 = pneg %p85
      %p92 = scmp.eq.s32.totalorder %s12, 2
      %p93 = por %p91, %p92
      %p94 = scmp.ne.s32.totalorder %s86, %s89
      %p95 = scmp.eq.s32.totalorder %s12, 0
      %p96 = por %p94, %p95
      %p97 = scmp.ne.s32.totalorder %s86, %s89
      %p98 = scmp.eq.s32.totalorder %s17, 2
      %p99 = por %p97, %p98
      %p100 = scmp.ne.s32.totalorder %s89, %s90
      %p101 = scmp.eq.s32.totalorder %s17, 0
      %p102 = por %p100, %p101
      %p103 = scmp.ne.s32.totalorder %s89, %s90
      %p104 = scmp.eq.s32.totalorder %s18, 2
      %p105 = por %p103, %p104
      %p107 = scmp.ne.s32.totalorder %s90, %s106
      %p108 = scmp.eq.s32.totalorder %s18, 0
      %p109 = por %p107, %p108
      %s111 = sadd.s32 %s110, 1
      %p114 = scmp.eq.s32.totalorder %s12, 2
      %p115 = scmp.ne.s32.totalorder %s110, %s112
      %p116 = scmp.eq.s32.totalorder %s12, 0
      %p117 = por %p115, %p116
      %p118 = scmp.ne.s32.totalorder %s110, %s112
      %p119 = scmp.eq.s32.totalorder %s17, 2
      %p120 = por %p118, %p119
      %p121 = scmp.ne.s32.totalorder %s112, %s113
      %p122 = scmp.eq.s32.totalorder %s17, 0
      %p123 = por %p121, %p122
      %p124 = scmp.ne.s32.totalorder %s112, %s113
      %p125 = scmp.eq.s32.totalorder %s18, 2
      %p126 = por %p124, %p125
      %p128 = scmp.ne.s32.totalorder %s113, %s127
      %p129 = scmp.eq.s32.totalorder %s18, 0
      %p130 = por %p128, %p129
      %s132 = sadd.s32 %s131, 1
      %p135 = scmp.eq.s32.totalorder %s12, 2
      %p136 = scmp.ne.s32.totalorder %s131, %s133
      %p137 = scmp.eq.s32.totalorder %s12, 0
      %p138 = por %p136, %p137
      %p139 = scmp.ne.s32.totalorder %s131, %s133
      %p140 = scmp.eq.s32.totalorder %s17, 2
      %p141 = por %p139, %p140
      %p142 = scmp.ne.s32.totalorder %s133, %s134
      %p143 = scmp.eq.s32.totalorder %s17, 0
      %p144 = por %p142, %p143
      %p145 = scmp.ne.s32.totalorder %s133, %s134
      %p146 = scmp.eq.s32.totalorder %s18, 2
      %p147 = por %p145, %p146
      %p149 = scmp.ne.s32.totalorder %s134, %s148
      %p150 = scmp.eq.s32.totalorder %s18, 0
      %p151 = por %p149, %p150
      %s152 = ssub.s32 %s12, %s19
      %p153 = scmp.eq.s32.totalorder %s152, 0
      %s155 = sadd.s32 %s154, 1
      %s156 = scalar_select %p153, %s154, %s155
      %p159 = pneg %p153
      %p160 = scmp.eq.s32.totalorder %s12, 2
      %p161 = por %p159, %p160
      %p162 = scmp.ne.s32.totalorder %s154, %s157
      %p163 = scmp.eq.s32.totalorder %s12, 0
      %p164 = por %p162, %p163
      %p165 = scmp.ne.s32.totalorder %s154, %s157
      %p166 = scmp.eq.s32.totalorder %s17, 2
      %p167 = por %p165, %p166
      %p168 = scmp.ne.s32.totalorder %s157, %s158
      %p169 = scmp.eq.s32.totalorder %s17, 0
      %p170 = por %p168, %p169
      %p171 = scmp.ne.s32.totalorder %s157, %s158
      %p172 = scmp.eq.s32.totalorder %s18, 2
      %p173 = por %p171, %p172
      %p175 = scmp.ne.s32.totalorder %s158, %s174
      %p176 = scmp.eq.s32.totalorder %s18, 0
      %p177 = por %p175, %p176
      %s178 = ssub.s32 %s12, %s19
      %p179 = scmp.eq.s32.totalorder %s178, 0
      %s181 = sadd.s32 %s180, 1
      %s182 = scalar_select %p179, %s180, %s181
      %p185 = pneg %p179
      %p186 = scmp.eq.s32.totalorder %s12, 2
      %p187 = por %p185, %p186
      %p188 = scmp.ne.s32.totalorder %s180, %s183
      %p189 = scmp.eq.s32.totalorder %s12, 0
      %p190 = por %p188, %p189
      %p191 = scmp.ne.s32.totalorder %s180, %s183
      %p192 = scmp.eq.s32.totalorder %s17, 2
      %p193 = por %p191, %p192
      %p194 = scmp.ne.s32.totalorder %s183, %s184
      %p195 = scmp.eq.s32.totalorder %s17, 0
      %p196 = por %p194, %p195
      %p197 = scmp.ne.s32.totalorder %s183, %s184
      %p198 = scmp.eq.s32.totalorder %s18, 2
      %p199 = por %p197, %p198
      %p201 = scmp.ne.s32.totalorder %s184, %s200
      %p202 = scmp.eq.s32.totalorder %s18, 0
      %p203 = por %p201, %p202
      %p204 = scmp.le.s32.totalorder 1, %s12
      %p205 = scmp.lt.s32.totalorder %s12, 4
      %p206 = pnand %p204, %p205
      %p207 = pneg %p206
      // Predicated region
      $region9: #{sp_head_forward.44} parent=5 // pred_check
        _
      $region10: #{sp_head_forward.44} parent=5 // pred_check_branch
        %209 = sbr.rel (%p206) target = $region12
      $region11: #{sp_head_forward.44} parent=5 // pred_region
        %s210 = ssub.s32 %s12, 1
        // Predicated region
        $region13: #{sp_head_forward.44} parent=11 // pred_check
          %p211 = pneg %p123
        $region14: #{sp_head_forward.44} parent=11 // pred_check_branch
          %213 = sbr.rel (%p211) target = $region16
        $region15: #{sp_head_forward.44} parent=11 // pred_region
          _
        $region16: #{sp_head_forward.44} parent=11 // pred_fallthru
          _
        // Predicated region
        $region17: #{sp_head_forward.44} parent=11 // pred_check
          %p214 = pneg %p144
        $region18: #{sp_head_forward.44} parent=11 // pred_check_branch
          %216 = sbr.rel (%p214) target = $region20
        $region19: #{sp_head_forward.44} parent=11 // pred_region
          _
        $region20: #{sp_head_forward.44} parent=11 // pred_fallthru
          _
      $region12: #{sp_head_forward.44} parent=5 // pred_fallthru
        _
      %p217 = scmp.lt.s32.totalorder %s12, 3
      // Predicated region
      $region21: #{sp_head_forward.44} parent=5 // pred_check
        %p218 = pneg %p217
      $region22: #{sp_head_forward.44} parent=5 // pred_check_branch
        %220 = sbr.rel (%p218) target = $region24
      $region23: #{sp_head_forward.44} parent=5 // pred_region
        // Predicated region
        $region25: #{sp_head_forward.44} parent=23 // pred_check
          %p221 = pneg %p38
        $region26: #{sp_head_forward.44} parent=23 // pred_check_branch
          %223 = sbr.rel (%p221) target = $region28
        $region27: #{sp_head_forward.44} parent=23 // pred_region
          %s224 = sand.u32 %s28, 1
          %s225 = sand.u32 %s28, 1
          %s226 = smul.addr %s225, 16
          %s227 = scalar_lea.vmem [#allocation2], %s226
          %s228 = ssub.s32 %s12, 1
          %p229 = scmp.gt.s32.totalorder %s228, 0
          %s230 = scalar_select %p229, %s228, 0
          %s231 = smul.u32 2, %s230
          %s232 = smul.addr %s231, 4
          %s233 = scalar_lea.vmem %s0, %s232
          // Predicated region
          $region29: #{sp_head_forward.44} parent=27 // pred_check
            _
          $region30: #{sp_head_forward.44} parent=27 // pred_check_branch
            %235 = sbr.rel (0) target = $region32
          $region31: #{sp_head_forward.44} parent=27 // pred_region
            // Predicated region
            $region33: #{sp_head_forward.44} parent=31 // pred_check
              _
            $region34: #{sp_head_forward.44} parent=31 // pred_check_branch
              %237 = sbr.rel (0) target = $region36
            $region35: #{sp_head_forward.44} parent=31 // pred_region
              // Predicated region
              $region48: #{sp_head_forward.44} parent=35 // pred_check
                _
              $region49: #{sp_head_forward.44} parent=35 // pred_check_branch
                %255 = sbr.rel (0) target = $region51
              $region50: #{sp_head_forward.44} parent=35 // pred_region
                loop: start=0, step=1, limit=1
                $region52: #{sp_head_forward.44} parent=50 // loop_pre_header
                  _
                $region53: #{sp_head_forward.44} parent=50 // loop_header
                  %s257 = sphi 0, %s261
                  %p258 = scmp.ge.s32.totalorder %s257, 1
                  %s262 = sphi %s233, %s233
                  %s263 = sphi %s227, %s227
                $region54: #{sp_head_forward.44} parent=50 // loop_header_branch
                  %260 = sbr.rel (%p258) target = $region58
                $region55: #{sp_head_forward.44} parent=50 // loop_body
                  %v264 = vld [vmem:[%s262] sm:$0xff]
                  %265 = vst [vmem:[%s263] sm:$0xff] %v264
                  %v266 = vld [vmem:[%s262 + $0x18] sm:$0xff]
                  %267 = vst [vmem:[%s263 + $0x8] sm:$0xff] %v266
                $region56: #{sp_head_forward.44} parent=50 // loop_footer
                  %s261 = sadd.s32 1, %s257
                $region57: #{sp_head_forward.44} parent=50 // loop_footer_branch
                  %256 = sbr.rel target = $region53
                $region58: #{sp_head_forward.44} parent=50 // loop_exit
                  _
              $region51: #{sp_head_forward.44} parent=35 // pred_fallthru
                _
              // Predicated region
              $region59: #{sp_head_forward.44} parent=35 // pred_check
                _
              $region60: #{sp_head_forward.44} parent=35 // pred_check_branch
                %269 = sbr.rel target = $region62
              $region61: #{sp_head_forward.44} parent=35 // pred_region
                _
              $region62: #{sp_head_forward.44} parent=35 // pred_fallthru
                _
            $region36: #{sp_head_forward.44} parent=31 // pred_fallthru
              _
            // Predicated region
            $region37: #{sp_head_forward.44} parent=31 // pred_check
              _
            $region38: #{sp_head_forward.44} parent=31 // pred_check_branch
              %239 = sbr.rel target = $region40
            $region39: #{sp_head_forward.44} parent=31 // pred_region
              %s241 = ssub.s32 256, 1
              loop: start=0, step=1, limit=1
              $region41: #{sp_head_forward.44} parent=39 // loop_pre_header
                _
              $region42: #{sp_head_forward.44} parent=39 // loop_header
                %s243 = sphi 0, %s247
                %p244 = scmp.ge.s32.totalorder %s243, 1
                %s248 = sphi %s233, %s233
                %s249 = sphi %s227, %s227
              $region43: #{sp_head_forward.44} parent=39 // loop_header_branch
                %246 = sbr.rel (%p244) target = $region47
              $region44: #{sp_head_forward.44} parent=39 // loop_body
                %v250 = vld [vmem:[%s248] sm:%s241]
                %251 = vst [vmem:[%s249] sm:%s241] %v250
                %v252 = vld [vmem:[%s248 + $0x18] sm:%s241]
                %253 = vst [vmem:[%s249 + $0x8] sm:%s241] %v252
              $region45: #{sp_head_forward.44} parent=39 // loop_footer
                %s247 = sadd.s32 1, %s243
              $region46: #{sp_head_forward.44} parent=39 // loop_footer_branch
                %242 = sbr.rel target = $region42
              $region47: #{sp_head_forward.44} parent=39 // loop_exit
                _
            $region40: #{sp_head_forward.44} parent=31 // pred_fallthru
              _
          $region32: #{sp_head_forward.44} parent=27 // pred_fallthru
            _
          %270 = vnop
        $region28: #{sp_head_forward.44} parent=23 // pred_fallthru
          _
        // Predicated region
        $region63: #{sp_head_forward.44} parent=23 // pred_check
          %p271 = pneg %p64
        $region64: #{sp_head_forward.44} parent=23 // pred_check_branch
          %273 = sbr.rel (%p271) target = $region66
        $region65: #{sp_head_forward.44} parent=23 // pred_region
          %s274 = sand.u32 %s54, 1
          %s275 = sand.u32 %s54, 1
          %s276 = smul.addr %s275, 16
          %s277 = scalar_lea.vmem [#allocation3], %s276
          %s278 = smul.u32 2, %s12
          %s279 = smul.addr %s278, 4
          %s280 = scalar_lea.vmem %s1, %s279
          // Predicated region
          $region67: #{sp_head_forward.44} parent=65 // pred_check
            _
          $region68: #{sp_head_forward.44} parent=65 // pred_check_branch
            %282 = sbr.rel (0) target = $region70
          $region69: #{sp_head_forward.44} parent=65 // pred_region
            // Predicated region
            $region71: #{sp_head_forward.44} parent=69 // pred_check
              _
            $region72: #{sp_head_forward.44} parent=69 // pred_check_branch
              %284 = sbr.rel (0) target = $region74
            $region73: #{sp_head_forward.44} parent=69 // pred_region
              // Predicated region
              $region86: #{sp_head_forward.44} parent=73 // pred_check
                _
              $region87: #{sp_head_forward.44} parent=73 // pred_check_branch
                %302 = sbr.rel (0) target = $region89
              $region88: #{sp_head_forward.44} parent=73 // pred_region
                loop: start=0, step=1, limit=1
                $region90: #{sp_head_forward.44} parent=88 // loop_pre_header
                  _
                $region91: #{sp_head_forward.44} parent=88 // loop_header
                  %s304 = sphi 0, %s308
                  %p305 = scmp.ge.s32.totalorder %s304, 1
                  %s309 = sphi %s280, %s280
                  %s310 = sphi %s277, %s277
                $region92: #{sp_head_forward.44} parent=88 // loop_header_branch
                  %307 = sbr.rel (%p305) target = $region96
                $region93: #{sp_head_forward.44} parent=88 // loop_body
                  %v311 = vld [vmem:[%s309] sm:$0xff]
                  %312 = vst [vmem:[%s310] sm:$0xff] %v311
                  %v313 = vld [vmem:[%s309 + $0x18] sm:$0xff]
                  %314 = vst [vmem:[%s310 + $0x8] sm:$0xff] %v313
                $region94: #{sp_head_forward.44} parent=88 // loop_footer
                  %s308 = sadd.s32 1, %s304
                $region95: #{sp_head_forward.44} parent=88 // loop_footer_branch
                  %303 = sbr.rel target = $region91
                $region96: #{sp_head_forward.44} parent=88 // loop_exit
                  _
              $region89: #{sp_head_forward.44} parent=73 // pred_fallthru
                _
              // Predicated region
              $region97: #{sp_head_forward.44} parent=73 // pred_check
                _
              $region98: #{sp_head_forward.44} parent=73 // pred_check_branch
                %316 = sbr.rel target = $region100
              $region99: #{sp_head_forward.44} parent=73 // pred_region
                _
              $region100: #{sp_head_forward.44} parent=73 // pred_fallthru
                _
            $region74: #{sp_head_forward.44} parent=69 // pred_fallthru
              _
            // Predicated region
            $region75: #{sp_head_forward.44} parent=69 // pred_check
              _
            $region76: #{sp_head_forward.44} parent=69 // pred_check_branch
              %286 = sbr.rel target = $region78
            $region77: #{sp_head_forward.44} parent=69 // pred_region
              %s288 = ssub.s32 256, 1
              loop: start=0, step=1, limit=1
              $region79: #{sp_head_forward.44} parent=77 // loop_pre_header
                _
              $region80: #{sp_head_forward.44} parent=77 // loop_header
                %s290 = sphi 0, %s294
                %p291 = scmp.ge.s32.totalorder %s290, 1
                %s295 = sphi %s280, %s280
                %s296 = sphi %s277, %s277
              $region81: #{sp_head_forward.44} parent=77 // loop_header_branch
                %293 = sbr.rel (%p291) target = $region85
              $region82: #{sp_head_forward.44} parent=77 // loop_body
                %v297 = vld [vmem:[%s295] sm:%s288]
                %298 = vst [vmem:[%s296] sm:%s288] %v297
                %v299 = vld [vmem:[%s295 + $0x18] sm:%s288]
                %300 = vst [vmem:[%s296 + $0x8] sm:%s288] %v299
              $region83: #{sp_head_forward.44} parent=77 // loop_footer
                %s294 = sadd.s32 1, %s290
              $region84: #{sp_head_forward.44} parent=77 // loop_footer_branch
                %289 = sbr.rel target = $region80
              $region85: #{sp_head_forward.44} parent=77 // loop_exit
                _
            $region78: #{sp_head_forward.44} parent=69 // pred_fallthru
              _
          $region70: #{sp_head_forward.44} parent=65 // pred_fallthru
            _
          %317 = vnop
        $region66: #{sp_head_forward.44} parent=23 // pred_fallthru
          _
        // Predicated region
        $region101: #{sp_head_forward.44} parent=23 // pred_check
          %p318 = pneg %p96
        $region102: #{sp_head_forward.44} parent=23 // pred_check_branch
          %320 = sbr.rel (%p318) target = $region104
        $region103: #{sp_head_forward.44} parent=23 // pred_region
          %s321 = sand.u32 %s86, 1
          %s322 = sand.u32 %s86, 1
          %s323 = smul.addr %s322, 16
          %s324 = scalar_lea.vmem [#allocation4], %s323
          %s325 = sadd.s32 %s12, 1
          %p326 = scmp.lt.s32.totalorder %s325, 2
          %s327 = scalar_select %p326, %s325, 2
          %s328 = smul.u32 2, %s327
          %s329 = smul.addr %s328, 4
          %s330 = scalar_lea.vmem %s2, %s329
          // Predicated region
          $region105: #{sp_head_forward.44} parent=103 // pred_check
            _
          $region106: #{sp_head_forward.44} parent=103 // pred_check_branch
            %332 = sbr.rel (0) target = $region108
          $region107: #{sp_head_forward.44} parent=103 // pred_region
            // Predicated region
            $region109: #{sp_head_forward.44} parent=107 // pred_check
              _
            $region110: #{sp_head_forward.44} parent=107 // pred_check_branch
              %334 = sbr.rel (0) target = $region112
            $region111: #{sp_head_forward.44} parent=107 // pred_region
              // Predicated region
              $region124: #{sp_head_forward.44} parent=111 // pred_check
                _
              $region125: #{sp_head_forward.44} parent=111 // pred_check_branch
                %352 = sbr.rel (0) target = $region127
              $region126: #{sp_head_forward.44} parent=111 // pred_region
                loop: start=0, step=1, limit=1
                $region128: #{sp_head_forward.44} parent=126 // loop_pre_header
                  _
                $region129: #{sp_head_forward.44} parent=126 // loop_header
                  %s354 = sphi 0, %s358
                  %p355 = scmp.ge.s32.totalorder %s354, 1
                  %s359 = sphi %s330, %s330
                  %s360 = sphi %s324, %s324
                $region130: #{sp_head_forward.44} parent=126 // loop_header_branch
                  %357 = sbr.rel (%p355) target = $region134
                $region131: #{sp_head_forward.44} parent=126 // loop_body
                  %v361 = vld [vmem:[%s359] sm:$0xff]
                  %362 = vst [vmem:[%s360] sm:$0xff] %v361
                  %v363 = vld [vmem:[%s359 + $0x18] sm:$0xff]
                  %364 = vst [vmem:[%s360 + $0x8] sm:$0xff] %v363
                $region132: #{sp_head_forward.44} parent=126 // loop_footer
                  %s358 = sadd.s32 1, %s354
                $region133: #{sp_head_forward.44} parent=126 // loop_footer_branch
                  %353 = sbr.rel target = $region129
                $region134: #{sp_head_forward.44} parent=126 // loop_exit
                  _
              $region127: #{sp_head_forward.44} parent=111 // pred_fallthru
                _
              // Predicated region
              $region135: #{sp_head_forward.44} parent=111 // pred_check
                _
              $region136: #{sp_head_forward.44} parent=111 // pred_check_branch
                %366 = sbr.rel target = $region138
              $region137: #{sp_head_forward.44} parent=111 // pred_region
                _
              $region138: #{sp_head_forward.44} parent=111 // pred_fallthru
                _
            $region112: #{sp_head_forward.44} parent=107 // pred_fallthru
              _
            // Predicated region
            $region113: #{sp_head_forward.44} parent=107 // pred_check
              _
            $region114: #{sp_head_forward.44} parent=107 // pred_check_branch
              %336 = sbr.rel target = $region116
            $region115: #{sp_head_forward.44} parent=107 // pred_region
              %s338 = ssub.s32 256, 1
              loop: start=0, step=1, limit=1
              $region117: #{sp_head_forward.44} parent=115 // loop_pre_header
                _
              $region118: #{sp_head_forward.44} parent=115 // loop_header
                %s340 = sphi 0, %s344
                %p341 = scmp.ge.s32.totalorder %s340, 1
                %s345 = sphi %s330, %s330
                %s346 = sphi %s324, %s324
              $region119: #{sp_head_forward.44} parent=115 // loop_header_branch
                %343 = sbr.rel (%p341) target = $region123
              $region120: #{sp_head_forward.44} parent=115 // loop_body
                %v347 = vld [vmem:[%s345] sm:%s338]
                %348 = vst [vmem:[%s346] sm:%s338] %v347
                %v349 = vld [vmem:[%s345 + $0x18] sm:%s338]
                %350 = vst [vmem:[%s346 + $0x8] sm:%s338] %v349
              $region121: #{sp_head_forward.44} parent=115 // loop_footer
                %s344 = sadd.s32 1, %s340
              $region122: #{sp_head_forward.44} parent=115 // loop_footer_branch
                %339 = sbr.rel target = $region118
              $region123: #{sp_head_forward.44} parent=115 // loop_exit
                _
            $region116: #{sp_head_forward.44} parent=107 // pred_fallthru
              _
          $region108: #{sp_head_forward.44} parent=103 // pred_fallthru
            _
          %367 = vnop
        $region104: #{sp_head_forward.44} parent=23 // pred_fallthru
          _
        // Predicated region
        $region139: #{sp_head_forward.44} parent=23 // pred_check
          %p368 = pneg %p164
        $region140: #{sp_head_forward.44} parent=23 // pred_check_branch
          %370 = sbr.rel (%p368) target = $region142
        $region141: #{sp_head_forward.44} parent=23 // pred_region
          %s371 = smul.u32 2, %s12
          %p372 = scmp.lt.s32.totalorder %s371, 5
          %s373 = scalar_select %p372, %s371, 5
          %s374 = scalar_lea.vmem %s5, %s373
          %s375 = smul.u32 2, %s12
        $region142: #{sp_head_forward.44} parent=23 // pred_fallthru
          _
      $region24: #{sp_head_forward.44} parent=5 // pred_fallthru
        _
      %p376 = scmp.le.s32.totalorder 1, %s12
      %p377 = scmp.lt.s32.totalorder %s12, 4
      %p378 = pnand %p376, %p377
      %p379 = pneg %p378
      // Predicated region
      $region143: #{sp_head_forward.44} parent=5 // pred_check
        _
      $region144: #{sp_head_forward.44} parent=5 // pred_check_branch
        %381 = sbr.rel (%p378) target = $region146
      $region145: #{sp_head_forward.44} parent=5 // pred_region
        %s382 = ssub.s32 %s12, 1
        %s383 = sand.u32 %s31, 1
        %s384 = sand.u32 %s31, 1
        %s385 = smul.addr %s384, 16
        %s386 = scalar_lea.vmem [#allocation2], %s385
        // Predicated region
        $region147: #{sp_head_forward.44} parent=145 // pred_check
          %p387 = pneg %p44
        $region148: #{sp_head_forward.44} parent=145 // pred_check_branch
          %389 = sbr.rel (%p387) target = $region150
        $region149: #{sp_head_forward.44} parent=145 // pred_region
          _
        $region150: #{sp_head_forward.44} parent=145 // pred_fallthru
          _
        %s390 = sand.u32 %s57, 1
        %s391 = sand.u32 %s57, 1
        %s392 = smul.addr %s391, 16
        %s393 = scalar_lea.vmem [#allocation3], %s392
        // Predicated region
        $region151: #{sp_head_forward.44} parent=145 // pred_check
          %p394 = pneg %p70
        $region152: #{sp_head_forward.44} parent=145 // pred_check_branch
          %396 = sbr.rel (%p394) target = $region154
        $region153: #{sp_head_forward.44} parent=145 // pred_region
          _
        $region154: #{sp_head_forward.44} parent=145 // pred_fallthru
          _
        %s397 = sand.u32 %s89, 1
        %s398 = sand.u32 %s89, 1
        %s399 = smul.addr %s398, 16
        %s400 = scalar_lea.vmem [#allocation4], %s399
        // Predicated region
        $region155: #{sp_head_forward.44} parent=145 // pred_check
          %p401 = pneg %p102
        $region156: #{sp_head_forward.44} parent=145 // pred_check_branch
          %403 = sbr.rel (%p401) target = $region158
        $region157: #{sp_head_forward.44} parent=145 // pred_region
          _
        $region158: #{sp_head_forward.44} parent=145 // pred_fallthru
          _
        %s404 = sand.u32 %s31, 1
        %s405 = sand.u32 %s31, 1
        %s406 = smul.addr %s405, 16
        %s407 = scalar_lea.vmem [#allocation2], %s406
        %p408 = pneg %p44
        %p409 = pneg %p41
        %s410 = sand.u32 %s57, 1
        %s411 = sand.u32 %s57, 1
        %s412 = smul.addr %s411, 16
        %s413 = scalar_lea.vmem [#allocation3], %s412
        %p414 = pneg %p70
        %p415 = pneg %p67
        %s416 = sand.u32 %s89, 1
        %s417 = sand.u32 %s89, 1
        %s418 = smul.addr %s417, 16
        %s419 = scalar_lea.vmem [#allocation4], %s418
        %p420 = pneg %p102
        %p421 = pneg %p99
        %p422 = pneg %p123
        %p423 = pneg %p120
        %p424 = pneg %p144
        %p425 = pneg %p141
        %s426 = smul.u32 2, %s17
        %p427 = scmp.lt.s32.totalorder %s426, 5
        %s428 = scalar_select %p427, %s426, 5
        %s429 = scalar_lea.vmem %s5, %s428
        %p430 = pneg %p170
        %p431 = pneg %p167
        %p432 = pneg %p196
        %p433 = pneg %p193
        %s434 = smul.u32 2, %s17
        %p435 = scmp.lt.s32.totalorder %s434, 5
        %s436 = scalar_select %p435, %s434, 5
        %s437 = smul.addr %s436, 4
        %s438 = scalar_lea.vmem %s6, %s437
        %s439 = ssub.s32 %s17, 1
        %p440 = scmp.gt.s32.totalorder %s439, 0
        %s441 = scalar_select %p440, %s439, 0
        %s442 = smul.u32 2, %s441
        %s443 = smul.u32 2, %s17
        %s444 = sadd.s32 %s17, 1
        %p445 = scmp.lt.s32.totalorder %s444, 2
        %s446 = scalar_select %p445, %s444, 2
        %s447 = smul.u32 2, %s446
        %s448 = smul.u32 2, %s17
        %p449 = scmp.lt.s32.totalorder %s448, 5
        %s450 = scalar_select %p449, %s448, 5
        %s451 = scalar_lea.vmem %s5, %s450
        %s452 = smul.u32 2, %s17
        %s453 = smul.u32 2, %s17
        %p454 = scmp.lt.s32.totalorder %s453, 5
        %s455 = scalar_select %p454, %s453, 5
        %s456 = smul.addr %s455, 4
        %s457 = scalar_lea.vmem %s6, %s456
        %s458 = smul.u32 2, %s17
        %v460 = vld [vmem:[%s393] sm:$0xff]
        %v461 = vld [vmem:[%s393 + $0x8] sm:$0xff]
        %v462 = vld [vmem:[%s386] sm:$0xff]
        %v463 = vld [vmem:[%s386 + $0x8] sm:$0xff]
        %v464 = vld [vmem:[%s400] sm:$0xff]
        %v465 = vld [vmem:[%s400 + $0x8] sm:$0xff]
        %v466 = vld [vmem:[%s3] sm:$0xf]
        %v469 = vunpack.c.h.b16 %v462
        %v470 = vunpack.c.h.b16 %v463
        %v471 = vpack.c.b16 %v470, %v469
        %472 = vrot.lane.b32.xlu0 %v471, 19
        %v473 = vpop.permute.xlu0 %472
        %v476 = vunpack.c.l.b16 %v460
        %v477 = vunpack.c.h.b16 %v460
        %v478 = vunpack.c.l.b16 %v461
        %v479 = vunpack.c.h.b16 %v461
        %v480 = vpack.c.b16 %v478, %v476
        %v481 = vpack.c.b16 %v479, %v477
        %482 = vrot.lane.b32.xlu0 %v480, 19
        %v483 = vpop.permute.xlu0 %482
        %484 = vrot.lane.b32.xlu0 %v481, 19
        %v485 = vpop.permute.xlu0 %484
        %vm486 = vcmask 154624
        %v487 = vsel %vm486, %v483, %v485
        %vm489 = vcmask 154624
        %v492 = vsel %vm489, %v473, %v483
        %s494 = scalar_lea.vmem %s3, 4
        %v495 = vld [vmem:[%s494] sm:$0xf]
        %496 = vrot.lane.b32.xlu0 %v471, 18
        %v497 = vpop.permute.xlu0 %496
        %498 = vrot.lane.b32.xlu0 %v480, 18
        %v499 = vpop.permute.xlu0 %498
        %500 = vrot.lane.b32.xlu0 %v481, 18
        %v501 = vpop.permute.xlu0 %500
        %vm502 = vcmask 146432
        %v503 = vsel %vm502, %v499, %v501
        %vm505 = vcmask 146432
        %v508 = vsel %vm505, %v497, %v499
        %vm510 = vcmask 130048
        %v512 = vsel %vm510, %v495, 0
        %514 = vmatprep.subr.bf16.mxu0 0
        %515 = vmatpush1.bf16.msra.mxu0 0
        %516 = vmatprep.subr.bf16.mxu0 0
        %517 = vmatpush1.bf16.msra.mxu0 0
        %518 = vmatprep.subr.bf16.mxu0 0
        %519 = vmatpush1.bf16.msra.mxu0 0
        %520 = vmatprep.subr.bf16.mxu0 0
        %521 = vmatpush1.bf16.msra.mxu0 0
        %522 = vmatprep.subr.bf16.mxu0 0
        %523 = vmatpush1.bf16.msra.mxu0 0
        %524 = vmatprep.subr.bf16.mxu0 0
        %525 = vmatpush1.bf16.msra.mxu0 0
        %526 = vmatprep.subr.bf16.mxu0 0
        %527 = vmatpush1.bf16.msra.mxu0 0
        %528 = vmatprep.subr.bf16.mxu0 %v503
        %529 = vmatpush1.bf16.msra.mxu0 %v508
        %530 = vmatprep.subr.bf16.mxu0 0
        %531 = vmatpush2.bf16.msra.mxu0 0
        %532 = vmatprep.subr.bf16.mxu0 0
        %533 = vmatpush2.bf16.msra.mxu0 0
        %534 = vmatprep.subr.bf16.mxu0 0
        %535 = vmatpush2.bf16.msra.mxu0 0
        %536 = vmatprep.subr.bf16.mxu0 0
        %537 = vmatpush2.bf16.msra.mxu0 0
        %538 = vmatprep.subr.bf16.mxu0 0
        %539 = vmatpush2.bf16.msra.mxu0 0
        %540 = vmatprep.subr.bf16.mxu0 0
        %541 = vmatpush2.bf16.msra.mxu0 0
        %542 = vmatprep.subr.bf16.mxu0 0
        %543 = vmatpush2.bf16.msra.mxu0 0
        %544 = vmatprep.subr.bf16.mxu0 0
        %545 = vmatpush2.bf16.msra.mxu0 0
        %546 = vmatprep.mubr.bf16.mxu0 0
        %547 = vmatmul.mubr.bf16.gmra.mxu0 %v512
        %v548 = vpop.f32.mrf.mxu0
        %v549 = vadd.f32 0.0, %v548
        %v550 = vpop.f32.mrf.mxu0
        %v551 = vadd.f32 0.0, %v550
        %v552 = vpop.f32.mrf.mxu0
        %v553 = vpop.f32.mrf.mxu0
        %554 = vdwg.mxu0
        %v556 = vsel %vm510, %v466, 0
        %558 = vmatprep.subr.bf16.mxu0 0
        %559 = vmatpush1.bf16.msra.mxu0 0
        %560 = vmatprep.subr.bf16.mxu0 0
        %561 = vmatpush1.bf16.msra.mxu0 0
        %562 = vmatprep.subr.bf16.mxu0 0
        %563 = vmatpush1.bf16.msra.mxu0 0
        %564 = vmatprep.subr.bf16.mxu0 0
        %565 = vmatpush1.bf16.msra.mxu0 0
        %566 = vmatprep.subr.bf16.mxu0 0
        %567 = vmatpush1.bf16.msra.mxu0 0
        %568 = vmatprep.subr.bf16.mxu0 0
        %569 = vmatpush1.bf16.msra.mxu0 0
        %570 = vmatprep.subr.bf16.mxu0 0
        %571 = vmatpush1.bf16.msra.mxu0 0
        %572 = vmatprep.subr.bf16.mxu0 %v487
        %573 = vmatpush1.bf16.msra.mxu0 %v492
        %574 = vmatprep.subr.bf16.mxu0 0
        %575 = vmatpush2.bf16.msra.mxu0 0
        %576 = vmatprep.subr.bf16.mxu0 0
        %577 = vmatpush2.bf16.msra.mxu0 0
        %578 = vmatprep.subr.bf16.mxu0 0
        %579 = vmatpush2.bf16.msra.mxu0 0
        %580 = vmatprep.subr.bf16.mxu0 0
        %581 = vmatpush2.bf16.msra.mxu0 0
        %582 = vmatprep.subr.bf16.mxu0 0
        %583 = vmatpush2.bf16.msra.mxu0 0
        %584 = vmatprep.subr.bf16.mxu0 0
        %585 = vmatpush2.bf16.msra.mxu0 0
        %586 = vmatprep.subr.bf16.mxu0 0
        %587 = vmatpush2.bf16.msra.mxu0 0
        %588 = vmatprep.subr.bf16.mxu0 0
        %589 = vmatpush2.bf16.msra.mxu0 0
        %590 = vmatprep.mubr.bf16.mxu0 0
        %591 = vmatmul.mubr.bf16.gmra.mxu0 %v556
        %v592 = vpop.f32.mrf.mxu0
        %v593 = vadd.f32 %v549, %v592
        %v594 = vpop.f32.mrf.mxu0
        %v595 = vadd.f32 %v551, %v594
        %v596 = vpop.f32.mrf.mxu0
        %v597 = vpop.f32.mrf.mxu0
        %598 = vdwg.mxu0
        %s599 = scalar_lea.vmem %s3, 8
        %v600 = vld [vmem:[%s599] sm:$0xf]
        %601 = vrot.lane.b32.xlu0 %v471, 17
        %v602 = vpop.permute.xlu0 %601
        %603 = vrot.lane.b32.xlu0 %v480, 17
        %v604 = vpop.permute.xlu0 %603
        %605 = vrot.lane.b32.xlu0 %v481, 17
        %v606 = vpop.permute.xlu0 %605
        %vm607 = vcmask 138240
        %v608 = vsel %vm607, %v604, %v606
        %vm610 = vcmask 138240
        %v613 = vsel %vm610, %v602, %v604
        %v616 = vsel %vm510, %v600, 0
        %618 = vmatprep.subr.bf16.mxu0 0
        %619 = vmatpush1.bf16.msra.mxu0 0
        %620 = vmatprep.subr.bf16.mxu0 0
        %621 = vmatpush1.bf16.msra.mxu0 0
        %622 = vmatprep.subr.bf16.mxu0 0
        %623 = vmatpush1.bf16.msra.mxu0 0
        %624 = vmatprep.subr.bf16.mxu0 0
        %625 = vmatpush1.bf16.msra.mxu0 0
        %626 = vmatprep.subr.bf16.mxu0 0
        %627 = vmatpush1.bf16.msra.mxu0 0
        %628 = vmatprep.subr.bf16.mxu0 0
        %629 = vmatpush1.bf16.msra.mxu0 0
        %630 = vmatprep.subr.bf16.mxu0 0
        %631 = vmatpush1.bf16.msra.mxu0 0
        %632 = vmatprep.subr.bf16.mxu0 %v608
        %633 = vmatpush1.bf16.msra.mxu0 %v613
        %634 = vmatprep.subr.bf16.mxu0 0
        %635 = vmatpush2.bf16.msra.mxu0 0
        %636 = vmatprep.subr.bf16.mxu0 0
        %637 = vmatpush2.bf16.msra.mxu0 0
        %638 = vmatprep.subr.bf16.mxu0 0
        %639 = vmatpush2.bf16.msra.mxu0 0
        %640 = vmatprep.subr.bf16.mxu0 0
        %641 = vmatpush2.bf16.msra.mxu0 0
        %642 = vmatprep.subr.bf16.mxu0 0
        %643 = vmatpush2.bf16.msra.mxu0 0
        %644 = vmatprep.subr.bf16.mxu0 0
        %645 = vmatpush2.bf16.msra.mxu0 0
        %646 = vmatprep.subr.bf16.mxu0 0
        %647 = vmatpush2.bf16.msra.mxu0 0
        %648 = vmatprep.subr.bf16.mxu0 0
        %649 = vmatpush2.bf16.msra.mxu0 0
        %650 = vmatprep.mubr.bf16.mxu0 0
        %651 = vmatmul.mubr.bf16.gmra.mxu0 %v616
        %v652 = vpop.f32.mrf.mxu0
        %v653 = vadd.f32 0.0, %v652
        %v654 = vpop.f32.mrf.mxu0
        %v655 = vadd.f32 0.0, %v654
        %v656 = vpop.f32.mrf.mxu0
        %v657 = vpop.f32.mrf.mxu0
        %658 = vdwg.mxu0
        %v659 = vadd.f32 %v593, %v653
        %v660 = vadd.f32 %v595, %v655
        %s661 = scalar_lea.vmem %s3, 12
        %v662 = vld [vmem:[%s661] sm:$0xf]
        %663 = vrot.lane.b32.xlu0 %v471, 1
        %v664 = vpop.permute.xlu0 %663
        %665 = vrot.lane.b32.xlu0 %v480, 1
        %v666 = vpop.permute.xlu0 %665
        %667 = vrot.lane.b32.xlu0 %v481, 1
        %v668 = vpop.permute.xlu0 %667
        %vm669 = vcmask 7168
        %v670 = vsel %vm669, %v666, %v668
        %vm672 = vcmask 7168
        %v675 = vsel %vm672, %v664, %v666
        %v678 = vsel %vm510, %v662, 0
        %680 = vmatprep.subr.bf16.mxu0 0
        %681 = vmatpush1.bf16.msra.mxu0 0
        %682 = vmatprep.subr.bf16.mxu0 0
        %683 = vmatpush1.bf16.msra.mxu0 0
        %684 = vmatprep.subr.bf16.mxu0 0
        %685 = vmatpush1.bf16.msra.mxu0 0
        %686 = vmatprep.subr.bf16.mxu0 0
        %687 = vmatpush1.bf16.msra.mxu0 0
        %688 = vmatprep.subr.bf16.mxu0 0
        %689 = vmatpush1.bf16.msra.mxu0 0
        %690 = vmatprep.subr.bf16.mxu0 0
        %691 = vmatpush1.bf16.msra.mxu0 0
        %692 = vmatprep.subr.bf16.mxu0 0
        %693 = vmatpush1.bf16.msra.mxu0 0
        %694 = vmatprep.subr.bf16.mxu0 %v670
        %695 = vmatpush1.bf16.msra.mxu0 %v675
        %696 = vmatprep.subr.bf16.mxu0 0
        %697 = vmatpush2.bf16.msra.mxu0 0
        %698 = vmatprep.subr.bf16.mxu0 0
        %699 = vmatpush2.bf16.msra.mxu0 0
        %700 = vmatprep.subr.bf16.mxu0 0
        %701 = vmatpush2.bf16.msra.mxu0 0
        %702 = vmatprep.subr.bf16.mxu0 0
        %703 = vmatpush2.bf16.msra.mxu0 0
        %704 = vmatprep.subr.bf16.mxu0 0
        %705 = vmatpush2.bf16.msra.mxu0 0
        %706 = vmatprep.subr.bf16.mxu0 0
        %707 = vmatpush2.bf16.msra.mxu0 0
        %708 = vmatprep.subr.bf16.mxu0 0
        %709 = vmatpush2.bf16.msra.mxu0 0
        %710 = vmatprep.subr.bf16.mxu0 0
        %711 = vmatpush2.bf16.msra.mxu0 0
        %712 = vmatprep.mubr.bf16.mxu0 0
        %713 = vmatmul.mubr.bf16.gmra.mxu0 %v678
        %v714 = vpop.f32.mrf.mxu0
        %v715 = vadd.f32 0.0, %v714
        %v716 = vpop.f32.mrf.mxu0
        %v717 = vadd.f32 0.0, %v716
        %v718 = vpop.f32.mrf.mxu0
        %v719 = vpop.f32.mrf.mxu0
        %720 = vdwg.mxu0
        %v721 = vadd.f32 %v659, %v715
        %v722 = vadd.f32 %v660, %v717
        %s723 = scalar_lea.vmem %s3, 16
        %v724 = vld [vmem:[%s723] sm:$0xf]
        %v728 = vsel %vm510, %v724, 0
        %730 = vmatprep.subr.bf16.mxu0 0
        %731 = vmatpush1.bf16.msra.mxu0 0
        %732 = vmatprep.subr.bf16.mxu0 0
        %733 = vmatpush1.bf16.msra.mxu0 0
        %734 = vmatprep.subr.bf16.mxu0 0
        %735 = vmatpush1.bf16.msra.mxu0 0
        %736 = vmatprep.subr.bf16.mxu0 0
        %737 = vmatpush1.bf16.msra.mxu0 0
        %738 = vmatprep.subr.bf16.mxu0 0
        %739 = vmatpush1.bf16.msra.mxu0 0
        %740 = vmatprep.subr.bf16.mxu0 0
        %741 = vmatpush1.bf16.msra.mxu0 0
        %742 = vmatprep.subr.bf16.mxu0 0
        %743 = vmatpush1.bf16.msra.mxu0 0
        %744 = vmatprep.subr.bf16.mxu0 %v481
        %745 = vmatpush1.bf16.msra.mxu0 %v480
        %746 = vmatprep.subr.bf16.mxu0 0
        %747 = vmatpush2.bf16.msra.mxu0 0
        %748 = vmatprep.subr.bf16.mxu0 0
        %749 = vmatpush2.bf16.msra.mxu0 0
        %750 = vmatprep.subr.bf16.mxu0 0
        %751 = vmatpush2.bf16.msra.mxu0 0
        %752 = vmatprep.subr.bf16.mxu0 0
        %753 = vmatpush2.bf16.msra.mxu0 0
        %754 = vmatprep.subr.bf16.mxu0 0
        %755 = vmatpush2.bf16.msra.mxu0 0
        %756 = vmatprep.subr.bf16.mxu0 0
        %757 = vmatpush2.bf16.msra.mxu0 0
        %758 = vmatprep.subr.bf16.mxu0 0
        %759 = vmatpush2.bf16.msra.mxu0 0
        %760 = vmatprep.subr.bf16.mxu0 0
        %761 = vmatpush2.bf16.msra.mxu0 0
        %762 = vmatprep.mubr.bf16.mxu0 0
        %763 = vmatmul.mubr.bf16.gmra.mxu0 %v728
        %v764 = vpop.f32.mrf.mxu0
        %v765 = vadd.f32 0.0, %v764
        %v766 = vpop.f32.mrf.mxu0
        %v767 = vadd.f32 0.0, %v766
        %v768 = vpop.f32.mrf.mxu0
        %v769 = vpop.f32.mrf.mxu0
        %770 = vdwg.mxu0
        %v771 = vadd.f32 %v721, %v765
        %v772 = vadd.f32 %v722, %v767
        %s773 = scalar_lea.vmem %s3, 20
        %v774 = vld [vmem:[%s773] sm:$0xf]
        %775 = vrot.lane.b32.xlu0 %v480, 127
        %v776 = vpop.permute.xlu0 %775
        %777 = vrot.lane.b32.xlu0 %v481, 127
        %v778 = vpop.permute.xlu0 %777
        %vm779 = vcmask 1039360
        %v780 = vsel %vm779, %v776, %v778
        %v784 = vunpack.c.l.b16 %v464
        %v785 = vunpack.c.l.b16 %v465
        %v786 = vpack.c.b16 %v785, %v784
        %787 = vrot.lane.b32.xlu0 %v786, 127
        %v788 = vpop.permute.xlu0 %787
        %vm789 = vcmask 1039360
        %v792 = vsel %vm789, %v778, %v788
        %v795 = vsel %vm510, %v774, 0
        %797 = vmatprep.subr.bf16.mxu0 0
        %798 = vmatpush1.bf16.msra.mxu0 0
        %799 = vmatprep.subr.bf16.mxu0 0
        %800 = vmatpush1.bf16.msra.mxu0 0
        %801 = vmatprep.subr.bf16.mxu0 0
        %802 = vmatpush1.bf16.msra.mxu0 0
        %803 = vmatprep.subr.bf16.mxu0 0
        %804 = vmatpush1.bf16.msra.mxu0 0
        %805 = vmatprep.subr.bf16.mxu0 0
        %806 = vmatpush1.bf16.msra.mxu0 0
        %807 = vmatprep.subr.bf16.mxu0 0
        %808 = vmatpush1.bf16.msra.mxu0 0
        %809 = vmatprep.subr.bf16.mxu0 0
        %810 = vmatpush1.bf16.msra.mxu0 0
        %811 = vmatprep.subr.bf16.mxu0 %v792
        %812 = vmatpush1.bf16.msra.mxu0 %v780
        %813 = vmatprep.subr.bf16.mxu0 0
        %814 = vmatpush2.bf16.msra.mxu0 0
        %815 = vmatprep.subr.bf16.mxu0 0
        %816 = vmatpush2.bf16.msra.mxu0 0
        %817 = vmatprep.subr.bf16.mxu0 0
        %818 = vmatpush2.bf16.msra.mxu0 0
        %819 = vmatprep.subr.bf16.mxu0 0
        %820 = vmatpush2.bf16.msra.mxu0 0
        %821 = vmatprep.subr.bf16.mxu0 0
        %822 = vmatpush2.bf16.msra.mxu0 0
        %823 = vmatprep.subr.bf16.mxu0 0
        %824 = vmatpush2.bf16.msra.mxu0 0
        %825 = vmatprep.subr.bf16.mxu0 0
        %826 = vmatpush2.bf16.msra.mxu0 0
        %827 = vmatprep.subr.bf16.mxu0 0
        %828 = vmatpush2.bf16.msra.mxu0 0
        %829 = vmatprep.mubr.bf16.mxu0 0
        %830 = vmatmul.mubr.bf16.gmra.mxu0 %v795
        %v831 = vpop.f32.mrf.mxu0
        %v832 = vadd.f32 0.0, %v831
        %v833 = vpop.f32.mrf.mxu0
        %v834 = vadd.f32 0.0, %v833
        %v835 = vpop.f32.mrf.mxu0
        %v836 = vpop.f32.mrf.mxu0
        %837 = vdwg.mxu0
        %v838 = vadd.f32 %v771, %v832
        %v839 = vadd.f32 %v772, %v834
        %s840 = scalar_lea.vmem %s3, 24
        %v841 = vld [vmem:[%s840] sm:$0xf]
        %842 = vrot.lane.b32.xlu0 %v480, 111
        %v843 = vpop.permute.xlu0 %842
        %844 = vrot.lane.b32.xlu0 %v481, 111
        %v845 = vpop.permute.xlu0 %844
        %vm846 = vcmask 908288
        %v847 = vsel %vm846, %v843, %v845
        %849 = vrot.lane.b32.xlu0 %v786, 111
        %v850 = vpop.permute.xlu0 %849
        %vm851 = vcmask 908288
        %v854 = vsel %vm851, %v845, %v850
        %v857 = vsel %vm510, %v841, 0
        %859 = vmatprep.subr.bf16.mxu0 0
        %860 = vmatpush1.bf16.msra.mxu0 0
        %861 = vmatprep.subr.bf16.mxu0 0
        %862 = vmatpush1.bf16.msra.mxu0 0
        %863 = vmatprep.subr.bf16.mxu0 0
        %864 = vmatpush1.bf16.msra.mxu0 0
        %865 = vmatprep.subr.bf16.mxu0 0
        %866 = vmatpush1.bf16.msra.mxu0 0
        %867 = vmatprep.subr.bf16.mxu0 0
        %868 = vmatpush1.bf16.msra.mxu0 0
        %869 = vmatprep.subr.bf16.mxu0 0
        %870 = vmatpush1.bf16.msra.mxu0 0
        %871 = vmatprep.subr.bf16.mxu0 0
        %872 = vmatpush1.bf16.msra.mxu0 0
        %873 = vmatprep.subr.bf16.mxu0 %v854
        %874 = vmatpush1.bf16.msra.mxu0 %v847
        %875 = vmatprep.subr.bf16.mxu0 0
        %876 = vmatpush2.bf16.msra.mxu0 0
        %877 = vmatprep.subr.bf16.mxu0 0
        %878 = vmatpush2.bf16.msra.mxu0 0
        %879 = vmatprep.subr.bf16.mxu0 0
        %880 = vmatpush2.bf16.msra.mxu0 0
        %881 = vmatprep.subr.bf16.mxu0 0
        %882 = vmatpush2.bf16.msra.mxu0 0
        %883 = vmatprep.subr.bf16.mxu0 0
        %884 = vmatpush2.bf16.msra.mxu0 0
        %885 = vmatprep.subr.bf16.mxu0 0
        %886 = vmatpush2.bf16.msra.mxu0 0
        %887 = vmatprep.subr.bf16.mxu0 0
        %888 = vmatpush2.bf16.msra.mxu0 0
        %889 = vmatprep.subr.bf16.mxu0 0
        %890 = vmatpush2.bf16.msra.mxu0 0
        %891 = vmatprep.mubr.bf16.mxu0 0
        %892 = vmatmul.mubr.bf16.gmra.mxu0 %v857
        %v893 = vpop.f32.mrf.mxu0
        %v894 = vadd.f32 0.0, %v893
        %v895 = vpop.f32.mrf.mxu0
        %v896 = vadd.f32 0.0, %v895
        %v897 = vpop.f32.mrf.mxu0
        %v898 = vpop.f32.mrf.mxu0
        %899 = vdwg.mxu0
        %v900 = vadd.f32 %v838, %v894
        %v901 = vadd.f32 %v839, %v896
        %s902 = scalar_lea.vmem %s3, 28
        %v903 = vld [vmem:[%s902] sm:$0xf]
        %904 = vrot.lane.b32.xlu0 %v480, 110
        %v905 = vpop.permute.xlu0 %904
        %906 = vrot.lane.b32.xlu0 %v481, 110
        %v907 = vpop.permute.xlu0 %906
        %vm908 = vcmask 900096
        %v909 = vsel %vm908, %v905, %v907
        %911 = vrot.lane.b32.xlu0 %v786, 110
        %v912 = vpop.permute.xlu0 %911
        %vm913 = vcmask 900096
        %v916 = vsel %vm913, %v907, %v912
        %v919 = vsel %vm510, %v903, 0
        %921 = vmatprep.subr.bf16.mxu0 0
        %922 = vmatpush1.bf16.msra.mxu0 0
        %923 = vmatprep.subr.bf16.mxu0 0
        %924 = vmatpush1.bf16.msra.mxu0 0
        %925 = vmatprep.subr.bf16.mxu0 0
        %926 = vmatpush1.bf16.msra.mxu0 0
        %927 = vmatprep.subr.bf16.mxu0 0
        %928 = vmatpush1.bf16.msra.mxu0 0
        %929 = vmatprep.subr.bf16.mxu0 0
        %930 = vmatpush1.bf16.msra.mxu0 0
        %931 = vmatprep.subr.bf16.mxu0 0
        %932 = vmatpush1.bf16.msra.mxu0 0
        %933 = vmatprep.subr.bf16.mxu0 0
        %934 = vmatpush1.bf16.msra.mxu0 0
        %935 = vmatprep.subr.bf16.mxu0 %v916
        %936 = vmatpush1.bf16.msra.mxu0 %v909
        %937 = vmatprep.subr.bf16.mxu0 0
        %938 = vmatpush2.bf16.msra.mxu0 0
        %939 = vmatprep.subr.bf16.mxu0 0
        %940 = vmatpush2.bf16.msra.mxu0 0
        %941 = vmatprep.subr.bf16.mxu0 0
        %942 = vmatpush2.bf16.msra.mxu0 0
        %943 = vmatprep.subr.bf16.mxu0 0
        %944 = vmatpush2.bf16.msra.mxu0 0
        %945 = vmatprep.subr.bf16.mxu0 0
        %946 = vmatpush2.bf16.msra.mxu0 0
        %947 = vmatprep.subr.bf16.mxu0 0
        %948 = vmatpush2.bf16.msra.mxu0 0
        %949 = vmatprep.subr.bf16.mxu0 0
        %950 = vmatpush2.bf16.msra.mxu0 0
        %951 = vmatprep.subr.bf16.mxu0 0
        %952 = vmatpush2.bf16.msra.mxu0 0
        %953 = vmatprep.mubr.bf16.mxu0 0
        %954 = vmatmul.mubr.bf16.gmra.mxu0 %v919
        %v955 = vpop.f32.mrf.mxu0
        %v956 = vadd.f32 0.0, %v955
        %v957 = vpop.f32.mrf.mxu0
        %v958 = vadd.f32 0.0, %v957
        %v959 = vpop.f32.mrf.mxu0
        %v960 = vpop.f32.mrf.mxu0
        %961 = vdwg.mxu0
        %v962 = vadd.f32 %v900, %v956
        %v963 = vadd.f32 %v901, %v958
        %s964 = scalar_lea.vmem %s3, 32
        %v965 = vld [vmem:[%s964] sm:$0xf]
        %966 = vrot.lane.b32.xlu0 %v480, 109
        %v967 = vpop.permute.xlu0 %966
        %968 = vrot.lane.b32.xlu0 %v481, 109
        %v969 = vpop.permute.xlu0 %968
        %vm970 = vcmask 891904
        %v971 = vsel %vm970, %v967, %v969
        %973 = vrot.lane.b32.xlu0 %v786, 109
        %v974 = vpop.permute.xlu0 %973
        %vm975 = vcmask 891904
        %v978 = vsel %vm975, %v969, %v974
        %v981 = vsel %vm510, %v965, 0
        %983 = vmatprep.subr.bf16.mxu0 0
        %984 = vmatpush1.bf16.msra.mxu0 0
        %985 = vmatprep.subr.bf16.mxu0 0
        %986 = vmatpush1.bf16.msra.mxu0 0
        %987 = vmatprep.subr.bf16.mxu0 0
        %988 = vmatpush1.bf16.msra.mxu0 0
        %989 = vmatprep.subr.bf16.mxu0 0
        %990 = vmatpush1.bf16.msra.mxu0 0
        %991 = vmatprep.subr.bf16.mxu0 0
        %992 = vmatpush1.bf16.msra.mxu0 0
        %993 = vmatprep.subr.bf16.mxu0 0
        %994 = vmatpush1.bf16.msra.mxu0 0
        %995 = vmatprep.subr.bf16.mxu0 0
        %996 = vmatpush1.bf16.msra.mxu0 0
        %997 = vmatprep.subr.bf16.mxu0 %v978
        %998 = vmatpush1.bf16.msra.mxu0 %v971
        %999 = vmatprep.subr.bf16.mxu0 0
        %1000 = vmatpush2.bf16.msra.mxu0 0
        %1001 = vmatprep.subr.bf16.mxu0 0
        %1002 = vmatpush2.bf16.msra.mxu0 0
        %1003 = vmatprep.subr.bf16.mxu0 0
        %1004 = vmatpush2.bf16.msra.mxu0 0
        %1005 = vmatprep.subr.bf16.mxu0 0
        %1006 = vmatpush2.bf16.msra.mxu0 0
        %1007 = vmatprep.subr.bf16.mxu0 0
        %1008 = vmatpush2.bf16.msra.mxu0 0
        %1009 = vmatprep.subr.bf16.mxu0 0
        %1010 = vmatpush2.bf16.msra.mxu0 0
        %1011 = vmatprep.subr.bf16.mxu0 0
        %1012 = vmatpush2.bf16.msra.mxu0 0
        %1013 = vmatprep.subr.bf16.mxu0 0
        %1014 = vmatpush2.bf16.msra.mxu0 0
        %1015 = vmatprep.mubr.bf16.mxu0 0
        %1016 = vmatmul.mubr.bf16.gmra.mxu0 %v981
        %v1017 = vpop.f32.mrf.mxu0
        %v1018 = vadd.f32 0.0, %v1017
        %v1019 = vpop.f32.mrf.mxu0
        %v1020 = vadd.f32 0.0, %v1019
        %v1021 = vpop.f32.mrf.mxu0
        %v1022 = vpop.f32.mrf.mxu0
        %1023 = vdwg.mxu0
        %v1024 = vadd.f32 %v962, %v1018
        %v1025 = vadd.f32 %v963, %v1020
        %v1026 = vld [vmem:[%s4] sm:$0xff]
        %1028 = vset.pattern.permute.xlu0 0
        %1029 = vperm.xlu0 %1028, %v1026
        %v1030 = vpop.permute.xlu0 %1029
        %v1032 = vadd.f32 %v1024, %v1030
        %v1033 = vadd.f32 %v1025, %v1030
        %v1034 = vmax.f32 %v1032, 0.0
        %v1035 = vmax.f32 %v1033, 0.0
        %v1036 = vld [vmem:[%s451] sm:$0x3]
        %v1038 = vlaneseq
        %v1039 = vshrl.u32 %v1038, 7
        %v1040 = vsub.s32 0, %v1039
        %v1041 = vrot.slane %v1036, %v1040
        %v1042 = vlaneseq
        %v1043 = vshrl.u32 %v1042, 7
        %v1044 = vsub.s32 1, %v1043
        %v1045 = vrot.slane %v1036, %v1044
        %v1048 = vmul.f32 %v1034, %v1041
        %v1049 = vmul.f32 %v1035, %v1045
        %v1050 = vpack.c.bf16 %v1048, %v1048
        %v1051 = vpack.c.bf16 %v1049, %v1049
        %v1054 = vunpack.c.l.b16 %v1050
        %v1055 = vunpack.c.l.b16 %v1051
        %v1056 = vpack.c.b16 %v1055, %v1054
        %1058 = vst [vmem:[%s457] sm:$0xff] %v1056
        %s1059 = smul.u32 2, %s17
        %p1060 = scmp.lt.s32.totalorder %s1059, 5
        %s1061 = scalar_select %p1060, %s1059, 5
        %s1062 = smul.addr %s1061, 4
        %s1063 = scalar_lea.vmem %s6, %s1062
        // Predicated region
        $region159: #{sp_head_forward.44} parent=145 // pred_check
          %p1064 = pneg %p193
        $region160: #{sp_head_forward.44} parent=145 // pred_check_branch
          %1066 = sbr.rel (%p1064) target = $region162
        $region161: #{sp_head_forward.44} parent=145 // pred_region
          %s1067 = smul.u32 2, %s17
        $region162: #{sp_head_forward.44} parent=145 // pred_fallthru
          _
      $region146: #{sp_head_forward.44} parent=5 // pred_fallthru
        _
      %p1068 = scmp.le.s32.totalorder 2, %s12
      // Predicated region
      $region163: #{sp_head_forward.44} parent=5 // pred_check
        %p1069 = pneg %p1068
      $region164: #{sp_head_forward.44} parent=5 // pred_check_branch
        %1071 = sbr.rel (%p1069) target = $region166
      $region165: #{sp_head_forward.44} parent=5 // pred_region
        %s1072 = ssub.s32 %s12, 2
        // Predicated region
        $region167: #{sp_head_forward.44} parent=165 // pred_check
          %p1073 = pneg %p199
        $region168: #{sp_head_forward.44} parent=165 // pred_check_branch
          %1075 = sbr.rel (%p1073) target = $region170
        $region169: #{sp_head_forward.44} parent=165 // pred_region
          %s1076 = smul.u32 2, %s18
          %p1077 = scmp.lt.s32.totalorder %s1076, 5
          %s1078 = scalar_select %p1077, %s1076, 5
          %s1079 = smul.addr %s1078, 4
          %s1080 = scalar_lea.vmem %s6, %s1079
        $region170: #{sp_head_forward.44} parent=165 // pred_fallthru
          _
      $region166: #{sp_head_forward.44} parent=5 // pred_fallthru
        _
    $region6: #{sp_head_forward.44} parent=1 // loop_footer
      %s16 = sadd.s32 1, %s12
    $region7: #{sp_head_forward.44} parent=1 // loop_footer_branch
      %11 = sbr.rel target = $region3
    $region8: #{sp_head_forward.44} parent=1 // loop_exit
      _

</llo_original>
